<compile_context>
chip_gen: v7x
topology: tpu7x:2x2x1
jax: 0.10.0
libtpu: 0.0.40
codegen_flags: <defaults>
</compile_context>

<pallas_src>
import functools

import jax
import jax.numpy as jnp
from jax.experimental import pallas as pl
from jax.experimental.pallas import tpu as pltpu


# ----------------------------------------------------------------------------
# Pallas kernel:  out = relu?(A) @ W + b (+ residual)
#   A, W, residual: bf16   bias / accumulator: f32   output: bf16 (or f32)
# ----------------------------------------------------------------------------
def _fused_matmul_kernel(*refs, pre_relu, has_residual):
    if has_residual:
        a_ref, w_ref, b_ref, r_ref, o_ref = refs
    else:
        a_ref, w_ref, b_ref, o_ref = refs
        r_ref = None

    a = a_ref[...]
    if pre_relu:                       # pre-activation ReLU fused into the matmul
        a = jnp.maximum(a, 0)
    acc = jnp.dot(a, w_ref[...], preferred_element_type=jnp.float32)
    acc = acc + b_ref[...]             # (tm, Np) + (1, Np)
    if has_residual:
        acc = acc + r_ref[...].astype(jnp.float32)
    o_ref[...] = acc.astype(o_ref.dtype)


def fused_matmul(a, w, b, *, pre_relu=False, residual=None,
                 out_dtype=jnp.bfloat16):
    """a:(M,K), w:(K,N), b:(N,), residual:(M,N) ->  relu?(a) @ w + b (+ res)."""
    M, K = a.shape
    _, N = w.shape

    # --- pad K and N to lane multiples (zero rows/cols contribute nothing) ---
    Kp = ((K + 127) // 128) * 128
    if Kp != K:
        a = jnp.pad(a, ((0, 0), (0, Kp - K)))
        w = jnp.pad(w, ((0, Kp - K), (0, 0)))
    Np = ((N + 127) // 128) * 128
    if Np != N:
        w = jnp.pad(w, ((0, 0), (0, Np - N)))
        b = jnp.pad(b, (0, Np - N))
        if residual is not None:
            residual = jnp.pad(residual, ((0, 0), (0, Np - N)))

    # --- M tiling: big lane-dense tiles, >=2 grid steps when M >= 256 --------
    if M >= 1024:
        tm = 512
    elif M >= 256:
        tm = 256
    elif M >= 128:
        tm = 128
    else:
        tm = ((M + 7) // 8) * 8
    Mp = -(-M // tm) * tm
    if Mp != M:
        a = jnp.pad(a, ((0, Mp - M), (0, 0)))
        if residual is not None:
            residual = jnp.pad(residual, ((0, Mp - M), (0, 0)))
    grid = (Mp // tm,)

    a = a.astype(jnp.bfloat16)
    w = w.astype(jnp.bfloat16)
    b = b.reshape(1, Np).astype(jnp.float32)

    in_specs = [
        pl.BlockSpec((tm, Kp), lambda i: (i, 0)),
        pl.BlockSpec((Kp, Np), lambda i: (0, 0)),
        pl.BlockSpec((1, Np), lambda i: (0, 0)),
    ]
    args = [a, w, b]
    if residual is not None:
        in_specs.append(pl.BlockSpec((tm, Np), lambda i: (i, 0)))
        args.append(residual.astype(jnp.bfloat16))

    out = pl.pallas_call(
        functools.partial(_fused_matmul_kernel, pre_relu=pre_relu,
                          has_residual=residual is not None),
        out_shape=jax.ShapeDtypeStruct((Mp, Np), out_dtype),
        grid=grid,
        in_specs=in_specs,
        out_specs=pl.BlockSpec((tm, Np), lambda i: (i, 0)),
        compiler_params=pltpu.CompilerParams(
            dimension_semantics=("parallel",)),
    )(*args)
    return out[:M, :N]


# ----------------------------------------------------------------------------
# Layout plumbing (NHWC everywhere inside the network)
# ----------------------------------------------------------------------------
def im2col_nhwc(x, kh, kw, stride, pad):
    """x:(N,H,W,C) -> (N*Ho*Wo, kh*kw*C) with column order (kh, kw, C)."""
    if pad > 0:
        x = jnp.pad(x, ((0, 0), (pad, pad), (pad, pad), (0, 0)))
    N, H, W, C = x.shape
    Ho = (H - kh) // stride + 1
    Wo = (W - kw) // stride + 1
    cols = []
    for i in range(kh):
        for j in range(kw):
            cols.append(x[:, i:i + stride * Ho:stride,
                          j:j + stride * Wo:stride, :])
    patches = jnp.stack(cols, axis=3)                  # (N, Ho, Wo, kh*kw, C)
    return patches.reshape(N * Ho * Wo, kh * kw * C), Ho, Wo


def conv2d_nhwc(x, w, b, *, stride=1, pad=0, pre_relu=False, residual=None,
                out_dtype=jnp.bfloat16):
    """x:(N,H,W,Cin) NHWC;  w:(Cout,Cin,kh,kw) (PyTorch layout);  b:(Cout,)."""
    N = x.shape[0]
    Cout, Cin, kh, kw = w.shape
    patches, Ho, Wo = im2col_nhwc(x, kh, kw, stride, pad)
    wm = w.transpose(2, 3, 1, 0).reshape(kh * kw * Cin, Cout)
    res = None if residual is None else residual.reshape(N * Ho * Wo, Cout)
    out = fused_matmul(patches, wm, b, pre_relu=pre_relu, residual=res,
                       out_dtype=out_dtype)
    return out.reshape(N, Ho, Wo, Cout)


def avg_pool2_nhwc(x):
    N, H, W, C = x.shape
    y = x.astype(jnp.float32).reshape(N, H // 2, 2, W // 2, 2, C).mean(axis=(2, 4))
    return y.astype(x.dtype)


# ----------------------------------------------------------------------------
# Parameters (spectral-norm applied once as weight preprocessing)
# ----------------------------------------------------------------------------
def _spectral_norm(w, key, n_iter=1, eps=1e-12):
    """Power-iteration spectral normalization: w / sigma_max(w.reshape(out,-1))."""
    wm = w.reshape(w.shape[0], -1).astype(jnp.float32)
    u = jax.random.normal(key, (wm.shape[0],), jnp.float32)
    u = u / (jnp.linalg.norm(u) + eps)
    v = wm.T @ u
    for _ in range(n_iter):
        v = wm.T @ u
        v = v / (jnp.linalg.norm(v) + eps)
        u = wm @ v
        u = u / (jnp.linalg.norm(u) + eps)
    sigma = jnp.dot(u, wm @ v)
    return w / sigma


def init_params(key, ndf=128):
    def conv_w(k, cout, cin, kh, kw, gain):
        fan_in, fan_out = cin * kh * kw, cout * kh * kw
        limit = gain * (6.0 / (fan_in + fan_out)) ** 0.5
        return jax.random.uniform(k, (cout, cin, kh, kw), jnp.float32,
                                  -limit, limit)

    keys = iter(jax.random.split(key, 32))
    sqrt2 = 2.0 ** 0.5
    params = {}
    # block1: DBlockOptimized(3, ndf)
    params["block1"] = {
        "c1_w": _spectral_norm(conv_w(next(keys), ndf, 3, 3, 3, sqrt2), next(keys)),
        "c1_b": jnp.zeros((ndf,), jnp.float32),
        "c2_w": _spectral_norm(conv_w(next(keys), ndf, ndf, 3, 3, sqrt2), next(keys)),
        "c2_b": jnp.zeros((ndf,), jnp.float32),
        "sc_w": _spectral_norm(conv_w(next(keys), ndf, 3, 1, 1, 1.0), next(keys)),
        "sc_b": jnp.zeros((ndf,), jnp.float32),
    }
    # block2: DBlock(ndf, ndf, downsample=True)
    params["block2"] = {
        "c1_w": _spectral_norm(conv_w(next(keys), ndf, ndf, 3, 3, sqrt2), next(keys)),
        "c1_b": jnp.zeros((ndf,), jnp.float32),
        "c2_w": _spectral_norm(conv_w(next(keys), ndf, ndf, 3, 3, sqrt2), next(keys)),
        "c2_b": jnp.zeros((ndf,), jnp.float32),
        "sc_w": _spectral_norm(conv_w(next(keys), ndf, ndf, 1, 1, 1.0), next(keys)),
        "sc_b": jnp.zeros((ndf,), jnp.float32),
    }
    # block3 / block4: DBlock(ndf, ndf, downsample=False) -> identity shortcut
    for name in ("block3", "block4"):
        params[name] = {
            "c1_w": _spectral_norm(conv_w(next(keys), ndf, ndf, 3, 3, sqrt2), next(keys)),
            "c1_b": jnp.zeros((ndf,), jnp.float32),
            "c2_w": _spectral_norm(conv_w(next(keys), ndf, ndf, 3, 3, sqrt2), next(keys)),
            "c2_b": jnp.zeros((ndf,), jnp.float32),
        }
    # head: SNLinear(ndf, 1), xavier_uniform gain 1
    limit = (6.0 / (ndf + 1)) ** 0.5
    lw = jax.random.uniform(next(keys), (1, ndf), jnp.float32, -limit, limit)
    params["l5_w"] = _spectral_norm(lw, next(keys))
    params["l5_b"] = jnp.zeros((1,), jnp.float32)
    return params


# ----------------------------------------------------------------------------
# Forward pass (Pallas kernels for every matmul/conv; NHWC internally)
# ----------------------------------------------------------------------------
def discriminator32_forward(params, x):
    """x: (N, 3, 32, 32) NCHW (PyTorch layout).  Returns (logits (N,1), feats (N,ndf))."""
    h = x.transpose(0, 2, 3, 1).astype(jnp.bfloat16)        # NCHW -> NHWC once

    # ---- block1: DBlockOptimized(3, ndf) ----
    p = params["block1"]
    m = conv2d_nhwc(h, p["c1_w"], p["c1_b"], stride=1, pad=1)                 # c1
    m = conv2d_nhwc(m, p["c2_w"], p["c2_b"], stride=1, pad=1, pre_relu=True)  # ReLU->c2
    m = avg_pool2_nhwc(m)
    # shortcut: avgpool -> 1x1 conv, residual-add fused into the conv kernel
    h = conv2d_nhwc(avg_pool2_nhwc(h), p["sc_w"], p["sc_b"], residual=m)

    # ---- block2: DBlock(ndf, ndf, downsample=True) ----
    p = params["block2"]
    m = conv2d_nhwc(h, p["c1_w"], p["c1_b"], stride=1, pad=1, pre_relu=True)
    m = conv2d_nhwc(m, p["c2_w"], p["c2_b"], stride=1, pad=1, pre_relu=True)
    m = avg_pool2_nhwc(m)
    # 1x1 conv and 2x2 avg-pool commute exactly; pool first (4x fewer rows)
    # and fuse the residual add into the shortcut conv kernel.
    h = conv2d_nhwc(avg_pool2_nhwc(h), p["sc_w"], p["sc_b"], residual=m)

    # ---- block3 / block4: DBlock(ndf, ndf, downsample=False), identity skip ----
    for name in ("block3", "block4"):
        p = params[name]
        m = conv2d_nhwc(h, p["c1_w"], p["c1_b"], stride=1, pad=1, pre_relu=True)
        h = conv2d_nhwc(m, p["c2_w"], p["c2_b"], stride=1, pad=1, pre_relu=True,
                        residual=h)

    # ---- head: ReLU -> global sum pool -> SNLinear(ndf, 1) ----
    feats = jnp.sum(jnp.maximum(h.astype(jnp.float32), 0.0), axis=(1, 2))   # (N, ndf)
    y = fused_matmul(feats, params["l5_w"].T, params["l5_b"],
                     out_dtype=jnp.float32)                                 # (N, 1)
    return y, feats


# ----------------------------------------------------------------------------
# Pure-JAX f32 reference (XLA convs, exact PyTorch op order) for sanity check
# ----------------------------------------------------------------------------
def _conv_ref(x, w, b, pad):
    y = jax.lax.conv_general_dilated(
        x, w, window_strides=(1, 1), padding=[(pad, pad), (pad, pad)],
        dimension_numbers=("NCHW", "OIHW", "NCHW"))
    return y + b.reshape(1, -1, 1, 1)


def _avg_pool_ref(x):
    N, C, H, W = x.shape
    return x.reshape(N, C, H // 2, 2, W // 2, 2).mean(axis=(3, 5))


def reference_forward(params, x):
    relu = lambda t: jnp.maximum(t, 0.0)
    h = x
    p = params["block1"]
    m = _conv_ref(h, p["c1_w"], p["c1_b"], 1)
    m = _avg_pool_ref(_conv_ref(relu(m), p["c2_w"], p["c2_b"], 1))
    h = _conv_ref(_avg_pool_ref(h), p["sc_w"], p["sc_b"], 0) + m
    p = params["block2"]
    m = _conv_ref(relu(h), p["c1_w"], p["c1_b"], 1)
    m = _avg_pool_ref(_conv_ref(relu(m), p["c2_w"], p["c2_b"], 1))
    h = _avg_pool_ref(_conv_ref(h, p["sc_w"], p["sc_b"], 0)) + m
    for name in ("block3", "block4"):
        p = params[name]
        m = _conv_ref(relu(h), p["c1_w"], p["c1_b"], 1)
        h = _conv_ref(relu(m), p["c2_w"], p["c2_b"], 1) + h
    feats = jnp.sum(relu(h), axis=(2, 3))
    y = feats @ params["l5_w"].T + params["l5_b"]
    return y, feats


if __name__ == "__main__":
    key = jax.random.PRNGKey(0)
    k_param, k_x = jax.random.split(key)

    params = init_params(k_param, ndf=128)
    batch = 2
    x = jax.random.normal(k_x, (batch, 3, 32, 32), jnp.float32)

    fwd = jax.jit(discriminator32_forward)
    y, feats = fwd(params, x)
    jax.block_until_ready((y, feats))

    assert y.shape == (batch, 1), y.shape
    assert bool(jnp.all(jnp.isfinite(y)))

    # Sanity-check the bf16 Pallas path against the f32 XLA reference.
    y_ref, feats_ref = reference_forward(params, x)
    ok_feats = jnp.all(jnp.abs(feats - feats_ref) <= 1.0 + 0.1 * jnp.abs(feats_ref))
    terms = jnp.abs(feats) @ jnp.abs(params["l5_w"]).T
    ok_head = jnp.all(
        jnp.abs(y - (feats @ params["l5_w"].T + params["l5_b"]))
        <= 0.05 + 0.01 * terms)
    assert bool(ok_feats), "pooled features mismatch vs reference"
    assert bool(ok_head), "head linear mismatch vs reference"

    print("KERNEL_OK")
</pallas_src>

<mosaic_0001>
module attributes {stable_mosaic.version = 11 : i64} {
  func.func @_fused_matmul_kernel(%arg0: i32, %arg1: memref<512x128xbf16, #tpu.memory_space<vmem>>, %arg2: memref<128x128xbf16, #tpu.memory_space<vmem>>, %arg3: memref<1x128xf32, #tpu.memory_space<vmem>>, %arg4: memref<512x128xbf16, #tpu.memory_space<vmem>>) attributes {dimension_semantics = [#tpu.dimension_semantics<parallel>], iteration_bounds = array<i64: 4>, scalar_prefetch = 0 : i64, scratch_operands = 0 : i64, tpu.core_type = #tpu.core_type<tc>, window_params = [{transform_indices = @transform_0, window_bounds = array<i64: 512, 128>}, {pipeline_mode = #tpu.pipeline_mode<synchronous>, transform_indices = @transform_1, window_bounds = array<i64: 128, 128>}, {pipeline_mode = #tpu.pipeline_mode<synchronous>, transform_indices = @transform_2, window_bounds = array<i64: 1, 128>}, {transform_indices = @transform_3, window_bounds = array<i64: 512, 128>}]} {
    %c0 = arith.constant 0 : index
    %c0_0 = arith.constant 0 : index
    %0 = vector.load %arg1[%c0, %c0_0] : memref<512x128xbf16, #tpu.memory_space<vmem>>, vector<512x128xbf16>
    %c0_1 = arith.constant 0 : index
    %c0_2 = arith.constant 0 : index
    %1 = vector.load %arg2[%c0_1, %c0_2] : memref<128x128xbf16, #tpu.memory_space<vmem>>, vector<128x128xbf16>
    %cst = arith.constant dense<0.000000e+00> : vector<512x128xf32>
    %2 = tpu.matmul %0, %1, %cst {dimension_numbers = #tpu.dot_dimension_numbers<[1], [0], [0], [1], [0, 0, 1, 1], [], []>} : vector<512x128xbf16>, vector<128x128xbf16>, vector<512x128xf32> -> vector<512x128xf32>
    %c0_3 = arith.constant 0 : index
    %c0_4 = arith.constant 0 : index
    %3 = vector.load %arg3[%c0_3, %c0_4] : memref<1x128xf32, #tpu.memory_space<vmem>>, vector<1x128xf32>
    %4 = vector.broadcast %3 : vector<1x128xf32> to vector<512x128xf32>
    %5 = arith.addf %2, %4 : vector<512x128xf32>
    %6 = arith.truncf %5 : vector<512x128xf32> to vector<512x128xbf16>
    %c0_5 = arith.constant 0 : index
    %c0_6 = arith.constant 0 : index
    %7 = vector.load %arg4[%c0_5, %c0_6] : memref<512x128xbf16, #tpu.memory_space<vmem>>, vector<512x128xbf16>
    tpu.vector_store %arg4[%c0_5, %c0_6], %6 {strides = array<i32>} : memref<512x128xbf16, #tpu.memory_space<vmem>>, vector<512x128xbf16>,
    return
  }
  func.func @transform_0(%arg0: i32) -> (i32, i32) {
    %c0_i32 = arith.constant 0 : i32
    %c0_i32_0 = arith.constant 0 : i32
    return %arg0, %c0_i32 : i32, i32
  }
  func.func @transform_1(%arg0: i32) -> (i32, i32) {
    %c0_i32 = arith.constant 0 : i32
    %c0_i32_0 = arith.constant 0 : i32
    %c0_i32_1 = arith.constant 0 : i32
    return %c0_i32, %c0_i32_0 : i32, i32
  }
  func.func @transform_2(%arg0: i32) -> (i32, i32) {
    %c0_i32 = arith.constant 0 : i32
    %c0_i32_0 = arith.constant 0 : i32
    %c0_i32_1 = arith.constant 0 : i32
    return %c0_i32, %c0_i32_0 : i32, i32
  }
  func.func @transform_3(%arg0: i32) -> (i32, i32) {
    %c0_i32 = arith.constant 0 : i32
    %c0_i32_0 = arith.constant 0 : i32
    return %arg0, %c0_i32 : i32, i32
  }
}

module attributes {stable_mosaic.version = 11 : i64} {
  func.func @_fused_matmul_kernel(%arg0: i32, %arg1: memref<512x1152xbf16, #tpu.memory_space<vmem>>, %arg2: memref<1152x128xbf16, #tpu.memory_space<vmem>>, %arg3: memref<1x128xf32, #tpu.memory_space<vmem>>, %arg4: memref<512x128xbf16, #tpu.memory_space<vmem>>) attributes {dimension_semantics = [#tpu.dimension_semantics<parallel>], iteration_bounds = array<i64: 4>, scalar_prefetch = 0 : i64, scratch_operands = 0 : i64, tpu.core_type = #tpu.core_type<tc>, window_params = [{transform_indices = @transform_0, window_bounds = array<i64: 512, 1152>}, {pipeline_mode = #tpu.pipeline_mode<synchronous>, transform_indices = @transform_1, window_bounds = array<i64: 1152, 128>}, {pipeline_mode = #tpu.pipeline_mode<synchronous>, transform_indices = @transform_2, window_bounds = array<i64: 1, 128>}, {transform_indices = @transform_3, window_bounds = array<i64: 512, 128>}]} {
    %c0 = arith.constant 0 : index
    %c0_0 = arith.constant 0 : index
    %0 = vector.load %arg1[%c0, %c0_0] : memref<512x1152xbf16, #tpu.memory_space<vmem>>, vector<512x1152xbf16>
    %cst = arith.constant 0.000000e+00 : bf16
    %1 = vector.broadcast %cst : bf16 to vector<512x1152xbf16>
    %2 = arith.maximumf %0, %1 : vector<512x1152xbf16>
    %c0_1 = arith.constant 0 : index
    %c0_2 = arith.constant 0 : index
    %3 = vector.load %arg2[%c0_1, %c0_2] : memref<1152x128xbf16, #tpu.memory_space<vmem>>, vector<1152x128xbf16>
    %cst_3 = arith.constant dense<0.000000e+00> : vector<512x128xf32>
    %4 = tpu.matmul %2, %3, %cst_3 {dimension_numbers = #tpu.dot_dimension_numbers<[1], [0], [0], [1], [0, 0, 1, 1], [], []>} : vector<512x1152xbf16>, vector<1152x128xbf16>, vector<512x128xf32> -> vector<512x128xf32>
    %c0_4 = arith.constant 0 : index
    %c0_5 = arith.constant 0 : index
    %5 = vector.load %arg3[%c0_4, %c0_5] : memref<1x128xf32, #tpu.memory_space<vmem>>, vector<1x128xf32>
    %6 = vector.broadcast %5 : vector<1x128xf32> to vector<512x128xf32>
    %7 = arith.addf %4, %6 : vector<512x128xf32>
    %8 = arith.truncf %7 : vector<512x128xf32> to vector<512x128xbf16>
    %c0_6 = arith.constant 0 : index
    %c0_7 = arith.constant 0 : index
    %9 = vector.load %arg4[%c0_6, %c0_7] : memref<512x128xbf16, #tpu.memory_space<vmem>>, vector<512x128xbf16>
    tpu.vector_store %arg4[%c0_6, %c0_7], %8 {strides = array<i32>} : memref<512x128xbf16, #tpu.memory_space<vmem>>, vector<512x128xbf16>,
    return
  }
  func.func @transform_0(%arg0: i32) -> (i32, i32) {
    %c0_i32 = arith.constant 0 : i32
    %c0_i32_0 = arith.constant 0 : i32
    return %arg0, %c0_i32 : i32, i32
  }
  func.func @transform_1(%arg0: i32) -> (i32, i32) {
    %c0_i32 = arith.constant 0 : i32
    %c0_i32_0 = arith.constant 0 : i32
    %c0_i32_1 = arith.constant 0 : i32
    return %c0_i32, %c0_i32_0 : i32, i32
  }
  func.func @transform_2(%arg0: i32) -> (i32, i32) {
    %c0_i32 = arith.constant 0 : i32
    %c0_i32_0 = arith.constant 0 : i32
    %c0_i32_1 = arith.constant 0 : i32
    return %c0_i32, %c0_i32_0 : i32, i32
  }
  func.func @transform_3(%arg0: i32) -> (i32, i32) {
    %c0_i32 = arith.constant 0 : i32
    %c0_i32_0 = arith.constant 0 : i32
    return %arg0, %c0_i32 : i32, i32
  }
}

module attributes {stable_mosaic.version = 11 : i64} {
  func.func @_fused_matmul_kernel(%arg0: i32, %arg1: memref<256x128xbf16, #tpu.memory_space<vmem>>, %arg2: memref<128x128xbf16, #tpu.memory_space<vmem>>, %arg3: memref<1x128xf32, #tpu.memory_space<vmem>>, %arg4: memref<256x128xbf16, #tpu.memory_space<vmem>>, %arg5: memref<256x128xbf16, #tpu.memory_space<vmem>>) attributes {dimension_semantics = [#tpu.dimension_semantics<parallel>], iteration_bounds = array<i64: 2>, scalar_prefetch = 0 : i64, scratch_operands = 0 : i64, tpu.core_type = #tpu.core_type<tc>, window_params = [{transform_indices = @transform_0, window_bounds = array<i64: 256, 128>}, {pipeline_mode = #tpu.pipeline_mode<synchronous>, transform_indices = @transform_1, window_bounds = array<i64: 128, 128>}, {pipeline_mode = #tpu.pipeline_mode<synchronous>, transform_indices = @transform_2, window_bounds = array<i64: 1, 128>}, {transform_indices = @transform_3, window_bounds = array<i64: 256, 128>}, {transform_indices = @transform_4, window_bounds = array<i64: 256, 128>}]} {
    %c0 = arith.constant 0 : index
    %c0_0 = arith.constant 0 : index
    %0 = vector.load %arg1[%c0, %c0_0] : memref<256x128xbf16, #tpu.memory_space<vmem>>, vector<256x128xbf16>
    %c0_1 = arith.constant 0 : index
    %c0_2 = arith.constant 0 : index
    %1 = vector.load %arg2[%c0_1, %c0_2] : memref<128x128xbf16, #tpu.memory_space<vmem>>, vector<128x128xbf16>
    %cst = arith.constant dense<0.000000e+00> : vector<256x128xf32>
    %2 = tpu.matmul %0, %1, %cst {dimension_numbers = #tpu.dot_dimension_numbers<[1], [0], [0], [1], [0, 0, 1, 1], [], []>} : vector<256x128xbf16>, vector<128x128xbf16>, vector<256x128xf32> -> vector<256x128xf32>
    %c0_3 = arith.constant 0 : index
    %c0_4 = arith.constant 0 : index
    %3 = vector.load %arg3[%c0_3, %c0_4] : memref<1x128xf32, #tpu.memory_space<vmem>>, vector<1x128xf32>
    %4 = vector.broadcast %3 : vector<1x128xf32> to vector<256x128xf32>
    %5 = arith.addf %2, %4 : vector<256x128xf32>
    %c0_5 = arith.constant 0 : index
    %c0_6 = arith.constant 0 : index
    %6 = vector.load %arg4[%c0_5, %c0_6] : memref<256x128xbf16, #tpu.memory_space<vmem>>, vector<256x128xbf16>
    %7 = arith.extf %6 : vector<256x128xbf16> to vector<256x128xf32>
    %8 = arith.addf %5, %7 : vector<256x128xf32>
    %9 = arith.truncf %8 : vector<256x128xf32> to vector<256x128xbf16>
    %c0_7 = arith.constant 0 : index
    %c0_8 = arith.constant 0 : index
    %10 = vector.load %arg5[%c0_7, %c0_8] : memref<256x128xbf16, #tpu.memory_space<vmem>>, vector<256x128xbf16>
    tpu.vector_store %arg5[%c0_7, %c0_8], %9 {strides = array<i32>} : memref<256x128xbf16, #tpu.memory_space<vmem>>, vector<256x128xbf16>,
    return
  }
  func.func @transform_0(%arg0: i32) -> (i32, i32) {
    %c0_i32 = arith.constant 0 : i32
    %c0_i32_0 = arith.constant 0 : i32
    return %arg0, %c0_i32 : i32, i32
  }
  func.func @transform_1(%arg0: i32) -> (i32, i32) {
    %c0_i32 = arith.constant 0 : i32
    %c0_i32_0 = arith.constant 0 : i32
    %c0_i32_1 = arith.constant 0 : i32
    return %c0_i32, %c0_i32_0 : i32, i32
  }
  func.func @transform_2(%arg0: i32) -> (i32, i32) {
    %c0_i32 = arith.constant 0 : i32
    %c0_i32_0 = arith.constant 0 : i32
    %c0_i32_1 = arith.constant 0 : i32
    return %c0_i32, %c0_i32_0 : i32, i32
  }
  func.func @transform_3(%arg0: i32) -> (i32, i32) {
    %c0_i32 = arith.constant 0 : i32
    %c0_i32_0 = arith.constant 0 : i32
    return %arg0, %c0_i32 : i32, i32
  }
  func.func @transform_4(%arg0: i32) -> (i32, i32) {
    %c0_i32 = arith.constant 0 : i32
    %c0_i32_0 = arith.constant 0 : i32
    return %arg0, %c0_i32 : i32, i32
  }
}

module attributes {stable_mosaic.version = 11 : i64} {
  func.func @_fused_matmul_kernel(%arg0: i32, %arg1: memref<256x1152xbf16, #tpu.memory_space<vmem>>, %arg2: memref<1152x128xbf16, #tpu.memory_space<vmem>>, %arg3: memref<1x128xf32, #tpu.memory_space<vmem>>, %arg4: memref<256x128xbf16, #tpu.memory_space<vmem>>) attributes {dimension_semantics = [#tpu.dimension_semantics<parallel>], iteration_bounds = array<i64: 2>, scalar_prefetch = 0 : i64, scratch_operands = 0 : i64, tpu.core_type = #tpu.core_type<tc>, window_params = [{transform_indices = @transform_0, window_bounds = array<i64: 256, 1152>}, {pipeline_mode = #tpu.pipeline_mode<synchronous>, transform_indices = @transform_1, window_bounds = array<i64: 1152, 128>}, {pipeline_mode = #tpu.pipeline_mode<synchronous>, transform_indices = @transform_2, window_bounds = array<i64: 1, 128>}, {transform_indices = @transform_3, window_bounds = array<i64: 256, 128>}]} {
    %c0 = arith.constant 0 : index
    %c0_0 = arith.constant 0 : index
    %0 = vector.load %arg1[%c0, %c0_0] : memref<256x1152xbf16, #tpu.memory_space<vmem>>, vector<256x1152xbf16>
    %cst = arith.constant 0.000000e+00 : bf16
    %1 = vector.broadcast %cst : bf16 to vector<256x1152xbf16>
    %2 = arith.maximumf %0, %1 : vector<256x1152xbf16>
    %c0_1 = arith.constant 0 : index
    %c0_2 = arith.constant 0 : index
    %3 = vector.load %arg2[%c0_1, %c0_2] : memref<1152x128xbf16, #tpu.memory_space<vmem>>, vector<1152x128xbf16>
    %cst_3 = arith.constant dense<0.000000e+00> : vector<256x128xf32>
    %4 = tpu.matmul %2, %3, %cst_3 {dimension_numbers = #tpu.dot_dimension_numbers<[1], [0], [0], [1], [0, 0, 1, 1], [], []>} : vector<256x1152xbf16>, vector<1152x128xbf16>, vector<256x128xf32> -> vector<256x128xf32>
    %c0_4 = arith.constant 0 : index
    %c0_5 = arith.constant 0 : index
    %5 = vector.load %arg3[%c0_4, %c0_5] : memref<1x128xf32, #tpu.memory_space<vmem>>, vector<1x128xf32>
    %6 = vector.broadcast %5 : vector<1x128xf32> to vector<256x128xf32>
    %7 = arith.addf %4, %6 : vector<256x128xf32>
    %8 = arith.truncf %7 : vector<256x128xf32> to vector<256x128xbf16>
    %c0_6 = arith.constant 0 : index
    %c0_7 = arith.constant 0 : index
    %9 = vector.load %arg4[%c0_6, %c0_7] : memref<256x128xbf16, #tpu.memory_space<vmem>>, vector<256x128xbf16>
    tpu.vector_store %arg4[%c0_6, %c0_7], %8 {strides = array<i32>} : memref<256x128xbf16, #tpu.memory_space<vmem>>, vector<256x128xbf16>,
    return
  }
  func.func @transform_0(%arg0: i32) -> (i32, i32) {
    %c0_i32 = arith.constant 0 : i32
    %c0_i32_0 = arith.constant 0 : i32
    return %arg0, %c0_i32 : i32, i32
  }
  func.func @transform_1(%arg0: i32) -> (i32, i32) {
    %c0_i32 = arith.constant 0 : i32
    %c0_i32_0 = arith.constant 0 : i32
    %c0_i32_1 = arith.constant 0 : i32
    return %c0_i32, %c0_i32_0 : i32, i32
  }
  func.func @transform_2(%arg0: i32) -> (i32, i32) {
    %c0_i32 = arith.constant 0 : i32
    %c0_i32_0 = arith.constant 0 : i32
    %c0_i32_1 = arith.constant 0 : i32
    return %c0_i32, %c0_i32_0 : i32, i32
  }
  func.func @transform_3(%arg0: i32) -> (i32, i32) {
    %c0_i32 = arith.constant 0 : i32
    %c0_i32_0 = arith.constant 0 : i32
    return %arg0, %c0_i32 : i32, i32
  }
}

module attributes {stable_mosaic.version = 11 : i64} {
  func.func @_fused_matmul_kernel(%arg0: i32, %arg1: memref<128x128xbf16, #tpu.memory_space<vmem>>, %arg2: memref<128x128xbf16, #tpu.memory_space<vmem>>, %arg3: memref<1x128xf32, #tpu.memory_space<vmem>>, %arg4: memref<128x128xbf16, #tpu.memory_space<vmem>>, %arg5: memref<128x128xbf16, #tpu.memory_space<vmem>>) attributes {dimension_semantics = [#tpu.dimension_semantics<parallel>], iteration_bounds = array<i64: 1>, scalar_prefetch = 0 : i64, scratch_operands = 0 : i64, tpu.core_type = #tpu.core_type<tc>, window_params = [{transform_indices = @transform_0, window_bounds = array<i64: 128, 128>}, {pipeline_mode = #tpu.pipeline_mode<synchronous>, transform_indices = @transform_1, window_bounds = array<i64: 128, 128>}, {pipeline_mode = #tpu.pipeline_mode<synchronous>, transform_indices = @transform_2, window_bounds = array<i64: 1, 128>}, {transform_indices = @transform_3, window_bounds = array<i64: 128, 128>}, {transform_indices = @transform_4, window_bounds = array<i64: 128, 128>}]} {
    %c0 = arith.constant 0 : index
    %c0_0 = arith.constant 0 : index
    %0 = vector.load %arg1[%c0, %c0_0] : memref<128x128xbf16, #tpu.memory_space<vmem>>, vector<128x128xbf16>
    %c0_1 = arith.constant 0 : index
    %c0_2 = arith.constant 0 : index
    %1 = vector.load %arg2[%c0_1, %c0_2] : memref<128x128xbf16, #tpu.memory_space<vmem>>, vector<128x128xbf16>
    %cst = arith.constant dense<0.000000e+00> : vector<128x128xf32>
    %2 = tpu.matmul %0, %1, %cst {dimension_numbers = #tpu.dot_dimension_numbers<[1], [0], [0], [1], [0, 0, 1, 1], [], []>} : vector<128x128xbf16>, vector<128x128xbf16>, vector<128x128xf32> -> vector<128x128xf32>
    %c0_3 = arith.constant 0 : index
    %c0_4 = arith.constant 0 : index
    %3 = vector.load %arg3[%c0_3, %c0_4] : memref<1x128xf32, #tpu.memory_space<vmem>>, vector<1x128xf32>
    %4 = vector.broadcast %3 : vector<1x128xf32> to vector<128x128xf32>
    %5 = arith.addf %2, %4 : vector<128x128xf32>
    %c0_5 = arith.constant 0 : index
    %c0_6 = arith.constant 0 : index
    %6 = vector.load %arg4[%c0_5, %c0_6] : memref<128x128xbf16, #tpu.memory_space<vmem>>, vector<128x128xbf16>
    %7 = arith.extf %6 : vector<128x128xbf16> to vector<128x128xf32>
    %8 = arith.addf %5, %7 : vector<128x128xf32>
    %9 = arith.truncf %8 : vector<128x128xf32> to vector<128x128xbf16>
    %c0_7 = arith.constant 0 : index
    %c0_8 = arith.constant 0 : index
    %10 = vector.load %arg5[%c0_7, %c0_8] : memref<128x128xbf16, #tpu.memory_space<vmem>>, vector<128x128xbf16>
    tpu.vector_store %arg5[%c0_7, %c0_8], %9 {strides = array<i32>} : memref<128x128xbf16, #tpu.memory_space<vmem>>, vector<128x128xbf16>,
    return
  }
  func.func @transform_0(%arg0: i32) -> (i32, i32) {
    %c0_i32 = arith.constant 0 : i32
    %c0_i32_0 = arith.constant 0 : i32
    return %arg0, %c0_i32 : i32, i32
  }
  func.func @transform_1(%arg0: i32) -> (i32, i32) {
    %c0_i32 = arith.constant 0 : i32
    %c0_i32_0 = arith.constant 0 : i32
    %c0_i32_1 = arith.constant 0 : i32
    return %c0_i32, %c0_i32_0 : i32, i32
  }
  func.func @transform_2(%arg0: i32) -> (i32, i32) {
    %c0_i32 = arith.constant 0 : i32
    %c0_i32_0 = arith.constant 0 : i32
    %c0_i32_1 = arith.constant 0 : i32
    return %c0_i32, %c0_i32_0 : i32, i32
  }
  func.func @transform_3(%arg0: i32) -> (i32, i32) {
    %c0_i32 = arith.constant 0 : i32
    %c0_i32_0 = arith.constant 0 : i32
    return %arg0, %c0_i32 : i32, i32
  }
  func.func @transform_4(%arg0: i32) -> (i32, i32) {
    %c0_i32 = arith.constant 0 : i32
    %c0_i32_0 = arith.constant 0 : i32
    return %arg0, %c0_i32 : i32, i32
  }
}

module attributes {stable_mosaic.version = 11 : i64} {
  func.func @_fused_matmul_kernel(%arg0: i32, %arg1: memref<128x1152xbf16, #tpu.memory_space<vmem>>, %arg2: memref<1152x128xbf16, #tpu.memory_space<vmem>>, %arg3: memref<1x128xf32, #tpu.memory_space<vmem>>, %arg4: memref<128x128xbf16, #tpu.memory_space<vmem>>) attributes {dimension_semantics = [#tpu.dimension_semantics<parallel>], iteration_bounds = array<i64: 1>, scalar_prefetch = 0 : i64, scratch_operands = 0 : i64, tpu.core_type = #tpu.core_type<tc>, window_params = [{transform_indices = @transform_0, window_bounds = array<i64: 128, 1152>}, {pipeline_mode = #tpu.pipeline_mode<synchronous>, transform_indices = @transform_1, window_bounds = array<i64: 1152, 128>}, {pipeline_mode = #tpu.pipeline_mode<synchronous>, transform_indices = @transform_2, window_bounds = array<i64: 1, 128>}, {transform_indices = @transform_3, window_bounds = array<i64: 128, 128>}]} {
    %c0 = arith.constant 0 : index
    %c0_0 = arith.constant 0 : index
    %0 = vector.load %arg1[%c0, %c0_0] : memref<128x1152xbf16, #tpu.memory_space<vmem>>, vector<128x1152xbf16>
    %cst = arith.constant 0.000000e+00 : bf16
    %1 = vector.broadcast %cst : bf16 to vector<128x1152xbf16>
    %2 = arith.maximumf %0, %1 : vector<128x1152xbf16>
    %c0_1 = arith.constant 0 : index
    %c0_2 = arith.constant 0 : index
    %3 = vector.load %arg2[%c0_1, %c0_2] : memref<1152x128xbf16, #tpu.memory_space<vmem>>, vector<1152x128xbf16>
    %cst_3 = arith.constant dense<0.000000e+00> : vector<128x128xf32>
    %4 = tpu.matmul %2, %3, %cst_3 {dimension_numbers = #tpu.dot_dimension_numbers<[1], [0], [0], [1], [0, 0, 1, 1], [], []>} : vector<128x1152xbf16>, vector<1152x128xbf16>, vector<128x128xf32> -> vector<128x128xf32>
    %c0_4 = arith.constant 0 : index
    %c0_5 = arith.constant 0 : index
    %5 = vector.load %arg3[%c0_4, %c0_5] : memref<1x128xf32, #tpu.memory_space<vmem>>, vector<1x128xf32>
    %6 = vector.broadcast %5 : vector<1x128xf32> to vector<128x128xf32>
    %7 = arith.addf %4, %6 : vector<128x128xf32>
    %8 = arith.truncf %7 : vector<128x128xf32> to vector<128x128xbf16>
    %c0_6 = arith.constant 0 : index
    %c0_7 = arith.constant 0 : index
    %9 = vector.load %arg4[%c0_6, %c0_7] : memref<128x128xbf16, #tpu.memory_space<vmem>>, vector<128x128xbf16>
    tpu.vector_store %arg4[%c0_6, %c0_7], %8 {strides = array<i32>} : memref<128x128xbf16, #tpu.memory_space<vmem>>, vector<128x128xbf16>,
    return
  }
  func.func @transform_0(%arg0: i32) -> (i32, i32) {
    %c0_i32 = arith.constant 0 : i32
    %c0_i32_0 = arith.constant 0 : i32
    return %arg0, %c0_i32 : i32, i32
  }
  func.func @transform_1(%arg0: i32) -> (i32, i32) {
    %c0_i32 = arith.constant 0 : i32
    %c0_i32_0 = arith.constant 0 : i32
    %c0_i32_1 = arith.constant 0 : i32
    return %c0_i32, %c0_i32_0 : i32, i32
  }
  func.func @transform_2(%arg0: i32) -> (i32, i32) {
    %c0_i32 = arith.constant 0 : i32
    %c0_i32_0 = arith.constant 0 : i32
    %c0_i32_1 = arith.constant 0 : i32
    return %c0_i32, %c0_i32_0 : i32, i32
  }
  func.func @transform_3(%arg0: i32) -> (i32, i32) {
    %c0_i32 = arith.constant 0 : i32
    %c0_i32_0 = arith.constant 0 : i32
    return %arg0, %c0_i32 : i32, i32
  }
}

module attributes {stable_mosaic.version = 11 : i64} {
  func.func @_fused_matmul_kernel(%arg0: i32, %arg1: memref<128x1152xbf16, #tpu.memory_space<vmem>>, %arg2: memref<1152x128xbf16, #tpu.memory_space<vmem>>, %arg3: memref<1x128xf32, #tpu.memory_space<vmem>>, %arg4: memref<128x128xbf16, #tpu.memory_space<vmem>>, %arg5: memref<128x128xbf16, #tpu.memory_space<vmem>>) attributes {dimension_semantics = [#tpu.dimension_semantics<parallel>], iteration_bounds = array<i64: 1>, scalar_prefetch = 0 : i64, scratch_operands = 0 : i64, tpu.core_type = #tpu.core_type<tc>, window_params = [{transform_indices = @transform_0, window_bounds = array<i64: 128, 1152>}, {pipeline_mode = #tpu.pipeline_mode<synchronous>, transform_indices = @transform_1, window_bounds = array<i64: 1152, 128>}, {pipeline_mode = #tpu.pipeline_mode<synchronous>, transform_indices = @transform_2, window_bounds = array<i64: 1, 128>}, {transform_indices = @transform_3, window_bounds = array<i64: 128, 128>}, {transform_indices = @transform_4, window_bounds = array<i64: 128, 128>}]} {
    %c0 = arith.constant 0 : index
    %c0_0 = arith.constant 0 : index
    %0 = vector.load %arg1[%c0, %c0_0] : memref<128x1152xbf16, #tpu.memory_space<vmem>>, vector<128x1152xbf16>
    %cst = arith.constant 0.000000e+00 : bf16
    %1 = vector.broadcast %cst : bf16 to vector<128x1152xbf16>
    %2 = arith.maximumf %0, %1 : vector<128x1152xbf16>
    %c0_1 = arith.constant 0 : index
    %c0_2 = arith.constant 0 : index
    %3 = vector.load %arg2[%c0_1, %c0_2] : memref<1152x128xbf16, #tpu.memory_space<vmem>>, vector<1152x128xbf16>
    %cst_3 = arith.constant dense<0.000000e+00> : vector<128x128xf32>
    %4 = tpu.matmul %2, %3, %cst_3 {dimension_numbers = #tpu.dot_dimension_numbers<[1], [0], [0], [1], [0, 0, 1, 1], [], []>} : vector<128x1152xbf16>, vector<1152x128xbf16>, vector<128x128xf32> -> vector<128x128xf32>
    %c0_4 = arith.constant 0 : index
    %c0_5 = arith.constant 0 : index
    %5 = vector.load %arg3[%c0_4, %c0_5] : memref<1x128xf32, #tpu.memory_space<vmem>>, vector<1x128xf32>
    %6 = vector.broadcast %5 : vector<1x128xf32> to vector<128x128xf32>
    %7 = arith.addf %4, %6 : vector<128x128xf32>
    %c0_6 = arith.constant 0 : index
    %c0_7 = arith.constant 0 : index
    %8 = vector.load %arg4[%c0_6, %c0_7] : memref<128x128xbf16, #tpu.memory_space<vmem>>, vector<128x128xbf16>
    %9 = arith.extf %8 : vector<128x128xbf16> to vector<128x128xf32>
    %10 = arith.addf %7, %9 : vector<128x128xf32>
    %11 = arith.truncf %10 : vector<128x128xf32> to vector<128x128xbf16>
    %c0_8 = arith.constant 0 : index
    %c0_9 = arith.constant 0 : index
    %12 = vector.load %arg5[%c0_8, %c0_9] : memref<128x128xbf16, #tpu.memory_space<vmem>>, vector<128x128xbf16>
    tpu.vector_store %arg5[%c0_8, %c0_9], %11 {strides = array<i32>} : memref<128x128xbf16, #tpu.memory_space<vmem>>, vector<128x128xbf16>,
    return
  }
  func.func @transform_0(%arg0: i32) -> (i32, i32) {
    %c0_i32 = arith.constant 0 : i32
    %c0_i32_0 = arith.constant 0 : i32
    return %arg0, %c0_i32 : i32, i32
  }
  func.func @transform_1(%arg0: i32) -> (i32, i32) {
    %c0_i32 = arith.constant 0 : i32
    %c0_i32_0 = arith.constant 0 : i32
    %c0_i32_1 = arith.constant 0 : i32
    return %c0_i32, %c0_i32_0 : i32, i32
  }
  func.func @transform_2(%arg0: i32) -> (i32, i32) {
    %c0_i32 = arith.constant 0 : i32
    %c0_i32_0 = arith.constant 0 : i32
    %c0_i32_1 = arith.constant 0 : i32
    return %c0_i32, %c0_i32_0 : i32, i32
  }
  func.func @transform_3(%arg0: i32) -> (i32, i32) {
    %c0_i32 = arith.constant 0 : i32
    %c0_i32_0 = arith.constant 0 : i32
    return %arg0, %c0_i32 : i32, i32
  }
  func.func @transform_4(%arg0: i32) -> (i32, i32) {
    %c0_i32 = arith.constant 0 : i32
    %c0_i32_0 = arith.constant 0 : i32
    return %arg0, %c0_i32 : i32, i32
  }
}

module attributes {stable_mosaic.version = 11 : i64} {
  func.func @_fused_matmul_kernel(%arg0: i32, %arg1: memref<8x128xbf16, #tpu.memory_space<vmem>>, %arg2: memref<128x128xbf16, #tpu.memory_space<vmem>>, %arg3: memref<1x128xf32, #tpu.memory_space<vmem>>, %arg4: memref<8x128xf32, #tpu.memory_space<vmem>>) attributes {dimension_semantics = [#tpu.dimension_semantics<parallel>], iteration_bounds = array<i64: 1>, scalar_prefetch = 0 : i64, scratch_operands = 0 : i64, tpu.core_type = #tpu.core_type<tc>, window_params = [{transform_indices = @transform_0, window_bounds = array<i64: 8, 128>}, {pipeline_mode = #tpu.pipeline_mode<synchronous>, transform_indices = @transform_1, window_bounds = array<i64: 128, 128>}, {pipeline_mode = #tpu.pipeline_mode<synchronous>, transform_indices = @transform_2, window_bounds = array<i64: 1, 128>}, {transform_indices = @transform_3, window_bounds = array<i64: 8, 128>}]} {
    %c0 = arith.constant 0 : index
    %c0_0 = arith.constant 0 : index
    %0 = vector.load %arg1[%c0, %c0_0] : memref<8x128xbf16, #tpu.memory_space<vmem>>, vector<8x128xbf16>
    %c0_1 = arith.constant 0 : index
    %c0_2 = arith.constant 0 : index
    %1 = vector.load %arg2[%c0_1, %c0_2] : memref<128x128xbf16, #tpu.memory_space<vmem>>, vector<128x128xbf16>
    %cst = arith.constant dense<0.000000e+00> : vector<8x128xf32>
    %2 = tpu.matmul %0, %1, %cst {dimension_numbers = #tpu.dot_dimension_numbers<[1], [0], [0], [1], [0, 0, 1, 1], [], []>} : vector<8x128xbf16>, vector<128x128xbf16>, vector<8x128xf32> -> vector<8x128xf32>
    %c0_3 = arith.constant 0 : index
    %c0_4 = arith.constant 0 : index
    %3 = vector.load %arg3[%c0_3, %c0_4] : memref<1x128xf32, #tpu.memory_space<vmem>>, vector<1x128xf32>
    %4 = vector.broadcast %3 : vector<1x128xf32> to vector<8x128xf32>
    %5 = arith.addf %2, %4 : vector<8x128xf32>
    %c0_5 = arith.constant 0 : index
    %c0_6 = arith.constant 0 : index
    %6 = vector.load %arg4[%c0_5, %c0_6] : memref<8x128xf32, #tpu.memory_space<vmem>>, vector<8x128xf32>
    tpu.vector_store %arg4[%c0_5, %c0_6], %5 {strides = array<i32>} : memref<8x128xf32, #tpu.memory_space<vmem>>, vector<8x128xf32>,
    return
  }
  func.func @transform_0(%arg0: i32) -> (i32, i32) {
    %c0_i32 = arith.constant 0 : i32
    %c0_i32_0 = arith.constant 0 : i32
    return %arg0, %c0_i32 : i32, i32
  }
  func.func @transform_1(%arg0: i32) -> (i32, i32) {
    %c0_i32 = arith.constant 0 : i32
    %c0_i32_0 = arith.constant 0 : i32
    %c0_i32_1 = arith.constant 0 : i32
    return %c0_i32, %c0_i32_0 : i32, i32
  }
  func.func @transform_2(%arg0: i32) -> (i32, i32) {
    %c0_i32 = arith.constant 0 : i32
    %c0_i32_0 = arith.constant 0 : i32
    %c0_i32_1 = arith.constant 0 : i32
    return %c0_i32, %c0_i32_0 : i32, i32
  }
  func.func @transform_3(%arg0: i32) -> (i32, i32) {
    %c0_i32 = arith.constant 0 : i32
    %c0_i32_0 = arith.constant 0 : i32
    return %arg0, %c0_i32 : i32, i32
  }
}

</mosaic_0001>

<llo_original>
// kernel: discriminator32_forward.11
$region0: #{discriminator32_forward.11}
  #allocation0 [shape = 'u32[]', space=smem, size = 0x4, offset = 0x4, fixed_abs, tag = 'smem constant byte address 0x4 - core index']
  #allocation1 [shape = 'u32[144,128]{1,0:T(1,128)}', space=vmem, size = 0x12000, scoped, tag = 'internal scratch']
  %s0 = inlined_call_operand.vmem [shape: bf16[2048,128], index: 0, kind: input, shape index: {}]
  %s1 = inlined_call_operand.vmem [shape: bf16[128,128], index: 1, kind: input, shape index: {}]
  %s2 = inlined_call_operand.vmem [shape: f32[1,128], index: 2, kind: input, shape index: {}]
  %s3 = inlined_call_operand.vmem [shape: bf16[2048,128], index: 3, kind: output, shape index: {}]
  %s4 = sld [smem:[#allocation0]]
  $region45: #{discriminator32_forward.11} parent=0
    _
  %s6 = ssub.s32 1, %s4
  %s7 = scalar_select 0, %s6, %s4
  loop: start=0, step=1, limit=6
  $region2: #{discriminator32_forward.11} parent=0 // loop_pre_header
    _
  $region3: #{discriminator32_forward.11} parent=0 // loop_header
    %s9 = sphi 0, %s13
    %p10 = scmp.ge.s32.totalorder %s9, 6
    %s19 = sphi 0, %s21
    %s22 = sphi 0, %s19
    %s23 = sphi 0, %s22
    %s39 = sphi 0, %s23
    %s43 = sphi 0, %s43
    %s45 = sphi 0, %s43
    %s46 = sphi 0, %s45
    %s60 = sphi 0, %s46
    %s64 = sphi 0, %s64
    %s66 = sphi 0, %s64
    %s67 = sphi 0, %s66
    %s81 = sphi 0, %s67
    %s87 = sphi 0, %s89
    %s90 = sphi 0, %s87
    %s91 = sphi 0, %s90
    %s107 = sphi 0, %s91
  $region4: #{discriminator32_forward.11} parent=0 // loop_header_branch
    %12 = sbr.rel (%p10) target = $region8
  $region5: #{discriminator32_forward.11} parent=0 // loop_body
    %s14 = ssub.s32 %s9, 1
    %s15 = ssub.s32 %s9, 2
    %s16 = sadd.s32 %s9, 1
    %s17 = ssub.s32 %s9, %s16
    %p18 = scmp.eq.s32.totalorder %s17, 0
    %s20 = sadd.s32 %s19, 1
    %s21 = scalar_select %p18, %s19, %s20
    %p24 = pneg %p18
    %p25 = scmp.eq.s32.totalorder %s9, 3
    %p26 = por %p24, %p25
    %p27 = scmp.ne.s32.totalorder %s19, %s22
    %p28 = scmp.eq.s32.totalorder %s9, 0
    %p29 = por %p27, %p28
    %p30 = scmp.ne.s32.totalorder %s19, %s22
    %p31 = scmp.eq.s32.totalorder %s14, 3
    %p32 = por %p30, %p31
    %p33 = scmp.ne.s32.totalorder %s22, %s23
    %p34 = scmp.eq.s32.totalorder %s14, 0
    %p35 = por %p33, %p34
    %p36 = scmp.ne.s32.totalorder %s22, %s23
    %p37 = scmp.eq.s32.totalorder %s15, 3
    %p38 = por %p36, %p37
    %p40 = scmp.ne.s32.totalorder %s23, %s39
    %p41 = scmp.eq.s32.totalorder %s15, 0
    %p42 = por %p40, %p41
    %s44 = sadd.s32 %s43, 1
    %p47 = scmp.eq.s32.totalorder %s9, 3
    %p48 = scmp.ne.s32.totalorder %s43, %s45
    %p49 = scmp.eq.s32.totalorder %s9, 0
    %p50 = por %p48, %p49
    %p51 = scmp.ne.s32.totalorder %s43, %s45
    %p52 = scmp.eq.s32.totalorder %s14, 3
    %p53 = por %p51, %p52
    %p54 = scmp.ne.s32.totalorder %s45, %s46
    %p55 = scmp.eq.s32.totalorder %s14, 0
    %p56 = por %p54, %p55
    %p57 = scmp.ne.s32.totalorder %s45, %s46
    %p58 = scmp.eq.s32.totalorder %s15, 3
    %p59 = por %p57, %p58
    %p61 = scmp.ne.s32.totalorder %s46, %s60
    %p62 = scmp.eq.s32.totalorder %s15, 0
    %p63 = por %p61, %p62
    %s65 = sadd.s32 %s64, 1
    %p68 = scmp.eq.s32.totalorder %s9, 3
    %p69 = scmp.ne.s32.totalorder %s64, %s66
    %p70 = scmp.eq.s32.totalorder %s9, 0
    %p71 = por %p69, %p70
    %p72 = scmp.ne.s32.totalorder %s64, %s66
    %p73 = scmp.eq.s32.totalorder %s14, 3
    %p74 = por %p72, %p73
    %p75 = scmp.ne.s32.totalorder %s66, %s67
    %p76 = scmp.eq.s32.totalorder %s14, 0
    %p77 = por %p75, %p76
    %p78 = scmp.ne.s32.totalorder %s66, %s67
    %p79 = scmp.eq.s32.totalorder %s15, 3
    %p80 = por %p78, %p79
    %p82 = scmp.ne.s32.totalorder %s67, %s81
    %p83 = scmp.eq.s32.totalorder %s15, 0
    %p84 = por %p82, %p83
    %s85 = ssub.s32 %s9, %s16
    %p86 = scmp.eq.s32.totalorder %s85, 0
    %s88 = sadd.s32 %s87, 1
    %s89 = scalar_select %p86, %s87, %s88
    %p92 = pneg %p86
    %p93 = scmp.eq.s32.totalorder %s9, 3
    %p94 = por %p92, %p93
    %p95 = scmp.ne.s32.totalorder %s87, %s90
    %p96 = scmp.eq.s32.totalorder %s9, 0
    %p97 = por %p95, %p96
    %p98 = scmp.ne.s32.totalorder %s87, %s90
    %p99 = scmp.eq.s32.totalorder %s14, 3
    %p100 = por %p98, %p99
    %p101 = scmp.ne.s32.totalorder %s90, %s91
    %p102 = scmp.eq.s32.totalorder %s14, 0
    %p103 = por %p101, %p102
    %p104 = scmp.ne.s32.totalorder %s90, %s91
    %p105 = scmp.eq.s32.totalorder %s15, 3
    %p106 = por %p104, %p105
    %p108 = scmp.ne.s32.totalorder %s91, %s107
    %p109 = scmp.eq.s32.totalorder %s15, 0
    %p110 = por %p108, %p109
    %p111 = scmp.le.s32.totalorder 1, %s9
    %p112 = scmp.lt.s32.totalorder %s9, 5
    %p113 = pnand %p111, %p112
    %p114 = pneg %p113
    // Predicated region
    $region9: #{discriminator32_forward.11} parent=5 // pred_check
      _
    $region10: #{discriminator32_forward.11} parent=5 // pred_check_branch
      %116 = sbr.rel (%p113) target = $region12
    $region11: #{discriminator32_forward.11} parent=5 // pred_region
      %s117 = ssub.s32 %s9, 1
      // Predicated region
      $region13: #{discriminator32_forward.11} parent=11 // pred_check
        %p118 = pneg %p56
      $region14: #{discriminator32_forward.11} parent=11 // pred_check_branch
        %120 = sbr.rel (%p118) target = $region16
      $region15: #{discriminator32_forward.11} parent=11 // pred_region
        _
      $region16: #{discriminator32_forward.11} parent=11 // pred_fallthru
        _
      // Predicated region
      $region17: #{discriminator32_forward.11} parent=11 // pred_check
        %p121 = pneg %p77
      $region18: #{discriminator32_forward.11} parent=11 // pred_check_branch
        %123 = sbr.rel (%p121) target = $region20
      $region19: #{discriminator32_forward.11} parent=11 // pred_region
        _
      $region20: #{discriminator32_forward.11} parent=11 // pred_fallthru
        _
    $region12: #{discriminator32_forward.11} parent=5 // pred_fallthru
      _
    %p124 = scmp.lt.s32.totalorder %s9, 4
    // Predicated region
    $region21: #{discriminator32_forward.11} parent=5 // pred_check
      %p125 = pneg %p124
    $region22: #{discriminator32_forward.11} parent=5 // pred_check_branch
      %127 = sbr.rel (%p125) target = $region24
    $region23: #{discriminator32_forward.11} parent=5 // pred_region
      // Predicated region
      $region25: #{discriminator32_forward.11} parent=23 // pred_check
        %p128 = pneg %p29
      $region26: #{discriminator32_forward.11} parent=23 // pred_check_branch
        %130 = sbr.rel (%p128) target = $region28
      $region27: #{discriminator32_forward.11} parent=23 // pred_region
        %s131 = smul.u32 64, %s9
        %p132 = scmp.lt.s32.totalorder %s131, 255
        %s133 = scalar_select %p132, %s131, 255
        %s134 = smul.addr %s133, 4
        %s135 = scalar_lea.vmem %s0, %s134
        %s136 = smul.u32 64, %s9
      $region28: #{discriminator32_forward.11} parent=23 // pred_fallthru
        _
    $region24: #{discriminator32_forward.11} parent=5 // pred_fallthru
      _
    %p137 = scmp.le.s32.totalorder 1, %s9
    %p138 = scmp.lt.s32.totalorder %s9, 5
    %p139 = pnand %p137, %p138
    %p140 = pneg %p139
    // Predicated region
    $region29: #{discriminator32_forward.11} parent=5 // pred_check
      _
    $region30: #{discriminator32_forward.11} parent=5 // pred_check_branch
      %142 = sbr.rel (%p139) target = $region32
    $region31: #{discriminator32_forward.11} parent=5 // pred_region
      %s143 = ssub.s32 %s9, 1
      %s144 = smul.u32 64, %s14
      %p145 = scmp.lt.s32.totalorder %s144, 255
      %s146 = scalar_select %p145, %s144, 255
      %s147 = smul.addr %s146, 4
      %s148 = scalar_lea.vmem %s0, %s147
      %p149 = pneg %p35
      %p150 = pneg %p32
      %p151 = pneg %p56
      %p152 = pneg %p53
      %p153 = pneg %p77
      %p154 = pneg %p74
      %p155 = pneg %p103
      %p156 = pneg %p100
      %s157 = smul.u32 64, %s14
      %p158 = scmp.lt.s32.totalorder %s157, 255
      %s159 = scalar_select %p158, %s157, 255
      %s160 = smul.addr %s159, 4
      %s161 = scalar_lea.vmem %s3, %s160
      %s162 = smul.u32 64, %s14
      %p163 = scmp.lt.s32.totalorder %s162, 255
      %s164 = scalar_select %p163, %s162, 255
      %s165 = smul.addr %s164, 4
      %s166 = scalar_lea.vmem %s0, %s165
      %s167 = smul.u32 64, %s14
      %s168 = smul.u32 64, %s14
      %p169 = scmp.lt.s32.totalorder %s168, 255
      %s170 = scalar_select %p169, %s168, 255
      %s171 = smul.addr %s170, 4
      %s172 = scalar_lea.vmem %s3, %s171
      %s173 = smul.u32 64, %s14
      %v175 = vld [vmem:[%s166] sm:$0xf]
      %v176 = vld [vmem:[%s166 + $0x4] sm:$0xf]
      %v177 = vld [vmem:[%s166 + $0x8] sm:$0xf]
      %v178 = vld [vmem:[%s166 + $0xc] sm:$0xf]
      %v179 = vld [vmem:[%s166 + $0x10] sm:$0xf]
      %v180 = vld [vmem:[%s166 + $0x14] sm:$0xf]
      %v181 = vld [vmem:[%s166 + $0x18] sm:$0xf]
      %v182 = vld [vmem:[%s166 + $0x1c] sm:$0xf]
      %v183 = vld [vmem:[%s166 + $0x20] sm:$0xf]
      %v184 = vld [vmem:[%s166 + $0x24] sm:$0xf]
      %v185 = vld [vmem:[%s166 + $0x28] sm:$0xf]
      %v186 = vld [vmem:[%s166 + $0x2c] sm:$0xf]
      %v187 = vld [vmem:[%s166 + $0x30] sm:$0xf]
      %v188 = vld [vmem:[%s166 + $0x34] sm:$0xf]
      %v189 = vld [vmem:[%s166 + $0x38] sm:$0xf]
      %v190 = vld [vmem:[%s166 + $0x3c] sm:$0xf]
      %v191 = vld [vmem:[%s166 + $0x40] sm:$0xf]
      %v192 = vld [vmem:[%s166 + $0x44] sm:$0xf]
      %v193 = vld [vmem:[%s166 + $0x48] sm:$0xf]
      %v194 = vld [vmem:[%s166 + $0x4c] sm:$0xf]
      %v195 = vld [vmem:[%s166 + $0x50] sm:$0xf]
      %v196 = vld [vmem:[%s166 + $0x54] sm:$0xf]
      %v197 = vld [vmem:[%s166 + $0x58] sm:$0xf]
      %v198 = vld [vmem:[%s166 + $0x5c] sm:$0xf]
      %v199 = vld [vmem:[%s166 + $0x60] sm:$0xf]
      %v200 = vld [vmem:[%s166 + $0x64] sm:$0xf]
      %v201 = vld [vmem:[%s166 + $0x68] sm:$0xf]
      %v202 = vld [vmem:[%s166 + $0x6c] sm:$0xf]
      %v203 = vld [vmem:[%s166 + $0x70] sm:$0xf]
      %v204 = vld [vmem:[%s166 + $0x74] sm:$0xf]
      %v205 = vld [vmem:[%s166 + $0x78] sm:$0xf]
      %v206 = vld [vmem:[%s166 + $0x7c] sm:$0xf]
      %v207 = vld [vmem:[%s166 + $0x80] sm:$0xf]
      %v208 = vld [vmem:[%s166 + $0x84] sm:$0xf]
      %v209 = vld [vmem:[%s166 + $0x88] sm:$0xf]
      %v210 = vld [vmem:[%s166 + $0x8c] sm:$0xf]
      %v211 = vld [vmem:[%s166 + $0x90] sm:$0xf]
      %v212 = vld [vmem:[%s166 + $0x94] sm:$0xf]
      %v213 = vld [vmem:[%s166 + $0x98] sm:$0xf]
      %v214 = vld [vmem:[%s166 + $0x9c] sm:$0xf]
      %v215 = vld [vmem:[%s166 + $0xa0] sm:$0xf]
      %v216 = vld [vmem:[%s166 + $0xa4] sm:$0xf]
      %v217 = vld [vmem:[%s166 + $0xa8] sm:$0xf]
      %v218 = vld [vmem:[%s166 + $0xac] sm:$0xf]
      %v219 = vld [vmem:[%s166 + $0xb0] sm:$0xf]
      %v220 = vld [vmem:[%s166 + $0xb4] sm:$0xf]
      %v221 = vld [vmem:[%s166 + $0xb8] sm:$0xf]
      %v222 = vld [vmem:[%s166 + $0xbc] sm:$0xf]
      %v223 = vld [vmem:[%s166 + $0xc0] sm:$0xf]
      %v224 = vld [vmem:[%s166 + $0xc4] sm:$0xf]
      %v225 = vld [vmem:[%s166 + $0xc8] sm:$0xf]
      %v226 = vld [vmem:[%s166 + $0xcc] sm:$0xf]
      %v227 = vld [vmem:[%s166 + $0xd0] sm:$0xf]
      %v228 = vld [vmem:[%s166 + $0xd4] sm:$0xf]
      %v229 = vld [vmem:[%s166 + $0xd8] sm:$0xf]
      %v230 = vld [vmem:[%s166 + $0xdc] sm:$0xf]
      %v231 = vld [vmem:[%s166 + $0xe0] sm:$0xf]
      %v232 = vld [vmem:[%s166 + $0xe4] sm:$0xf]
      %v233 = vld [vmem:[%s166 + $0xe8] sm:$0xf]
      %v234 = vld [vmem:[%s166 + $0xec] sm:$0xf]
      %v235 = vld [vmem:[%s166 + $0xf0] sm:$0xf]
      %v236 = vld [vmem:[%s166 + $0xf4] sm:$0xf]
      %v237 = vld [vmem:[%s166 + $0xf8] sm:$0xf]
      %v238 = vld [vmem:[%s166 + $0xfc] sm:$0xf]
      %v239 = vld [vmem:[%s1] sm:$0xf]
      %v240 = vld [vmem:[%s1 + $0x4] sm:$0xf]
      %v241 = vld [vmem:[%s1 + $0x8] sm:$0xf]
      %v242 = vld [vmem:[%s1 + $0xc] sm:$0xf]
      %v243 = vld [vmem:[%s1 + $0x10] sm:$0xf]
      %v244 = vld [vmem:[%s1 + $0x14] sm:$0xf]
      %v245 = vld [vmem:[%s1 + $0x18] sm:$0xf]
      %v246 = vld [vmem:[%s1 + $0x1c] sm:$0xf]
      %v247 = vld [vmem:[%s1 + $0x20] sm:$0xf]
      %v248 = vld [vmem:[%s1 + $0x24] sm:$0xf]
      %v249 = vld [vmem:[%s1 + $0x28] sm:$0xf]
      %v250 = vld [vmem:[%s1 + $0x2c] sm:$0xf]
      %v251 = vld [vmem:[%s1 + $0x30] sm:$0xf]
      %v252 = vld [vmem:[%s1 + $0x34] sm:$0xf]
      %v253 = vld [vmem:[%s1 + $0x38] sm:$0xf]
      %v254 = vld [vmem:[%s1 + $0x3c] sm:$0xf]
      %v255 = vld [vmem:[%s2] sm:$0x1]
      %v257 = vlaneseq
      %v258 = vshrl.u32 %v257, 7
      %v259 = vsub.s32 0, %v258
      %v260 = vrot.slane %v255, %v259
      %v326 = vunpack.c.l.b16 %v175
      %v327 = vunpack.c.l.b16 %v176
      %v328 = vunpack.c.l.b16 %v177
      %v329 = vunpack.c.l.b16 %v178
      %v330 = vunpack.c.l.b16 %v179
      %v331 = vunpack.c.l.b16 %v180
      %v332 = vunpack.c.l.b16 %v181
      %v333 = vunpack.c.l.b16 %v182
      %v334 = vunpack.c.l.b16 %v183
      %v335 = vunpack.c.l.b16 %v184
      %v336 = vunpack.c.l.b16 %v185
      %v337 = vunpack.c.l.b16 %v186
      %v338 = vunpack.c.l.b16 %v187
      %v339 = vunpack.c.l.b16 %v188
      %v340 = vunpack.c.l.b16 %v189
      %v341 = vunpack.c.l.b16 %v190
      %v342 = vunpack.c.l.b16 %v191
      %v343 = vunpack.c.l.b16 %v192
      %v344 = vunpack.c.l.b16 %v193
      %v345 = vunpack.c.l.b16 %v194
      %v346 = vunpack.c.l.b16 %v195
      %v347 = vunpack.c.l.b16 %v196
      %v348 = vunpack.c.l.b16 %v197
      %v349 = vunpack.c.l.b16 %v198
      %v350 = vunpack.c.l.b16 %v199
      %v351 = vunpack.c.l.b16 %v200
      %v352 = vunpack.c.l.b16 %v201
      %v353 = vunpack.c.l.b16 %v202
      %v354 = vunpack.c.l.b16 %v203
      %v355 = vunpack.c.l.b16 %v204
      %v356 = vunpack.c.l.b16 %v205
      %v357 = vunpack.c.l.b16 %v206
      %v358 = vunpack.c.l.b16 %v207
      %v359 = vunpack.c.l.b16 %v208
      %v360 = vunpack.c.l.b16 %v209
      %v361 = vunpack.c.l.b16 %v210
      %v362 = vunpack.c.l.b16 %v211
      %v363 = vunpack.c.l.b16 %v212
      %v364 = vunpack.c.l.b16 %v213
      %v365 = vunpack.c.l.b16 %v214
      %v366 = vunpack.c.l.b16 %v215
      %v367 = vunpack.c.l.b16 %v216
      %v368 = vunpack.c.l.b16 %v217
      %v369 = vunpack.c.l.b16 %v218
      %v370 = vunpack.c.l.b16 %v219
      %v371 = vunpack.c.l.b16 %v220
      %v372 = vunpack.c.l.b16 %v221
      %v373 = vunpack.c.l.b16 %v222
      %v374 = vunpack.c.l.b16 %v223
      %v375 = vunpack.c.l.b16 %v224
      %v376 = vunpack.c.l.b16 %v225
      %v377 = vunpack.c.l.b16 %v226
      %v378 = vunpack.c.l.b16 %v227
      %v379 = vunpack.c.l.b16 %v228
      %v380 = vunpack.c.l.b16 %v229
      %v381 = vunpack.c.l.b16 %v230
      %v382 = vunpack.c.l.b16 %v231
      %v383 = vunpack.c.l.b16 %v232
      %v384 = vunpack.c.l.b16 %v233
      %v385 = vunpack.c.l.b16 %v234
      %v386 = vunpack.c.l.b16 %v235
      %v387 = vunpack.c.l.b16 %v236
      %v388 = vunpack.c.l.b16 %v237
      %v389 = vunpack.c.l.b16 %v238
      %v390 = vpack.c.b16 %v327, %v326
      %v391 = vpack.c.b16 %v329, %v328
      %v392 = vpack.c.b16 %v331, %v330
      %v393 = vpack.c.b16 %v333, %v332
      %v394 = vpack.c.b16 %v335, %v334
      %v395 = vpack.c.b16 %v337, %v336
      %v396 = vpack.c.b16 %v339, %v338
      %v397 = vpack.c.b16 %v341, %v340
      %v398 = vpack.c.b16 %v343, %v342
      %v399 = vpack.c.b16 %v345, %v344
      %v400 = vpack.c.b16 %v347, %v346
      %v401 = vpack.c.b16 %v349, %v348
      %v402 = vpack.c.b16 %v351, %v350
      %v403 = vpack.c.b16 %v353, %v352
      %v404 = vpack.c.b16 %v355, %v354
      %v405 = vpack.c.b16 %v357, %v356
      %v406 = vpack.c.b16 %v359, %v358
      %v407 = vpack.c.b16 %v361, %v360
      %v408 = vpack.c.b16 %v363, %v362
      %v409 = vpack.c.b16 %v365, %v364
      %v410 = vpack.c.b16 %v367, %v366
      %v411 = vpack.c.b16 %v369, %v368
      %v412 = vpack.c.b16 %v371, %v370
      %v413 = vpack.c.b16 %v373, %v372
      %v414 = vpack.c.b16 %v375, %v374
      %v415 = vpack.c.b16 %v377, %v376
      %v416 = vpack.c.b16 %v379, %v378
      %v417 = vpack.c.b16 %v381, %v380
      %v418 = vpack.c.b16 %v383, %v382
      %v419 = vpack.c.b16 %v385, %v384
      %v420 = vpack.c.b16 %v387, %v386
      %v421 = vpack.c.b16 %v389, %v388
      %v470 = vunpack.c.l.b16 %v239
      %v471 = vunpack.c.l.b16 %v240
      %v472 = vunpack.c.l.b16 %v241
      %v473 = vunpack.c.l.b16 %v242
      %v474 = vunpack.c.l.b16 %v243
      %v475 = vunpack.c.l.b16 %v244
      %v476 = vunpack.c.l.b16 %v245
      %v477 = vunpack.c.l.b16 %v246
      %v478 = vunpack.c.l.b16 %v247
      %v479 = vunpack.c.l.b16 %v248
      %v480 = vunpack.c.l.b16 %v249
      %v481 = vunpack.c.l.b16 %v250
      %v482 = vunpack.c.l.b16 %v251
      %v483 = vunpack.c.l.b16 %v252
      %v484 = vunpack.c.l.b16 %v253
      %v485 = vunpack.c.l.b16 %v254
      %v486 = vpack.c.b16 %v471, %v470
      %v487 = vpack.c.b16 %v473, %v472
      %v488 = vpack.c.b16 %v475, %v474
      %v489 = vpack.c.b16 %v477, %v476
      %v490 = vpack.c.b16 %v479, %v478
      %v491 = vpack.c.b16 %v481, %v480
      %v492 = vpack.c.b16 %v483, %v482
      %v493 = vpack.c.b16 %v485, %v484
      %502 = vmatprep.subr.bf16.mxu0 0
      %503 = vmatpush1.bf16.msra.mxu0 %v486
      %504 = vmatprep.subr.bf16.mxu0 0
      %505 = vmatpush1.bf16.msra.mxu0 %v487
      %506 = vmatprep.subr.bf16.mxu0 0
      %507 = vmatpush1.bf16.msra.mxu0 %v488
      %508 = vmatprep.subr.bf16.mxu0 0
      %509 = vmatpush1.bf16.msra.mxu0 %v489
      %510 = vmatprep.subr.bf16.mxu0 0
      %511 = vmatpush1.bf16.msra.mxu0 %v490
      %512 = vmatprep.subr.bf16.mxu0 0
      %513 = vmatpush1.bf16.msra.mxu0 %v491
      %514 = vmatprep.subr.bf16.mxu0 0
      %515 = vmatpush1.bf16.msra.mxu0 %v492
      %516 = vmatprep.subr.bf16.mxu0 0
      %517 = vmatpush1.bf16.msra.mxu0 %v493
      %518 = vmatprep.subr.bf16.mxu0 0
      %519 = vmatpush1.bf16.msra.mxu0 0
      %520 = vmatprep.subr.bf16.mxu0 0
      %521 = vmatpush1.bf16.msra.mxu0 0
      %522 = vmatprep.subr.bf16.mxu0 0
      %523 = vmatpush1.bf16.msra.mxu0 0
      %524 = vmatprep.subr.bf16.mxu0 0
      %525 = vmatpush1.bf16.msra.mxu0 0
      %526 = vmatprep.subr.bf16.mxu0 0
      %527 = vmatpush1.bf16.msra.mxu0 0
      %528 = vmatprep.subr.bf16.mxu0 0
      %529 = vmatpush1.bf16.msra.mxu0 0
      %530 = vmatprep.subr.bf16.mxu0 0
      %531 = vmatpush1.bf16.msra.mxu0 0
      %532 = vmatprep.subr.bf16.mxu0 0
      %533 = vmatpush1.bf16.msra.mxu0 0
      %534 = vmatprep.mubr.bf16.mxu0 0
      %535 = vmatmul.mubr.bf16.gmra.mrb[0].mxu0 %v390
      %v536 = vpop.f32.mrb[0].mxu0
      %v537 = vadd.f32 %v260, %v536
      %v538 = vpop.f32.mrb[0].mxu0
      %v539 = vpop.f32.mrb[0].mxu0
      %v540 = vadd.f32 %v260, %v539
      %v541 = vpop.f32.mrb[0].mxu0
      %542 = vmatprep.mubr.bf16.mxu0 0
      %543 = vmatmul.mubr.bf16.gmra.mrb[0].mxu0 %v391
      %v544 = vpop.f32.mrb[0].mxu0
      %v545 = vadd.f32 %v260, %v544
      %v546 = vpop.f32.mrb[0].mxu0
      %v547 = vpop.f32.mrb[0].mxu0
      %v548 = vadd.f32 %v260, %v547
      %v549 = vpop.f32.mrb[0].mxu0
      %550 = vmatprep.mubr.bf16.mxu0 0
      %551 = vmatmul.mubr.bf16.gmra.mrb[0].mxu0 %v392
      %v552 = vpop.f32.mrb[0].mxu0
      %v553 = vadd.f32 %v260, %v552
      %v554 = vpop.f32.mrb[0].mxu0
      %v555 = vpop.f32.mrb[0].mxu0
      %v556 = vadd.f32 %v260, %v555
      %v557 = vpop.f32.mrb[0].mxu0
      %558 = vmatprep.mubr.bf16.mxu0 0
      %559 = vmatmul.mubr.bf16.gmra.mrb[0].mxu0 %v393
      %v560 = vpop.f32.mrb[0].mxu0
      %v561 = vadd.f32 %v260, %v560
      %v562 = vpop.f32.mrb[0].mxu0
      %v563 = vpop.f32.mrb[0].mxu0
      %v564 = vadd.f32 %v260, %v563
      %v565 = vpop.f32.mrb[0].mxu0
      %566 = vmatprep.mubr.bf16.mxu0 0
      %567 = vmatmul.mubr.bf16.gmra.mrb[0].mxu0 %v394
      %v568 = vpop.f32.mrb[0].mxu0
      %v569 = vadd.f32 %v260, %v568
      %v570 = vpop.f32.mrb[0].mxu0
      %v571 = vpop.f32.mrb[0].mxu0
      %v572 = vadd.f32 %v260, %v571
      %v573 = vpop.f32.mrb[0].mxu0
      %574 = vmatprep.mubr.bf16.mxu0 0
      %575 = vmatmul.mubr.bf16.gmra.mrb[0].mxu0 %v395
      %v576 = vpop.f32.mrb[0].mxu0
      %v577 = vadd.f32 %v260, %v576
      %v578 = vpop.f32.mrb[0].mxu0
      %v579 = vpop.f32.mrb[0].mxu0
      %v580 = vadd.f32 %v260, %v579
      %v581 = vpop.f32.mrb[0].mxu0
      %582 = vmatprep.mubr.bf16.mxu0 0
      %583 = vmatmul.mubr.bf16.gmra.mrb[0].mxu0 %v396
      %v584 = vpop.f32.mrb[0].mxu0
      %v585 = vadd.f32 %v260, %v584
      %v586 = vpop.f32.mrb[0].mxu0
      %v587 = vpop.f32.mrb[0].mxu0
      %v588 = vadd.f32 %v260, %v587
      %v589 = vpop.f32.mrb[0].mxu0
      %590 = vmatprep.mubr.bf16.mxu0 0
      %591 = vmatmul.mubr.bf16.gmra.mrb[0].mxu0 %v397
      %v592 = vpop.f32.mrb[0].mxu0
      %v593 = vadd.f32 %v260, %v592
      %v594 = vpop.f32.mrb[0].mxu0
      %v595 = vpop.f32.mrb[0].mxu0
      %v596 = vadd.f32 %v260, %v595
      %v597 = vpop.f32.mrb[0].mxu0
      %598 = vmatprep.mubr.bf16.mxu0 0
      %599 = vmatmul.mubr.bf16.gmra.mrb[0].mxu0 %v398
      %v600 = vpop.f32.mrb[0].mxu0
      %v601 = vadd.f32 %v260, %v600
      %v602 = vpop.f32.mrb[0].mxu0
      %v603 = vpop.f32.mrb[0].mxu0
      %v604 = vadd.f32 %v260, %v603
      %v605 = vpop.f32.mrb[0].mxu0
      %606 = vmatprep.mubr.bf16.mxu0 0
      %607 = vmatmul.mubr.bf16.gmra.mrb[0].mxu0 %v399
      %v608 = vpop.f32.mrb[0].mxu0
      %v609 = vadd.f32 %v260, %v608
      %v610 = vpop.f32.mrb[0].mxu0
      %v611 = vpop.f32.mrb[0].mxu0
      %v612 = vadd.f32 %v260, %v611
      %v613 = vpop.f32.mrb[0].mxu0
      %614 = vmatprep.mubr.bf16.mxu0 0
      %615 = vmatmul.mubr.bf16.gmra.mrb[0].mxu0 %v400
      %v616 = vpop.f32.mrb[0].mxu0
      %v617 = vadd.f32 %v260, %v616
      %v618 = vpop.f32.mrb[0].mxu0
      %v619 = vpop.f32.mrb[0].mxu0
      %v620 = vadd.f32 %v260, %v619
      %v621 = vpop.f32.mrb[0].mxu0
      %622 = vmatprep.mubr.bf16.mxu0 0
      %623 = vmatmul.mubr.bf16.gmra.mrb[0].mxu0 %v401
      %v624 = vpop.f32.mrb[0].mxu0
      %v625 = vadd.f32 %v260, %v624
      %v626 = vpop.f32.mrb[0].mxu0
      %v627 = vpop.f32.mrb[0].mxu0
      %v628 = vadd.f32 %v260, %v627
      %v629 = vpop.f32.mrb[0].mxu0
      %630 = vmatprep.mubr.bf16.mxu0 0
      %631 = vmatmul.mubr.bf16.gmra.mrb[0].mxu0 %v402
      %v632 = vpop.f32.mrb[0].mxu0
      %v633 = vadd.f32 %v260, %v632
      %v634 = vpop.f32.mrb[0].mxu0
      %v635 = vpop.f32.mrb[0].mxu0
      %v636 = vadd.f32 %v260, %v635
      %v637 = vpop.f32.mrb[0].mxu0
      %638 = vmatprep.mubr.bf16.mxu0 0
      %639 = vmatmul.mubr.bf16.gmra.mrb[0].mxu0 %v403
      %v640 = vpop.f32.mrb[0].mxu0
      %v641 = vadd.f32 %v260, %v640
      %v642 = vpop.f32.mrb[0].mxu0
      %v643 = vpop.f32.mrb[0].mxu0
      %v644 = vadd.f32 %v260, %v643
      %v645 = vpop.f32.mrb[0].mxu0
      %646 = vmatprep.mubr.bf16.mxu0 0
      %647 = vmatmul.mubr.bf16.gmra.mrb[0].mxu0 %v404
      %v648 = vpop.f32.mrb[0].mxu0
      %v649 = vadd.f32 %v260, %v648
      %v650 = vpop.f32.mrb[0].mxu0
      %v651 = vpop.f32.mrb[0].mxu0
      %v652 = vadd.f32 %v260, %v651
      %v653 = vpop.f32.mrb[0].mxu0
      %654 = vmatprep.mubr.bf16.mxu0 0
      %655 = vmatmul.mubr.bf16.gmra.mrb[0].mxu0 %v405
      %v656 = vpop.f32.mrb[0].mxu0
      %v657 = vadd.f32 %v260, %v656
      %v658 = vpop.f32.mrb[0].mxu0
      %v659 = vpop.f32.mrb[0].mxu0
      %v660 = vadd.f32 %v260, %v659
      %v661 = vpop.f32.mrb[0].mxu0
      %662 = vmatprep.mubr.bf16.mxu0 0
      %663 = vmatmul.mubr.bf16.gmra.mrb[0].mxu0 %v406
      %v664 = vpop.f32.mrb[0].mxu0
      %v665 = vadd.f32 %v260, %v664
      %v666 = vpop.f32.mrb[0].mxu0
      %v667 = vpop.f32.mrb[0].mxu0
      %v668 = vadd.f32 %v260, %v667
      %v669 = vpop.f32.mrb[0].mxu0
      %670 = vmatprep.mubr.bf16.mxu0 0
      %671 = vmatmul.mubr.bf16.gmra.mrb[0].mxu0 %v407
      %v672 = vpop.f32.mrb[0].mxu0
      %v673 = vadd.f32 %v260, %v672
      %v674 = vpop.f32.mrb[0].mxu0
      %v675 = vpop.f32.mrb[0].mxu0
      %v676 = vadd.f32 %v260, %v675
      %v677 = vpop.f32.mrb[0].mxu0
      %678 = vmatprep.mubr.bf16.mxu0 0
      %679 = vmatmul.mubr.bf16.gmra.mrb[0].mxu0 %v408
      %v680 = vpop.f32.mrb[0].mxu0
      %v681 = vadd.f32 %v260, %v680
      %v682 = vpop.f32.mrb[0].mxu0
      %v683 = vpop.f32.mrb[0].mxu0
      %v684 = vadd.f32 %v260, %v683
      %v685 = vpop.f32.mrb[0].mxu0
      %686 = vmatprep.mubr.bf16.mxu0 0
      %687 = vmatmul.mubr.bf16.gmra.mrb[0].mxu0 %v409
      %v688 = vpop.f32.mrb[0].mxu0
      %v689 = vadd.f32 %v260, %v688
      %v690 = vpop.f32.mrb[0].mxu0
      %v691 = vpop.f32.mrb[0].mxu0
      %v692 = vadd.f32 %v260, %v691
      %v693 = vpop.f32.mrb[0].mxu0
      %694 = vmatprep.mubr.bf16.mxu0 0
      %695 = vmatmul.mubr.bf16.gmra.mrb[0].mxu0 %v410
      %v696 = vpop.f32.mrb[0].mxu0
      %v697 = vadd.f32 %v260, %v696
      %v698 = vpop.f32.mrb[0].mxu0
      %v699 = vpop.f32.mrb[0].mxu0
      %v700 = vadd.f32 %v260, %v699
      %v701 = vpop.f32.mrb[0].mxu0
      %702 = vmatprep.mubr.bf16.mxu0 0
      %703 = vmatmul.mubr.bf16.gmra.mrb[0].mxu0 %v411
      %v704 = vpop.f32.mrb[0].mxu0
      %v705 = vadd.f32 %v260, %v704
      %v706 = vpop.f32.mrb[0].mxu0
      %v707 = vpop.f32.mrb[0].mxu0
      %v708 = vadd.f32 %v260, %v707
      %v709 = vpop.f32.mrb[0].mxu0
      %710 = vmatprep.mubr.bf16.mxu0 0
      %711 = vmatmul.mubr.bf16.gmra.mrb[0].mxu0 %v412
      %v712 = vpop.f32.mrb[0].mxu0
      %v713 = vadd.f32 %v260, %v712
      %v714 = vpop.f32.mrb[0].mxu0
      %v715 = vpop.f32.mrb[0].mxu0
      %v716 = vadd.f32 %v260, %v715
      %v717 = vpop.f32.mrb[0].mxu0
      %718 = vmatprep.mubr.bf16.mxu0 0
      %719 = vmatmul.mubr.bf16.gmra.mrb[0].mxu0 %v413
      %v720 = vpop.f32.mrb[0].mxu0
      %v721 = vadd.f32 %v260, %v720
      %v722 = vpop.f32.mrb[0].mxu0
      %v723 = vpop.f32.mrb[0].mxu0
      %v724 = vadd.f32 %v260, %v723
      %v725 = vpop.f32.mrb[0].mxu0
      %726 = vmatprep.mubr.bf16.mxu0 0
      %727 = vmatmul.mubr.bf16.gmra.mrb[0].mxu0 %v414
      %v728 = vpop.f32.mrb[0].mxu0
      %v729 = vadd.f32 %v260, %v728
      %v730 = vpop.f32.mrb[0].mxu0
      %v731 = vpop.f32.mrb[0].mxu0
      %v732 = vadd.f32 %v260, %v731
      %v733 = vpop.f32.mrb[0].mxu0
      %734 = vmatprep.mubr.bf16.mxu0 0
      %735 = vmatmul.mubr.bf16.gmra.mrb[0].mxu0 %v415
      %v736 = vpop.f32.mrb[0].mxu0
      %v737 = vadd.f32 %v260, %v736
      %v738 = vpop.f32.mrb[0].mxu0
      %v739 = vpop.f32.mrb[0].mxu0
      %v740 = vadd.f32 %v260, %v739
      %v741 = vpop.f32.mrb[0].mxu0
      %742 = vmatprep.mubr.bf16.mxu0 0
      %743 = vmatmul.mubr.bf16.gmra.mrb[0].mxu0 %v416
      %v744 = vpop.f32.mrb[0].mxu0
      %v745 = vadd.f32 %v260, %v744
      %v746 = vpop.f32.mrb[0].mxu0
      %v747 = vpop.f32.mrb[0].mxu0
      %v748 = vadd.f32 %v260, %v747
      %v749 = vpop.f32.mrb[0].mxu0
      %750 = vmatprep.mubr.bf16.mxu0 0
      %751 = vmatmul.mubr.bf16.gmra.mrb[0].mxu0 %v417
      %v752 = vpop.f32.mrb[0].mxu0
      %v753 = vadd.f32 %v260, %v752
      %v754 = vpop.f32.mrb[0].mxu0
      %v755 = vpop.f32.mrb[0].mxu0
      %v756 = vadd.f32 %v260, %v755
      %v757 = vpop.f32.mrb[0].mxu0
      %758 = vmatprep.mubr.bf16.mxu0 0
      %759 = vmatmul.mubr.bf16.gmra.mrb[0].mxu0 %v418
      %v760 = vpop.f32.mrb[0].mxu0
      %v761 = vadd.f32 %v260, %v760
      %v762 = vpop.f32.mrb[0].mxu0
      %v763 = vpop.f32.mrb[0].mxu0
      %v764 = vadd.f32 %v260, %v763
      %v765 = vpop.f32.mrb[0].mxu0
      %766 = vmatprep.mubr.bf16.mxu0 0
      %767 = vmatmul.mubr.bf16.gmra.mrb[0].mxu0 %v419
      %v768 = vpop.f32.mrb[0].mxu0
      %v769 = vadd.f32 %v260, %v768
      %v770 = vpop.f32.mrb[0].mxu0
      %v771 = vpop.f32.mrb[0].mxu0
      %v772 = vadd.f32 %v260, %v771
      %v773 = vpop.f32.mrb[0].mxu0
      %774 = vmatprep.mubr.bf16.mxu0 0
      %775 = vmatmul.mubr.bf16.gmra.mrb[0].mxu0 %v420
      %v776 = vpop.f32.mrb[0].mxu0
      %v777 = vadd.f32 %v260, %v776
      %v778 = vpop.f32.mrb[0].mxu0
      %v779 = vpop.f32.mrb[0].mxu0
      %v780 = vadd.f32 %v260, %v779
      %v781 = vpop.f32.mrb[0].mxu0
      %782 = vmatprep.mubr.bf16.mxu0 0
      %783 = vmatmul.mubr.bf16.gmra.mrb[0].mxu0 %v421
      %v784 = vpop.f32.mrb[0].mxu0
      %v785 = vadd.f32 %v260, %v784
      %v786 = vpop.f32.mrb[0].mxu0
      %v787 = vpop.f32.mrb[0].mxu0
      %v788 = vadd.f32 %v260, %v787
      %v789 = vpop.f32.mrb[0].mxu0
      %790 = vdwg.mxu0
      %v791 = vpack.c.bf16 %v540, %v537
      %v792 = vpack.c.bf16 %v548, %v545
      %v793 = vpack.c.bf16 %v556, %v553
      %v794 = vpack.c.bf16 %v564, %v561
      %v795 = vpack.c.bf16 %v572, %v569
      %v796 = vpack.c.bf16 %v580, %v577
      %v797 = vpack.c.bf16 %v588, %v585
      %v798 = vpack.c.bf16 %v596, %v593
      %v799 = vpack.c.bf16 %v604, %v601
      %v800 = vpack.c.bf16 %v612, %v609
      %v801 = vpack.c.bf16 %v620, %v617
      %v802 = vpack.c.bf16 %v628, %v625
      %v803 = vpack.c.bf16 %v636, %v633
      %v804 = vpack.c.bf16 %v644, %v641
      %v805 = vpack.c.bf16 %v652, %v649
      %v806 = vpack.c.bf16 %v660, %v657
      %v807 = vpack.c.bf16 %v668, %v665
      %v808 = vpack.c.bf16 %v676, %v673
      %v809 = vpack.c.bf16 %v684, %v681
      %v810 = vpack.c.bf16 %v692, %v689
      %v811 = vpack.c.bf16 %v700, %v697
      %v812 = vpack.c.bf16 %v708, %v705
      %v813 = vpack.c.bf16 %v716, %v713
      %v814 = vpack.c.bf16 %v724, %v721
      %v815 = vpack.c.bf16 %v732, %v729
      %v816 = vpack.c.bf16 %v740, %v737
      %v817 = vpack.c.bf16 %v748, %v745
      %v818 = vpack.c.bf16 %v756, %v753
      %v819 = vpack.c.bf16 %v764, %v761
      %v820 = vpack.c.bf16 %v772, %v769
      %v821 = vpack.c.bf16 %v780, %v777
      %v822 = vpack.c.bf16 %v788, %v785
      %v855 = vunpack.c.l.b16 %v791
      %v856 = vunpack.c.h.b16 %v791
      %v857 = vunpack.c.l.b16 %v792
      %v858 = vunpack.c.h.b16 %v792
      %v859 = vunpack.c.l.b16 %v793
      %v860 = vunpack.c.h.b16 %v793
      %v861 = vunpack.c.l.b16 %v794
      %v862 = vunpack.c.h.b16 %v794
      %v863 = vunpack.c.l.b16 %v795
      %v864 = vunpack.c.h.b16 %v795
      %v865 = vunpack.c.l.b16 %v796
      %v866 = vunpack.c.h.b16 %v796
      %v867 = vunpack.c.l.b16 %v797
      %v868 = vunpack.c.h.b16 %v797
      %v869 = vunpack.c.l.b16 %v798
      %v870 = vunpack.c.h.b16 %v798
      %v871 = vunpack.c.l.b16 %v799
      %v872 = vunpack.c.h.b16 %v799
      %v873 = vunpack.c.l.b16 %v800
      %v874 = vunpack.c.h.b16 %v800
      %v875 = vunpack.c.l.b16 %v801
      %v876 = vunpack.c.h.b16 %v801
      %v877 = vunpack.c.l.b16 %v802
      %v878 = vunpack.c.h.b16 %v802
      %v879 = vunpack.c.l.b16 %v803
      %v880 = vunpack.c.h.b16 %v803
      %v881 = vunpack.c.l.b16 %v804
      %v882 = vunpack.c.h.b16 %v804
      %v883 = vunpack.c.l.b16 %v805
      %v884 = vunpack.c.h.b16 %v805
      %v885 = vunpack.c.l.b16 %v806
      %v886 = vunpack.c.h.b16 %v806
      %v887 = vunpack.c.l.b16 %v807
      %v888 = vunpack.c.h.b16 %v807
      %v889 = vunpack.c.l.b16 %v808
      %v890 = vunpack.c.h.b16 %v808
      %v891 = vunpack.c.l.b16 %v809
      %v892 = vunpack.c.h.b16 %v809
      %v893 = vunpack.c.l.b16 %v810
      %v894 = vunpack.c.h.b16 %v810
      %v895 = vunpack.c.l.b16 %v811
      %v896 = vunpack.c.h.b16 %v811
      %v897 = vunpack.c.l.b16 %v812
      %v898 = vunpack.c.h.b16 %v812
      %v899 = vunpack.c.l.b16 %v813
      %v900 = vunpack.c.h.b16 %v813
      %v901 = vunpack.c.l.b16 %v814
      %v902 = vunpack.c.h.b16 %v814
      %v903 = vunpack.c.l.b16 %v815
      %v904 = vunpack.c.h.b16 %v815
      %v905 = vunpack.c.l.b16 %v816
      %v906 = vunpack.c.h.b16 %v816
      %v907 = vunpack.c.l.b16 %v817
      %v908 = vunpack.c.h.b16 %v817
      %v909 = vunpack.c.l.b16 %v818
      %v910 = vunpack.c.h.b16 %v818
      %v911 = vunpack.c.l.b16 %v819
      %v912 = vunpack.c.h.b16 %v819
      %v913 = vunpack.c.l.b16 %v820
      %v914 = vunpack.c.h.b16 %v820
      %v915 = vunpack.c.l.b16 %v821
      %v916 = vunpack.c.h.b16 %v821
      %v917 = vunpack.c.l.b16 %v822
      %v918 = vunpack.c.h.b16 %v822
      %v919 = vpack.c.b16 %v855, %v855
      %v920 = vpack.c.b16 %v856, %v856
      %v921 = vpack.c.b16 %v857, %v857
      %v922 = vpack.c.b16 %v858, %v858
      %v923 = vpack.c.b16 %v859, %v859
      %v924 = vpack.c.b16 %v860, %v860
      %v925 = vpack.c.b16 %v861, %v861
      %v926 = vpack.c.b16 %v862, %v862
      %v927 = vpack.c.b16 %v863, %v863
      %v928 = vpack.c.b16 %v864, %v864
      %v929 = vpack.c.b16 %v865, %v865
      %v930 = vpack.c.b16 %v866, %v866
      %v931 = vpack.c.b16 %v867, %v867
      %v932 = vpack.c.b16 %v868, %v868
      %v933 = vpack.c.b16 %v869, %v869
      %v934 = vpack.c.b16 %v870, %v870
      %v935 = vpack.c.b16 %v871, %v871
      %v936 = vpack.c.b16 %v872, %v872
      %v937 = vpack.c.b16 %v873, %v873
      %v938 = vpack.c.b16 %v874, %v874
      %v939 = vpack.c.b16 %v875, %v875
      %v940 = vpack.c.b16 %v876, %v876
      %v941 = vpack.c.b16 %v877, %v877
      %v942 = vpack.c.b16 %v878, %v878
      %v943 = vpack.c.b16 %v879, %v879
      %v944 = vpack.c.b16 %v880, %v880
      %v945 = vpack.c.b16 %v881, %v881
      %v946 = vpack.c.b16 %v882, %v882
      %v947 = vpack.c.b16 %v883, %v883
      %v948 = vpack.c.b16 %v884, %v884
      %v949 = vpack.c.b16 %v885, %v885
      %v950 = vpack.c.b16 %v886, %v886
      %v951 = vpack.c.b16 %v887, %v887
      %v952 = vpack.c.b16 %v888, %v888
      %v953 = vpack.c.b16 %v889, %v889
      %v954 = vpack.c.b16 %v890, %v890
      %v955 = vpack.c.b16 %v891, %v891
      %v956 = vpack.c.b16 %v892, %v892
      %v957 = vpack.c.b16 %v893, %v893
      %v958 = vpack.c.b16 %v894, %v894
      %v959 = vpack.c.b16 %v895, %v895
      %v960 = vpack.c.b16 %v896, %v896
      %v961 = vpack.c.b16 %v897, %v897
      %v962 = vpack.c.b16 %v898, %v898
      %v963 = vpack.c.b16 %v899, %v899
      %v964 = vpack.c.b16 %v900, %v900
      %v965 = vpack.c.b16 %v901, %v901
      %v966 = vpack.c.b16 %v902, %v902
      %v967 = vpack.c.b16 %v903, %v903
      %v968 = vpack.c.b16 %v904, %v904
      %v969 = vpack.c.b16 %v905, %v905
      %v970 = vpack.c.b16 %v906, %v906
      %v971 = vpack.c.b16 %v907, %v907
      %v972 = vpack.c.b16 %v908, %v908
      %v973 = vpack.c.b16 %v909, %v909
      %v974 = vpack.c.b16 %v910, %v910
      %v975 = vpack.c.b16 %v911, %v911
      %v976 = vpack.c.b16 %v912, %v912
      %v977 = vpack.c.b16 %v913, %v913
      %v978 = vpack.c.b16 %v914, %v914
      %v979 = vpack.c.b16 %v915, %v915
      %v980 = vpack.c.b16 %v916, %v916
      %v981 = vpack.c.b16 %v917, %v917
      %v982 = vpack.c.b16 %v918, %v918
      %1047 = vst [vmem:[%s172] sm:$0xf] %v919
      %1048 = vst [vmem:[%s172 + $0x4] sm:$0xf] %v920
      %1049 = vst [vmem:[%s172 + $0x8] sm:$0xf] %v921
      %1050 = vst [vmem:[%s172 + $0xc] sm:$0xf] %v922
      %1051 = vst [vmem:[%s172 + $0x10] sm:$0xf] %v923
      %1052 = vst [vmem:[%s172 + $0x14] sm:$0xf] %v924
      %1053 = vst [vmem:[%s172 + $0x18] sm:$0xf] %v925
      %1054 = vst [vmem:[%s172 + $0x1c] sm:$0xf] %v926
      %1055 = vst [vmem:[%s172 + $0x20] sm:$0xf] %v927
      %1056 = vst [vmem:[%s172 + $0x24] sm:$0xf] %v928
      %1057 = vst [vmem:[%s172 + $0x28] sm:$0xf] %v929
      %1058 = vst [vmem:[%s172 + $0x2c] sm:$0xf] %v930
      %1059 = vst [vmem:[%s172 + $0x30] sm:$0xf] %v931
      %1060 = vst [vmem:[%s172 + $0x34] sm:$0xf] %v932
      %1061 = vst [vmem:[%s172 + $0x38] sm:$0xf] %v933
      %1062 = vst [vmem:[%s172 + $0x3c] sm:$0xf] %v934
      %1063 = vst [vmem:[%s172 + $0x40] sm:$0xf] %v935
      %1064 = vst [vmem:[%s172 + $0x44] sm:$0xf] %v936
      %1065 = vst [vmem:[%s172 + $0x48] sm:$0xf] %v937
      %1066 = vst [vmem:[%s172 + $0x4c] sm:$0xf] %v938
      %1067 = vst [vmem:[%s172 + $0x50] sm:$0xf] %v939
      %1068 = vst [vmem:[%s172 + $0x54] sm:$0xf] %v940
      %1069 = vst [vmem:[%s172 + $0x58] sm:$0xf] %v941
      %1070 = vst [vmem:[%s172 + $0x5c] sm:$0xf] %v942
      %1071 = vst [vmem:[%s172 + $0x60] sm:$0xf] %v943
      %1072 = vst [vmem:[%s172 + $0x64] sm:$0xf] %v944
      %1073 = vst [vmem:[%s172 + $0x68] sm:$0xf] %v945
      %1074 = vst [vmem:[%s172 + $0x6c] sm:$0xf] %v946
      %1075 = vst [vmem:[%s172 + $0x70] sm:$0xf] %v947
      %1076 = vst [vmem:[%s172 + $0x74] sm:$0xf] %v948
      %1077 = vst [vmem:[%s172 + $0x78] sm:$0xf] %v949
      %1078 = vst [vmem:[%s172 + $0x7c] sm:$0xf] %v950
      %1079 = vst [vmem:[%s172 + $0x80] sm:$0xf] %v951
      %1080 = vst [vmem:[%s172 + $0x84] sm:$0xf] %v952
      %1081 = vst [vmem:[%s172 + $0x88] sm:$0xf] %v953
      %1082 = vst [vmem:[%s172 + $0x8c] sm:$0xf] %v954
      %1083 = vst [vmem:[%s172 + $0x90] sm:$0xf] %v955
      %1084 = vst [vmem:[%s172 + $0x94] sm:$0xf] %v956
      %1085 = vst [vmem:[%s172 + $0x98] sm:$0xf] %v957
      %1086 = vst [vmem:[%s172 + $0x9c] sm:$0xf] %v958
      %1087 = vst [vmem:[%s172 + $0xa0] sm:$0xf] %v959
      %1088 = vst [vmem:[%s172 + $0xa4] sm:$0xf] %v960
      %1089 = vst [vmem:[%s172 + $0xa8] sm:$0xf] %v961
      %1090 = vst [vmem:[%s172 + $0xac] sm:$0xf] %v962
      %1091 = vst [vmem:[%s172 + $0xb0] sm:$0xf] %v963
      %1092 = vst [vmem:[%s172 + $0xb4] sm:$0xf] %v964
      %1093 = vst [vmem:[%s172 + $0xb8] sm:$0xf] %v965
      %1094 = vst [vmem:[%s172 + $0xbc] sm:$0xf] %v966
      %1095 = vst [vmem:[%s172 + $0xc0] sm:$0xf] %v967
      %1096 = vst [vmem:[%s172 + $0xc4] sm:$0xf] %v968
      %1097 = vst [vmem:[%s172 + $0xc8] sm:$0xf] %v969
      %1098 = vst [vmem:[%s172 + $0xcc] sm:$0xf] %v970
      %1099 = vst [vmem:[%s172 + $0xd0] sm:$0xf] %v971
      %1100 = vst [vmem:[%s172 + $0xd4] sm:$0xf] %v972
      %1101 = vst [vmem:[%s172 + $0xd8] sm:$0xf] %v973
      %1102 = vst [vmem:[%s172 + $0xdc] sm:$0xf] %v974
      %1103 = vst [vmem:[%s172 + $0xe0] sm:$0xf] %v975
      %1104 = vst [vmem:[%s172 + $0xe4] sm:$0xf] %v976
      %1105 = vst [vmem:[%s172 + $0xe8] sm:$0xf] %v977
      %1106 = vst [vmem:[%s172 + $0xec] sm:$0xf] %v978
      %1107 = vst [vmem:[%s172 + $0xf0] sm:$0xf] %v979
      %1108 = vst [vmem:[%s172 + $0xf4] sm:$0xf] %v980
      %1109 = vst [vmem:[%s172 + $0xf8] sm:$0xf] %v981
      %1110 = vst [vmem:[%s172 + $0xfc] sm:$0xf] %v982
      %s1111 = smul.u32 64, %s14
      %p1112 = scmp.lt.s32.totalorder %s1111, 255
      %s1113 = scalar_select %p1112, %s1111, 255
      %s1114 = smul.addr %s1113, 4
      %s1115 = scalar_lea.vmem %s3, %s1114
      // Predicated region
      $region33: #{discriminator32_forward.11} parent=31 // pred_check
        %p1116 = pneg %p100
      $region34: #{discriminator32_forward.11} parent=31 // pred_check_branch
        %1118 = sbr.rel (%p1116) target = $region36
      $region35: #{discriminator32_forward.11} parent=31 // pred_region
        %s1119 = smul.u32 64, %s14
      $region36: #{discriminator32_forward.11} parent=31 // pred_fallthru
        _
    $region32: #{discriminator32_forward.11} parent=5 // pred_fallthru
      _
    %p1120 = scmp.le.s32.totalorder 2, %s9
    // Predicated region
    $region37: #{discriminator32_forward.11} parent=5 // pred_check
      %p1121 = pneg %p1120
    $region38: #{discriminator32_forward.11} parent=5 // pred_check_branch
      %1123 = sbr.rel (%p1121) target = $region40
    $region39: #{discriminator32_forward.11} parent=5 // pred_region
      %s1124 = ssub.s32 %s9, 2
      // Predicated region
      $region41: #{discriminator32_forward.11} parent=39 // pred_check
        %p1125 = pneg %p106
      $region42: #{discriminator32_forward.11} parent=39 // pred_check_branch
        %1127 = sbr.rel (%p1125) target = $region44
      $region43: #{discriminator32_forward.11} parent=39 // pred_region
        %s1128 = smul.u32 64, %s15
        %p1129 = scmp.lt.s32.totalorder %s1128, 255
        %s1130 = scalar_select %p1129, %s1128, 255
        %s1131 = smul.addr %s1130, 4
        %s1132 = scalar_lea.vmem %s3, %s1131
      $region44: #{discriminator32_forward.11} parent=39 // pred_fallthru
        _
    $region40: #{discriminator32_forward.11} parent=5 // pred_fallthru
      _
  $region6: #{discriminator32_forward.11} parent=0 // loop_footer
    %s13 = sadd.s32 1, %s9
  $region7: #{discriminator32_forward.11} parent=0 // loop_footer_branch
    %8 = sbr.rel target = $region3
  $region8: #{discriminator32_forward.11} parent=0 // loop_exit
    _

// kernel: discriminator32_forward.12
$region0: #{discriminator32_forward.12}
  #allocation0 [shape = 'u32[]', space=smem, size = 0x4, offset = 0x4, fixed_abs, tag = 'smem constant byte address 0x4 - core index']
  #allocation1 [shape = 'u32[144,128]{1,0:T(1,128)}', space=vmem, size = 0x12000, scoped, tag = 'internal scratch']
  %s0 = inlined_call_operand.vmem [shape: bf16[2048,1152], index: 0, kind: input, shape index: {}]
  %s1 = inlined_call_operand.vmem [shape: bf16[1152,128], index: 1, kind: input, shape index: {}]
  %s2 = inlined_call_operand.vmem [shape: f32[1,128], index: 2, kind: input, shape index: {}]
  %s3 = inlined_call_operand.vmem [shape: bf16[2048,128], index: 3, kind: output, shape index: {}]
  %s4 = sld [smem:[#allocation0]]
  $region45: #{discriminator32_forward.12} parent=0
    _
  %s6 = ssub.s32 1, %s4
  %s7 = scalar_select 0, %s6, %s4
  loop: start=0, step=1, limit=6
  $region2: #{discriminator32_forward.12} parent=0 // loop_pre_header
    _
  $region3: #{discriminator32_forward.12} parent=0 // loop_header
    %s9 = sphi 0, %s13
    %p10 = scmp.ge.s32.totalorder %s9, 6
    %s19 = sphi 0, %s21
    %s22 = sphi 0, %s19
    %s23 = sphi 0, %s22
    %s39 = sphi 0, %s23
    %s43 = sphi 0, %s43
    %s45 = sphi 0, %s43
    %s46 = sphi 0, %s45
    %s60 = sphi 0, %s46
    %s64 = sphi 0, %s64
    %s66 = sphi 0, %s64
    %s67 = sphi 0, %s66
    %s81 = sphi 0, %s67
    %s87 = sphi 0, %s89
    %s90 = sphi 0, %s87
    %s91 = sphi 0, %s90
    %s107 = sphi 0, %s91
  $region4: #{discriminator32_forward.12} parent=0 // loop_header_branch
    %12 = sbr.rel (%p10) target = $region8
  $region5: #{discriminator32_forward.12} parent=0 // loop_body
    %s14 = ssub.s32 %s9, 1
    %s15 = ssub.s32 %s9, 2
    %s16 = sadd.s32 %s9, 1
    %s17 = ssub.s32 %s9, %s16
    %p18 = scmp.eq.s32.totalorder %s17, 0
    %s20 = sadd.s32 %s19, 1
    %s21 = scalar_select %p18, %s19, %s20
    %p24 = pneg %p18
    %p25 = scmp.eq.s32.totalorder %s9, 3
    %p26 = por %p24, %p25
    %p27 = scmp.ne.s32.totalorder %s19, %s22
    %p28 = scmp.eq.s32.totalorder %s9, 0
    %p29 = por %p27, %p28
    %p30 = scmp.ne.s32.totalorder %s19, %s22
    %p31 = scmp.eq.s32.totalorder %s14, 3
    %p32 = por %p30, %p31
    %p33 = scmp.ne.s32.totalorder %s22, %s23
    %p34 = scmp.eq.s32.totalorder %s14, 0
    %p35 = por %p33, %p34
    %p36 = scmp.ne.s32.totalorder %s22, %s23
    %p37 = scmp.eq.s32.totalorder %s15, 3
    %p38 = por %p36, %p37
    %p40 = scmp.ne.s32.totalorder %s23, %s39
    %p41 = scmp.eq.s32.totalorder %s15, 0
    %p42 = por %p40, %p41
    %s44 = sadd.s32 %s43, 1
    %p47 = scmp.eq.s32.totalorder %s9, 3
    %p48 = scmp.ne.s32.totalorder %s43, %s45
    %p49 = scmp.eq.s32.totalorder %s9, 0
    %p50 = por %p48, %p49
    %p51 = scmp.ne.s32.totalorder %s43, %s45
    %p52 = scmp.eq.s32.totalorder %s14, 3
    %p53 = por %p51, %p52
    %p54 = scmp.ne.s32.totalorder %s45, %s46
    %p55 = scmp.eq.s32.totalorder %s14, 0
    %p56 = por %p54, %p55
    %p57 = scmp.ne.s32.totalorder %s45, %s46
    %p58 = scmp.eq.s32.totalorder %s15, 3
    %p59 = por %p57, %p58
    %p61 = scmp.ne.s32.totalorder %s46, %s60
    %p62 = scmp.eq.s32.totalorder %s15, 0
    %p63 = por %p61, %p62
    %s65 = sadd.s32 %s64, 1
    %p68 = scmp.eq.s32.totalorder %s9, 3
    %p69 = scmp.ne.s32.totalorder %s64, %s66
    %p70 = scmp.eq.s32.totalorder %s9, 0
    %p71 = por %p69, %p70
    %p72 = scmp.ne.s32.totalorder %s64, %s66
    %p73 = scmp.eq.s32.totalorder %s14, 3
    %p74 = por %p72, %p73
    %p75 = scmp.ne.s32.totalorder %s66, %s67
    %p76 = scmp.eq.s32.totalorder %s14, 0
    %p77 = por %p75, %p76
    %p78 = scmp.ne.s32.totalorder %s66, %s67
    %p79 = scmp.eq.s32.totalorder %s15, 3
    %p80 = por %p78, %p79
    %p82 = scmp.ne.s32.totalorder %s67, %s81
    %p83 = scmp.eq.s32.totalorder %s15, 0
    %p84 = por %p82, %p83
    %s85 = ssub.s32 %s9, %s16
    %p86 = scmp.eq.s32.totalorder %s85, 0
    %s88 = sadd.s32 %s87, 1
    %s89 = scalar_select %p86, %s87, %s88
    %p92 = pneg %p86
    %p93 = scmp.eq.s32.totalorder %s9, 3
    %p94 = por %p92, %p93
    %p95 = scmp.ne.s32.totalorder %s87, %s90
    %p96 = scmp.eq.s32.totalorder %s9, 0
    %p97 = por %p95, %p96
    %p98 = scmp.ne.s32.totalorder %s87, %s90
    %p99 = scmp.eq.s32.totalorder %s14, 3
    %p100 = por %p98, %p99
    %p101 = scmp.ne.s32.totalorder %s90, %s91
    %p102 = scmp.eq.s32.totalorder %s14, 0
    %p103 = por %p101, %p102
    %p104 = scmp.ne.s32.totalorder %s90, %s91
    %p105 = scmp.eq.s32.totalorder %s15, 3
    %p106 = por %p104, %p105
    %p108 = scmp.ne.s32.totalorder %s91, %s107
    %p109 = scmp.eq.s32.totalorder %s15, 0
    %p110 = por %p108, %p109
    %p111 = scmp.le.s32.totalorder 1, %s9
    %p112 = scmp.lt.s32.totalorder %s9, 5
    %p113 = pnand %p111, %p112
    %p114 = pneg %p113
    // Predicated region
    $region9: #{discriminator32_forward.12} parent=5 // pred_check
      _
    $region10: #{discriminator32_forward.12} parent=5 // pred_check_branch
      %116 = sbr.rel (%p113) target = $region12
    $region11: #{discriminator32_forward.12} parent=5 // pred_region
      %s117 = ssub.s32 %s9, 1
      // Predicated region
      $region13: #{discriminator32_forward.12} parent=11 // pred_check
        %p118 = pneg %p56
      $region14: #{discriminator32_forward.12} parent=11 // pred_check_branch
        %120 = sbr.rel (%p118) target = $region16
      $region15: #{discriminator32_forward.12} parent=11 // pred_region
        _
      $region16: #{discriminator32_forward.12} parent=11 // pred_fallthru
        _
      // Predicated region
      $region17: #{discriminator32_forward.12} parent=11 // pred_check
        %p121 = pneg %p77
      $region18: #{discriminator32_forward.12} parent=11 // pred_check_branch
        %123 = sbr.rel (%p121) target = $region20
      $region19: #{discriminator32_forward.12} parent=11 // pred_region
        _
      $region20: #{discriminator32_forward.12} parent=11 // pred_fallthru
        _
    $region12: #{discriminator32_forward.12} parent=5 // pred_fallthru
      _
    %p124 = scmp.lt.s32.totalorder %s9, 4
    // Predicated region
    $region21: #{discriminator32_forward.12} parent=5 // pred_check
      %p125 = pneg %p124
    $region22: #{discriminator32_forward.12} parent=5 // pred_check_branch
      %127 = sbr.rel (%p125) target = $region24
    $region23: #{discriminator32_forward.12} parent=5 // pred_region
      // Predicated region
      $region25: #{discriminator32_forward.12} parent=23 // pred_check
        %p128 = pneg %p29
      $region26: #{discriminator32_forward.12} parent=23 // pred_check_branch
        %130 = sbr.rel (%p128) target = $region28
      $region27: #{discriminator32_forward.12} parent=23 // pred_region
        %s131 = smul.u32 64, %s9
        %p132 = scmp.lt.s32.totalorder %s131, 255
        %s133 = scalar_select %p132, %s131, 255
        %s134 = smul.addr %s133, 9
        %s135 = smul.addr %s134, 4
        %s136 = scalar_lea.vmem %s0, %s135
        %s137 = smul.u32 64, %s9
      $region28: #{discriminator32_forward.12} parent=23 // pred_fallthru
        _
    $region24: #{discriminator32_forward.12} parent=5 // pred_fallthru
      _
    %p138 = scmp.le.s32.totalorder 1, %s9
    %p139 = scmp.lt.s32.totalorder %s9, 5
    %p140 = pnand %p138, %p139
    %p141 = pneg %p140
    // Predicated region
    $region29: #{discriminator32_forward.12} parent=5 // pred_check
      _
    $region30: #{discriminator32_forward.12} parent=5 // pred_check_branch
      %143 = sbr.rel (%p140) target = $region32
    $region31: #{discriminator32_forward.12} parent=5 // pred_region
      %s144 = ssub.s32 %s9, 1
      %s145 = smul.u32 64, %s14
      %p146 = scmp.lt.s32.totalorder %s145, 255
      %s147 = scalar_select %p146, %s145, 255
      %s148 = smul.addr %s147, 9
      %s149 = smul.addr %s148, 4
      %s150 = scalar_lea.vmem %s0, %s149
      %p151 = pneg %p35
      %p152 = pneg %p32
      %p153 = pneg %p56
      %p154 = pneg %p53
      %p155 = pneg %p77
      %p156 = pneg %p74
      %p157 = pneg %p103
      %p158 = pneg %p100
      %s159 = smul.u32 64, %s14
      %p160 = scmp.lt.s32.totalorder %s159, 255
      %s161 = scalar_select %p160, %s159, 255
      %s162 = smul.addr %s161, 4
      %s163 = scalar_lea.vmem %s3, %s162
      %s164 = smul.u32 64, %s14
      %p165 = scmp.lt.s32.totalorder %s164, 255
      %s166 = scalar_select %p165, %s164, 255
      %s167 = smul.addr %s166, 9
      %s168 = smul.addr %s167, 4
      %s169 = scalar_lea.vmem %s0, %s168
      %s170 = smul.u32 64, %s14
      %s171 = smul.u32 64, %s14
      %p172 = scmp.lt.s32.totalorder %s171, 255
      %s173 = scalar_select %p172, %s171, 255
      %s174 = smul.addr %s173, 4
      %s175 = scalar_lea.vmem %s3, %s174
      %s176 = smul.u32 64, %s14
      %v178 = vld [vmem:[%s169] sm:$0xff]
      %v179 = vld [vmem:[%s169 + $0x8] sm:$0xff]
      %v180 = vld [vmem:[%s169 + $0x10] sm:$0xff]
      %v181 = vld [vmem:[%s169 + $0x18] sm:$0xff]
      %v182 = vld [vmem:[%s169 + $0x20] sm:$0xf]
      %v183 = vld [vmem:[%s169 + $0x24] sm:$0xff]
      %v184 = vld [vmem:[%s169 + $0x2c] sm:$0xff]
      %v185 = vld [vmem:[%s169 + $0x34] sm:$0xff]
      %v186 = vld [vmem:[%s169 + $0x3c] sm:$0xff]
      %v187 = vld [vmem:[%s169 + $0x44] sm:$0xf]
      %v188 = vld [vmem:[%s169 + $0x48] sm:$0xff]
      %v189 = vld [vmem:[%s169 + $0x50] sm:$0xff]
      %v190 = vld [vmem:[%s169 + $0x58] sm:$0xff]
      %v191 = vld [vmem:[%s169 + $0x60] sm:$0xff]
      %v192 = vld [vmem:[%s169 + $0x68] sm:$0xf]
      %v193 = vld [vmem:[%s169 + $0x6c] sm:$0xff]
      %v194 = vld [vmem:[%s169 + $0x74] sm:$0xff]
      %v195 = vld [vmem:[%s169 + $0x7c] sm:$0xff]
      %v196 = vld [vmem:[%s169 + $0x84] sm:$0xff]
      %v197 = vld [vmem:[%s169 + $0x8c] sm:$0xf]
      %v198 = vld [vmem:[%s169 + $0x90] sm:$0xff]
      %v199 = vld [vmem:[%s169 + $0x98] sm:$0xff]
      %v200 = vld [vmem:[%s169 + $0xa0] sm:$0xff]
      %v201 = vld [vmem:[%s169 + $0xa8] sm:$0xff]
      %v202 = vld [vmem:[%s169 + $0xb0] sm:$0xf]
      %v203 = vld [vmem:[%s169 + $0xb4] sm:$0xff]
      %v204 = vld [vmem:[%s169 + $0xbc] sm:$0xff]
      %v205 = vld [vmem:[%s169 + $0xc4] sm:$0xff]
      %v206 = vld [vmem:[%s169 + $0xcc] sm:$0xff]
      %v207 = vld [vmem:[%s169 + $0xd4] sm:$0xf]
      %v208 = vld [vmem:[%s169 + $0xd8] sm:$0xff]
      %v209 = vld [vmem:[%s169 + $0xe0] sm:$0xff]
      %v210 = vld [vmem:[%s169 + $0xe8] sm:$0xff]
      %v211 = vld [vmem:[%s169 + $0xf0] sm:$0xff]
      %v212 = vld [vmem:[%s169 + $0xf8] sm:$0xf]
      %v213 = vld [vmem:[%s169 + $0xfc] sm:$0xff]
      %v214 = vld [vmem:[%s169 + $0x104] sm:$0xff]
      %v215 = vld [vmem:[%s169 + $0x10c] sm:$0xff]
      %v216 = vld [vmem:[%s169 + $0x114] sm:$0xff]
      %v217 = vld [vmem:[%s169 + $0x11c] sm:$0xf]
      %v218 = vld [vmem:[%s169 + $0x120] sm:$0xff]
      %v219 = vld [vmem:[%s169 + $0x128] sm:$0xff]
      %v220 = vld [vmem:[%s169 + $0x130] sm:$0xff]
      %v221 = vld [vmem:[%s169 + $0x138] sm:$0xff]
      %v222 = vld [vmem:[%s169 + $0x140] sm:$0xf]
      %v223 = vld [vmem:[%s169 + $0x144] sm:$0xff]
      %v224 = vld [vmem:[%s169 + $0x14c] sm:$0xff]
      %v225 = vld [vmem:[%s169 + $0x154] sm:$0xff]
      %v226 = vld [vmem:[%s169 + $0x15c] sm:$0xff]
      %v227 = vld [vmem:[%s169 + $0x164] sm:$0xf]
      %v228 = vld [vmem:[%s169 + $0x168] sm:$0xff]
      %v229 = vld [vmem:[%s169 + $0x170] sm:$0xff]
      %v230 = vld [vmem:[%s169 + $0x178] sm:$0xff]
      %v231 = vld [vmem:[%s169 + $0x180] sm:$0xff]
      %v232 = vld [vmem:[%s169 + $0x188] sm:$0xf]
      %v233 = vld [vmem:[%s169 + $0x18c] sm:$0xff]
      %v234 = vld [vmem:[%s169 + $0x194] sm:$0xff]
      %v235 = vld [vmem:[%s169 + $0x19c] sm:$0xff]
      %v236 = vld [vmem:[%s169 + $0x1a4] sm:$0xff]
      %v237 = vld [vmem:[%s169 + $0x1ac] sm:$0xf]
      %v238 = vld [vmem:[%s169 + $0x1b0] sm:$0xff]
      %v239 = vld [vmem:[%s169 + $0x1b8] sm:$0xff]
      %v240 = vld [vmem:[%s169 + $0x1c0] sm:$0xff]
      %v241 = vld [vmem:[%s169 + $0x1c8] sm:$0xff]
      %v242 = vld [vmem:[%s169 + $0x1d0] sm:$0xf]
      %v243 = vld [vmem:[%s169 + $0x1d4] sm:$0xff]
      %v244 = vld [vmem:[%s169 + $0x1dc] sm:$0xff]
      %v245 = vld [vmem:[%s169 + $0x1e4] sm:$0xff]
      %v246 = vld [vmem:[%s169 + $0x1ec] sm:$0xff]
      %v247 = vld [vmem:[%s169 + $0x1f4] sm:$0xf]
      %v248 = vld [vmem:[%s169 + $0x1f8] sm:$0xff]
      %v249 = vld [vmem:[%s169 + $0x200] sm:$0xff]
      %v250 = vld [vmem:[%s169 + $0x208] sm:$0xff]
      %v251 = vld [vmem:[%s169 + $0x210] sm:$0xff]
      %v252 = vld [vmem:[%s169 + $0x218] sm:$0xf]
      %v253 = vld [vmem:[%s169 + $0x21c] sm:$0xff]
      %v254 = vld [vmem:[%s169 + $0x224] sm:$0xff]
      %v255 = vld [vmem:[%s169 + $0x22c] sm:$0xff]
      %v256 = vld [vmem:[%s169 + $0x234] sm:$0xff]
      %v257 = vld [vmem:[%s169 + $0x23c] sm:$0xf]
      %v258 = vld [vmem:[%s169 + $0x240] sm:$0xff]
      %v259 = vld [vmem:[%s169 + $0x248] sm:$0xff]
      %v260 = vld [vmem:[%s169 + $0x250] sm:$0xff]
      %v261 = vld [vmem:[%s169 + $0x258] sm:$0xff]
      %v262 = vld [vmem:[%s169 + $0x260] sm:$0xf]
      %v263 = vld [vmem:[%s169 + $0x264] sm:$0xff]
      %v264 = vld [vmem:[%s169 + $0x26c] sm:$0xff]
      %v265 = vld [vmem:[%s169 + $0x274] sm:$0xff]
      %v266 = vld [vmem:[%s169 + $0x27c] sm:$0xff]
      %v267 = vld [vmem:[%s169 + $0x284] sm:$0xf]
      %v268 = vld [vmem:[%s169 + $0x288] sm:$0xff]
      %v269 = vld [vmem:[%s169 + $0x290] sm:$0xff]
      %v270 = vld [vmem:[%s169 + $0x298] sm:$0xff]
      %v271 = vld [vmem:[%s169 + $0x2a0] sm:$0xff]
      %v272 = vld [vmem:[%s169 + $0x2a8] sm:$0xf]
      %v273 = vld [vmem:[%s169 + $0x2ac] sm:$0xff]
      %v274 = vld [vmem:[%s169 + $0x2b4] sm:$0xff]
      %v275 = vld [vmem:[%s169 + $0x2bc] sm:$0xff]
      %v276 = vld [vmem:[%s169 + $0x2c4] sm:$0xff]
      %v277 = vld [vmem:[%s169 + $0x2cc] sm:$0xf]
      %v278 = vld [vmem:[%s169 + $0x2d0] sm:$0xff]
      %v279 = vld [vmem:[%s169 + $0x2d8] sm:$0xff]
      %v280 = vld [vmem:[%s169 + $0x2e0] sm:$0xff]
      %v281 = vld [vmem:[%s169 + $0x2e8] sm:$0xff]
      %v282 = vld [vmem:[%s169 + $0x2f0] sm:$0xf]
      %v283 = vld [vmem:[%s169 + $0x2f4] sm:$0xff]
      %v284 = vld [vmem:[%s169 + $0x2fc] sm:$0xff]
      %v285 = vld [vmem:[%s169 + $0x304] sm:$0xff]
      %v286 = vld [vmem:[%s169 + $0x30c] sm:$0xff]
      %v287 = vld [vmem:[%s169 + $0x314] sm:$0xf]
      %v288 = vld [vmem:[%s169 + $0x318] sm:$0xff]
      %v289 = vld [vmem:[%s169 + $0x320] sm:$0xff]
      %v290 = vld [vmem:[%s169 + $0x328] sm:$0xff]
      %v291 = vld [vmem:[%s169 + $0x330] sm:$0xff]
      %v292 = vld [vmem:[%s169 + $0x338] sm:$0xf]
      %v293 = vld [vmem:[%s169 + $0x33c] sm:$0xff]
      %v294 = vld [vmem:[%s169 + $0x344] sm:$0xff]
      %v295 = vld [vmem:[%s169 + $0x34c] sm:$0xff]
      %v296 = vld [vmem:[%s169 + $0x354] sm:$0xff]
      %v297 = vld [vmem:[%s169 + $0x35c] sm:$0xf]
      %v298 = vld [vmem:[%s169 + $0x360] sm:$0xff]
      %v299 = vld [vmem:[%s169 + $0x368] sm:$0xff]
      %v300 = vld [vmem:[%s169 + $0x370] sm:$0xff]
      %v301 = vld [vmem:[%s169 + $0x378] sm:$0xff]
      %v302 = vld [vmem:[%s169 + $0x380] sm:$0xf]
      %v303 = vld [vmem:[%s169 + $0x384] sm:$0xff]
      %v304 = vld [vmem:[%s169 + $0x38c] sm:$0xff]
      %v305 = vld [vmem:[%s169 + $0x394] sm:$0xff]
      %v306 = vld [vmem:[%s169 + $0x39c] sm:$0xff]
      %v307 = vld [vmem:[%s169 + $0x3a4] sm:$0xf]
      %v308 = vld [vmem:[%s169 + $0x3a8] sm:$0xff]
      %v309 = vld [vmem:[%s169 + $0x3b0] sm:$0xff]
      %v310 = vld [vmem:[%s169 + $0x3b8] sm:$0xff]
      %v311 = vld [vmem:[%s169 + $0x3c0] sm:$0xff]
      %v312 = vld [vmem:[%s169 + $0x3c8] sm:$0xf]
      %v313 = vld [vmem:[%s169 + $0x3cc] sm:$0xff]
      %v314 = vld [vmem:[%s169 + $0x3d4] sm:$0xff]
      %v315 = vld [vmem:[%s169 + $0x3dc] sm:$0xff]
      %v316 = vld [vmem:[%s169 + $0x3e4] sm:$0xff]
      %v317 = vld [vmem:[%s169 + $0x3ec] sm:$0xf]
      %v318 = vld [vmem:[%s169 + $0x3f0] sm:$0xff]
      %v319 = vld [vmem:[%s169 + $0x3f8] sm:$0xff]
      %v320 = vld [vmem:[%s169 + $0x400] sm:$0xff]
      %v321 = vld [vmem:[%s169 + $0x408] sm:$0xff]
      %v322 = vld [vmem:[%s169 + $0x410] sm:$0xf]
      %v323 = vld [vmem:[%s169 + $0x414] sm:$0xff]
      %v324 = vld [vmem:[%s169 + $0x41c] sm:$0xff]
      %v325 = vld [vmem:[%s169 + $0x424] sm:$0xff]
      %v326 = vld [vmem:[%s169 + $0x42c] sm:$0xff]
      %v327 = vld [vmem:[%s169 + $0x434] sm:$0xf]
      %v328 = vld [vmem:[%s169 + $0x438] sm:$0xff]
      %v329 = vld [vmem:[%s169 + $0x440] sm:$0xff]
      %v330 = vld [vmem:[%s169 + $0x448] sm:$0xff]
      %v331 = vld [vmem:[%s169 + $0x450] sm:$0xff]
      %v332 = vld [vmem:[%s169 + $0x458] sm:$0xf]
      %v333 = vld [vmem:[%s169 + $0x45c] sm:$0xff]
      %v334 = vld [vmem:[%s169 + $0x464] sm:$0xff]
      %v335 = vld [vmem:[%s169 + $0x46c] sm:$0xff]
      %v336 = vld [vmem:[%s169 + $0x474] sm:$0xff]
      %v337 = vld [vmem:[%s169 + $0x47c] sm:$0xf]
      %v338 = vld [vmem:[%s169 + $0x480] sm:$0xff]
      %v339 = vld [vmem:[%s169 + $0x488] sm:$0xff]
      %v340 = vld [vmem:[%s169 + $0x490] sm:$0xff]
      %v341 = vld [vmem:[%s169 + $0x498] sm:$0xff]
      %v342 = vld [vmem:[%s169 + $0x4a0] sm:$0xf]
      %v343 = vld [vmem:[%s169 + $0x4a4] sm:$0xff]
      %v344 = vld [vmem:[%s169 + $0x4ac] sm:$0xff]
      %v345 = vld [vmem:[%s169 + $0x4b4] sm:$0xff]
      %v346 = vld [vmem:[%s169 + $0x4bc] sm:$0xff]
      %v347 = vld [vmem:[%s169 + $0x4c4] sm:$0xf]
      %v348 = vld [vmem:[%s169 + $0x4c8] sm:$0xff]
      %v349 = vld [vmem:[%s169 + $0x4d0] sm:$0xff]
      %v350 = vld [vmem:[%s169 + $0x4d8] sm:$0xff]
      %v351 = vld [vmem:[%s169 + $0x4e0] sm:$0xff]
      %v352 = vld [vmem:[%s169 + $0x4e8] sm:$0xf]
      %v353 = vld [vmem:[%s169 + $0x4ec] sm:$0xff]
      %v354 = vld [vmem:[%s169 + $0x4f4] sm:$0xff]
      %v355 = vld [vmem:[%s169 + $0x4fc] sm:$0xff]
      %v356 = vld [vmem:[%s169 + $0x504] sm:$0xff]
      %v357 = vld [vmem:[%s169 + $0x50c] sm:$0xf]
      %v358 = vld [vmem:[%s169 + $0x510] sm:$0xff]
      %v359 = vld [vmem:[%s169 + $0x518] sm:$0xff]
      %v360 = vld [vmem:[%s169 + $0x520] sm:$0xff]
      %v361 = vld [vmem:[%s169 + $0x528] sm:$0xff]
      %v362 = vld [vmem:[%s169 + $0x530] sm:$0xf]
      %v363 = vld [vmem:[%s169 + $0x534] sm:$0xff]
      %v364 = vld [vmem:[%s169 + $0x53c] sm:$0xff]
      %v365 = vld [vmem:[%s169 + $0x544] sm:$0xff]
      %v366 = vld [vmem:[%s169 + $0x54c] sm:$0xff]
      %v367 = vld [vmem:[%s169 + $0x554] sm:$0xf]
      %v368 = vld [vmem:[%s169 + $0x558] sm:$0xff]
      %v369 = vld [vmem:[%s169 + $0x560] sm:$0xff]
      %v370 = vld [vmem:[%s169 + $0x568] sm:$0xff]
      %v371 = vld [vmem:[%s169 + $0x570] sm:$0xff]
      %v372 = vld [vmem:[%s169 + $0x578] sm:$0xf]
      %v373 = vld [vmem:[%s169 + $0x57c] sm:$0xff]
      %v374 = vld [vmem:[%s169 + $0x584] sm:$0xff]
      %v375 = vld [vmem:[%s169 + $0x58c] sm:$0xff]
      %v376 = vld [vmem:[%s169 + $0x594] sm:$0xff]
      %v377 = vld [vmem:[%s169 + $0x59c] sm:$0xf]
      %v378 = vld [vmem:[%s169 + $0x5a0] sm:$0xff]
      %v379 = vld [vmem:[%s169 + $0x5a8] sm:$0xff]
      %v380 = vld [vmem:[%s169 + $0x5b0] sm:$0xff]
      %v381 = vld [vmem:[%s169 + $0x5b8] sm:$0xff]
      %v382 = vld [vmem:[%s169 + $0x5c0] sm:$0xf]
      %v383 = vld [vmem:[%s169 + $0x5c4] sm:$0xff]
      %v384 = vld [vmem:[%s169 + $0x5cc] sm:$0xff]
      %v385 = vld [vmem:[%s169 + $0x5d4] sm:$0xff]
      %v386 = vld [vmem:[%s169 + $0x5dc] sm:$0xff]
      %v387 = vld [vmem:[%s169 + $0x5e4] sm:$0xf]
      %v388 = vld [vmem:[%s169 + $0x5e8] sm:$0xff]
      %v389 = vld [vmem:[%s169 + $0x5f0] sm:$0xff]
      %v390 = vld [vmem:[%s169 + $0x5f8] sm:$0xff]
      %v391 = vld [vmem:[%s169 + $0x600] sm:$0xff]
      %v392 = vld [vmem:[%s169 + $0x608] sm:$0xf]
      %v393 = vld [vmem:[%s169 + $0x60c] sm:$0xff]
      %v394 = vld [vmem:[%s169 + $0x614] sm:$0xff]
      %v395 = vld [vmem:[%s169 + $0x61c] sm:$0xff]
      %v396 = vld [vmem:[%s169 + $0x624] sm:$0xff]
      %v397 = vld [vmem:[%s169 + $0x62c] sm:$0xf]
      %v398 = vld [vmem:[%s169 + $0x630] sm:$0xff]
      %v399 = vld [vmem:[%s169 + $0x638] sm:$0xff]
      %v400 = vld [vmem:[%s169 + $0x640] sm:$0xff]
      %v401 = vld [vmem:[%s169 + $0x648] sm:$0xff]
      %v402 = vld [vmem:[%s169 + $0x650] sm:$0xf]
      %v403 = vld [vmem:[%s169 + $0x654] sm:$0xff]
      %v404 = vld [vmem:[%s169 + $0x65c] sm:$0xff]
      %v405 = vld [vmem:[%s169 + $0x664] sm:$0xff]
      %v406 = vld [vmem:[%s169 + $0x66c] sm:$0xff]
      %v407 = vld [vmem:[%s169 + $0x674] sm:$0xf]
      %v408 = vld [vmem:[%s169 + $0x678] sm:$0xff]
      %v409 = vld [vmem:[%s169 + $0x680] sm:$0xff]
      %v410 = vld [vmem:[%s169 + $0x688] sm:$0xff]
      %v411 = vld [vmem:[%s169 + $0x690] sm:$0xff]
      %v412 = vld [vmem:[%s169 + $0x698] sm:$0xf]
      %v413 = vld [vmem:[%s169 + $0x69c] sm:$0xff]
      %v414 = vld [vmem:[%s169 + $0x6a4] sm:$0xff]
      %v415 = vld [vmem:[%s169 + $0x6ac] sm:$0xff]
      %v416 = vld [vmem:[%s169 + $0x6b4] sm:$0xff]
      %v417 = vld [vmem:[%s169 + $0x6bc] sm:$0xf]
      %v418 = vld [vmem:[%s169 + $0x6c0] sm:$0xff]
      %v419 = vld [vmem:[%s169 + $0x6c8] sm:$0xff]
      %v420 = vld [vmem:[%s169 + $0x6d0] sm:$0xff]
      %v421 = vld [vmem:[%s169 + $0x6d8] sm:$0xff]
      %v422 = vld [vmem:[%s169 + $0x6e0] sm:$0xf]
      %v423 = vld [vmem:[%s169 + $0x6e4] sm:$0xff]
      %v424 = vld [vmem:[%s169 + $0x6ec] sm:$0xff]
      %v425 = vld [vmem:[%s169 + $0x6f4] sm:$0xff]
      %v426 = vld [vmem:[%s169 + $0x6fc] sm:$0xff]
      %v427 = vld [vmem:[%s169 + $0x704] sm:$0xf]
      %v428 = vld [vmem:[%s169 + $0x708] sm:$0xff]
      %v429 = vld [vmem:[%s169 + $0x710] sm:$0xff]
      %v430 = vld [vmem:[%s169 + $0x718] sm:$0xff]
      %v431 = vld [vmem:[%s169 + $0x720] sm:$0xff]
      %v432 = vld [vmem:[%s169 + $0x728] sm:$0xf]
      %v433 = vld [vmem:[%s169 + $0x72c] sm:$0xff]
      %v434 = vld [vmem:[%s169 + $0x734] sm:$0xff]
      %v435 = vld [vmem:[%s169 + $0x73c] sm:$0xff]
      %v436 = vld [vmem:[%s169 + $0x744] sm:$0xff]
      %v437 = vld [vmem:[%s169 + $0x74c] sm:$0xf]
      %v438 = vld [vmem:[%s169 + $0x750] sm:$0xff]
      %v439 = vld [vmem:[%s169 + $0x758] sm:$0xff]
      %v440 = vld [vmem:[%s169 + $0x760] sm:$0xff]
      %v441 = vld [vmem:[%s169 + $0x768] sm:$0xff]
      %v442 = vld [vmem:[%s169 + $0x770] sm:$0xf]
      %v443 = vld [vmem:[%s169 + $0x774] sm:$0xff]
      %v444 = vld [vmem:[%s169 + $0x77c] sm:$0xff]
      %v445 = vld [vmem:[%s169 + $0x784] sm:$0xff]
      %v446 = vld [vmem:[%s169 + $0x78c] sm:$0xff]
      %v447 = vld [vmem:[%s169 + $0x794] sm:$0xf]
      %v448 = vld [vmem:[%s169 + $0x798] sm:$0xff]
      %v449 = vld [vmem:[%s169 + $0x7a0] sm:$0xff]
      %v450 = vld [vmem:[%s169 + $0x7a8] sm:$0xff]
      %v451 = vld [vmem:[%s169 + $0x7b0] sm:$0xff]
      %v452 = vld [vmem:[%s169 + $0x7b8] sm:$0xf]
      %v453 = vld [vmem:[%s169 + $0x7bc] sm:$0xff]
      %v454 = vld [vmem:[%s169 + $0x7c4] sm:$0xff]
      %v455 = vld [vmem:[%s169 + $0x7cc] sm:$0xff]
      %v456 = vld [vmem:[%s169 + $0x7d4] sm:$0xff]
      %v457 = vld [vmem:[%s169 + $0x7dc] sm:$0xf]
      %v458 = vld [vmem:[%s169 + $0x7e0] sm:$0xff]
      %v459 = vld [vmem:[%s169 + $0x7e8] sm:$0xff]
      %v460 = vld [vmem:[%s169 + $0x7f0] sm:$0xff]
      %v461 = vld [vmem:[%s169 + $0x7f8] sm:$0xff]
      %v462 = vld [vmem:[%s169 + $0x800] sm:$0xf]
      %v463 = vld [vmem:[%s169 + $0x804] sm:$0xff]
      %v464 = vld [vmem:[%s169 + $0x80c] sm:$0xff]
      %v465 = vld [vmem:[%s169 + $0x814] sm:$0xff]
      %v466 = vld [vmem:[%s169 + $0x81c] sm:$0xff]
      %v467 = vld [vmem:[%s169 + $0x824] sm:$0xf]
      %v468 = vld [vmem:[%s169 + $0x828] sm:$0xff]
      %v469 = vld [vmem:[%s169 + $0x830] sm:$0xff]
      %v470 = vld [vmem:[%s169 + $0x838] sm:$0xff]
      %v471 = vld [vmem:[%s169 + $0x840] sm:$0xff]
      %v472 = vld [vmem:[%s169 + $0x848] sm:$0xf]
      %v473 = vld [vmem:[%s169 + $0x84c] sm:$0xff]
      %v474 = vld [vmem:[%s169 + $0x854] sm:$0xff]
      %v475 = vld [vmem:[%s169 + $0x85c] sm:$0xff]
      %v476 = vld [vmem:[%s169 + $0x864] sm:$0xff]
      %v477 = vld [vmem:[%s169 + $0x86c] sm:$0xf]
      %v478 = vld [vmem:[%s169 + $0x870] sm:$0xff]
      %v479 = vld [vmem:[%s169 + $0x878] sm:$0xff]
      %v480 = vld [vmem:[%s169 + $0x880] sm:$0xff]
      %v481 = vld [vmem:[%s169 + $0x888] sm:$0xff]
      %v482 = vld [vmem:[%s169 + $0x890] sm:$0xf]
      %v483 = vld [vmem:[%s169 + $0x894] sm:$0xff]
      %v484 = vld [vmem:[%s169 + $0x89c] sm:$0xff]
      %v485 = vld [vmem:[%s169 + $0x8a4] sm:$0xff]
      %v486 = vld [vmem:[%s169 + $0x8ac] sm:$0xff]
      %v487 = vld [vmem:[%s169 + $0x8b4] sm:$0xf]
      %v488 = vld [vmem:[%s169 + $0x8b8] sm:$0xff]
      %v489 = vld [vmem:[%s169 + $0x8c0] sm:$0xff]
      %v490 = vld [vmem:[%s169 + $0x8c8] sm:$0xff]
      %v491 = vld [vmem:[%s169 + $0x8d0] sm:$0xff]
      %v492 = vld [vmem:[%s169 + $0x8d8] sm:$0xf]
      %v493 = vld [vmem:[%s169 + $0x8dc] sm:$0xff]
      %v494 = vld [vmem:[%s169 + $0x8e4] sm:$0xff]
      %v495 = vld [vmem:[%s169 + $0x8ec] sm:$0xff]
      %v496 = vld [vmem:[%s169 + $0x8f4] sm:$0xff]
      %v497 = vld [vmem:[%s169 + $0x8fc] sm:$0xf]
      %v498 = vmax.bf16 %v178, 0
      %v499 = vmax.bf16 %v179, 0
      %v500 = vmax.bf16 %v180, 0
      %v501 = vmax.bf16 %v181, 0
      %v502 = vmax.bf16 %v182, 0
      %v503 = vmax.bf16 %v183, 0
      %v504 = vmax.bf16 %v184, 0
      %v505 = vmax.bf16 %v185, 0
      %v506 = vmax.bf16 %v186, 0
      %v507 = vmax.bf16 %v187, 0
      %v508 = vmax.bf16 %v188, 0
      %v509 = vmax.bf16 %v189, 0
      %v510 = vmax.bf16 %v190, 0
      %v511 = vmax.bf16 %v191, 0
      %v512 = vmax.bf16 %v192, 0
      %v513 = vmax.bf16 %v193, 0
      %v514 = vmax.bf16 %v194, 0
      %v515 = vmax.bf16 %v195, 0
      %v516 = vmax.bf16 %v196, 0
      %v517 = vmax.bf16 %v197, 0
      %v518 = vmax.bf16 %v198, 0
      %v519 = vmax.bf16 %v199, 0
      %v520 = vmax.bf16 %v200, 0
      %v521 = vmax.bf16 %v201, 0
      %v522 = vmax.bf16 %v202, 0
      %v523 = vmax.bf16 %v203, 0
      %v524 = vmax.bf16 %v204, 0
      %v525 = vmax.bf16 %v205, 0
      %v526 = vmax.bf16 %v206, 0
      %v527 = vmax.bf16 %v207, 0
      %v528 = vmax.bf16 %v208, 0
      %v529 = vmax.bf16 %v209, 0
      %v530 = vmax.bf16 %v210, 0
      %v531 = vmax.bf16 %v211, 0
      %v532 = vmax.bf16 %v212, 0
      %v533 = vmax.bf16 %v213, 0
      %v534 = vmax.bf16 %v214, 0
      %v535 = vmax.bf16 %v215, 0
      %v536 = vmax.bf16 %v216, 0
      %v537 = vmax.bf16 %v217, 0
      %v538 = vmax.bf16 %v218, 0
      %v539 = vmax.bf16 %v219, 0
      %v540 = vmax.bf16 %v220, 0
      %v541 = vmax.bf16 %v221, 0
      %v542 = vmax.bf16 %v222, 0
      %v543 = vmax.bf16 %v223, 0
      %v544 = vmax.bf16 %v224, 0
      %v545 = vmax.bf16 %v225, 0
      %v546 = vmax.bf16 %v226, 0
      %v547 = vmax.bf16 %v227, 0
      %v548 = vmax.bf16 %v228, 0
      %v549 = vmax.bf16 %v229, 0
      %v550 = vmax.bf16 %v230, 0
      %v551 = vmax.bf16 %v231, 0
      %v552 = vmax.bf16 %v232, 0
      %v553 = vmax.bf16 %v233, 0
      %v554 = vmax.bf16 %v234, 0
      %v555 = vmax.bf16 %v235, 0
      %v556 = vmax.bf16 %v236, 0
      %v557 = vmax.bf16 %v237, 0
      %v558 = vmax.bf16 %v238, 0
      %v559 = vmax.bf16 %v239, 0
      %v560 = vmax.bf16 %v240, 0
      %v561 = vmax.bf16 %v241, 0
      %v562 = vmax.bf16 %v242, 0
      %v563 = vmax.bf16 %v243, 0
      %v564 = vmax.bf16 %v244, 0
      %v565 = vmax.bf16 %v245, 0
      %v566 = vmax.bf16 %v246, 0
      %v567 = vmax.bf16 %v247, 0
      %v568 = vmax.bf16 %v248, 0
      %v569 = vmax.bf16 %v249, 0
      %v570 = vmax.bf16 %v250, 0
      %v571 = vmax.bf16 %v251, 0
      %v572 = vmax.bf16 %v252, 0
      %v573 = vmax.bf16 %v253, 0
      %v574 = vmax.bf16 %v254, 0
      %v575 = vmax.bf16 %v255, 0
      %v576 = vmax.bf16 %v256, 0
      %v577 = vmax.bf16 %v257, 0
      %v578 = vmax.bf16 %v258, 0
      %v579 = vmax.bf16 %v259, 0
      %v580 = vmax.bf16 %v260, 0
      %v581 = vmax.bf16 %v261, 0
      %v582 = vmax.bf16 %v262, 0
      %v583 = vmax.bf16 %v263, 0
      %v584 = vmax.bf16 %v264, 0
      %v585 = vmax.bf16 %v265, 0
      %v586 = vmax.bf16 %v266, 0
      %v587 = vmax.bf16 %v267, 0
      %v588 = vmax.bf16 %v268, 0
      %v589 = vmax.bf16 %v269, 0
      %v590 = vmax.bf16 %v270, 0
      %v591 = vmax.bf16 %v271, 0
      %v592 = vmax.bf16 %v272, 0
      %v593 = vmax.bf16 %v273, 0
      %v594 = vmax.bf16 %v274, 0
      %v595 = vmax.bf16 %v275, 0
      %v596 = vmax.bf16 %v276, 0
      %v597 = vmax.bf16 %v277, 0
      %v598 = vmax.bf16 %v278, 0
      %v599 = vmax.bf16 %v279, 0
      %v600 = vmax.bf16 %v280, 0
      %v601 = vmax.bf16 %v281, 0
      %v602 = vmax.bf16 %v282, 0
      %v603 = vmax.bf16 %v283, 0
      %v604 = vmax.bf16 %v284, 0
      %v605 = vmax.bf16 %v285, 0
      %v606 = vmax.bf16 %v286, 0
      %v607 = vmax.bf16 %v287, 0
      %v608 = vmax.bf16 %v288, 0
      %v609 = vmax.bf16 %v289, 0
      %v610 = vmax.bf16 %v290, 0
      %v611 = vmax.bf16 %v291, 0
      %v612 = vmax.bf16 %v292, 0
      %v613 = vmax.bf16 %v293, 0
      %v614 = vmax.bf16 %v294, 0
      %v615 = vmax.bf16 %v295, 0
      %v616 = vmax.bf16 %v296, 0
      %v617 = vmax.bf16 %v297, 0
      %v618 = vmax.bf16 %v298, 0
      %v619 = vmax.bf16 %v299, 0
      %v620 = vmax.bf16 %v300, 0
      %v621 = vmax.bf16 %v301, 0
      %v622 = vmax.bf16 %v302, 0
      %v623 = vmax.bf16 %v303, 0
      %v624 = vmax.bf16 %v304, 0
      %v625 = vmax.bf16 %v305, 0
      %v626 = vmax.bf16 %v306, 0
      %v627 = vmax.bf16 %v307, 0
      %v628 = vmax.bf16 %v308, 0
      %v629 = vmax.bf16 %v309, 0
      %v630 = vmax.bf16 %v310, 0
      %v631 = vmax.bf16 %v311, 0
      %v632 = vmax.bf16 %v312, 0
      %v633 = vmax.bf16 %v313, 0
      %v634 = vmax.bf16 %v314, 0
      %v635 = vmax.bf16 %v315, 0
      %v636 = vmax.bf16 %v316, 0
      %v637 = vmax.bf16 %v317, 0
      %v638 = vmax.bf16 %v318, 0
      %v639 = vmax.bf16 %v319, 0
      %v640 = vmax.bf16 %v320, 0
      %v641 = vmax.bf16 %v321, 0
      %v642 = vmax.bf16 %v322, 0
      %v643 = vmax.bf16 %v323, 0
      %v644 = vmax.bf16 %v324, 0
      %v645 = vmax.bf16 %v325, 0
      %v646 = vmax.bf16 %v326, 0
      %v647 = vmax.bf16 %v327, 0
      %v648 = vmax.bf16 %v328, 0
      %v649 = vmax.bf16 %v329, 0
      %v650 = vmax.bf16 %v330, 0
      %v651 = vmax.bf16 %v331, 0
      %v652 = vmax.bf16 %v332, 0
      %v653 = vmax.bf16 %v333, 0
      %v654 = vmax.bf16 %v334, 0
      %v655 = vmax.bf16 %v335, 0
      %v656 = vmax.bf16 %v336, 0
      %v657 = vmax.bf16 %v337, 0
      %v658 = vmax.bf16 %v338, 0
      %v659 = vmax.bf16 %v339, 0
      %v660 = vmax.bf16 %v340, 0
      %v661 = vmax.bf16 %v341, 0
      %v662 = vmax.bf16 %v342, 0
      %v663 = vmax.bf16 %v343, 0
      %v664 = vmax.bf16 %v344, 0
      %v665 = vmax.bf16 %v345, 0
      %v666 = vmax.bf16 %v346, 0
      %v667 = vmax.bf16 %v347, 0
      %v668 = vmax.bf16 %v348, 0
      %v669 = vmax.bf16 %v349, 0
      %v670 = vmax.bf16 %v350, 0
      %v671 = vmax.bf16 %v351, 0
      %v672 = vmax.bf16 %v352, 0
      %v673 = vmax.bf16 %v353, 0
      %v674 = vmax.bf16 %v354, 0
      %v675 = vmax.bf16 %v355, 0
      %v676 = vmax.bf16 %v356, 0
      %v677 = vmax.bf16 %v357, 0
      %v678 = vmax.bf16 %v358, 0
      %v679 = vmax.bf16 %v359, 0
      %v680 = vmax.bf16 %v360, 0
      %v681 = vmax.bf16 %v361, 0
      %v682 = vmax.bf16 %v362, 0
      %v683 = vmax.bf16 %v363, 0
      %v684 = vmax.bf16 %v364, 0
      %v685 = vmax.bf16 %v365, 0
      %v686 = vmax.bf16 %v366, 0
      %v687 = vmax.bf16 %v367, 0
      %v688 = vmax.bf16 %v368, 0
      %v689 = vmax.bf16 %v369, 0
      %v690 = vmax.bf16 %v370, 0
      %v691 = vmax.bf16 %v371, 0
      %v692 = vmax.bf16 %v372, 0
      %v693 = vmax.bf16 %v373, 0
      %v694 = vmax.bf16 %v374, 0
      %v695 = vmax.bf16 %v375, 0
      %v696 = vmax.bf16 %v376, 0
      %v697 = vmax.bf16 %v377, 0
      %v698 = vmax.bf16 %v378, 0
      %v699 = vmax.bf16 %v379, 0
      %v700 = vmax.bf16 %v380, 0
      %v701 = vmax.bf16 %v381, 0
      %v702 = vmax.bf16 %v382, 0
      %v703 = vmax.bf16 %v383, 0
      %v704 = vmax.bf16 %v384, 0
      %v705 = vmax.bf16 %v385, 0
      %v706 = vmax.bf16 %v386, 0
      %v707 = vmax.bf16 %v387, 0
      %v708 = vmax.bf16 %v388, 0
      %v709 = vmax.bf16 %v389, 0
      %v710 = vmax.bf16 %v390, 0
      %v711 = vmax.bf16 %v391, 0
      %v712 = vmax.bf16 %v392, 0
      %v713 = vmax.bf16 %v393, 0
      %v714 = vmax.bf16 %v394, 0
      %v715 = vmax.bf16 %v395, 0
      %v716 = vmax.bf16 %v396, 0
      %v717 = vmax.bf16 %v397, 0
      %v718 = vmax.bf16 %v398, 0
      %v719 = vmax.bf16 %v399, 0
      %v720 = vmax.bf16 %v400, 0
      %v721 = vmax.bf16 %v401, 0
      %v722 = vmax.bf16 %v402, 0
      %v723 = vmax.bf16 %v403, 0
      %v724 = vmax.bf16 %v404, 0
      %v725 = vmax.bf16 %v405, 0
      %v726 = vmax.bf16 %v406, 0
      %v727 = vmax.bf16 %v407, 0
      %v728 = vmax.bf16 %v408, 0
      %v729 = vmax.bf16 %v409, 0
      %v730 = vmax.bf16 %v410, 0
      %v731 = vmax.bf16 %v411, 0
      %v732 = vmax.bf16 %v412, 0
      %v733 = vmax.bf16 %v413, 0
      %v734 = vmax.bf16 %v414, 0
      %v735 = vmax.bf16 %v415, 0
      %v736 = vmax.bf16 %v416, 0
      %v737 = vmax.bf16 %v417, 0
      %v738 = vmax.bf16 %v418, 0
      %v739 = vmax.bf16 %v419, 0
      %v740 = vmax.bf16 %v420, 0
      %v741 = vmax.bf16 %v421, 0
      %v742 = vmax.bf16 %v422, 0
      %v743 = vmax.bf16 %v423, 0
      %v744 = vmax.bf16 %v424, 0
      %v745 = vmax.bf16 %v425, 0
      %v746 = vmax.bf16 %v426, 0
      %v747 = vmax.bf16 %v427, 0
      %v748 = vmax.bf16 %v428, 0
      %v749 = vmax.bf16 %v429, 0
      %v750 = vmax.bf16 %v430, 0
      %v751 = vmax.bf16 %v431, 0
      %v752 = vmax.bf16 %v432, 0
      %v753 = vmax.bf16 %v433, 0
      %v754 = vmax.bf16 %v434, 0
      %v755 = vmax.bf16 %v435, 0
      %v756 = vmax.bf16 %v436, 0
      %v757 = vmax.bf16 %v437, 0
      %v758 = vmax.bf16 %v438, 0
      %v759 = vmax.bf16 %v439, 0
      %v760 = vmax.bf16 %v440, 0
      %v761 = vmax.bf16 %v441, 0
      %v762 = vmax.bf16 %v442, 0
      %v763 = vmax.bf16 %v443, 0
      %v764 = vmax.bf16 %v444, 0
      %v765 = vmax.bf16 %v445, 0
      %v766 = vmax.bf16 %v446, 0
      %v767 = vmax.bf16 %v447, 0
      %v768 = vmax.bf16 %v448, 0
      %v769 = vmax.bf16 %v449, 0
      %v770 = vmax.bf16 %v450, 0
      %v771 = vmax.bf16 %v451, 0
      %v772 = vmax.bf16 %v452, 0
      %v773 = vmax.bf16 %v453, 0
      %v774 = vmax.bf16 %v454, 0
      %v775 = vmax.bf16 %v455, 0
      %v776 = vmax.bf16 %v456, 0
      %v777 = vmax.bf16 %v457, 0
      %v778 = vmax.bf16 %v458, 0
      %v779 = vmax.bf16 %v459, 0
      %v780 = vmax.bf16 %v460, 0
      %v781 = vmax.bf16 %v461, 0
      %v782 = vmax.bf16 %v462, 0
      %v783 = vmax.bf16 %v463, 0
      %v784 = vmax.bf16 %v464, 0
      %v785 = vmax.bf16 %v465, 0
      %v786 = vmax.bf16 %v466, 0
      %v787 = vmax.bf16 %v467, 0
      %v788 = vmax.bf16 %v468, 0
      %v789 = vmax.bf16 %v469, 0
      %v790 = vmax.bf16 %v470, 0
      %v791 = vmax.bf16 %v471, 0
      %v792 = vmax.bf16 %v472, 0
      %v793 = vmax.bf16 %v473, 0
      %v794 = vmax.bf16 %v474, 0
      %v795 = vmax.bf16 %v475, 0
      %v796 = vmax.bf16 %v476, 0
      %v797 = vmax.bf16 %v477, 0
      %v798 = vmax.bf16 %v478, 0
      %v799 = vmax.bf16 %v479, 0
      %v800 = vmax.bf16 %v480, 0
      %v801 = vmax.bf16 %v481, 0
      %v802 = vmax.bf16 %v482, 0
      %v803 = vmax.bf16 %v483, 0
      %v804 = vmax.bf16 %v484, 0
      %v805 = vmax.bf16 %v485, 0
      %v806 = vmax.bf16 %v486, 0
      %v807 = vmax.bf16 %v487, 0
      %v808 = vmax.bf16 %v488, 0
      %v809 = vmax.bf16 %v489, 0
      %v810 = vmax.bf16 %v490, 0
      %v811 = vmax.bf16 %v491, 0
      %v812 = vmax.bf16 %v492, 0
      %v813 = vmax.bf16 %v493, 0
      %v814 = vmax.bf16 %v494, 0
      %v815 = vmax.bf16 %v495, 0
      %v816 = vmax.bf16 %v496, 0
      %v817 = vmax.bf16 %v497, 0
      %v818 = vld [vmem:[%s1] sm:$0xf]
      %v819 = vld [vmem:[%s1 + $0x4] sm:$0xf]
      %v820 = vld [vmem:[%s1 + $0x8] sm:$0xf]
      %v821 = vld [vmem:[%s1 + $0xc] sm:$0xf]
      %v822 = vld [vmem:[%s1 + $0x10] sm:$0xf]
      %v823 = vld [vmem:[%s1 + $0x14] sm:$0xf]
      %v824 = vld [vmem:[%s1 + $0x18] sm:$0xf]
      %v825 = vld [vmem:[%s1 + $0x1c] sm:$0xf]
      %v826 = vld [vmem:[%s1 + $0x20] sm:$0xf]
      %v827 = vld [vmem:[%s1 + $0x24] sm:$0xf]
      %v828 = vld [vmem:[%s1 + $0x28] sm:$0xf]
      %v829 = vld [vmem:[%s1 + $0x2c] sm:$0xf]
      %v830 = vld [vmem:[%s1 + $0x30] sm:$0xf]
      %v831 = vld [vmem:[%s1 + $0x34] sm:$0xf]
      %v832 = vld [vmem:[%s1 + $0x38] sm:$0xf]
      %v833 = vld [vmem:[%s1 + $0x3c] sm:$0xf]
      %v834 = vld [vmem:[%s1 + $0x40] sm:$0xf]
      %v835 = vld [vmem:[%s1 + $0x44] sm:$0xf]
      %v836 = vld [vmem:[%s1 + $0x48] sm:$0xf]
      %v837 = vld [vmem:[%s1 + $0x4c] sm:$0xf]
      %v838 = vld [vmem:[%s1 + $0x50] sm:$0xf]
      %v839 = vld [vmem:[%s1 + $0x54] sm:$0xf]
      %v840 = vld [vmem:[%s1 + $0x58] sm:$0xf]
      %v841 = vld [vmem:[%s1 + $0x5c] sm:$0xf]
      %v842 = vld [vmem:[%s1 + $0x60] sm:$0xf]
      %v843 = vld [vmem:[%s1 + $0x64] sm:$0xf]
      %v844 = vld [vmem:[%s1 + $0x68] sm:$0xf]
      %v845 = vld [vmem:[%s1 + $0x6c] sm:$0xf]
      %v846 = vld [vmem:[%s1 + $0x70] sm:$0xf]
      %v847 = vld [vmem:[%s1 + $0x74] sm:$0xf]
      %v848 = vld [vmem:[%s1 + $0x78] sm:$0xf]
      %v849 = vld [vmem:[%s1 + $0x7c] sm:$0xf]
      %v850 = vld [vmem:[%s1 + $0x80] sm:$0xf]
      %v851 = vld [vmem:[%s1 + $0x84] sm:$0xf]
      %v852 = vld [vmem:[%s1 + $0x88] sm:$0xf]
      %v853 = vld [vmem:[%s1 + $0x8c] sm:$0xf]
      %v854 = vld [vmem:[%s1 + $0x90] sm:$0xf]
      %v855 = vld [vmem:[%s1 + $0x94] sm:$0xf]
      %v856 = vld [vmem:[%s1 + $0x98] sm:$0xf]
      %v857 = vld [vmem:[%s1 + $0x9c] sm:$0xf]
      %v858 = vld [vmem:[%s1 + $0xa0] sm:$0xf]
      %v859 = vld [vmem:[%s1 + $0xa4] sm:$0xf]
      %v860 = vld [vmem:[%s1 + $0xa8] sm:$0xf]
      %v861 = vld [vmem:[%s1 + $0xac] sm:$0xf]
      %v862 = vld [vmem:[%s1 + $0xb0] sm:$0xf]
      %v863 = vld [vmem:[%s1 + $0xb4] sm:$0xf]
      %v864 = vld [vmem:[%s1 + $0xb8] sm:$0xf]
      %v865 = vld [vmem:[%s1 + $0xbc] sm:$0xf]
      %v866 = vld [vmem:[%s1 + $0xc0] sm:$0xf]
      %v867 = vld [vmem:[%s1 + $0xc4] sm:$0xf]
      %v868 = vld [vmem:[%s1 + $0xc8] sm:$0xf]
      %v869 = vld [vmem:[%s1 + $0xcc] sm:$0xf]
      %v870 = vld [vmem:[%s1 + $0xd0] sm:$0xf]
      %v871 = vld [vmem:[%s1 + $0xd4] sm:$0xf]
      %v872 = vld [vmem:[%s1 + $0xd8] sm:$0xf]
      %v873 = vld [vmem:[%s1 + $0xdc] sm:$0xf]
      %v874 = vld [vmem:[%s1 + $0xe0] sm:$0xf]
      %v875 = vld [vmem:[%s1 + $0xe4] sm:$0xf]
      %v876 = vld [vmem:[%s1 + $0xe8] sm:$0xf]
      %v877 = vld [vmem:[%s1 + $0xec] sm:$0xf]
      %v878 = vld [vmem:[%s1 + $0xf0] sm:$0xf]
      %v879 = vld [vmem:[%s1 + $0xf4] sm:$0xf]
      %v880 = vld [vmem:[%s1 + $0xf8] sm:$0xf]
      %v881 = vld [vmem:[%s1 + $0xfc] sm:$0xf]
      %v882 = vld [vmem:[%s1 + $0x100] sm:$0xf]
      %v883 = vld [vmem:[%s1 + $0x104] sm:$0xf]
      %v884 = vld [vmem:[%s1 + $0x108] sm:$0xf]
      %v885 = vld [vmem:[%s1 + $0x10c] sm:$0xf]
      %v886 = vld [vmem:[%s1 + $0x110] sm:$0xf]
      %v887 = vld [vmem:[%s1 + $0x114] sm:$0xf]
      %v888 = vld [vmem:[%s1 + $0x118] sm:$0xf]
      %v889 = vld [vmem:[%s1 + $0x11c] sm:$0xf]
      %v890 = vld [vmem:[%s1 + $0x120] sm:$0xf]
      %v891 = vld [vmem:[%s1 + $0x124] sm:$0xf]
      %v892 = vld [vmem:[%s1 + $0x128] sm:$0xf]
      %v893 = vld [vmem:[%s1 + $0x12c] sm:$0xf]
      %v894 = vld [vmem:[%s1 + $0x130] sm:$0xf]
      %v895 = vld [vmem:[%s1 + $0x134] sm:$0xf]
      %v896 = vld [vmem:[%s1 + $0x138] sm:$0xf]
      %v897 = vld [vmem:[%s1 + $0x13c] sm:$0xf]
      %v898 = vld [vmem:[%s1 + $0x140] sm:$0xf]
      %v899 = vld [vmem:[%s1 + $0x144] sm:$0xf]
      %v900 = vld [vmem:[%s1 + $0x148] sm:$0xf]
      %v901 = vld [vmem:[%s1 + $0x14c] sm:$0xf]
      %v902 = vld [vmem:[%s1 + $0x150] sm:$0xf]
      %v903 = vld [vmem:[%s1 + $0x154] sm:$0xf]
      %v904 = vld [vmem:[%s1 + $0x158] sm:$0xf]
      %v905 = vld [vmem:[%s1 + $0x15c] sm:$0xf]
      %v906 = vld [vmem:[%s1 + $0x160] sm:$0xf]
      %v907 = vld [vmem:[%s1 + $0x164] sm:$0xf]
      %v908 = vld [vmem:[%s1 + $0x168] sm:$0xf]
      %v909 = vld [vmem:[%s1 + $0x16c] sm:$0xf]
      %v910 = vld [vmem:[%s1 + $0x170] sm:$0xf]
      %v911 = vld [vmem:[%s1 + $0x174] sm:$0xf]
      %v912 = vld [vmem:[%s1 + $0x178] sm:$0xf]
      %v913 = vld [vmem:[%s1 + $0x17c] sm:$0xf]
      %v914 = vld [vmem:[%s1 + $0x180] sm:$0xf]
      %v915 = vld [vmem:[%s1 + $0x184] sm:$0xf]
      %v916 = vld [vmem:[%s1 + $0x188] sm:$0xf]
      %v917 = vld [vmem:[%s1 + $0x18c] sm:$0xf]
      %v918 = vld [vmem:[%s1 + $0x190] sm:$0xf]
      %v919 = vld [vmem:[%s1 + $0x194] sm:$0xf]
      %v920 = vld [vmem:[%s1 + $0x198] sm:$0xf]
      %v921 = vld [vmem:[%s1 + $0x19c] sm:$0xf]
      %v922 = vld [vmem:[%s1 + $0x1a0] sm:$0xf]
      %v923 = vld [vmem:[%s1 + $0x1a4] sm:$0xf]
      %v924 = vld [vmem:[%s1 + $0x1a8] sm:$0xf]
      %v925 = vld [vmem:[%s1 + $0x1ac] sm:$0xf]
      %v926 = vld [vmem:[%s1 + $0x1b0] sm:$0xf]
      %v927 = vld [vmem:[%s1 + $0x1b4] sm:$0xf]
      %v928 = vld [vmem:[%s1 + $0x1b8] sm:$0xf]
      %v929 = vld [vmem:[%s1 + $0x1bc] sm:$0xf]
      %v930 = vld [vmem:[%s1 + $0x1c0] sm:$0xf]
      %v931 = vld [vmem:[%s1 + $0x1c4] sm:$0xf]
      %v932 = vld [vmem:[%s1 + $0x1c8] sm:$0xf]
      %v933 = vld [vmem:[%s1 + $0x1cc] sm:$0xf]
      %v934 = vld [vmem:[%s1 + $0x1d0] sm:$0xf]
      %v935 = vld [vmem:[%s1 + $0x1d4] sm:$0xf]
      %v936 = vld [vmem:[%s1 + $0x1d8] sm:$0xf]
      %v937 = vld [vmem:[%s1 + $0x1dc] sm:$0xf]
      %v938 = vld [vmem:[%s1 + $0x1e0] sm:$0xf]
      %v939 = vld [vmem:[%s1 + $0x1e4] sm:$0xf]
      %v940 = vld [vmem:[%s1 + $0x1e8] sm:$0xf]
      %v941 = vld [vmem:[%s1 + $0x1ec] sm:$0xf]
      %v942 = vld [vmem:[%s1 + $0x1f0] sm:$0xf]
      %v943 = vld [vmem:[%s1 + $0x1f4] sm:$0xf]
      %v944 = vld [vmem:[%s1 + $0x1f8] sm:$0xf]
      %v945 = vld [vmem:[%s1 + $0x1fc] sm:$0xf]
      %v946 = vld [vmem:[%s1 + $0x200] sm:$0xf]
      %v947 = vld [vmem:[%s1 + $0x204] sm:$0xf]
      %v948 = vld [vmem:[%s1 + $0x208] sm:$0xf]
      %v949 = vld [vmem:[%s1 + $0x20c] sm:$0xf]
      %v950 = vld [vmem:[%s1 + $0x210] sm:$0xf]
      %v951 = vld [vmem:[%s1 + $0x214] sm:$0xf]
      %v952 = vld [vmem:[%s1 + $0x218] sm:$0xf]
      %v953 = vld [vmem:[%s1 + $0x21c] sm:$0xf]
      %v954 = vld [vmem:[%s1 + $0x220] sm:$0xf]
      %v955 = vld [vmem:[%s1 + $0x224] sm:$0xf]
      %v956 = vld [vmem:[%s1 + $0x228] sm:$0xf]
      %v957 = vld [vmem:[%s1 + $0x22c] sm:$0xf]
      %v958 = vld [vmem:[%s1 + $0x230] sm:$0xf]
      %v959 = vld [vmem:[%s1 + $0x234] sm:$0xf]
      %v960 = vld [vmem:[%s1 + $0x238] sm:$0xf]
      %v961 = vld [vmem:[%s1 + $0x23c] sm:$0xf]
      %v962 = vld [vmem:[%s2] sm:$0x1]
      %v964 = vlaneseq
      %v965 = vshrl.u32 %v964, 7
      %v966 = vsub.s32 0, %v965
      %v967 = vrot.slane %v962, %v966
      %v1289 = vunpack.c.l.b16 %v498
      %v1290 = vunpack.c.h.b16 %v498
      %v1291 = vunpack.c.l.b16 %v499
      %v1292 = vunpack.c.h.b16 %v499
      %v1293 = vunpack.c.l.b16 %v500
      %v1294 = vunpack.c.h.b16 %v500
      %v1295 = vunpack.c.l.b16 %v501
      %v1296 = vunpack.c.h.b16 %v501
      %v1297 = vunpack.c.l.b16 %v502
      %v1298 = vunpack.c.l.b16 %v503
      %v1299 = vunpack.c.h.b16 %v503
      %v1300 = vunpack.c.l.b16 %v504
      %v1301 = vunpack.c.h.b16 %v504
      %v1302 = vunpack.c.l.b16 %v505
      %v1303 = vunpack.c.h.b16 %v505
      %v1304 = vunpack.c.l.b16 %v506
      %v1305 = vunpack.c.h.b16 %v506
      %v1306 = vunpack.c.l.b16 %v507
      %v1307 = vunpack.c.l.b16 %v508
      %v1308 = vunpack.c.h.b16 %v508
      %v1309 = vunpack.c.l.b16 %v509
      %v1310 = vunpack.c.h.b16 %v509
      %v1311 = vunpack.c.l.b16 %v510
      %v1312 = vunpack.c.h.b16 %v510
      %v1313 = vunpack.c.l.b16 %v511
      %v1314 = vunpack.c.h.b16 %v511
      %v1315 = vunpack.c.l.b16 %v512
      %v1316 = vunpack.c.l.b16 %v513
      %v1317 = vunpack.c.h.b16 %v513
      %v1318 = vunpack.c.l.b16 %v514
      %v1319 = vunpack.c.h.b16 %v514
      %v1320 = vunpack.c.l.b16 %v515
      %v1321 = vunpack.c.h.b16 %v515
      %v1322 = vunpack.c.l.b16 %v516
      %v1323 = vunpack.c.h.b16 %v516
      %v1324 = vunpack.c.l.b16 %v517
      %v1325 = vunpack.c.l.b16 %v518
      %v1326 = vunpack.c.h.b16 %v518
      %v1327 = vunpack.c.l.b16 %v519
      %v1328 = vunpack.c.h.b16 %v519
      %v1329 = vunpack.c.l.b16 %v520
      %v1330 = vunpack.c.h.b16 %v520
      %v1331 = vunpack.c.l.b16 %v521
      %v1332 = vunpack.c.h.b16 %v521
      %v1333 = vunpack.c.l.b16 %v522
      %v1334 = vunpack.c.l.b16 %v523
      %v1335 = vunpack.c.h.b16 %v523
      %v1336 = vunpack.c.l.b16 %v524
      %v1337 = vunpack.c.h.b16 %v524
      %v1338 = vunpack.c.l.b16 %v525
      %v1339 = vunpack.c.h.b16 %v525
      %v1340 = vunpack.c.l.b16 %v526
      %v1341 = vunpack.c.h.b16 %v526
      %v1342 = vunpack.c.l.b16 %v527
      %v1343 = vunpack.c.l.b16 %v528
      %v1344 = vunpack.c.h.b16 %v528
      %v1345 = vunpack.c.l.b16 %v529
      %v1346 = vunpack.c.h.b16 %v529
      %v1347 = vunpack.c.l.b16 %v530
      %v1348 = vunpack.c.h.b16 %v530
      %v1349 = vunpack.c.l.b16 %v531
      %v1350 = vunpack.c.h.b16 %v531
      %v1351 = vunpack.c.l.b16 %v532
      %v1352 = vunpack.c.l.b16 %v533
      %v1353 = vunpack.c.h.b16 %v533
      %v1354 = vunpack.c.l.b16 %v534
      %v1355 = vunpack.c.h.b16 %v534
      %v1356 = vunpack.c.l.b16 %v535
      %v1357 = vunpack.c.h.b16 %v535
      %v1358 = vunpack.c.l.b16 %v536
      %v1359 = vunpack.c.h.b16 %v536
      %v1360 = vunpack.c.l.b16 %v537
      %v1361 = vunpack.c.l.b16 %v538
      %v1362 = vunpack.c.h.b16 %v538
      %v1363 = vunpack.c.l.b16 %v539
      %v1364 = vunpack.c.h.b16 %v539
      %v1365 = vunpack.c.l.b16 %v540
      %v1366 = vunpack.c.h.b16 %v540
      %v1367 = vunpack.c.l.b16 %v541
      %v1368 = vunpack.c.h.b16 %v541
      %v1369 = vunpack.c.l.b16 %v542
      %v1370 = vunpack.c.l.b16 %v543
      %v1371 = vunpack.c.h.b16 %v543
      %v1372 = vunpack.c.l.b16 %v544
      %v1373 = vunpack.c.h.b16 %v544
      %v1374 = vunpack.c.l.b16 %v545
      %v1375 = vunpack.c.h.b16 %v545
      %v1376 = vunpack.c.l.b16 %v546
      %v1377 = vunpack.c.h.b16 %v546
      %v1378 = vunpack.c.l.b16 %v547
      %v1379 = vunpack.c.l.b16 %v548
      %v1380 = vunpack.c.h.b16 %v548
      %v1381 = vunpack.c.l.b16 %v549
      %v1382 = vunpack.c.h.b16 %v549
      %v1383 = vunpack.c.l.b16 %v550
      %v1384 = vunpack.c.h.b16 %v550
      %v1385 = vunpack.c.l.b16 %v551
      %v1386 = vunpack.c.h.b16 %v551
      %v1387 = vunpack.c.l.b16 %v552
      %v1388 = vunpack.c.l.b16 %v553
      %v1389 = vunpack.c.h.b16 %v553
      %v1390 = vunpack.c.l.b16 %v554
      %v1391 = vunpack.c.h.b16 %v554
      %v1392 = vunpack.c.l.b16 %v555
      %v1393 = vunpack.c.h.b16 %v555
      %v1394 = vunpack.c.l.b16 %v556
      %v1395 = vunpack.c.h.b16 %v556
      %v1396 = vunpack.c.l.b16 %v557
      %v1397 = vunpack.c.l.b16 %v558
      %v1398 = vunpack.c.h.b16 %v558
      %v1399 = vunpack.c.l.b16 %v559
      %v1400 = vunpack.c.h.b16 %v559
      %v1401 = vunpack.c.l.b16 %v560
      %v1402 = vunpack.c.h.b16 %v560
      %v1403 = vunpack.c.l.b16 %v561
      %v1404 = vunpack.c.h.b16 %v561
      %v1405 = vunpack.c.l.b16 %v562
      %v1406 = vunpack.c.l.b16 %v563
      %v1407 = vunpack.c.h.b16 %v563
      %v1408 = vunpack.c.l.b16 %v564
      %v1409 = vunpack.c.h.b16 %v564
      %v1410 = vunpack.c.l.b16 %v565
      %v1411 = vunpack.c.h.b16 %v565
      %v1412 = vunpack.c.l.b16 %v566
      %v1413 = vunpack.c.h.b16 %v566
      %v1414 = vunpack.c.l.b16 %v567
      %v1415 = vunpack.c.l.b16 %v568
      %v1416 = vunpack.c.h.b16 %v568
      %v1417 = vunpack.c.l.b16 %v569
      %v1418 = vunpack.c.h.b16 %v569
      %v1419 = vunpack.c.l.b16 %v570
      %v1420 = vunpack.c.h.b16 %v570
      %v1421 = vunpack.c.l.b16 %v571
      %v1422 = vunpack.c.h.b16 %v571
      %v1423 = vunpack.c.l.b16 %v572
      %v1424 = vunpack.c.l.b16 %v573
      %v1425 = vunpack.c.h.b16 %v573
      %v1426 = vunpack.c.l.b16 %v574
      %v1427 = vunpack.c.h.b16 %v574
      %v1428 = vunpack.c.l.b16 %v575
      %v1429 = vunpack.c.h.b16 %v575
      %v1430 = vunpack.c.l.b16 %v576
      %v1431 = vunpack.c.h.b16 %v576
      %v1432 = vunpack.c.l.b16 %v577
      %v1433 = vunpack.c.l.b16 %v578
      %v1434 = vunpack.c.h.b16 %v578
      %v1435 = vunpack.c.l.b16 %v579
      %v1436 = vunpack.c.h.b16 %v579
      %v1437 = vunpack.c.l.b16 %v580
      %v1438 = vunpack.c.h.b16 %v580
      %v1439 = vunpack.c.l.b16 %v581
      %v1440 = vunpack.c.h.b16 %v581
      %v1441 = vunpack.c.l.b16 %v582
      %v1442 = vunpack.c.l.b16 %v583
      %v1443 = vunpack.c.h.b16 %v583
      %v1444 = vunpack.c.l.b16 %v584
      %v1445 = vunpack.c.h.b16 %v584
      %v1446 = vunpack.c.l.b16 %v585
      %v1447 = vunpack.c.h.b16 %v585
      %v1448 = vunpack.c.l.b16 %v586
      %v1449 = vunpack.c.h.b16 %v586
      %v1450 = vunpack.c.l.b16 %v587
      %v1451 = vunpack.c.l.b16 %v588
      %v1452 = vunpack.c.h.b16 %v588
      %v1453 = vunpack.c.l.b16 %v589
      %v1454 = vunpack.c.h.b16 %v589
      %v1455 = vunpack.c.l.b16 %v590
      %v1456 = vunpack.c.h.b16 %v590
      %v1457 = vunpack.c.l.b16 %v591
      %v1458 = vunpack.c.h.b16 %v591
      %v1459 = vunpack.c.l.b16 %v592
      %v1460 = vunpack.c.l.b16 %v593
      %v1461 = vunpack.c.h.b16 %v593
      %v1462 = vunpack.c.l.b16 %v594
      %v1463 = vunpack.c.h.b16 %v594
      %v1464 = vunpack.c.l.b16 %v595
      %v1465 = vunpack.c.h.b16 %v595
      %v1466 = vunpack.c.l.b16 %v596
      %v1467 = vunpack.c.h.b16 %v596
      %v1468 = vunpack.c.l.b16 %v597
      %v1469 = vunpack.c.l.b16 %v598
      %v1470 = vunpack.c.h.b16 %v598
      %v1471 = vunpack.c.l.b16 %v599
      %v1472 = vunpack.c.h.b16 %v599
      %v1473 = vunpack.c.l.b16 %v600
      %v1474 = vunpack.c.h.b16 %v600
      %v1475 = vunpack.c.l.b16 %v601
      %v1476 = vunpack.c.h.b16 %v601
      %v1477 = vunpack.c.l.b16 %v602
      %v1478 = vunpack.c.l.b16 %v603
      %v1479 = vunpack.c.h.b16 %v603
      %v1480 = vunpack.c.l.b16 %v604
      %v1481 = vunpack.c.h.b16 %v604
      %v1482 = vunpack.c.l.b16 %v605
      %v1483 = vunpack.c.h.b16 %v605
      %v1484 = vunpack.c.l.b16 %v606
      %v1485 = vunpack.c.h.b16 %v606
      %v1486 = vunpack.c.l.b16 %v607
      %v1487 = vunpack.c.l.b16 %v608
      %v1488 = vunpack.c.h.b16 %v608
      %v1489 = vunpack.c.l.b16 %v609
      %v1490 = vunpack.c.h.b16 %v609
      %v1491 = vunpack.c.l.b16 %v610
      %v1492 = vunpack.c.h.b16 %v610
      %v1493 = vunpack.c.l.b16 %v611
      %v1494 = vunpack.c.h.b16 %v611
      %v1495 = vunpack.c.l.b16 %v612
      %v1496 = vunpack.c.l.b16 %v613
      %v1497 = vunpack.c.h.b16 %v613
      %v1498 = vunpack.c.l.b16 %v614
      %v1499 = vunpack.c.h.b16 %v614
      %v1500 = vunpack.c.l.b16 %v615
      %v1501 = vunpack.c.h.b16 %v615
      %v1502 = vunpack.c.l.b16 %v616
      %v1503 = vunpack.c.h.b16 %v616
      %v1504 = vunpack.c.l.b16 %v617
      %v1505 = vunpack.c.l.b16 %v618
      %v1506 = vunpack.c.h.b16 %v618
      %v1507 = vunpack.c.l.b16 %v619
      %v1508 = vunpack.c.h.b16 %v619
      %v1509 = vunpack.c.l.b16 %v620
      %v1510 = vunpack.c.h.b16 %v620
      %v1511 = vunpack.c.l.b16 %v621
      %v1512 = vunpack.c.h.b16 %v621
      %v1513 = vunpack.c.l.b16 %v622
      %v1514 = vunpack.c.l.b16 %v623
      %v1515 = vunpack.c.h.b16 %v623
      %v1516 = vunpack.c.l.b16 %v624
      %v1517 = vunpack.c.h.b16 %v624
      %v1518 = vunpack.c.l.b16 %v625
      %v1519 = vunpack.c.h.b16 %v625
      %v1520 = vunpack.c.l.b16 %v626
      %v1521 = vunpack.c.h.b16 %v626
      %v1522 = vunpack.c.l.b16 %v627
      %v1523 = vunpack.c.l.b16 %v628
      %v1524 = vunpack.c.h.b16 %v628
      %v1525 = vunpack.c.l.b16 %v629
      %v1526 = vunpack.c.h.b16 %v629
      %v1527 = vunpack.c.l.b16 %v630
      %v1528 = vunpack.c.h.b16 %v630
      %v1529 = vunpack.c.l.b16 %v631
      %v1530 = vunpack.c.h.b16 %v631
      %v1531 = vunpack.c.l.b16 %v632
      %v1532 = vunpack.c.l.b16 %v633
      %v1533 = vunpack.c.h.b16 %v633
      %v1534 = vunpack.c.l.b16 %v634
      %v1535 = vunpack.c.h.b16 %v634
      %v1536 = vunpack.c.l.b16 %v635
      %v1537 = vunpack.c.h.b16 %v635
      %v1538 = vunpack.c.l.b16 %v636
      %v1539 = vunpack.c.h.b16 %v636
      %v1540 = vunpack.c.l.b16 %v637
      %v1541 = vunpack.c.l.b16 %v638
      %v1542 = vunpack.c.h.b16 %v638
      %v1543 = vunpack.c.l.b16 %v639
      %v1544 = vunpack.c.h.b16 %v639
      %v1545 = vunpack.c.l.b16 %v640
      %v1546 = vunpack.c.h.b16 %v640
      %v1547 = vunpack.c.l.b16 %v641
      %v1548 = vunpack.c.h.b16 %v641
      %v1549 = vunpack.c.l.b16 %v642
      %v1550 = vunpack.c.l.b16 %v643
      %v1551 = vunpack.c.h.b16 %v643
      %v1552 = vunpack.c.l.b16 %v644
      %v1553 = vunpack.c.h.b16 %v644
      %v1554 = vunpack.c.l.b16 %v645
      %v1555 = vunpack.c.h.b16 %v645
      %v1556 = vunpack.c.l.b16 %v646
      %v1557 = vunpack.c.h.b16 %v646
      %v1558 = vunpack.c.l.b16 %v647
      %v1559 = vunpack.c.l.b16 %v648
      %v1560 = vunpack.c.h.b16 %v648
      %v1561 = vunpack.c.l.b16 %v649
      %v1562 = vunpack.c.h.b16 %v649
      %v1563 = vunpack.c.l.b16 %v650
      %v1564 = vunpack.c.h.b16 %v650
      %v1565 = vunpack.c.l.b16 %v651
      %v1566 = vunpack.c.h.b16 %v651
      %v1567 = vunpack.c.l.b16 %v652
      %v1568 = vunpack.c.l.b16 %v653
      %v1569 = vunpack.c.h.b16 %v653
      %v1570 = vunpack.c.l.b16 %v654
      %v1571 = vunpack.c.h.b16 %v654
      %v1572 = vunpack.c.l.b16 %v655
      %v1573 = vunpack.c.h.b16 %v655
      %v1574 = vunpack.c.l.b16 %v656
      %v1575 = vunpack.c.h.b16 %v656
      %v1576 = vunpack.c.l.b16 %v657
      %v1577 = vunpack.c.l.b16 %v658
      %v1578 = vunpack.c.h.b16 %v658
      %v1579 = vunpack.c.l.b16 %v659
      %v1580 = vunpack.c.h.b16 %v659
      %v1581 = vunpack.c.l.b16 %v660
      %v1582 = vunpack.c.h.b16 %v660
      %v1583 = vunpack.c.l.b16 %v661
      %v1584 = vunpack.c.h.b16 %v661
      %v1585 = vunpack.c.l.b16 %v662
      %v1586 = vunpack.c.l.b16 %v663
      %v1587 = vunpack.c.h.b16 %v663
      %v1588 = vunpack.c.l.b16 %v664
      %v1589 = vunpack.c.h.b16 %v664
      %v1590 = vunpack.c.l.b16 %v665
      %v1591 = vunpack.c.h.b16 %v665
      %v1592 = vunpack.c.l.b16 %v666
      %v1593 = vunpack.c.h.b16 %v666
      %v1594 = vunpack.c.l.b16 %v667
      %v1595 = vunpack.c.l.b16 %v668
      %v1596 = vunpack.c.h.b16 %v668
      %v1597 = vunpack.c.l.b16 %v669
      %v1598 = vunpack.c.h.b16 %v669
      %v1599 = vunpack.c.l.b16 %v670
      %v1600 = vunpack.c.h.b16 %v670
      %v1601 = vunpack.c.l.b16 %v671
      %v1602 = vunpack.c.h.b16 %v671
      %v1603 = vunpack.c.l.b16 %v672
      %v1604 = vunpack.c.l.b16 %v673
      %v1605 = vunpack.c.h.b16 %v673
      %v1606 = vunpack.c.l.b16 %v674
      %v1607 = vunpack.c.h.b16 %v674
      %v1608 = vunpack.c.l.b16 %v675
      %v1609 = vunpack.c.h.b16 %v675
      %v1610 = vunpack.c.l.b16 %v676
      %v1611 = vunpack.c.h.b16 %v676
      %v1612 = vunpack.c.l.b16 %v677
      %v1613 = vunpack.c.l.b16 %v678
      %v1614 = vunpack.c.h.b16 %v678
      %v1615 = vunpack.c.l.b16 %v679
      %v1616 = vunpack.c.h.b16 %v679
      %v1617 = vunpack.c.l.b16 %v680
      %v1618 = vunpack.c.h.b16 %v680
      %v1619 = vunpack.c.l.b16 %v681
      %v1620 = vunpack.c.h.b16 %v681
      %v1621 = vunpack.c.l.b16 %v682
      %v1622 = vunpack.c.l.b16 %v683
      %v1623 = vunpack.c.h.b16 %v683
      %v1624 = vunpack.c.l.b16 %v684
      %v1625 = vunpack.c.h.b16 %v684
      %v1626 = vunpack.c.l.b16 %v685
      %v1627 = vunpack.c.h.b16 %v685
      %v1628 = vunpack.c.l.b16 %v686
      %v1629 = vunpack.c.h.b16 %v686
      %v1630 = vunpack.c.l.b16 %v687
      %v1631 = vunpack.c.l.b16 %v688
      %v1632 = vunpack.c.h.b16 %v688
      %v1633 = vunpack.c.l.b16 %v689
      %v1634 = vunpack.c.h.b16 %v689
      %v1635 = vunpack.c.l.b16 %v690
      %v1636 = vunpack.c.h.b16 %v690
      %v1637 = vunpack.c.l.b16 %v691
      %v1638 = vunpack.c.h.b16 %v691
      %v1639 = vunpack.c.l.b16 %v692
      %v1640 = vunpack.c.l.b16 %v693
      %v1641 = vunpack.c.h.b16 %v693
      %v1642 = vunpack.c.l.b16 %v694
      %v1643 = vunpack.c.h.b16 %v694
      %v1644 = vunpack.c.l.b16 %v695
      %v1645 = vunpack.c.h.b16 %v695
      %v1646 = vunpack.c.l.b16 %v696
      %v1647 = vunpack.c.h.b16 %v696
      %v1648 = vunpack.c.l.b16 %v697
      %v1649 = vunpack.c.l.b16 %v698
      %v1650 = vunpack.c.h.b16 %v698
      %v1651 = vunpack.c.l.b16 %v699
      %v1652 = vunpack.c.h.b16 %v699
      %v1653 = vunpack.c.l.b16 %v700
      %v1654 = vunpack.c.h.b16 %v700
      %v1655 = vunpack.c.l.b16 %v701
      %v1656 = vunpack.c.h.b16 %v701
      %v1657 = vunpack.c.l.b16 %v702
      %v1658 = vunpack.c.l.b16 %v703
      %v1659 = vunpack.c.h.b16 %v703
      %v1660 = vunpack.c.l.b16 %v704
      %v1661 = vunpack.c.h.b16 %v704
      %v1662 = vunpack.c.l.b16 %v705
      %v1663 = vunpack.c.h.b16 %v705
      %v1664 = vunpack.c.l.b16 %v706
      %v1665 = vunpack.c.h.b16 %v706
      %v1666 = vunpack.c.l.b16 %v707
      %v1667 = vunpack.c.l.b16 %v708
      %v1668 = vunpack.c.h.b16 %v708
      %v1669 = vunpack.c.l.b16 %v709
      %v1670 = vunpack.c.h.b16 %v709
      %v1671 = vunpack.c.l.b16 %v710
      %v1672 = vunpack.c.h.b16 %v710
      %v1673 = vunpack.c.l.b16 %v711
      %v1674 = vunpack.c.h.b16 %v711
      %v1675 = vunpack.c.l.b16 %v712
      %v1676 = vunpack.c.l.b16 %v713
      %v1677 = vunpack.c.h.b16 %v713
      %v1678 = vunpack.c.l.b16 %v714
      %v1679 = vunpack.c.h.b16 %v714
      %v1680 = vunpack.c.l.b16 %v715
      %v1681 = vunpack.c.h.b16 %v715
      %v1682 = vunpack.c.l.b16 %v716
      %v1683 = vunpack.c.h.b16 %v716
      %v1684 = vunpack.c.l.b16 %v717
      %v1685 = vunpack.c.l.b16 %v718
      %v1686 = vunpack.c.h.b16 %v718
      %v1687 = vunpack.c.l.b16 %v719
      %v1688 = vunpack.c.h.b16 %v719
      %v1689 = vunpack.c.l.b16 %v720
      %v1690 = vunpack.c.h.b16 %v720
      %v1691 = vunpack.c.l.b16 %v721
      %v1692 = vunpack.c.h.b16 %v721
      %v1693 = vunpack.c.l.b16 %v722
      %v1694 = vunpack.c.l.b16 %v723
      %v1695 = vunpack.c.h.b16 %v723
      %v1696 = vunpack.c.l.b16 %v724
      %v1697 = vunpack.c.h.b16 %v724
      %v1698 = vunpack.c.l.b16 %v725
      %v1699 = vunpack.c.h.b16 %v725
      %v1700 = vunpack.c.l.b16 %v726
      %v1701 = vunpack.c.h.b16 %v726
      %v1702 = vunpack.c.l.b16 %v727
      %v1703 = vunpack.c.l.b16 %v728
      %v1704 = vunpack.c.h.b16 %v728
      %v1705 = vunpack.c.l.b16 %v729
      %v1706 = vunpack.c.h.b16 %v729
      %v1707 = vunpack.c.l.b16 %v730
      %v1708 = vunpack.c.h.b16 %v730
      %v1709 = vunpack.c.l.b16 %v731
      %v1710 = vunpack.c.h.b16 %v731
      %v1711 = vunpack.c.l.b16 %v732
      %v1712 = vunpack.c.l.b16 %v733
      %v1713 = vunpack.c.h.b16 %v733
      %v1714 = vunpack.c.l.b16 %v734
      %v1715 = vunpack.c.h.b16 %v734
      %v1716 = vunpack.c.l.b16 %v735
      %v1717 = vunpack.c.h.b16 %v735
      %v1718 = vunpack.c.l.b16 %v736
      %v1719 = vunpack.c.h.b16 %v736
      %v1720 = vunpack.c.l.b16 %v737
      %v1721 = vunpack.c.l.b16 %v738
      %v1722 = vunpack.c.h.b16 %v738
      %v1723 = vunpack.c.l.b16 %v739
      %v1724 = vunpack.c.h.b16 %v739
      %v1725 = vunpack.c.l.b16 %v740
      %v1726 = vunpack.c.h.b16 %v740
      %v1727 = vunpack.c.l.b16 %v741
      %v1728 = vunpack.c.h.b16 %v741
      %v1729 = vunpack.c.l.b16 %v742
      %v1730 = vunpack.c.l.b16 %v743
      %v1731 = vunpack.c.h.b16 %v743
      %v1732 = vunpack.c.l.b16 %v744
      %v1733 = vunpack.c.h.b16 %v744
      %v1734 = vunpack.c.l.b16 %v745
      %v1735 = vunpack.c.h.b16 %v745
      %v1736 = vunpack.c.l.b16 %v746
      %v1737 = vunpack.c.h.b16 %v746
      %v1738 = vunpack.c.l.b16 %v747
      %v1739 = vunpack.c.l.b16 %v748
      %v1740 = vunpack.c.h.b16 %v748
      %v1741 = vunpack.c.l.b16 %v749
      %v1742 = vunpack.c.h.b16 %v749
      %v1743 = vunpack.c.l.b16 %v750
      %v1744 = vunpack.c.h.b16 %v750
      %v1745 = vunpack.c.l.b16 %v751
      %v1746 = vunpack.c.h.b16 %v751
      %v1747 = vunpack.c.l.b16 %v752
      %v1748 = vunpack.c.l.b16 %v753
      %v1749 = vunpack.c.h.b16 %v753
      %v1750 = vunpack.c.l.b16 %v754
      %v1751 = vunpack.c.h.b16 %v754
      %v1752 = vunpack.c.l.b16 %v755
      %v1753 = vunpack.c.h.b16 %v755
      %v1754 = vunpack.c.l.b16 %v756
      %v1755 = vunpack.c.h.b16 %v756
      %v1756 = vunpack.c.l.b16 %v757
      %v1757 = vunpack.c.l.b16 %v758
      %v1758 = vunpack.c.h.b16 %v758
      %v1759 = vunpack.c.l.b16 %v759
      %v1760 = vunpack.c.h.b16 %v759
      %v1761 = vunpack.c.l.b16 %v760
      %v1762 = vunpack.c.h.b16 %v760
      %v1763 = vunpack.c.l.b16 %v761
      %v1764 = vunpack.c.h.b16 %v761
      %v1765 = vunpack.c.l.b16 %v762
      %v1766 = vunpack.c.l.b16 %v763
      %v1767 = vunpack.c.h.b16 %v763
      %v1768 = vunpack.c.l.b16 %v764
      %v1769 = vunpack.c.h.b16 %v764
      %v1770 = vunpack.c.l.b16 %v765
      %v1771 = vunpack.c.h.b16 %v765
      %v1772 = vunpack.c.l.b16 %v766
      %v1773 = vunpack.c.h.b16 %v766
      %v1774 = vunpack.c.l.b16 %v767
      %v1775 = vunpack.c.l.b16 %v768
      %v1776 = vunpack.c.h.b16 %v768
      %v1777 = vunpack.c.l.b16 %v769
      %v1778 = vunpack.c.h.b16 %v769
      %v1779 = vunpack.c.l.b16 %v770
      %v1780 = vunpack.c.h.b16 %v770
      %v1781 = vunpack.c.l.b16 %v771
      %v1782 = vunpack.c.h.b16 %v771
      %v1783 = vunpack.c.l.b16 %v772
      %v1784 = vunpack.c.l.b16 %v773
      %v1785 = vunpack.c.h.b16 %v773
      %v1786 = vunpack.c.l.b16 %v774
      %v1787 = vunpack.c.h.b16 %v774
      %v1788 = vunpack.c.l.b16 %v775
      %v1789 = vunpack.c.h.b16 %v775
      %v1790 = vunpack.c.l.b16 %v776
      %v1791 = vunpack.c.h.b16 %v776
      %v1792 = vunpack.c.l.b16 %v777
      %v1793 = vunpack.c.l.b16 %v778
      %v1794 = vunpack.c.h.b16 %v778
      %v1795 = vunpack.c.l.b16 %v779
      %v1796 = vunpack.c.h.b16 %v779
      %v1797 = vunpack.c.l.b16 %v780
      %v1798 = vunpack.c.h.b16 %v780
      %v1799 = vunpack.c.l.b16 %v781
      %v1800 = vunpack.c.h.b16 %v781
      %v1801 = vunpack.c.l.b16 %v782
      %v1802 = vunpack.c.l.b16 %v783
      %v1803 = vunpack.c.h.b16 %v783
      %v1804 = vunpack.c.l.b16 %v784
      %v1805 = vunpack.c.h.b16 %v784
      %v1806 = vunpack.c.l.b16 %v785
      %v1807 = vunpack.c.h.b16 %v785
      %v1808 = vunpack.c.l.b16 %v786
      %v1809 = vunpack.c.h.b16 %v786
      %v1810 = vunpack.c.l.b16 %v787
      %v1811 = vunpack.c.l.b16 %v788
      %v1812 = vunpack.c.h.b16 %v788
      %v1813 = vunpack.c.l.b16 %v789
      %v1814 = vunpack.c.h.b16 %v789
      %v1815 = vunpack.c.l.b16 %v790
      %v1816 = vunpack.c.h.b16 %v790
      %v1817 = vunpack.c.l.b16 %v791
      %v1818 = vunpack.c.h.b16 %v791
      %v1819 = vunpack.c.l.b16 %v792
      %v1820 = vunpack.c.l.b16 %v793
      %v1821 = vunpack.c.h.b16 %v793
      %v1822 = vunpack.c.l.b16 %v794
      %v1823 = vunpack.c.h.b16 %v794
      %v1824 = vunpack.c.l.b16 %v795
      %v1825 = vunpack.c.h.b16 %v795
      %v1826 = vunpack.c.l.b16 %v796
      %v1827 = vunpack.c.h.b16 %v796
      %v1828 = vunpack.c.l.b16 %v797
      %v1829 = vunpack.c.l.b16 %v798
      %v1830 = vunpack.c.h.b16 %v798
      %v1831 = vunpack.c.l.b16 %v799
      %v1832 = vunpack.c.h.b16 %v799
      %v1833 = vunpack.c.l.b16 %v800
      %v1834 = vunpack.c.h.b16 %v800
      %v1835 = vunpack.c.l.b16 %v801
      %v1836 = vunpack.c.h.b16 %v801
      %v1837 = vunpack.c.l.b16 %v802
      %v1838 = vunpack.c.l.b16 %v803
      %v1839 = vunpack.c.h.b16 %v803
      %v1840 = vunpack.c.l.b16 %v804
      %v1841 = vunpack.c.h.b16 %v804
      %v1842 = vunpack.c.l.b16 %v805
      %v1843 = vunpack.c.h.b16 %v805
      %v1844 = vunpack.c.l.b16 %v806
      %v1845 = vunpack.c.h.b16 %v806
      %v1846 = vunpack.c.l.b16 %v807
      %v1847 = vunpack.c.l.b16 %v808
      %v1848 = vunpack.c.h.b16 %v808
      %v1849 = vunpack.c.l.b16 %v809
      %v1850 = vunpack.c.h.b16 %v809
      %v1851 = vunpack.c.l.b16 %v810
      %v1852 = vunpack.c.h.b16 %v810
      %v1853 = vunpack.c.l.b16 %v811
      %v1854 = vunpack.c.h.b16 %v811
      %v1855 = vunpack.c.l.b16 %v812
      %v1856 = vunpack.c.l.b16 %v813
      %v1857 = vunpack.c.h.b16 %v813
      %v1858 = vunpack.c.l.b16 %v814
      %v1859 = vunpack.c.h.b16 %v814
      %v1860 = vunpack.c.l.b16 %v815
      %v1861 = vunpack.c.h.b16 %v815
      %v1862 = vunpack.c.l.b16 %v816
      %v1863 = vunpack.c.h.b16 %v816
      %v1864 = vunpack.c.l.b16 %v817
      %v1865 = vpack.c.b16 %v1298, %v1289
      %v1866 = vpack.c.b16 %v1299, %v1290
      %v1867 = vpack.c.b16 %v1300, %v1291
      %v1868 = vpack.c.b16 %v1301, %v1292
      %v1869 = vpack.c.b16 %v1302, %v1293
      %v1870 = vpack.c.b16 %v1303, %v1294
      %v1871 = vpack.c.b16 %v1304, %v1295
      %v1872 = vpack.c.b16 %v1305, %v1296
      %v1873 = vpack.c.b16 %v1306, %v1297
      %v1874 = vpack.c.b16 %v1316, %v1307
      %v1875 = vpack.c.b16 %v1317, %v1308
      %v1876 = vpack.c.b16 %v1318, %v1309
      %v1877 = vpack.c.b16 %v1319, %v1310
      %v1878 = vpack.c.b16 %v1320, %v1311
      %v1879 = vpack.c.b16 %v1321, %v1312
      %v1880 = vpack.c.b16 %v1322, %v1313
      %v1881 = vpack.c.b16 %v1323, %v1314
      %v1882 = vpack.c.b16 %v1324, %v1315
      %v1883 = vpack.c.b16 %v1334, %v1325
      %v1884 = vpack.c.b16 %v1335, %v1326
      %v1885 = vpack.c.b16 %v1336, %v1327
      %v1886 = vpack.c.b16 %v1337, %v1328
      %v1887 = vpack.c.b16 %v1338, %v1329
      %v1888 = vpack.c.b16 %v1339, %v1330
      %v1889 = vpack.c.b16 %v1340, %v1331
      %v1890 = vpack.c.b16 %v1341, %v1332
      %v1891 = vpack.c.b16 %v1342, %v1333
      %v1892 = vpack.c.b16 %v1352, %v1343
      %v1893 = vpack.c.b16 %v1353, %v1344
      %v1894 = vpack.c.b16 %v1354, %v1345
      %v1895 = vpack.c.b16 %v1355, %v1346
      %v1896 = vpack.c.b16 %v1356, %v1347
      %v1897 = vpack.c.b16 %v1357, %v1348
      %v1898 = vpack.c.b16 %v1358, %v1349
      %v1899 = vpack.c.b16 %v1359, %v1350
      %v1900 = vpack.c.b16 %v1360, %v1351
      %v1901 = vpack.c.b16 %v1370, %v1361
      %v1902 = vpack.c.b16 %v1371, %v1362
      %v1903 = vpack.c.b16 %v1372, %v1363
      %v1904 = vpack.c.b16 %v1373, %v1364
      %v1905 = vpack.c.b16 %v1374, %v1365
      %v1906 = vpack.c.b16 %v1375, %v1366
      %v1907 = vpack.c.b16 %v1376, %v1367
      %v1908 = vpack.c.b16 %v1377, %v1368
      %v1909 = vpack.c.b16 %v1378, %v1369
      %v1910 = vpack.c.b16 %v1388, %v1379
      %v1911 = vpack.c.b16 %v1389, %v1380
      %v1912 = vpack.c.b16 %v1390, %v1381
      %v1913 = vpack.c.b16 %v1391, %v1382
      %v1914 = vpack.c.b16 %v1392, %v1383
      %v1915 = vpack.c.b16 %v1393, %v1384
      %v1916 = vpack.c.b16 %v1394, %v1385
      %v1917 = vpack.c.b16 %v1395, %v1386
      %v1918 = vpack.c.b16 %v1396, %v1387
      %v1919 = vpack.c.b16 %v1406, %v1397
      %v1920 = vpack.c.b16 %v1407, %v1398
      %v1921 = vpack.c.b16 %v1408, %v1399
      %v1922 = vpack.c.b16 %v1409, %v1400
      %v1923 = vpack.c.b16 %v1410, %v1401
      %v1924 = vpack.c.b16 %v1411, %v1402
      %v1925 = vpack.c.b16 %v1412, %v1403
      %v1926 = vpack.c.b16 %v1413, %v1404
      %v1927 = vpack.c.b16 %v1414, %v1405
      %v1928 = vpack.c.b16 %v1424, %v1415
      %v1929 = vpack.c.b16 %v1425, %v1416
      %v1930 = vpack.c.b16 %v1426, %v1417
      %v1931 = vpack.c.b16 %v1427, %v1418
      %v1932 = vpack.c.b16 %v1428, %v1419
      %v1933 = vpack.c.b16 %v1429, %v1420
      %v1934 = vpack.c.b16 %v1430, %v1421
      %v1935 = vpack.c.b16 %v1431, %v1422
      %v1936 = vpack.c.b16 %v1432, %v1423
      %v1937 = vpack.c.b16 %v1442, %v1433
      %v1938 = vpack.c.b16 %v1443, %v1434
      %v1939 = vpack.c.b16 %v1444, %v1435
      %v1940 = vpack.c.b16 %v1445, %v1436
      %v1941 = vpack.c.b16 %v1446, %v1437
      %v1942 = vpack.c.b16 %v1447, %v1438
      %v1943 = vpack.c.b16 %v1448, %v1439
      %v1944 = vpack.c.b16 %v1449, %v1440
      %v1945 = vpack.c.b16 %v1450, %v1441
      %v1946 = vpack.c.b16 %v1460, %v1451
      %v1947 = vpack.c.b16 %v1461, %v1452
      %v1948 = vpack.c.b16 %v1462, %v1453
      %v1949 = vpack.c.b16 %v1463, %v1454
      %v1950 = vpack.c.b16 %v1464, %v1455
      %v1951 = vpack.c.b16 %v1465, %v1456
      %v1952 = vpack.c.b16 %v1466, %v1457
      %v1953 = vpack.c.b16 %v1467, %v1458
      %v1954 = vpack.c.b16 %v1468, %v1459
      %v1955 = vpack.c.b16 %v1478, %v1469
      %v1956 = vpack.c.b16 %v1479, %v1470
      %v1957 = vpack.c.b16 %v1480, %v1471
      %v1958 = vpack.c.b16 %v1481, %v1472
      %v1959 = vpack.c.b16 %v1482, %v1473
      %v1960 = vpack.c.b16 %v1483, %v1474
      %v1961 = vpack.c.b16 %v1484, %v1475
      %v1962 = vpack.c.b16 %v1485, %v1476
      %v1963 = vpack.c.b16 %v1486, %v1477
      %v1964 = vpack.c.b16 %v1496, %v1487
      %v1965 = vpack.c.b16 %v1497, %v1488
      %v1966 = vpack.c.b16 %v1498, %v1489
      %v1967 = vpack.c.b16 %v1499, %v1490
      %v1968 = vpack.c.b16 %v1500, %v1491
      %v1969 = vpack.c.b16 %v1501, %v1492
      %v1970 = vpack.c.b16 %v1502, %v1493
      %v1971 = vpack.c.b16 %v1503, %v1494
      %v1972 = vpack.c.b16 %v1504, %v1495
      %v1973 = vpack.c.b16 %v1514, %v1505
      %v1974 = vpack.c.b16 %v1515, %v1506
      %v1975 = vpack.c.b16 %v1516, %v1507
      %v1976 = vpack.c.b16 %v1517, %v1508
      %v1977 = vpack.c.b16 %v1518, %v1509
      %v1978 = vpack.c.b16 %v1519, %v1510
      %v1979 = vpack.c.b16 %v1520, %v1511
      %v1980 = vpack.c.b16 %v1521, %v1512
      %v1981 = vpack.c.b16 %v1522, %v1513
      %v1982 = vpack.c.b16 %v1532, %v1523
      %v1983 = vpack.c.b16 %v1533, %v1524
      %v1984 = vpack.c.b16 %v1534, %v1525
      %v1985 = vpack.c.b16 %v1535, %v1526
      %v1986 = vpack.c.b16 %v1536, %v1527
      %v1987 = vpack.c.b16 %v1537, %v1528
      %v1988 = vpack.c.b16 %v1538, %v1529
      %v1989 = vpack.c.b16 %v1539, %v1530
      %v1990 = vpack.c.b16 %v1540, %v1531
      %v1991 = vpack.c.b16 %v1550, %v1541
      %v1992 = vpack.c.b16 %v1551, %v1542
      %v1993 = vpack.c.b16 %v1552, %v1543
      %v1994 = vpack.c.b16 %v1553, %v1544
      %v1995 = vpack.c.b16 %v1554, %v1545
      %v1996 = vpack.c.b16 %v1555, %v1546
      %v1997 = vpack.c.b16 %v1556, %v1547
      %v1998 = vpack.c.b16 %v1557, %v1548
      %v1999 = vpack.c.b16 %v1558, %v1549
      %v2000 = vpack.c.b16 %v1568, %v1559
      %v2001 = vpack.c.b16 %v1569, %v1560
      %v2002 = vpack.c.b16 %v1570, %v1561
      %v2003 = vpack.c.b16 %v1571, %v1562
      %v2004 = vpack.c.b16 %v1572, %v1563
      %v2005 = vpack.c.b16 %v1573, %v1564
      %v2006 = vpack.c.b16 %v1574, %v1565
      %v2007 = vpack.c.b16 %v1575, %v1566
      %v2008 = vpack.c.b16 %v1576, %v1567
      %v2009 = vpack.c.b16 %v1586, %v1577
      %v2010 = vpack.c.b16 %v1587, %v1578
      %v2011 = vpack.c.b16 %v1588, %v1579
      %v2012 = vpack.c.b16 %v1589, %v1580
      %v2013 = vpack.c.b16 %v1590, %v1581
      %v2014 = vpack.c.b16 %v1591, %v1582
      %v2015 = vpack.c.b16 %v1592, %v1583
      %v2016 = vpack.c.b16 %v1593, %v1584
      %v2017 = vpack.c.b16 %v1594, %v1585
      %v2018 = vpack.c.b16 %v1604, %v1595
      %v2019 = vpack.c.b16 %v1605, %v1596
      %v2020 = vpack.c.b16 %v1606, %v1597
      %v2021 = vpack.c.b16 %v1607, %v1598
      %v2022 = vpack.c.b16 %v1608, %v1599
      %v2023 = vpack.c.b16 %v1609, %v1600
      %v2024 = vpack.c.b16 %v1610, %v1601
      %v2025 = vpack.c.b16 %v1611, %v1602
      %v2026 = vpack.c.b16 %v1612, %v1603
      %v2027 = vpack.c.b16 %v1622, %v1613
      %v2028 = vpack.c.b16 %v1623, %v1614
      %v2029 = vpack.c.b16 %v1624, %v1615
      %v2030 = vpack.c.b16 %v1625, %v1616
      %v2031 = vpack.c.b16 %v1626, %v1617
      %v2032 = vpack.c.b16 %v1627, %v1618
      %v2033 = vpack.c.b16 %v1628, %v1619
      %v2034 = vpack.c.b16 %v1629, %v1620
      %v2035 = vpack.c.b16 %v1630, %v1621
      %v2036 = vpack.c.b16 %v1640, %v1631
      %v2037 = vpack.c.b16 %v1641, %v1632
      %v2038 = vpack.c.b16 %v1642, %v1633
      %v2039 = vpack.c.b16 %v1643, %v1634
      %v2040 = vpack.c.b16 %v1644, %v1635
      %v2041 = vpack.c.b16 %v1645, %v1636
      %v2042 = vpack.c.b16 %v1646, %v1637
      %v2043 = vpack.c.b16 %v1647, %v1638
      %v2044 = vpack.c.b16 %v1648, %v1639
      %v2045 = vpack.c.b16 %v1658, %v1649
      %v2046 = vpack.c.b16 %v1659, %v1650
      %v2047 = vpack.c.b16 %v1660, %v1651
      %v2048 = vpack.c.b16 %v1661, %v1652
      %v2049 = vpack.c.b16 %v1662, %v1653
      %v2050 = vpack.c.b16 %v1663, %v1654
      %v2051 = vpack.c.b16 %v1664, %v1655
      %v2052 = vpack.c.b16 %v1665, %v1656
      %v2053 = vpack.c.b16 %v1666, %v1657
      %v2054 = vpack.c.b16 %v1676, %v1667
      %v2055 = vpack.c.b16 %v1677, %v1668
      %v2056 = vpack.c.b16 %v1678, %v1669
      %v2057 = vpack.c.b16 %v1679, %v1670
      %v2058 = vpack.c.b16 %v1680, %v1671
      %v2059 = vpack.c.b16 %v1681, %v1672
      %v2060 = vpack.c.b16 %v1682, %v1673
      %v2061 = vpack.c.b16 %v1683, %v1674
      %v2062 = vpack.c.b16 %v1684, %v1675
      %v2063 = vpack.c.b16 %v1694, %v1685
      %v2064 = vpack.c.b16 %v1695, %v1686
      %v2065 = vpack.c.b16 %v1696, %v1687
      %v2066 = vpack.c.b16 %v1697, %v1688
      %v2067 = vpack.c.b16 %v1698, %v1689
      %v2068 = vpack.c.b16 %v1699, %v1690
      %v2069 = vpack.c.b16 %v1700, %v1691
      %v2070 = vpack.c.b16 %v1701, %v1692
      %v2071 = vpack.c.b16 %v1702, %v1693
      %v2072 = vpack.c.b16 %v1712, %v1703
      %v2073 = vpack.c.b16 %v1713, %v1704
      %v2074 = vpack.c.b16 %v1714, %v1705
      %v2075 = vpack.c.b16 %v1715, %v1706
      %v2076 = vpack.c.b16 %v1716, %v1707
      %v2077 = vpack.c.b16 %v1717, %v1708
      %v2078 = vpack.c.b16 %v1718, %v1709
      %v2079 = vpack.c.b16 %v1719, %v1710
      %v2080 = vpack.c.b16 %v1720, %v1711
      %v2081 = vpack.c.b16 %v1730, %v1721
      %v2082 = vpack.c.b16 %v1731, %v1722
      %v2083 = vpack.c.b16 %v1732, %v1723
      %v2084 = vpack.c.b16 %v1733, %v1724
      %v2085 = vpack.c.b16 %v1734, %v1725
      %v2086 = vpack.c.b16 %v1735, %v1726
      %v2087 = vpack.c.b16 %v1736, %v1727
      %v2088 = vpack.c.b16 %v1737, %v1728
      %v2089 = vpack.c.b16 %v1738, %v1729
      %v2090 = vpack.c.b16 %v1748, %v1739
      %v2091 = vpack.c.b16 %v1749, %v1740
      %v2092 = vpack.c.b16 %v1750, %v1741
      %v2093 = vpack.c.b16 %v1751, %v1742
      %v2094 = vpack.c.b16 %v1752, %v1743
      %v2095 = vpack.c.b16 %v1753, %v1744
      %v2096 = vpack.c.b16 %v1754, %v1745
      %v2097 = vpack.c.b16 %v1755, %v1746
      %v2098 = vpack.c.b16 %v1756, %v1747
      %v2099 = vpack.c.b16 %v1766, %v1757
      %v2100 = vpack.c.b16 %v1767, %v1758
      %v2101 = vpack.c.b16 %v1768, %v1759
      %v2102 = vpack.c.b16 %v1769, %v1760
      %v2103 = vpack.c.b16 %v1770, %v1761
      %v2104 = vpack.c.b16 %v1771, %v1762
      %v2105 = vpack.c.b16 %v1772, %v1763
      %v2106 = vpack.c.b16 %v1773, %v1764
      %v2107 = vpack.c.b16 %v1774, %v1765
      %v2108 = vpack.c.b16 %v1784, %v1775
      %v2109 = vpack.c.b16 %v1785, %v1776
      %v2110 = vpack.c.b16 %v1786, %v1777
      %v2111 = vpack.c.b16 %v1787, %v1778
      %v2112 = vpack.c.b16 %v1788, %v1779
      %v2113 = vpack.c.b16 %v1789, %v1780
      %v2114 = vpack.c.b16 %v1790, %v1781
      %v2115 = vpack.c.b16 %v1791, %v1782
      %v2116 = vpack.c.b16 %v1792, %v1783
      %v2117 = vpack.c.b16 %v1802, %v1793
      %v2118 = vpack.c.b16 %v1803, %v1794
      %v2119 = vpack.c.b16 %v1804, %v1795
      %v2120 = vpack.c.b16 %v1805, %v1796
      %v2121 = vpack.c.b16 %v1806, %v1797
      %v2122 = vpack.c.b16 %v1807, %v1798
      %v2123 = vpack.c.b16 %v1808, %v1799
      %v2124 = vpack.c.b16 %v1809, %v1800
      %v2125 = vpack.c.b16 %v1810, %v1801
      %v2126 = vpack.c.b16 %v1820, %v1811
      %v2127 = vpack.c.b16 %v1821, %v1812
      %v2128 = vpack.c.b16 %v1822, %v1813
      %v2129 = vpack.c.b16 %v1823, %v1814
      %v2130 = vpack.c.b16 %v1824, %v1815
      %v2131 = vpack.c.b16 %v1825, %v1816
      %v2132 = vpack.c.b16 %v1826, %v1817
      %v2133 = vpack.c.b16 %v1827, %v1818
      %v2134 = vpack.c.b16 %v1828, %v1819
      %v2135 = vpack.c.b16 %v1838, %v1829
      %v2136 = vpack.c.b16 %v1839, %v1830
      %v2137 = vpack.c.b16 %v1840, %v1831
      %v2138 = vpack.c.b16 %v1841, %v1832
      %v2139 = vpack.c.b16 %v1842, %v1833
      %v2140 = vpack.c.b16 %v1843, %v1834
      %v2141 = vpack.c.b16 %v1844, %v1835
      %v2142 = vpack.c.b16 %v1845, %v1836
      %v2143 = vpack.c.b16 %v1846, %v1837
      %v2144 = vpack.c.b16 %v1856, %v1847
      %v2145 = vpack.c.b16 %v1857, %v1848
      %v2146 = vpack.c.b16 %v1858, %v1849
      %v2147 = vpack.c.b16 %v1859, %v1850
      %v2148 = vpack.c.b16 %v1860, %v1851
      %v2149 = vpack.c.b16 %v1861, %v1852
      %v2150 = vpack.c.b16 %v1862, %v1853
      %v2151 = vpack.c.b16 %v1863, %v1854
      %v2152 = vpack.c.b16 %v1864, %v1855
      %v2585 = vunpack.c.l.b16 %v818
      %v2586 = vunpack.c.l.b16 %v819
      %v2587 = vunpack.c.l.b16 %v820
      %v2588 = vunpack.c.l.b16 %v821
      %v2589 = vunpack.c.l.b16 %v822
      %v2590 = vunpack.c.l.b16 %v823
      %v2591 = vunpack.c.l.b16 %v824
      %v2592 = vunpack.c.l.b16 %v825
      %v2593 = vunpack.c.l.b16 %v826
      %v2594 = vunpack.c.l.b16 %v827
      %v2595 = vunpack.c.l.b16 %v828
      %v2596 = vunpack.c.l.b16 %v829
      %v2597 = vunpack.c.l.b16 %v830
      %v2598 = vunpack.c.l.b16 %v831
      %v2599 = vunpack.c.l.b16 %v832
      %v2600 = vunpack.c.l.b16 %v833
      %v2601 = vunpack.c.l.b16 %v834
      %v2602 = vunpack.c.l.b16 %v835
      %v2603 = vunpack.c.l.b16 %v836
      %v2604 = vunpack.c.l.b16 %v837
      %v2605 = vunpack.c.l.b16 %v838
      %v2606 = vunpack.c.l.b16 %v839
      %v2607 = vunpack.c.l.b16 %v840
      %v2608 = vunpack.c.l.b16 %v841
      %v2609 = vunpack.c.l.b16 %v842
      %v2610 = vunpack.c.l.b16 %v843
      %v2611 = vunpack.c.l.b16 %v844
      %v2612 = vunpack.c.l.b16 %v845
      %v2613 = vunpack.c.l.b16 %v846
      %v2614 = vunpack.c.l.b16 %v847
      %v2615 = vunpack.c.l.b16 %v848
      %v2616 = vunpack.c.l.b16 %v849
      %v2617 = vunpack.c.l.b16 %v850
      %v2618 = vunpack.c.l.b16 %v851
      %v2619 = vunpack.c.l.b16 %v852
      %v2620 = vunpack.c.l.b16 %v853
      %v2621 = vunpack.c.l.b16 %v854
      %v2622 = vunpack.c.l.b16 %v855
      %v2623 = vunpack.c.l.b16 %v856
      %v2624 = vunpack.c.l.b16 %v857
      %v2625 = vunpack.c.l.b16 %v858
      %v2626 = vunpack.c.l.b16 %v859
      %v2627 = vunpack.c.l.b16 %v860
      %v2628 = vunpack.c.l.b16 %v861
      %v2629 = vunpack.c.l.b16 %v862
      %v2630 = vunpack.c.l.b16 %v863
      %v2631 = vunpack.c.l.b16 %v864
      %v2632 = vunpack.c.l.b16 %v865
      %v2633 = vunpack.c.l.b16 %v866
      %v2634 = vunpack.c.l.b16 %v867
      %v2635 = vunpack.c.l.b16 %v868
      %v2636 = vunpack.c.l.b16 %v869
      %v2637 = vunpack.c.l.b16 %v870
      %v2638 = vunpack.c.l.b16 %v871
      %v2639 = vunpack.c.l.b16 %v872
      %v2640 = vunpack.c.l.b16 %v873
      %v2641 = vunpack.c.l.b16 %v874
      %v2642 = vunpack.c.l.b16 %v875
      %v2643 = vunpack.c.l.b16 %v876
      %v2644 = vunpack.c.l.b16 %v877
      %v2645 = vunpack.c.l.b16 %v878
      %v2646 = vunpack.c.l.b16 %v879
      %v2647 = vunpack.c.l.b16 %v880
      %v2648 = vunpack.c.l.b16 %v881
      %v2649 = vunpack.c.l.b16 %v882
      %v2650 = vunpack.c.l.b16 %v883
      %v2651 = vunpack.c.l.b16 %v884
      %v2652 = vunpack.c.l.b16 %v885
      %v2653 = vunpack.c.l.b16 %v886
      %v2654 = vunpack.c.l.b16 %v887
      %v2655 = vunpack.c.l.b16 %v888
      %v2656 = vunpack.c.l.b16 %v889
      %v2657 = vunpack.c.l.b16 %v890
      %v2658 = vunpack.c.l.b16 %v891
      %v2659 = vunpack.c.l.b16 %v892
      %v2660 = vunpack.c.l.b16 %v893
      %v2661 = vunpack.c.l.b16 %v894
      %v2662 = vunpack.c.l.b16 %v895
      %v2663 = vunpack.c.l.b16 %v896
      %v2664 = vunpack.c.l.b16 %v897
      %v2665 = vunpack.c.l.b16 %v898
      %v2666 = vunpack.c.l.b16 %v899
      %v2667 = vunpack.c.l.b16 %v900
      %v2668 = vunpack.c.l.b16 %v901
      %v2669 = vunpack.c.l.b16 %v902
      %v2670 = vunpack.c.l.b16 %v903
      %v2671 = vunpack.c.l.b16 %v904
      %v2672 = vunpack.c.l.b16 %v905
      %v2673 = vunpack.c.l.b16 %v906
      %v2674 = vunpack.c.l.b16 %v907
      %v2675 = vunpack.c.l.b16 %v908
      %v2676 = vunpack.c.l.b16 %v909
      %v2677 = vunpack.c.l.b16 %v910
      %v2678 = vunpack.c.l.b16 %v911
      %v2679 = vunpack.c.l.b16 %v912
      %v2680 = vunpack.c.l.b16 %v913
      %v2681 = vunpack.c.l.b16 %v914
      %v2682 = vunpack.c.l.b16 %v915
      %v2683 = vunpack.c.l.b16 %v916
      %v2684 = vunpack.c.l.b16 %v917
      %v2685 = vunpack.c.l.b16 %v918
      %v2686 = vunpack.c.l.b16 %v919
      %v2687 = vunpack.c.l.b16 %v920
      %v2688 = vunpack.c.l.b16 %v921
      %v2689 = vunpack.c.l.b16 %v922
      %v2690 = vunpack.c.l.b16 %v923
      %v2691 = vunpack.c.l.b16 %v924
      %v2692 = vunpack.c.l.b16 %v925
      %v2693 = vunpack.c.l.b16 %v926
      %v2694 = vunpack.c.l.b16 %v927
      %v2695 = vunpack.c.l.b16 %v928
      %v2696 = vunpack.c.l.b16 %v929
      %v2697 = vunpack.c.l.b16 %v930
      %v2698 = vunpack.c.l.b16 %v931
      %v2699 = vunpack.c.l.b16 %v932
      %v2700 = vunpack.c.l.b16 %v933
      %v2701 = vunpack.c.l.b16 %v934
      %v2702 = vunpack.c.l.b16 %v935
      %v2703 = vunpack.c.l.b16 %v936
      %v2704 = vunpack.c.l.b16 %v937
      %v2705 = vunpack.c.l.b16 %v938
      %v2706 = vunpack.c.l.b16 %v939
      %v2707 = vunpack.c.l.b16 %v940
      %v2708 = vunpack.c.l.b16 %v941
      %v2709 = vunpack.c.l.b16 %v942
      %v2710 = vunpack.c.l.b16 %v943
      %v2711 = vunpack.c.l.b16 %v944
      %v2712 = vunpack.c.l.b16 %v945
      %v2713 = vunpack.c.l.b16 %v946
      %v2714 = vunpack.c.l.b16 %v947
      %v2715 = vunpack.c.l.b16 %v948
      %v2716 = vunpack.c.l.b16 %v949
      %v2717 = vunpack.c.l.b16 %v950
      %v2718 = vunpack.c.l.b16 %v951
      %v2719 = vunpack.c.l.b16 %v952
      %v2720 = vunpack.c.l.b16 %v953
      %v2721 = vunpack.c.l.b16 %v954
      %v2722 = vunpack.c.l.b16 %v955
      %v2723 = vunpack.c.l.b16 %v956
      %v2724 = vunpack.c.l.b16 %v957
      %v2725 = vunpack.c.l.b16 %v958
      %v2726 = vunpack.c.l.b16 %v959
      %v2727 = vunpack.c.l.b16 %v960
      %v2728 = vunpack.c.l.b16 %v961
      %v2729 = vpack.c.b16 %v2586, %v2585
      %v2730 = vpack.c.b16 %v2588, %v2587
      %v2731 = vpack.c.b16 %v2590, %v2589
      %v2732 = vpack.c.b16 %v2592, %v2591
      %v2733 = vpack.c.b16 %v2594, %v2593
      %v2734 = vpack.c.b16 %v2596, %v2595
      %v2735 = vpack.c.b16 %v2598, %v2597
      %v2736 = vpack.c.b16 %v2600, %v2599
      %v2737 = vpack.c.b16 %v2602, %v2601
      %v2738 = vpack.c.b16 %v2604, %v2603
      %v2739 = vpack.c.b16 %v2606, %v2605
      %v2740 = vpack.c.b16 %v2608, %v2607
      %v2741 = vpack.c.b16 %v2610, %v2609
      %v2742 = vpack.c.b16 %v2612, %v2611
      %v2743 = vpack.c.b16 %v2614, %v2613
      %v2744 = vpack.c.b16 %v2616, %v2615
      %v2745 = vpack.c.b16 %v2618, %v2617
      %v2746 = vpack.c.b16 %v2620, %v2619
      %v2747 = vpack.c.b16 %v2622, %v2621
      %v2748 = vpack.c.b16 %v2624, %v2623
      %v2749 = vpack.c.b16 %v2626, %v2625
      %v2750 = vpack.c.b16 %v2628, %v2627
      %v2751 = vpack.c.b16 %v2630, %v2629
      %v2752 = vpack.c.b16 %v2632, %v2631
      %v2753 = vpack.c.b16 %v2634, %v2633
      %v2754 = vpack.c.b16 %v2636, %v2635
      %v2755 = vpack.c.b16 %v2638, %v2637
      %v2756 = vpack.c.b16 %v2640, %v2639
      %v2757 = vpack.c.b16 %v2642, %v2641
      %v2758 = vpack.c.b16 %v2644, %v2643
      %v2759 = vpack.c.b16 %v2646, %v2645
      %v2760 = vpack.c.b16 %v2648, %v2647
      %v2761 = vpack.c.b16 %v2650, %v2649
      %v2762 = vpack.c.b16 %v2652, %v2651
      %v2763 = vpack.c.b16 %v2654, %v2653
      %v2764 = vpack.c.b16 %v2656, %v2655
      %v2765 = vpack.c.b16 %v2658, %v2657
      %v2766 = vpack.c.b16 %v2660, %v2659
      %v2767 = vpack.c.b16 %v2662, %v2661
      %v2768 = vpack.c.b16 %v2664, %v2663
      %v2769 = vpack.c.b16 %v2666, %v2665
      %v2770 = vpack.c.b16 %v2668, %v2667
      %v2771 = vpack.c.b16 %v2670, %v2669
      %v2772 = vpack.c.b16 %v2672, %v2671
      %v2773 = vpack.c.b16 %v2674, %v2673
      %v2774 = vpack.c.b16 %v2676, %v2675
      %v2775 = vpack.c.b16 %v2678, %v2677
      %v2776 = vpack.c.b16 %v2680, %v2679
      %v2777 = vpack.c.b16 %v2682, %v2681
      %v2778 = vpack.c.b16 %v2684, %v2683
      %v2779 = vpack.c.b16 %v2686, %v2685
      %v2780 = vpack.c.b16 %v2688, %v2687
      %v2781 = vpack.c.b16 %v2690, %v2689
      %v2782 = vpack.c.b16 %v2692, %v2691
      %v2783 = vpack.c.b16 %v2694, %v2693
      %v2784 = vpack.c.b16 %v2696, %v2695
      %v2785 = vpack.c.b16 %v2698, %v2697
      %v2786 = vpack.c.b16 %v2700, %v2699
      %v2787 = vpack.c.b16 %v2702, %v2701
      %v2788 = vpack.c.b16 %v2704, %v2703
      %v2789 = vpack.c.b16 %v2706, %v2705
      %v2790 = vpack.c.b16 %v2708, %v2707
      %v2791 = vpack.c.b16 %v2710, %v2709
      %v2792 = vpack.c.b16 %v2712, %v2711
      %v2793 = vpack.c.b16 %v2714, %v2713
      %v2794 = vpack.c.b16 %v2716, %v2715
      %v2795 = vpack.c.b16 %v2718, %v2717
      %v2796 = vpack.c.b16 %v2720, %v2719
      %v2797 = vpack.c.b16 %v2722, %v2721
      %v2798 = vpack.c.b16 %v2724, %v2723
      %v2799 = vpack.c.b16 %v2726, %v2725
      %v2800 = vpack.c.b16 %v2728, %v2727
      %2873 = vmatprep.subr.bf16.mxu0 0
      %2874 = vmatpush1.bf16.msra.mxu0 %v2729
      %2875 = vmatprep.subr.bf16.mxu0 0
      %2876 = vmatpush1.bf16.msra.mxu0 %v2730
      %2877 = vmatprep.subr.bf16.mxu0 0
      %2878 = vmatpush1.bf16.msra.mxu0 %v2731
      %2879 = vmatprep.subr.bf16.mxu0 0
      %2880 = vmatpush1.bf16.msra.mxu0 %v2732
      %2881 = vmatprep.subr.bf16.mxu0 0
      %2882 = vmatpush1.bf16.msra.mxu0 %v2733
      %2883 = vmatprep.subr.bf16.mxu0 0
      %2884 = vmatpush1.bf16.msra.mxu0 %v2734
      %2885 = vmatprep.subr.bf16.mxu0 0
      %2886 = vmatpush1.bf16.msra.mxu0 %v2735
      %2887 = vmatprep.subr.bf16.mxu0 0
      %2888 = vmatpush1.bf16.msra.mxu0 %v2736
      %2889 = vmatprep.subr.bf16.mxu0 0
      %2890 = vmatpush1.bf16.msra.mxu0 %v2737
      %2891 = vmatprep.subr.bf16.mxu0 0
      %2892 = vmatpush1.bf16.msra.mxu0 %v2738
      %2893 = vmatprep.subr.bf16.mxu0 0
      %2894 = vmatpush1.bf16.msra.mxu0 %v2739
      %2895 = vmatprep.subr.bf16.mxu0 0
      %2896 = vmatpush1.bf16.msra.mxu0 %v2740
      %2897 = vmatprep.subr.bf16.mxu0 0
      %2898 = vmatpush1.bf16.msra.mxu0 %v2741
      %2899 = vmatprep.subr.bf16.mxu0 0
      %2900 = vmatpush1.bf16.msra.mxu0 %v2742
      %2901 = vmatprep.subr.bf16.mxu0 0
      %2902 = vmatpush1.bf16.msra.mxu0 %v2743
      %2903 = vmatprep.subr.bf16.mxu0 0
      %2904 = vmatpush1.bf16.msra.mxu0 %v2744
      %2905 = vmatprep.mubr.bf16.mxu0 %v1866
      %2906 = vmatmul.mubr.bf16.gmra.mrb[0].mxu0 %v1865
      %v2907 = vpop.f32.mrb[0].mxu0
      %v2908 = vadd.f32 %v967, %v2907
      %v2909 = vpop.f32.mrb[0].mxu0
      %v2910 = vpop.f32.mrb[0].mxu0
      %v2911 = vadd.f32 %v967, %v2910
      %v2912 = vpop.f32.mrb[0].mxu0
      %2913 = vmatprep.mubr.bf16.mxu0 %v1875
      %2914 = vmatmul.mubr.bf16.gmra.mrb[0].mxu0 %v1874
      %v2915 = vpop.f32.mrb[0].mxu0
      %v2916 = vadd.f32 %v967, %v2915
      %v2917 = vpop.f32.mrb[0].mxu0
      %v2918 = vpop.f32.mrb[0].mxu0
      %v2919 = vadd.f32 %v967, %v2918
      %v2920 = vpop.f32.mrb[0].mxu0
      %2921 = vmatprep.mubr.bf16.mxu0 %v1884
      %2922 = vmatmul.mubr.bf16.gmra.mrb[0].mxu0 %v1883
      %v2923 = vpop.f32.mrb[0].mxu0
      %v2924 = vadd.f32 %v967, %v2923
      %v2925 = vpop.f32.mrb[0].mxu0
      %v2926 = vpop.f32.mrb[0].mxu0
      %v2927 = vadd.f32 %v967, %v2926
      %v2928 = vpop.f32.mrb[0].mxu0
      %2929 = vmatprep.mubr.bf16.mxu0 %v1893
      %2930 = vmatmul.mubr.bf16.gmra.mrb[0].mxu0 %v1892
      %v2931 = vpop.f32.mrb[0].mxu0
      %v2932 = vadd.f32 %v967, %v2931
      %v2933 = vpop.f32.mrb[0].mxu0
      %v2934 = vpop.f32.mrb[0].mxu0
      %v2935 = vadd.f32 %v967, %v2934
      %v2936 = vpop.f32.mrb[0].mxu0
      %2937 = vmatprep.mubr.bf16.mxu0 %v1902
      %2938 = vmatmul.mubr.bf16.gmra.mrb[0].mxu0 %v1901
      %v2939 = vpop.f32.mrb[0].mxu0
      %v2940 = vadd.f32 %v967, %v2939
      %v2941 = vpop.f32.mrb[0].mxu0
      %v2942 = vpop.f32.mrb[0].mxu0
      %v2943 = vadd.f32 %v967, %v2942
      %v2944 = vpop.f32.mrb[0].mxu0
      %2945 = vmatprep.mubr.bf16.mxu0 %v1911
      %2946 = vmatmul.mubr.bf16.gmra.mrb[0].mxu0 %v1910
      %v2947 = vpop.f32.mrb[0].mxu0
      %v2948 = vadd.f32 %v967, %v2947
      %v2949 = vpop.f32.mrb[0].mxu0
      %v2950 = vpop.f32.mrb[0].mxu0
      %v2951 = vadd.f32 %v967, %v2950
      %v2952 = vpop.f32.mrb[0].mxu0
      %2953 = vmatprep.mubr.bf16.mxu0 %v1920
      %2954 = vmatmul.mubr.bf16.gmra.mrb[0].mxu0 %v1919
      %v2955 = vpop.f32.mrb[0].mxu0
      %v2956 = vadd.f32 %v967, %v2955
      %v2957 = vpop.f32.mrb[0].mxu0
      %v2958 = vpop.f32.mrb[0].mxu0
      %v2959 = vadd.f32 %v967, %v2958
      %v2960 = vpop.f32.mrb[0].mxu0
      %2961 = vmatprep.mubr.bf16.mxu0 %v1929
      %2962 = vmatmul.mubr.bf16.gmra.mrb[0].mxu0 %v1928
      %v2963 = vpop.f32.mrb[0].mxu0
      %v2964 = vadd.f32 %v967, %v2963
      %v2965 = vpop.f32.mrb[0].mxu0
      %v2966 = vpop.f32.mrb[0].mxu0
      %v2967 = vadd.f32 %v967, %v2966
      %v2968 = vpop.f32.mrb[0].mxu0
      %2969 = vmatprep.mubr.bf16.mxu0 %v1938
      %2970 = vmatmul.mubr.bf16.gmra.mrb[0].mxu0 %v1937
      %v2971 = vpop.f32.mrb[0].mxu0
      %v2972 = vadd.f32 %v967, %v2971
      %v2973 = vpop.f32.mrb[0].mxu0
      %v2974 = vpop.f32.mrb[0].mxu0
      %v2975 = vadd.f32 %v967, %v2974
      %v2976 = vpop.f32.mrb[0].mxu0
      %2977 = vmatprep.mubr.bf16.mxu0 %v1947
      %2978 = vmatmul.mubr.bf16.gmra.mrb[0].mxu0 %v1946
      %v2979 = vpop.f32.mrb[0].mxu0
      %v2980 = vadd.f32 %v967, %v2979
      %v2981 = vpop.f32.mrb[0].mxu0
      %v2982 = vpop.f32.mrb[0].mxu0
      %v2983 = vadd.f32 %v967, %v2982
      %v2984 = vpop.f32.mrb[0].mxu0
      %2985 = vmatprep.mubr.bf16.mxu0 %v1956
      %2986 = vmatmul.mubr.bf16.gmra.mrb[0].mxu0 %v1955
      %v2987 = vpop.f32.mrb[0].mxu0
      %v2988 = vadd.f32 %v967, %v2987
      %v2989 = vpop.f32.mrb[0].mxu0
      %v2990 = vpop.f32.mrb[0].mxu0
      %v2991 = vadd.f32 %v967, %v2990
      %v2992 = vpop.f32.mrb[0].mxu0
      %2993 = vmatprep.mubr.bf16.mxu0 %v1965
      %2994 = vmatmul.mubr.bf16.gmra.mrb[0].mxu0 %v1964
      %v2995 = vpop.f32.mrb[0].mxu0
      %v2996 = vadd.f32 %v967, %v2995
      %v2997 = vpop.f32.mrb[0].mxu0
      %v2998 = vpop.f32.mrb[0].mxu0
      %v2999 = vadd.f32 %v967, %v2998
      %v3000 = vpop.f32.mrb[0].mxu0
      %3001 = vmatprep.mubr.bf16.mxu0 %v1974
      %3002 = vmatmul.mubr.bf16.gmra.mrb[0].mxu0 %v1973
      %v3003 = vpop.f32.mrb[0].mxu0
      %v3004 = vadd.f32 %v967, %v3003
      %v3005 = vpop.f32.mrb[0].mxu0
      %v3006 = vpop.f32.mrb[0].mxu0
      %v3007 = vadd.f32 %v967, %v3006
      %v3008 = vpop.f32.mrb[0].mxu0
      %3009 = vmatprep.mubr.bf16.mxu0 %v1983
      %3010 = vmatmul.mubr.bf16.gmra.mrb[0].mxu0 %v1982
      %v3011 = vpop.f32.mrb[0].mxu0
      %v3012 = vadd.f32 %v967, %v3011
      %v3013 = vpop.f32.mrb[0].mxu0
      %v3014 = vpop.f32.mrb[0].mxu0
      %v3015 = vadd.f32 %v967, %v3014
      %v3016 = vpop.f32.mrb[0].mxu0
      %3017 = vmatprep.mubr.bf16.mxu0 %v1992
      %3018 = vmatmul.mubr.bf16.gmra.mrb[0].mxu0 %v1991
      %v3019 = vpop.f32.mrb[0].mxu0
      %v3020 = vadd.f32 %v967, %v3019
      %v3021 = vpop.f32.mrb[0].mxu0
      %v3022 = vpop.f32.mrb[0].mxu0
      %v3023 = vadd.f32 %v967, %v3022
      %v3024 = vpop.f32.mrb[0].mxu0
      %3025 = vmatprep.mubr.bf16.mxu0 %v2001
      %3026 = vmatmul.mubr.bf16.gmra.mrb[0].mxu0 %v2000
      %v3027 = vpop.f32.mrb[0].mxu0
      %v3028 = vadd.f32 %v967, %v3027
      %v3029 = vpop.f32.mrb[0].mxu0
      %v3030 = vpop.f32.mrb[0].mxu0
      %v3031 = vadd.f32 %v967, %v3030
      %v3032 = vpop.f32.mrb[0].mxu0
      %3033 = vmatprep.mubr.bf16.mxu0 %v2010
      %3034 = vmatmul.mubr.bf16.gmra.mrb[0].mxu0 %v2009
      %v3035 = vpop.f32.mrb[0].mxu0
      %v3036 = vadd.f32 %v967, %v3035
      %v3037 = vpop.f32.mrb[0].mxu0
      %v3038 = vpop.f32.mrb[0].mxu0
      %v3039 = vadd.f32 %v967, %v3038
      %v3040 = vpop.f32.mrb[0].mxu0
      %3041 = vmatprep.mubr.bf16.mxu0 %v2019
      %3042 = vmatmul.mubr.bf16.gmra.mrb[0].mxu0 %v2018
      %v3043 = vpop.f32.mrb[0].mxu0
      %v3044 = vadd.f32 %v967, %v3043
      %v3045 = vpop.f32.mrb[0].mxu0
      %v3046 = vpop.f32.mrb[0].mxu0
      %v3047 = vadd.f32 %v967, %v3046
      %v3048 = vpop.f32.mrb[0].mxu0
      %3049 = vmatprep.mubr.bf16.mxu0 %v2028
      %3050 = vmatmul.mubr.bf16.gmra.mrb[0].mxu0 %v2027
      %v3051 = vpop.f32.mrb[0].mxu0
      %v3052 = vadd.f32 %v967, %v3051
      %v3053 = vpop.f32.mrb[0].mxu0
      %v3054 = vpop.f32.mrb[0].mxu0
      %v3055 = vadd.f32 %v967, %v3054
      %v3056 = vpop.f32.mrb[0].mxu0
      %3057 = vmatprep.mubr.bf16.mxu0 %v2037
      %3058 = vmatmul.mubr.bf16.gmra.mrb[0].mxu0 %v2036
      %v3059 = vpop.f32.mrb[0].mxu0
      %v3060 = vadd.f32 %v967, %v3059
      %v3061 = vpop.f32.mrb[0].mxu0
      %v3062 = vpop.f32.mrb[0].mxu0
      %v3063 = vadd.f32 %v967, %v3062
      %v3064 = vpop.f32.mrb[0].mxu0
      %3065 = vmatprep.mubr.bf16.mxu0 %v2046
      %3066 = vmatmul.mubr.bf16.gmra.mrb[0].mxu0 %v2045
      %v3067 = vpop.f32.mrb[0].mxu0
      %v3068 = vadd.f32 %v967, %v3067
      %v3069 = vpop.f32.mrb[0].mxu0
      %v3070 = vpop.f32.mrb[0].mxu0
      %v3071 = vadd.f32 %v967, %v3070
      %v3072 = vpop.f32.mrb[0].mxu0
      %3073 = vmatprep.mubr.bf16.mxu0 %v2055
      %3074 = vmatmul.mubr.bf16.gmra.mrb[0].mxu0 %v2054
      %v3075 = vpop.f32.mrb[0].mxu0
      %v3076 = vadd.f32 %v967, %v3075
      %v3077 = vpop.f32.mrb[0].mxu0
      %v3078 = vpop.f32.mrb[0].mxu0
      %v3079 = vadd.f32 %v967, %v3078
      %v3080 = vpop.f32.mrb[0].mxu0
      %3081 = vmatprep.mubr.bf16.mxu0 %v2064
      %3082 = vmatmul.mubr.bf16.gmra.mrb[0].mxu0 %v2063
      %v3083 = vpop.f32.mrb[0].mxu0
      %v3084 = vadd.f32 %v967, %v3083
      %v3085 = vpop.f32.mrb[0].mxu0
      %v3086 = vpop.f32.mrb[0].mxu0
      %v3087 = vadd.f32 %v967, %v3086
      %v3088 = vpop.f32.mrb[0].mxu0
      %3089 = vmatprep.mubr.bf16.mxu0 %v2073
      %3090 = vmatmul.mubr.bf16.gmra.mrb[0].mxu0 %v2072
      %v3091 = vpop.f32.mrb[0].mxu0
      %v3092 = vadd.f32 %v967, %v3091
      %v3093 = vpop.f32.mrb[0].mxu0
      %v3094 = vpop.f32.mrb[0].mxu0
      %v3095 = vadd.f32 %v967, %v3094
      %v3096 = vpop.f32.mrb[0].mxu0
      %3097 = vmatprep.mubr.bf16.mxu0 %v2082
      %3098 = vmatmul.mubr.bf16.gmra.mrb[0].mxu0 %v2081
      %v3099 = vpop.f32.mrb[0].mxu0
      %v3100 = vadd.f32 %v967, %v3099
      %v3101 = vpop.f32.mrb[0].mxu0
      %v3102 = vpop.f32.mrb[0].mxu0
      %v3103 = vadd.f32 %v967, %v3102
      %v3104 = vpop.f32.mrb[0].mxu0
      %3105 = vmatprep.mubr.bf16.mxu0 %v2091
      %3106 = vmatmul.mubr.bf16.gmra.mrb[0].mxu0 %v2090
      %v3107 = vpop.f32.mrb[0].mxu0
      %v3108 = vadd.f32 %v967, %v3107
      %v3109 = vpop.f32.mrb[0].mxu0
      %v3110 = vpop.f32.mrb[0].mxu0
      %v3111 = vadd.f32 %v967, %v3110
      %v3112 = vpop.f32.mrb[0].mxu0
      %3113 = vmatprep.mubr.bf16.mxu0 %v2100
      %3114 = vmatmul.mubr.bf16.gmra.mrb[0].mxu0 %v2099
      %v3115 = vpop.f32.mrb[0].mxu0
      %v3116 = vadd.f32 %v967, %v3115
      %v3117 = vpop.f32.mrb[0].mxu0
      %v3118 = vpop.f32.mrb[0].mxu0
      %v3119 = vadd.f32 %v967, %v3118
      %v3120 = vpop.f32.mrb[0].mxu0
      %3121 = vmatprep.mubr.bf16.mxu0 %v2109
      %3122 = vmatmul.mubr.bf16.gmra.mrb[0].mxu0 %v2108
      %v3123 = vpop.f32.mrb[0].mxu0
      %v3124 = vadd.f32 %v967, %v3123
      %v3125 = vpop.f32.mrb[0].mxu0
      %v3126 = vpop.f32.mrb[0].mxu0
      %v3127 = vadd.f32 %v967, %v3126
      %v3128 = vpop.f32.mrb[0].mxu0
      %3129 = vmatprep.mubr.bf16.mxu0 %v2118
      %3130 = vmatmul.mubr.bf16.gmra.mrb[0].mxu0 %v2117
      %v3131 = vpop.f32.mrb[0].mxu0
      %v3132 = vadd.f32 %v967, %v3131
      %v3133 = vpop.f32.mrb[0].mxu0
      %v3134 = vpop.f32.mrb[0].mxu0
      %v3135 = vadd.f32 %v967, %v3134
      %v3136 = vpop.f32.mrb[0].mxu0
      %3137 = vmatprep.mubr.bf16.mxu0 %v2127
      %3138 = vmatmul.mubr.bf16.gmra.mrb[0].mxu0 %v2126
      %v3139 = vpop.f32.mrb[0].mxu0
      %v3140 = vadd.f32 %v967, %v3139
      %v3141 = vpop.f32.mrb[0].mxu0
      %v3142 = vpop.f32.mrb[0].mxu0
      %v3143 = vadd.f32 %v967, %v3142
      %v3144 = vpop.f32.mrb[0].mxu0
      %3145 = vmatprep.mubr.bf16.mxu0 %v2136
      %3146 = vmatmul.mubr.bf16.gmra.mrb[0].mxu0 %v2135
      %v3147 = vpop.f32.mrb[0].mxu0
      %v3148 = vadd.f32 %v967, %v3147
      %v3149 = vpop.f32.mrb[0].mxu0
      %v3150 = vpop.f32.mrb[0].mxu0
      %v3151 = vadd.f32 %v967, %v3150
      %v3152 = vpop.f32.mrb[0].mxu0
      %3153 = vmatprep.mubr.bf16.mxu0 %v2145
      %3154 = vmatmul.mubr.bf16.gmra.mrb[0].mxu0 %v2144
      %v3155 = vpop.f32.mrb[0].mxu0
      %v3156 = vadd.f32 %v967, %v3155
      %v3157 = vpop.f32.mrb[0].mxu0
      %v3158 = vpop.f32.mrb[0].mxu0
      %v3159 = vadd.f32 %v967, %v3158
      %v3160 = vpop.f32.mrb[0].mxu0
      %3161 = vdwg.mxu0
      %3162 = vmatprep.subr.bf16.mxu0 0
      %3163 = vmatpush1.bf16.msra.mxu0 %v2745
      %3164 = vmatprep.subr.bf16.mxu0 0
      %3165 = vmatpush1.bf16.msra.mxu0 %v2746
      %3166 = vmatprep.subr.bf16.mxu0 0
      %3167 = vmatpush1.bf16.msra.mxu0 %v2747
      %3168 = vmatprep.subr.bf16.mxu0 0
      %3169 = vmatpush1.bf16.msra.mxu0 %v2748
      %3170 = vmatprep.subr.bf16.mxu0 0
      %3171 = vmatpush1.bf16.msra.mxu0 %v2749
      %3172 = vmatprep.subr.bf16.mxu0 0
      %3173 = vmatpush1.bf16.msra.mxu0 %v2750
      %3174 = vmatprep.subr.bf16.mxu0 0
      %3175 = vmatpush1.bf16.msra.mxu0 %v2751
      %3176 = vmatprep.subr.bf16.mxu0 0
      %3177 = vmatpush1.bf16.msra.mxu0 %v2752
      %3178 = vmatprep.subr.bf16.mxu0 0
      %3179 = vmatpush1.bf16.msra.mxu0 %v2753
      %3180 = vmatprep.subr.bf16.mxu0 0
      %3181 = vmatpush1.bf16.msra.mxu0 %v2754
      %3182 = vmatprep.subr.bf16.mxu0 0
      %3183 = vmatpush1.bf16.msra.mxu0 %v2755
      %3184 = vmatprep.subr.bf16.mxu0 0
      %3185 = vmatpush1.bf16.msra.mxu0 %v2756
      %3186 = vmatprep.subr.bf16.mxu0 0
      %3187 = vmatpush1.bf16.msra.mxu0 %v2757
      %3188 = vmatprep.subr.bf16.mxu0 0
      %3189 = vmatpush1.bf16.msra.mxu0 %v2758
      %3190 = vmatprep.subr.bf16.mxu0 0
      %3191 = vmatpush1.bf16.msra.mxu0 %v2759
      %3192 = vmatprep.subr.bf16.mxu0 0
      %3193 = vmatpush1.bf16.msra.mxu0 %v2760
      %3194 = vmatprep.mubr.bf16.mxu0 %v1868
      %3195 = vmatmul.mubr.bf16.gmra.mrb[0].mxu0 %v1867
      %v3196 = vpop.f32.mrb[0].mxu0
      %v3197 = vadd.f32 %v2908, %v3196
      %v3198 = vpop.f32.mrb[0].mxu0
      %v3199 = vpop.f32.mrb[0].mxu0
      %v3200 = vadd.f32 %v2911, %v3199
      %v3201 = vpop.f32.mrb[0].mxu0
      %3202 = vmatprep.mubr.bf16.mxu0 %v1877
      %3203 = vmatmul.mubr.bf16.gmra.mrb[0].mxu0 %v1876
      %v3204 = vpop.f32.mrb[0].mxu0
      %v3205 = vadd.f32 %v2916, %v3204
      %v3206 = vpop.f32.mrb[0].mxu0
      %v3207 = vpop.f32.mrb[0].mxu0
      %v3208 = vadd.f32 %v2919, %v3207
      %v3209 = vpop.f32.mrb[0].mxu0
      %3210 = vmatprep.mubr.bf16.mxu0 %v1886
      %3211 = vmatmul.mubr.bf16.gmra.mrb[0].mxu0 %v1885
      %v3212 = vpop.f32.mrb[0].mxu0
      %v3213 = vadd.f32 %v2924, %v3212
      %v3214 = vpop.f32.mrb[0].mxu0
      %v3215 = vpop.f32.mrb[0].mxu0
      %v3216 = vadd.f32 %v2927, %v3215
      %v3217 = vpop.f32.mrb[0].mxu0
      %3218 = vmatprep.mubr.bf16.mxu0 %v1895
      %3219 = vmatmul.mubr.bf16.gmra.mrb[0].mxu0 %v1894
      %v3220 = vpop.f32.mrb[0].mxu0
      %v3221 = vadd.f32 %v2932, %v3220
      %v3222 = vpop.f32.mrb[0].mxu0
      %v3223 = vpop.f32.mrb[0].mxu0
      %v3224 = vadd.f32 %v2935, %v3223
      %v3225 = vpop.f32.mrb[0].mxu0
      %3226 = vmatprep.mubr.bf16.mxu0 %v1904
      %3227 = vmatmul.mubr.bf16.gmra.mrb[0].mxu0 %v1903
      %v3228 = vpop.f32.mrb[0].mxu0
      %v3229 = vadd.f32 %v2940, %v3228
      %v3230 = vpop.f32.mrb[0].mxu0
      %v3231 = vpop.f32.mrb[0].mxu0
      %v3232 = vadd.f32 %v2943, %v3231
      %v3233 = vpop.f32.mrb[0].mxu0
      %3234 = vmatprep.mubr.bf16.mxu0 %v1913
      %3235 = vmatmul.mubr.bf16.gmra.mrb[0].mxu0 %v1912
      %v3236 = vpop.f32.mrb[0].mxu0
      %v3237 = vadd.f32 %v2948, %v3236
      %v3238 = vpop.f32.mrb[0].mxu0
      %v3239 = vpop.f32.mrb[0].mxu0
      %v3240 = vadd.f32 %v2951, %v3239
      %v3241 = vpop.f32.mrb[0].mxu0
      %3242 = vmatprep.mubr.bf16.mxu0 %v1922
      %3243 = vmatmul.mubr.bf16.gmra.mrb[0].mxu0 %v1921
      %v3244 = vpop.f32.mrb[0].mxu0
      %v3245 = vadd.f32 %v2956, %v3244
      %v3246 = vpop.f32.mrb[0].mxu0
      %v3247 = vpop.f32.mrb[0].mxu0
      %v3248 = vadd.f32 %v2959, %v3247
      %v3249 = vpop.f32.mrb[0].mxu0
      %3250 = vmatprep.mubr.bf16.mxu0 %v1931
      %3251 = vmatmul.mubr.bf16.gmra.mrb[0].mxu0 %v1930
      %v3252 = vpop.f32.mrb[0].mxu0
      %v3253 = vadd.f32 %v2964, %v3252
      %v3254 = vpop.f32.mrb[0].mxu0
      %v3255 = vpop.f32.mrb[0].mxu0
      %v3256 = vadd.f32 %v2967, %v3255
      %v3257 = vpop.f32.mrb[0].mxu0
      %3258 = vmatprep.mubr.bf16.mxu0 %v1940
      %3259 = vmatmul.mubr.bf16.gmra.mrb[0].mxu0 %v1939
      %v3260 = vpop.f32.mrb[0].mxu0
      %v3261 = vadd.f32 %v2972, %v3260
      %v3262 = vpop.f32.mrb[0].mxu0
      %v3263 = vpop.f32.mrb[0].mxu0
      %v3264 = vadd.f32 %v2975, %v3263
      %v3265 = vpop.f32.mrb[0].mxu0
      %3266 = vmatprep.mubr.bf16.mxu0 %v1949
      %3267 = vmatmul.mubr.bf16.gmra.mrb[0].mxu0 %v1948
      %v3268 = vpop.f32.mrb[0].mxu0
      %v3269 = vadd.f32 %v2980, %v3268
      %v3270 = vpop.f32.mrb[0].mxu0
      %v3271 = vpop.f32.mrb[0].mxu0
      %v3272 = vadd.f32 %v2983, %v3271
      %v3273 = vpop.f32.mrb[0].mxu0
      %3274 = vmatprep.mubr.bf16.mxu0 %v1958
      %3275 = vmatmul.mubr.bf16.gmra.mrb[0].mxu0 %v1957
      %v3276 = vpop.f32.mrb[0].mxu0
      %v3277 = vadd.f32 %v2988, %v3276
      %v3278 = vpop.f32.mrb[0].mxu0
      %v3279 = vpop.f32.mrb[0].mxu0
      %v3280 = vadd.f32 %v2991, %v3279
      %v3281 = vpop.f32.mrb[0].mxu0
      %3282 = vmatprep.mubr.bf16.mxu0 %v1967
      %3283 = vmatmul.mubr.bf16.gmra.mrb[0].mxu0 %v1966
      %v3284 = vpop.f32.mrb[0].mxu0
      %v3285 = vadd.f32 %v2996, %v3284
      %v3286 = vpop.f32.mrb[0].mxu0
      %v3287 = vpop.f32.mrb[0].mxu0
      %v3288 = vadd.f32 %v2999, %v3287
      %v3289 = vpop.f32.mrb[0].mxu0
      %3290 = vmatprep.mubr.bf16.mxu0 %v1976
      %3291 = vmatmul.mubr.bf16.gmra.mrb[0].mxu0 %v1975
      %v3292 = vpop.f32.mrb[0].mxu0
      %v3293 = vadd.f32 %v3004, %v3292
      %v3294 = vpop.f32.mrb[0].mxu0
      %v3295 = vpop.f32.mrb[0].mxu0
      %v3296 = vadd.f32 %v3007, %v3295
      %v3297 = vpop.f32.mrb[0].mxu0
      %3298 = vmatprep.mubr.bf16.mxu0 %v1985
      %3299 = vmatmul.mubr.bf16.gmra.mrb[0].mxu0 %v1984
      %v3300 = vpop.f32.mrb[0].mxu0
      %v3301 = vadd.f32 %v3012, %v3300
      %v3302 = vpop.f32.mrb[0].mxu0
      %v3303 = vpop.f32.mrb[0].mxu0
      %v3304 = vadd.f32 %v3015, %v3303
      %v3305 = vpop.f32.mrb[0].mxu0
      %3306 = vmatprep.mubr.bf16.mxu0 %v1994
      %3307 = vmatmul.mubr.bf16.gmra.mrb[0].mxu0 %v1993
      %v3308 = vpop.f32.mrb[0].mxu0
      %v3309 = vadd.f32 %v3020, %v3308
      %v3310 = vpop.f32.mrb[0].mxu0
      %v3311 = vpop.f32.mrb[0].mxu0
      %v3312 = vadd.f32 %v3023, %v3311
      %v3313 = vpop.f32.mrb[0].mxu0
      %3314 = vmatprep.mubr.bf16.mxu0 %v2003
      %3315 = vmatmul.mubr.bf16.gmra.mrb[0].mxu0 %v2002
      %v3316 = vpop.f32.mrb[0].mxu0
      %v3317 = vadd.f32 %v3028, %v3316
      %v3318 = vpop.f32.mrb[0].mxu0
      %v3319 = vpop.f32.mrb[0].mxu0
      %v3320 = vadd.f32 %v3031, %v3319
      %v3321 = vpop.f32.mrb[0].mxu0
      %3322 = vmatprep.mubr.bf16.mxu0 %v2012
      %3323 = vmatmul.mubr.bf16.gmra.mrb[0].mxu0 %v2011
      %v3324 = vpop.f32.mrb[0].mxu0
      %v3325 = vadd.f32 %v3036, %v3324
      %v3326 = vpop.f32.mrb[0].mxu0
      %v3327 = vpop.f32.mrb[0].mxu0
      %v3328 = vadd.f32 %v3039, %v3327
      %v3329 = vpop.f32.mrb[0].mxu0
      %3330 = vmatprep.mubr.bf16.mxu0 %v2021
      %3331 = vmatmul.mubr.bf16.gmra.mrb[0].mxu0 %v2020
      %v3332 = vpop.f32.mrb[0].mxu0
      %v3333 = vadd.f32 %v3044, %v3332
      %v3334 = vpop.f32.mrb[0].mxu0
      %v3335 = vpop.f32.mrb[0].mxu0
      %v3336 = vadd.f32 %v3047, %v3335
      %v3337 = vpop.f32.mrb[0].mxu0
      %3338 = vmatprep.mubr.bf16.mxu0 %v2030
      %3339 = vmatmul.mubr.bf16.gmra.mrb[0].mxu0 %v2029
      %v3340 = vpop.f32.mrb[0].mxu0
      %v3341 = vadd.f32 %v3052, %v3340
      %v3342 = vpop.f32.mrb[0].mxu0
      %v3343 = vpop.f32.mrb[0].mxu0
      %v3344 = vadd.f32 %v3055, %v3343
      %v3345 = vpop.f32.mrb[0].mxu0
      %3346 = vmatprep.mubr.bf16.mxu0 %v2039
      %3347 = vmatmul.mubr.bf16.gmra.mrb[0].mxu0 %v2038
      %v3348 = vpop.f32.mrb[0].mxu0
      %v3349 = vadd.f32 %v3060, %v3348
      %v3350 = vpop.f32.mrb[0].mxu0
      %v3351 = vpop.f32.mrb[0].mxu0
      %v3352 = vadd.f32 %v3063, %v3351
      %v3353 = vpop.f32.mrb[0].mxu0
      %3354 = vmatprep.mubr.bf16.mxu0 %v2048
      %3355 = vmatmul.mubr.bf16.gmra.mrb[0].mxu0 %v2047
      %v3356 = vpop.f32.mrb[0].mxu0
      %v3357 = vadd.f32 %v3068, %v3356
      %v3358 = vpop.f32.mrb[0].mxu0
      %v3359 = vpop.f32.mrb[0].mxu0
      %v3360 = vadd.f32 %v3071, %v3359
      %v3361 = vpop.f32.mrb[0].mxu0
      %3362 = vmatprep.mubr.bf16.mxu0 %v2057
      %3363 = vmatmul.mubr.bf16.gmra.mrb[0].mxu0 %v2056
      %v3364 = vpop.f32.mrb[0].mxu0
      %v3365 = vadd.f32 %v3076, %v3364
      %v3366 = vpop.f32.mrb[0].mxu0
      %v3367 = vpop.f32.mrb[0].mxu0
      %v3368 = vadd.f32 %v3079, %v3367
      %v3369 = vpop.f32.mrb[0].mxu0
      %3370 = vmatprep.mubr.bf16.mxu0 %v2066
      %3371 = vmatmul.mubr.bf16.gmra.mrb[0].mxu0 %v2065
      %v3372 = vpop.f32.mrb[0].mxu0
      %v3373 = vadd.f32 %v3084, %v3372
      %v3374 = vpop.f32.mrb[0].mxu0
      %v3375 = vpop.f32.mrb[0].mxu0
      %v3376 = vadd.f32 %v3087, %v3375
      %v3377 = vpop.f32.mrb[0].mxu0
      %3378 = vmatprep.mubr.bf16.mxu0 %v2075
      %3379 = vmatmul.mubr.bf16.gmra.mrb[0].mxu0 %v2074
      %v3380 = vpop.f32.mrb[0].mxu0
      %v3381 = vadd.f32 %v3092, %v3380
      %v3382 = vpop.f32.mrb[0].mxu0
      %v3383 = vpop.f32.mrb[0].mxu0
      %v3384 = vadd.f32 %v3095, %v3383
      %v3385 = vpop.f32.mrb[0].mxu0
      %3386 = vmatprep.mubr.bf16.mxu0 %v2084
      %3387 = vmatmul.mubr.bf16.gmra.mrb[0].mxu0 %v2083
      %v3388 = vpop.f32.mrb[0].mxu0
      %v3389 = vadd.f32 %v3100, %v3388
      %v3390 = vpop.f32.mrb[0].mxu0
      %v3391 = vpop.f32.mrb[0].mxu0
      %v3392 = vadd.f32 %v3103, %v3391
      %v3393 = vpop.f32.mrb[0].mxu0
      %3394 = vmatprep.mubr.bf16.mxu0 %v2093
      %3395 = vmatmul.mubr.bf16.gmra.mrb[0].mxu0 %v2092
      %v3396 = vpop.f32.mrb[0].mxu0
      %v3397 = vadd.f32 %v3108, %v3396
      %v3398 = vpop.f32.mrb[0].mxu0
      %v3399 = vpop.f32.mrb[0].mxu0
      %v3400 = vadd.f32 %v3111, %v3399
      %v3401 = vpop.f32.mrb[0].mxu0
      %3402 = vmatprep.mubr.bf16.mxu0 %v2102
      %3403 = vmatmul.mubr.bf16.gmra.mrb[0].mxu0 %v2101
      %v3404 = vpop.f32.mrb[0].mxu0
      %v3405 = vadd.f32 %v3116, %v3404
      %v3406 = vpop.f32.mrb[0].mxu0
      %v3407 = vpop.f32.mrb[0].mxu0
      %v3408 = vadd.f32 %v3119, %v3407
      %v3409 = vpop.f32.mrb[0].mxu0
      %3410 = vmatprep.mubr.bf16.mxu0 %v2111
      %3411 = vmatmul.mubr.bf16.gmra.mrb[0].mxu0 %v2110
      %v3412 = vpop.f32.mrb[0].mxu0
      %v3413 = vadd.f32 %v3124, %v3412
      %v3414 = vpop.f32.mrb[0].mxu0
      %v3415 = vpop.f32.mrb[0].mxu0
      %v3416 = vadd.f32 %v3127, %v3415
      %v3417 = vpop.f32.mrb[0].mxu0
      %3418 = vmatprep.mubr.bf16.mxu0 %v2120
      %3419 = vmatmul.mubr.bf16.gmra.mrb[0].mxu0 %v2119
      %v3420 = vpop.f32.mrb[0].mxu0
      %v3421 = vadd.f32 %v3132, %v3420
      %v3422 = vpop.f32.mrb[0].mxu0
      %v3423 = vpop.f32.mrb[0].mxu0
      %v3424 = vadd.f32 %v3135, %v3423
      %v3425 = vpop.f32.mrb[0].mxu0
      %3426 = vmatprep.mubr.bf16.mxu0 %v2129
      %3427 = vmatmul.mubr.bf16.gmra.mrb[0].mxu0 %v2128
      %v3428 = vpop.f32.mrb[0].mxu0
      %v3429 = vadd.f32 %v3140, %v3428
      %v3430 = vpop.f32.mrb[0].mxu0
      %v3431 = vpop.f32.mrb[0].mxu0
      %v3432 = vadd.f32 %v3143, %v3431
      %v3433 = vpop.f32.mrb[0].mxu0
      %3434 = vmatprep.mubr.bf16.mxu0 %v2138
      %3435 = vmatmul.mubr.bf16.gmra.mrb[0].mxu0 %v2137
      %v3436 = vpop.f32.mrb[0].mxu0
      %v3437 = vadd.f32 %v3148, %v3436
      %v3438 = vpop.f32.mrb[0].mxu0
      %v3439 = vpop.f32.mrb[0].mxu0
      %v3440 = vadd.f32 %v3151, %v3439
      %v3441 = vpop.f32.mrb[0].mxu0
      %3442 = vmatprep.mubr.bf16.mxu0 %v2147
      %3443 = vmatmul.mubr.bf16.gmra.mrb[0].mxu0 %v2146
      %v3444 = vpop.f32.mrb[0].mxu0
      %v3445 = vadd.f32 %v3156, %v3444
      %v3446 = vpop.f32.mrb[0].mxu0
      %v3447 = vpop.f32.mrb[0].mxu0
      %v3448 = vadd.f32 %v3159, %v3447
      %v3449 = vpop.f32.mrb[0].mxu0
      %3450 = vdwg.mxu0
      %3451 = vmatprep.subr.bf16.mxu0 0
      %3452 = vmatpush1.bf16.msra.mxu0 %v2761
      %3453 = vmatprep.subr.bf16.mxu0 0
      %3454 = vmatpush1.bf16.msra.mxu0 %v2762
      %3455 = vmatprep.subr.bf16.mxu0 0
      %3456 = vmatpush1.bf16.msra.mxu0 %v2763
      %3457 = vmatprep.subr.bf16.mxu0 0
      %3458 = vmatpush1.bf16.msra.mxu0 %v2764
      %3459 = vmatprep.subr.bf16.mxu0 0
      %3460 = vmatpush1.bf16.msra.mxu0 %v2765
      %3461 = vmatprep.subr.bf16.mxu0 0
      %3462 = vmatpush1.bf16.msra.mxu0 %v2766
      %3463 = vmatprep.subr.bf16.mxu0 0
      %3464 = vmatpush1.bf16.msra.mxu0 %v2767
      %3465 = vmatprep.subr.bf16.mxu0 0
      %3466 = vmatpush1.bf16.msra.mxu0 %v2768
      %3467 = vmatprep.subr.bf16.mxu0 0
      %3468 = vmatpush1.bf16.msra.mxu0 %v2769
      %3469 = vmatprep.subr.bf16.mxu0 0
      %3470 = vmatpush1.bf16.msra.mxu0 %v2770
      %3471 = vmatprep.subr.bf16.mxu0 0
      %3472 = vmatpush1.bf16.msra.mxu0 %v2771
      %3473 = vmatprep.subr.bf16.mxu0 0
      %3474 = vmatpush1.bf16.msra.mxu0 %v2772
      %3475 = vmatprep.subr.bf16.mxu0 0
      %3476 = vmatpush1.bf16.msra.mxu0 %v2773
      %3477 = vmatprep.subr.bf16.mxu0 0
      %3478 = vmatpush1.bf16.msra.mxu0 %v2774
      %3479 = vmatprep.subr.bf16.mxu0 0
      %3480 = vmatpush1.bf16.msra.mxu0 %v2775
      %3481 = vmatprep.subr.bf16.mxu0 0
      %3482 = vmatpush1.bf16.msra.mxu0 %v2776
      %3483 = vmatprep.mubr.bf16.mxu0 %v1870
      %3484 = vmatmul.mubr.bf16.gmra.mrb[0].mxu0 %v1869
      %v3485 = vpop.f32.mrb[0].mxu0
      %v3486 = vadd.f32 %v3197, %v3485
      %v3487 = vpop.f32.mrb[0].mxu0
      %v3488 = vpop.f32.mrb[0].mxu0
      %v3489 = vadd.f32 %v3200, %v3488
      %v3490 = vpop.f32.mrb[0].mxu0
      %3491 = vmatprep.mubr.bf16.mxu0 %v1879
      %3492 = vmatmul.mubr.bf16.gmra.mrb[0].mxu0 %v1878
      %v3493 = vpop.f32.mrb[0].mxu0
      %v3494 = vadd.f32 %v3205, %v3493
      %v3495 = vpop.f32.mrb[0].mxu0
      %v3496 = vpop.f32.mrb[0].mxu0
      %v3497 = vadd.f32 %v3208, %v3496
      %v3498 = vpop.f32.mrb[0].mxu0
      %3499 = vmatprep.mubr.bf16.mxu0 %v1888
      %3500 = vmatmul.mubr.bf16.gmra.mrb[0].mxu0 %v1887
      %v3501 = vpop.f32.mrb[0].mxu0
      %v3502 = vadd.f32 %v3213, %v3501
      %v3503 = vpop.f32.mrb[0].mxu0
      %v3504 = vpop.f32.mrb[0].mxu0
      %v3505 = vadd.f32 %v3216, %v3504
      %v3506 = vpop.f32.mrb[0].mxu0
      %3507 = vmatprep.mubr.bf16.mxu0 %v1897
      %3508 = vmatmul.mubr.bf16.gmra.mrb[0].mxu0 %v1896
      %v3509 = vpop.f32.mrb[0].mxu0
      %v3510 = vadd.f32 %v3221, %v3509
      %v3511 = vpop.f32.mrb[0].mxu0
      %v3512 = vpop.f32.mrb[0].mxu0
      %v3513 = vadd.f32 %v3224, %v3512
      %v3514 = vpop.f32.mrb[0].mxu0
      %3515 = vmatprep.mubr.bf16.mxu0 %v1906
      %3516 = vmatmul.mubr.bf16.gmra.mrb[0].mxu0 %v1905
      %v3517 = vpop.f32.mrb[0].mxu0
      %v3518 = vadd.f32 %v3229, %v3517
      %v3519 = vpop.f32.mrb[0].mxu0
      %v3520 = vpop.f32.mrb[0].mxu0
      %v3521 = vadd.f32 %v3232, %v3520
      %v3522 = vpop.f32.mrb[0].mxu0
      %3523 = vmatprep.mubr.bf16.mxu0 %v1915
      %3524 = vmatmul.mubr.bf16.gmra.mrb[0].mxu0 %v1914
      %v3525 = vpop.f32.mrb[0].mxu0
      %v3526 = vadd.f32 %v3237, %v3525
      %v3527 = vpop.f32.mrb[0].mxu0
      %v3528 = vpop.f32.mrb[0].mxu0
      %v3529 = vadd.f32 %v3240, %v3528
      %v3530 = vpop.f32.mrb[0].mxu0
      %3531 = vmatprep.mubr.bf16.mxu0 %v1924
      %3532 = vmatmul.mubr.bf16.gmra.mrb[0].mxu0 %v1923
      %v3533 = vpop.f32.mrb[0].mxu0
      %v3534 = vadd.f32 %v3245, %v3533
      %v3535 = vpop.f32.mrb[0].mxu0
      %v3536 = vpop.f32.mrb[0].mxu0
      %v3537 = vadd.f32 %v3248, %v3536
      %v3538 = vpop.f32.mrb[0].mxu0
      %3539 = vmatprep.mubr.bf16.mxu0 %v1933
      %3540 = vmatmul.mubr.bf16.gmra.mrb[0].mxu0 %v1932
      %v3541 = vpop.f32.mrb[0].mxu0
      %v3542 = vadd.f32 %v3253, %v3541
      %v3543 = vpop.f32.mrb[0].mxu0
      %v3544 = vpop.f32.mrb[0].mxu0
      %v3545 = vadd.f32 %v3256, %v3544
      %v3546 = vpop.f32.mrb[0].mxu0
      %3547 = vmatprep.mubr.bf16.mxu0 %v1942
      %3548 = vmatmul.mubr.bf16.gmra.mrb[0].mxu0 %v1941
      %v3549 = vpop.f32.mrb[0].mxu0
      %v3550 = vadd.f32 %v3261, %v3549
      %v3551 = vpop.f32.mrb[0].mxu0
      %v3552 = vpop.f32.mrb[0].mxu0
      %v3553 = vadd.f32 %v3264, %v3552
      %v3554 = vpop.f32.mrb[0].mxu0
      %3555 = vmatprep.mubr.bf16.mxu0 %v1951
      %3556 = vmatmul.mubr.bf16.gmra.mrb[0].mxu0 %v1950
      %v3557 = vpop.f32.mrb[0].mxu0
      %v3558 = vadd.f32 %v3269, %v3557
      %v3559 = vpop.f32.mrb[0].mxu0
      %v3560 = vpop.f32.mrb[0].mxu0
      %v3561 = vadd.f32 %v3272, %v3560
      %v3562 = vpop.f32.mrb[0].mxu0
      %3563 = vmatprep.mubr.bf16.mxu0 %v1960
      %3564 = vmatmul.mubr.bf16.gmra.mrb[0].mxu0 %v1959
      %v3565 = vpop.f32.mrb[0].mxu0
      %v3566 = vadd.f32 %v3277, %v3565
      %v3567 = vpop.f32.mrb[0].mxu0
      %v3568 = vpop.f32.mrb[0].mxu0
      %v3569 = vadd.f32 %v3280, %v3568
      %v3570 = vpop.f32.mrb[0].mxu0
      %3571 = vmatprep.mubr.bf16.mxu0 %v1969
      %3572 = vmatmul.mubr.bf16.gmra.mrb[0].mxu0 %v1968
      %v3573 = vpop.f32.mrb[0].mxu0
      %v3574 = vadd.f32 %v3285, %v3573
      %v3575 = vpop.f32.mrb[0].mxu0
      %v3576 = vpop.f32.mrb[0].mxu0
      %v3577 = vadd.f32 %v3288, %v3576
      %v3578 = vpop.f32.mrb[0].mxu0
      %3579 = vmatprep.mubr.bf16.mxu0 %v1978
      %3580 = vmatmul.mubr.bf16.gmra.mrb[0].mxu0 %v1977
      %v3581 = vpop.f32.mrb[0].mxu0
      %v3582 = vadd.f32 %v3293, %v3581
      %v3583 = vpop.f32.mrb[0].mxu0
      %v3584 = vpop.f32.mrb[0].mxu0
      %v3585 = vadd.f32 %v3296, %v3584
      %v3586 = vpop.f32.mrb[0].mxu0
      %3587 = vmatprep.mubr.bf16.mxu0 %v1987
      %3588 = vmatmul.mubr.bf16.gmra.mrb[0].mxu0 %v1986
      %v3589 = vpop.f32.mrb[0].mxu0
      %v3590 = vadd.f32 %v3301, %v3589
      %v3591 = vpop.f32.mrb[0].mxu0
      %v3592 = vpop.f32.mrb[0].mxu0
      %v3593 = vadd.f32 %v3304, %v3592
      %v3594 = vpop.f32.mrb[0].mxu0
      %3595 = vmatprep.mubr.bf16.mxu0 %v1996
      %3596 = vmatmul.mubr.bf16.gmra.mrb[0].mxu0 %v1995
      %v3597 = vpop.f32.mrb[0].mxu0
      %v3598 = vadd.f32 %v3309, %v3597
      %v3599 = vpop.f32.mrb[0].mxu0
      %v3600 = vpop.f32.mrb[0].mxu0
      %v3601 = vadd.f32 %v3312, %v3600
      %v3602 = vpop.f32.mrb[0].mxu0
      %3603 = vmatprep.mubr.bf16.mxu0 %v2005
      %3604 = vmatmul.mubr.bf16.gmra.mrb[0].mxu0 %v2004
      %v3605 = vpop.f32.mrb[0].mxu0
      %v3606 = vadd.f32 %v3317, %v3605
      %v3607 = vpop.f32.mrb[0].mxu0
      %v3608 = vpop.f32.mrb[0].mxu0
      %v3609 = vadd.f32 %v3320, %v3608
      %v3610 = vpop.f32.mrb[0].mxu0
      %3611 = vmatprep.mubr.bf16.mxu0 %v2014
      %3612 = vmatmul.mubr.bf16.gmra.mrb[0].mxu0 %v2013
      %v3613 = vpop.f32.mrb[0].mxu0
      %v3614 = vadd.f32 %v3325, %v3613
      %v3615 = vpop.f32.mrb[0].mxu0
      %v3616 = vpop.f32.mrb[0].mxu0
      %v3617 = vadd.f32 %v3328, %v3616
      %v3618 = vpop.f32.mrb[0].mxu0
      %3619 = vmatprep.mubr.bf16.mxu0 %v2023
      %3620 = vmatmul.mubr.bf16.gmra.mrb[0].mxu0 %v2022
      %v3621 = vpop.f32.mrb[0].mxu0
      %v3622 = vadd.f32 %v3333, %v3621
      %v3623 = vpop.f32.mrb[0].mxu0
      %v3624 = vpop.f32.mrb[0].mxu0
      %v3625 = vadd.f32 %v3336, %v3624
      %v3626 = vpop.f32.mrb[0].mxu0
      %3627 = vmatprep.mubr.bf16.mxu0 %v2032
      %3628 = vmatmul.mubr.bf16.gmra.mrb[0].mxu0 %v2031
      %v3629 = vpop.f32.mrb[0].mxu0
      %v3630 = vadd.f32 %v3341, %v3629
      %v3631 = vpop.f32.mrb[0].mxu0
      %v3632 = vpop.f32.mrb[0].mxu0
      %v3633 = vadd.f32 %v3344, %v3632
      %v3634 = vpop.f32.mrb[0].mxu0
      %3635 = vmatprep.mubr.bf16.mxu0 %v2041
      %3636 = vmatmul.mubr.bf16.gmra.mrb[0].mxu0 %v2040
      %v3637 = vpop.f32.mrb[0].mxu0
      %v3638 = vadd.f32 %v3349, %v3637
      %v3639 = vpop.f32.mrb[0].mxu0
      %v3640 = vpop.f32.mrb[0].mxu0
      %v3641 = vadd.f32 %v3352, %v3640
      %v3642 = vpop.f32.mrb[0].mxu0
      %3643 = vmatprep.mubr.bf16.mxu0 %v2050
      %3644 = vmatmul.mubr.bf16.gmra.mrb[0].mxu0 %v2049
      %v3645 = vpop.f32.mrb[0].mxu0
      %v3646 = vadd.f32 %v3357, %v3645
      %v3647 = vpop.f32.mrb[0].mxu0
      %v3648 = vpop.f32.mrb[0].mxu0
      %v3649 = vadd.f32 %v3360, %v3648
      %v3650 = vpop.f32.mrb[0].mxu0
      %3651 = vmatprep.mubr.bf16.mxu0 %v2059
      %3652 = vmatmul.mubr.bf16.gmra.mrb[0].mxu0 %v2058
      %v3653 = vpop.f32.mrb[0].mxu0
      %v3654 = vadd.f32 %v3365, %v3653
      %v3655 = vpop.f32.mrb[0].mxu0
      %v3656 = vpop.f32.mrb[0].mxu0
      %v3657 = vadd.f32 %v3368, %v3656
      %v3658 = vpop.f32.mrb[0].mxu0
      %3659 = vmatprep.mubr.bf16.mxu0 %v2068
      %3660 = vmatmul.mubr.bf16.gmra.mrb[0].mxu0 %v2067
      %v3661 = vpop.f32.mrb[0].mxu0
      %v3662 = vadd.f32 %v3373, %v3661
      %v3663 = vpop.f32.mrb[0].mxu0
      %v3664 = vpop.f32.mrb[0].mxu0
      %v3665 = vadd.f32 %v3376, %v3664
      %v3666 = vpop.f32.mrb[0].mxu0
      %3667 = vmatprep.mubr.bf16.mxu0 %v2077
      %3668 = vmatmul.mubr.bf16.gmra.mrb[0].mxu0 %v2076
      %v3669 = vpop.f32.mrb[0].mxu0
      %v3670 = vadd.f32 %v3381, %v3669
      %v3671 = vpop.f32.mrb[0].mxu0
      %v3672 = vpop.f32.mrb[0].mxu0
      %v3673 = vadd.f32 %v3384, %v3672
      %v3674 = vpop.f32.mrb[0].mxu0
      %3675 = vmatprep.mubr.bf16.mxu0 %v2086
      %3676 = vmatmul.mubr.bf16.gmra.mrb[0].mxu0 %v2085
      %v3677 = vpop.f32.mrb[0].mxu0
      %v3678 = vadd.f32 %v3389, %v3677
      %v3679 = vpop.f32.mrb[0].mxu0
      %v3680 = vpop.f32.mrb[0].mxu0
      %v3681 = vadd.f32 %v3392, %v3680
      %v3682 = vpop.f32.mrb[0].mxu0
      %3683 = vmatprep.mubr.bf16.mxu0 %v2095
      %3684 = vmatmul.mubr.bf16.gmra.mrb[0].mxu0 %v2094
      %v3685 = vpop.f32.mrb[0].mxu0
      %v3686 = vadd.f32 %v3397, %v3685
      %v3687 = vpop.f32.mrb[0].mxu0
      %v3688 = vpop.f32.mrb[0].mxu0
      %v3689 = vadd.f32 %v3400, %v3688
      %v3690 = vpop.f32.mrb[0].mxu0
      %3691 = vmatprep.mubr.bf16.mxu0 %v2104
      %3692 = vmatmul.mubr.bf16.gmra.mrb[0].mxu0 %v2103
      %v3693 = vpop.f32.mrb[0].mxu0
      %v3694 = vadd.f32 %v3405, %v3693
      %v3695 = vpop.f32.mrb[0].mxu0
      %v3696 = vpop.f32.mrb[0].mxu0
      %v3697 = vadd.f32 %v3408, %v3696
      %v3698 = vpop.f32.mrb[0].mxu0
      %3699 = vmatprep.mubr.bf16.mxu0 %v2113
      %3700 = vmatmul.mubr.bf16.gmra.mrb[0].mxu0 %v2112
      %v3701 = vpop.f32.mrb[0].mxu0
      %v3702 = vadd.f32 %v3413, %v3701
      %v3703 = vpop.f32.mrb[0].mxu0
      %v3704 = vpop.f32.mrb[0].mxu0
      %v3705 = vadd.f32 %v3416, %v3704
      %v3706 = vpop.f32.mrb[0].mxu0
      %3707 = vmatprep.mubr.bf16.mxu0 %v2122
      %3708 = vmatmul.mubr.bf16.gmra.mrb[0].mxu0 %v2121
      %v3709 = vpop.f32.mrb[0].mxu0
      %v3710 = vadd.f32 %v3421, %v3709
      %v3711 = vpop.f32.mrb[0].mxu0
      %v3712 = vpop.f32.mrb[0].mxu0
      %v3713 = vadd.f32 %v3424, %v3712
      %v3714 = vpop.f32.mrb[0].mxu0
      %3715 = vmatprep.mubr.bf16.mxu0 %v2131
      %3716 = vmatmul.mubr.bf16.gmra.mrb[0].mxu0 %v2130
      %v3717 = vpop.f32.mrb[0].mxu0
      %v3718 = vadd.f32 %v3429, %v3717
      %v3719 = vpop.f32.mrb[0].mxu0
      %v3720 = vpop.f32.mrb[0].mxu0
      %v3721 = vadd.f32 %v3432, %v3720
      %v3722 = vpop.f32.mrb[0].mxu0
      %3723 = vmatprep.mubr.bf16.mxu0 %v2140
      %3724 = vmatmul.mubr.bf16.gmra.mrb[0].mxu0 %v2139
      %v3725 = vpop.f32.mrb[0].mxu0
      %v3726 = vadd.f32 %v3437, %v3725
      %v3727 = vpop.f32.mrb[0].mxu0
      %v3728 = vpop.f32.mrb[0].mxu0
      %v3729 = vadd.f32 %v3440, %v3728
      %v3730 = vpop.f32.mrb[0].mxu0
      %3731 = vmatprep.mubr.bf16.mxu0 %v2149
      %3732 = vmatmul.mubr.bf16.gmra.mrb[0].mxu0 %v2148
      %v3733 = vpop.f32.mrb[0].mxu0
      %v3734 = vadd.f32 %v3445, %v3733
      %v3735 = vpop.f32.mrb[0].mxu0
      %v3736 = vpop.f32.mrb[0].mxu0
      %v3737 = vadd.f32 %v3448, %v3736
      %v3738 = vpop.f32.mrb[0].mxu0
      %3739 = vdwg.mxu0
      %3740 = vmatprep.subr.bf16.mxu0 0
      %3741 = vmatpush1.bf16.msra.mxu0 %v2777
      %3742 = vmatprep.subr.bf16.mxu0 0
      %3743 = vmatpush1.bf16.msra.mxu0 %v2778
      %3744 = vmatprep.subr.bf16.mxu0 0
      %3745 = vmatpush1.bf16.msra.mxu0 %v2779
      %3746 = vmatprep.subr.bf16.mxu0 0
      %3747 = vmatpush1.bf16.msra.mxu0 %v2780
      %3748 = vmatprep.subr.bf16.mxu0 0
      %3749 = vmatpush1.bf16.msra.mxu0 %v2781
      %3750 = vmatprep.subr.bf16.mxu0 0
      %3751 = vmatpush1.bf16.msra.mxu0 %v2782
      %3752 = vmatprep.subr.bf16.mxu0 0
      %3753 = vmatpush1.bf16.msra.mxu0 %v2783
      %3754 = vmatprep.subr.bf16.mxu0 0
      %3755 = vmatpush1.bf16.msra.mxu0 %v2784
      %3756 = vmatprep.subr.bf16.mxu0 0
      %3757 = vmatpush1.bf16.msra.mxu0 %v2785
      %3758 = vmatprep.subr.bf16.mxu0 0
      %3759 = vmatpush1.bf16.msra.mxu0 %v2786
      %3760 = vmatprep.subr.bf16.mxu0 0
      %3761 = vmatpush1.bf16.msra.mxu0 %v2787
      %3762 = vmatprep.subr.bf16.mxu0 0
      %3763 = vmatpush1.bf16.msra.mxu0 %v2788
      %3764 = vmatprep.subr.bf16.mxu0 0
      %3765 = vmatpush1.bf16.msra.mxu0 %v2789
      %3766 = vmatprep.subr.bf16.mxu0 0
      %3767 = vmatpush1.bf16.msra.mxu0 %v2790
      %3768 = vmatprep.subr.bf16.mxu0 0
      %3769 = vmatpush1.bf16.msra.mxu0 %v2791
      %3770 = vmatprep.subr.bf16.mxu0 0
      %3771 = vmatpush1.bf16.msra.mxu0 %v2792
      %3772 = vmatprep.mubr.bf16.mxu0 %v1872
      %3773 = vmatmul.mubr.bf16.gmra.mrb[0].mxu0 %v1871
      %v3774 = vpop.f32.mrb[0].mxu0
      %v3775 = vadd.f32 %v3486, %v3774
      %v3776 = vpop.f32.mrb[0].mxu0
      %v3777 = vpop.f32.mrb[0].mxu0
      %v3778 = vadd.f32 %v3489, %v3777
      %v3779 = vpop.f32.mrb[0].mxu0
      %3780 = vmatprep.mubr.bf16.mxu0 %v1881
      %3781 = vmatmul.mubr.bf16.gmra.mrb[0].mxu0 %v1880
      %v3782 = vpop.f32.mrb[0].mxu0
      %v3783 = vadd.f32 %v3494, %v3782
      %v3784 = vpop.f32.mrb[0].mxu0
      %v3785 = vpop.f32.mrb[0].mxu0
      %v3786 = vadd.f32 %v3497, %v3785
      %v3787 = vpop.f32.mrb[0].mxu0
      %3788 = vmatprep.mubr.bf16.mxu0 %v1890
      %3789 = vmatmul.mubr.bf16.gmra.mrb[0].mxu0 %v1889
      %v3790 = vpop.f32.mrb[0].mxu0
      %v3791 = vadd.f32 %v3502, %v3790
      %v3792 = vpop.f32.mrb[0].mxu0
      %v3793 = vpop.f32.mrb[0].mxu0
      %v3794 = vadd.f32 %v3505, %v3793
      %v3795 = vpop.f32.mrb[0].mxu0
      %3796 = vmatprep.mubr.bf16.mxu0 %v1899
      %3797 = vmatmul.mubr.bf16.gmra.mrb[0].mxu0 %v1898
      %v3798 = vpop.f32.mrb[0].mxu0
      %v3799 = vadd.f32 %v3510, %v3798
      %v3800 = vpop.f32.mrb[0].mxu0
      %v3801 = vpop.f32.mrb[0].mxu0
      %v3802 = vadd.f32 %v3513, %v3801
      %v3803 = vpop.f32.mrb[0].mxu0
      %3804 = vmatprep.mubr.bf16.mxu0 %v1908
      %3805 = vmatmul.mubr.bf16.gmra.mrb[0].mxu0 %v1907
      %v3806 = vpop.f32.mrb[0].mxu0
      %v3807 = vadd.f32 %v3518, %v3806
      %v3808 = vpop.f32.mrb[0].mxu0
      %v3809 = vpop.f32.mrb[0].mxu0
      %v3810 = vadd.f32 %v3521, %v3809
      %v3811 = vpop.f32.mrb[0].mxu0
      %3812 = vmatprep.mubr.bf16.mxu0 %v1917
      %3813 = vmatmul.mubr.bf16.gmra.mrb[0].mxu0 %v1916
      %v3814 = vpop.f32.mrb[0].mxu0
      %v3815 = vadd.f32 %v3526, %v3814
      %v3816 = vpop.f32.mrb[0].mxu0
      %v3817 = vpop.f32.mrb[0].mxu0
      %v3818 = vadd.f32 %v3529, %v3817
      %v3819 = vpop.f32.mrb[0].mxu0
      %3820 = vmatprep.mubr.bf16.mxu0 %v1926
      %3821 = vmatmul.mubr.bf16.gmra.mrb[0].mxu0 %v1925
      %v3822 = vpop.f32.mrb[0].mxu0
      %v3823 = vadd.f32 %v3534, %v3822
      %v3824 = vpop.f32.mrb[0].mxu0
      %v3825 = vpop.f32.mrb[0].mxu0
      %v3826 = vadd.f32 %v3537, %v3825
      %v3827 = vpop.f32.mrb[0].mxu0
      %3828 = vmatprep.mubr.bf16.mxu0 %v1935
      %3829 = vmatmul.mubr.bf16.gmra.mrb[0].mxu0 %v1934
      %v3830 = vpop.f32.mrb[0].mxu0
      %v3831 = vadd.f32 %v3542, %v3830
      %v3832 = vpop.f32.mrb[0].mxu0
      %v3833 = vpop.f32.mrb[0].mxu0
      %v3834 = vadd.f32 %v3545, %v3833
      %v3835 = vpop.f32.mrb[0].mxu0
      %3836 = vmatprep.mubr.bf16.mxu0 %v1944
      %3837 = vmatmul.mubr.bf16.gmra.mrb[0].mxu0 %v1943
      %v3838 = vpop.f32.mrb[0].mxu0
      %v3839 = vadd.f32 %v3550, %v3838
      %v3840 = vpop.f32.mrb[0].mxu0
      %v3841 = vpop.f32.mrb[0].mxu0
      %v3842 = vadd.f32 %v3553, %v3841
      %v3843 = vpop.f32.mrb[0].mxu0
      %3844 = vmatprep.mubr.bf16.mxu0 %v1953
      %3845 = vmatmul.mubr.bf16.gmra.mrb[0].mxu0 %v1952
      %v3846 = vpop.f32.mrb[0].mxu0
      %v3847 = vadd.f32 %v3558, %v3846
      %v3848 = vpop.f32.mrb[0].mxu0
      %v3849 = vpop.f32.mrb[0].mxu0
      %v3850 = vadd.f32 %v3561, %v3849
      %v3851 = vpop.f32.mrb[0].mxu0
      %3852 = vmatprep.mubr.bf16.mxu0 %v1962
      %3853 = vmatmul.mubr.bf16.gmra.mrb[0].mxu0 %v1961
      %v3854 = vpop.f32.mrb[0].mxu0
      %v3855 = vadd.f32 %v3566, %v3854
      %v3856 = vpop.f32.mrb[0].mxu0
      %v3857 = vpop.f32.mrb[0].mxu0
      %v3858 = vadd.f32 %v3569, %v3857
      %v3859 = vpop.f32.mrb[0].mxu0
      %3860 = vmatprep.mubr.bf16.mxu0 %v1971
      %3861 = vmatmul.mubr.bf16.gmra.mrb[0].mxu0 %v1970
      %v3862 = vpop.f32.mrb[0].mxu0
      %v3863 = vadd.f32 %v3574, %v3862
      %v3864 = vpop.f32.mrb[0].mxu0
      %v3865 = vpop.f32.mrb[0].mxu0
      %v3866 = vadd.f32 %v3577, %v3865
      %v3867 = vpop.f32.mrb[0].mxu0
      %3868 = vmatprep.mubr.bf16.mxu0 %v1980
      %3869 = vmatmul.mubr.bf16.gmra.mrb[0].mxu0 %v1979
      %v3870 = vpop.f32.mrb[0].mxu0
      %v3871 = vadd.f32 %v3582, %v3870
      %v3872 = vpop.f32.mrb[0].mxu0
      %v3873 = vpop.f32.mrb[0].mxu0
      %v3874 = vadd.f32 %v3585, %v3873
      %v3875 = vpop.f32.mrb[0].mxu0
      %3876 = vmatprep.mubr.bf16.mxu0 %v1989
      %3877 = vmatmul.mubr.bf16.gmra.mrb[0].mxu0 %v1988
      %v3878 = vpop.f32.mrb[0].mxu0
      %v3879 = vadd.f32 %v3590, %v3878
      %v3880 = vpop.f32.mrb[0].mxu0
      %v3881 = vpop.f32.mrb[0].mxu0
      %v3882 = vadd.f32 %v3593, %v3881
      %v3883 = vpop.f32.mrb[0].mxu0
      %3884 = vmatprep.mubr.bf16.mxu0 %v1998
      %3885 = vmatmul.mubr.bf16.gmra.mrb[0].mxu0 %v1997
      %v3886 = vpop.f32.mrb[0].mxu0
      %v3887 = vadd.f32 %v3598, %v3886
      %v3888 = vpop.f32.mrb[0].mxu0
      %v3889 = vpop.f32.mrb[0].mxu0
      %v3890 = vadd.f32 %v3601, %v3889
      %v3891 = vpop.f32.mrb[0].mxu0
      %3892 = vmatprep.mubr.bf16.mxu0 %v2007
      %3893 = vmatmul.mubr.bf16.gmra.mrb[0].mxu0 %v2006
      %v3894 = vpop.f32.mrb[0].mxu0
      %v3895 = vadd.f32 %v3606, %v3894
      %v3896 = vpop.f32.mrb[0].mxu0
      %v3897 = vpop.f32.mrb[0].mxu0
      %v3898 = vadd.f32 %v3609, %v3897
      %v3899 = vpop.f32.mrb[0].mxu0
      %3900 = vmatprep.mubr.bf16.mxu0 %v2016
      %3901 = vmatmul.mubr.bf16.gmra.mrb[0].mxu0 %v2015
      %v3902 = vpop.f32.mrb[0].mxu0
      %v3903 = vadd.f32 %v3614, %v3902
      %v3904 = vpop.f32.mrb[0].mxu0
      %v3905 = vpop.f32.mrb[0].mxu0
      %v3906 = vadd.f32 %v3617, %v3905
      %v3907 = vpop.f32.mrb[0].mxu0
      %3908 = vmatprep.mubr.bf16.mxu0 %v2025
      %3909 = vmatmul.mubr.bf16.gmra.mrb[0].mxu0 %v2024
      %v3910 = vpop.f32.mrb[0].mxu0
      %v3911 = vadd.f32 %v3622, %v3910
      %v3912 = vpop.f32.mrb[0].mxu0
      %v3913 = vpop.f32.mrb[0].mxu0
      %v3914 = vadd.f32 %v3625, %v3913
      %v3915 = vpop.f32.mrb[0].mxu0
      %3916 = vmatprep.mubr.bf16.mxu0 %v2034
      %3917 = vmatmul.mubr.bf16.gmra.mrb[0].mxu0 %v2033
      %v3918 = vpop.f32.mrb[0].mxu0
      %v3919 = vadd.f32 %v3630, %v3918
      %v3920 = vpop.f32.mrb[0].mxu0
      %v3921 = vpop.f32.mrb[0].mxu0
      %v3922 = vadd.f32 %v3633, %v3921
      %v3923 = vpop.f32.mrb[0].mxu0
      %3924 = vmatprep.mubr.bf16.mxu0 %v2043
      %3925 = vmatmul.mubr.bf16.gmra.mrb[0].mxu0 %v2042
      %v3926 = vpop.f32.mrb[0].mxu0
      %v3927 = vadd.f32 %v3638, %v3926
      %v3928 = vpop.f32.mrb[0].mxu0
      %v3929 = vpop.f32.mrb[0].mxu0
      %v3930 = vadd.f32 %v3641, %v3929
      %v3931 = vpop.f32.mrb[0].mxu0
      %3932 = vmatprep.mubr.bf16.mxu0 %v2052
      %3933 = vmatmul.mubr.bf16.gmra.mrb[0].mxu0 %v2051
      %v3934 = vpop.f32.mrb[0].mxu0
      %v3935 = vadd.f32 %v3646, %v3934
      %v3936 = vpop.f32.mrb[0].mxu0
      %v3937 = vpop.f32.mrb[0].mxu0
      %v3938 = vadd.f32 %v3649, %v3937
      %v3939 = vpop.f32.mrb[0].mxu0
      %3940 = vmatprep.mubr.bf16.mxu0 %v2061
      %3941 = vmatmul.mubr.bf16.gmra.mrb[0].mxu0 %v2060
      %v3942 = vpop.f32.mrb[0].mxu0
      %v3943 = vadd.f32 %v3654, %v3942
      %v3944 = vpop.f32.mrb[0].mxu0
      %v3945 = vpop.f32.mrb[0].mxu0
      %v3946 = vadd.f32 %v3657, %v3945
      %v3947 = vpop.f32.mrb[0].mxu0
      %3948 = vmatprep.mubr.bf16.mxu0 %v2070
      %3949 = vmatmul.mubr.bf16.gmra.mrb[0].mxu0 %v2069
      %v3950 = vpop.f32.mrb[0].mxu0
      %v3951 = vadd.f32 %v3662, %v3950
      %v3952 = vpop.f32.mrb[0].mxu0
      %v3953 = vpop.f32.mrb[0].mxu0
      %v3954 = vadd.f32 %v3665, %v3953
      %v3955 = vpop.f32.mrb[0].mxu0
      %3956 = vmatprep.mubr.bf16.mxu0 %v2079
      %3957 = vmatmul.mubr.bf16.gmra.mrb[0].mxu0 %v2078
      %v3958 = vpop.f32.mrb[0].mxu0
      %v3959 = vadd.f32 %v3670, %v3958
      %v3960 = vpop.f32.mrb[0].mxu0
      %v3961 = vpop.f32.mrb[0].mxu0
      %v3962 = vadd.f32 %v3673, %v3961
      %v3963 = vpop.f32.mrb[0].mxu0
      %3964 = vmatprep.mubr.bf16.mxu0 %v2088
      %3965 = vmatmul.mubr.bf16.gmra.mrb[0].mxu0 %v2087
      %v3966 = vpop.f32.mrb[0].mxu0
      %v3967 = vadd.f32 %v3678, %v3966
      %v3968 = vpop.f32.mrb[0].mxu0
      %v3969 = vpop.f32.mrb[0].mxu0
      %v3970 = vadd.f32 %v3681, %v3969
      %v3971 = vpop.f32.mrb[0].mxu0
      %3972 = vmatprep.mubr.bf16.mxu0 %v2097
      %3973 = vmatmul.mubr.bf16.gmra.mrb[0].mxu0 %v2096
      %v3974 = vpop.f32.mrb[0].mxu0
      %v3975 = vadd.f32 %v3686, %v3974
      %v3976 = vpop.f32.mrb[0].mxu0
      %v3977 = vpop.f32.mrb[0].mxu0
      %v3978 = vadd.f32 %v3689, %v3977
      %v3979 = vpop.f32.mrb[0].mxu0
      %3980 = vmatprep.mubr.bf16.mxu0 %v2106
      %3981 = vmatmul.mubr.bf16.gmra.mrb[0].mxu0 %v2105
      %v3982 = vpop.f32.mrb[0].mxu0
      %v3983 = vadd.f32 %v3694, %v3982
      %v3984 = vpop.f32.mrb[0].mxu0
      %v3985 = vpop.f32.mrb[0].mxu0
      %v3986 = vadd.f32 %v3697, %v3985
      %v3987 = vpop.f32.mrb[0].mxu0
      %3988 = vmatprep.mubr.bf16.mxu0 %v2115
      %3989 = vmatmul.mubr.bf16.gmra.mrb[0].mxu0 %v2114
      %v3990 = vpop.f32.mrb[0].mxu0
      %v3991 = vadd.f32 %v3702, %v3990
      %v3992 = vpop.f32.mrb[0].mxu0
      %v3993 = vpop.f32.mrb[0].mxu0
      %v3994 = vadd.f32 %v3705, %v3993
      %v3995 = vpop.f32.mrb[0].mxu0
      %3996 = vmatprep.mubr.bf16.mxu0 %v2124
      %3997 = vmatmul.mubr.bf16.gmra.mrb[0].mxu0 %v2123
      %v3998 = vpop.f32.mrb[0].mxu0
      %v3999 = vadd.f32 %v3710, %v3998
      %v4000 = vpop.f32.mrb[0].mxu0
      %v4001 = vpop.f32.mrb[0].mxu0
      %v4002 = vadd.f32 %v3713, %v4001
      %v4003 = vpop.f32.mrb[0].mxu0
      %4004 = vmatprep.mubr.bf16.mxu0 %v2133
      %4005 = vmatmul.mubr.bf16.gmra.mrb[0].mxu0 %v2132
      %v4006 = vpop.f32.mrb[0].mxu0
      %v4007 = vadd.f32 %v3718, %v4006
      %v4008 = vpop.f32.mrb[0].mxu0
      %v4009 = vpop.f32.mrb[0].mxu0
      %v4010 = vadd.f32 %v3721, %v4009
      %v4011 = vpop.f32.mrb[0].mxu0
      %4012 = vmatprep.mubr.bf16.mxu0 %v2142
      %4013 = vmatmul.mubr.bf16.gmra.mrb[0].mxu0 %v2141
      %v4014 = vpop.f32.mrb[0].mxu0
      %v4015 = vadd.f32 %v3726, %v4014
      %v4016 = vpop.f32.mrb[0].mxu0
      %v4017 = vpop.f32.mrb[0].mxu0
      %v4018 = vadd.f32 %v3729, %v4017
      %v4019 = vpop.f32.mrb[0].mxu0
      %4020 = vmatprep.mubr.bf16.mxu0 %v2151
      %4021 = vmatmul.mubr.bf16.gmra.mrb[0].mxu0 %v2150
      %v4022 = vpop.f32.mrb[0].mxu0
      %v4023 = vadd.f32 %v3734, %v4022
      %v4024 = vpop.f32.mrb[0].mxu0
      %v4025 = vpop.f32.mrb[0].mxu0
      %v4026 = vadd.f32 %v3737, %v4025
      %v4027 = vpop.f32.mrb[0].mxu0
      %4028 = vdwg.mxu0
      %4029 = vmatprep.subr.bf16.mxu0 0
      %4030 = vmatpush1.bf16.msra.mxu0 %v2793
      %4031 = vmatprep.subr.bf16.mxu0 0
      %4032 = vmatpush1.bf16.msra.mxu0 %v2794
      %4033 = vmatprep.subr.bf16.mxu0 0
      %4034 = vmatpush1.bf16.msra.mxu0 %v2795
      %4035 = vmatprep.subr.bf16.mxu0 0
      %4036 = vmatpush1.bf16.msra.mxu0 %v2796
      %4037 = vmatprep.subr.bf16.mxu0 0
      %4038 = vmatpush1.bf16.msra.mxu0 %v2797
      %4039 = vmatprep.subr.bf16.mxu0 0
      %4040 = vmatpush1.bf16.msra.mxu0 %v2798
      %4041 = vmatprep.subr.bf16.mxu0 0
      %4042 = vmatpush1.bf16.msra.mxu0 %v2799
      %4043 = vmatprep.subr.bf16.mxu0 0
      %4044 = vmatpush1.bf16.msra.mxu0 %v2800
      %4045 = vmatprep.subr.bf16.mxu0 0
      %4046 = vmatpush1.bf16.msra.mxu0 0
      %4047 = vmatprep.subr.bf16.mxu0 0
      %4048 = vmatpush1.bf16.msra.mxu0 0
      %4049 = vmatprep.subr.bf16.mxu0 0
      %4050 = vmatpush1.bf16.msra.mxu0 0
      %4051 = vmatprep.subr.bf16.mxu0 0
      %4052 = vmatpush1.bf16.msra.mxu0 0
      %4053 = vmatprep.subr.bf16.mxu0 0
      %4054 = vmatpush1.bf16.msra.mxu0 0
      %4055 = vmatprep.subr.bf16.mxu0 0
      %4056 = vmatpush1.bf16.msra.mxu0 0
      %4057 = vmatprep.subr.bf16.mxu0 0
      %4058 = vmatpush1.bf16.msra.mxu0 0
      %4059 = vmatprep.subr.bf16.mxu0 0
      %4060 = vmatpush1.bf16.msra.mxu0 0
      %4061 = vmatprep.mubr.bf16.mxu0 0
      %4062 = vmatmul.mubr.bf16.gmra.mrb[0].mxu0 %v1873
      %v4063 = vpop.f32.mrb[0].mxu0
      %v4064 = vadd.f32 %v3775, %v4063
      %v4065 = vpop.f32.mrb[0].mxu0
      %v4066 = vpop.f32.mrb[0].mxu0
      %v4067 = vadd.f32 %v3778, %v4066
      %v4068 = vpop.f32.mrb[0].mxu0
      %4069 = vmatprep.mubr.bf16.mxu0 0
      %4070 = vmatmul.mubr.bf16.gmra.mrb[0].mxu0 %v1882
      %v4071 = vpop.f32.mrb[0].mxu0
      %v4072 = vadd.f32 %v3783, %v4071
      %v4073 = vpop.f32.mrb[0].mxu0
      %v4074 = vpop.f32.mrb[0].mxu0
      %v4075 = vadd.f32 %v3786, %v4074
      %v4076 = vpop.f32.mrb[0].mxu0
      %4077 = vmatprep.mubr.bf16.mxu0 0
      %4078 = vmatmul.mubr.bf16.gmra.mrb[0].mxu0 %v1891
      %v4079 = vpop.f32.mrb[0].mxu0
      %v4080 = vadd.f32 %v3791, %v4079
      %v4081 = vpop.f32.mrb[0].mxu0
      %v4082 = vpop.f32.mrb[0].mxu0
      %v4083 = vadd.f32 %v3794, %v4082
      %v4084 = vpop.f32.mrb[0].mxu0
      %4085 = vmatprep.mubr.bf16.mxu0 0
      %4086 = vmatmul.mubr.bf16.gmra.mrb[0].mxu0 %v1900
      %v4087 = vpop.f32.mrb[0].mxu0
      %v4088 = vadd.f32 %v3799, %v4087
      %v4089 = vpop.f32.mrb[0].mxu0
      %v4090 = vpop.f32.mrb[0].mxu0
      %v4091 = vadd.f32 %v3802, %v4090
      %v4092 = vpop.f32.mrb[0].mxu0
      %4093 = vmatprep.mubr.bf16.mxu0 0
      %4094 = vmatmul.mubr.bf16.gmra.mrb[0].mxu0 %v1909
      %v4095 = vpop.f32.mrb[0].mxu0
      %v4096 = vadd.f32 %v3807, %v4095
      %v4097 = vpop.f32.mrb[0].mxu0
      %v4098 = vpop.f32.mrb[0].mxu0
      %v4099 = vadd.f32 %v3810, %v4098
      %v4100 = vpop.f32.mrb[0].mxu0
      %4101 = vmatprep.mubr.bf16.mxu0 0
      %4102 = vmatmul.mubr.bf16.gmra.mrb[0].mxu0 %v1918
      %v4103 = vpop.f32.mrb[0].mxu0
      %v4104 = vadd.f32 %v3815, %v4103
      %v4105 = vpop.f32.mrb[0].mxu0
      %v4106 = vpop.f32.mrb[0].mxu0
      %v4107 = vadd.f32 %v3818, %v4106
      %v4108 = vpop.f32.mrb[0].mxu0
      %4109 = vmatprep.mubr.bf16.mxu0 0
      %4110 = vmatmul.mubr.bf16.gmra.mrb[0].mxu0 %v1927
      %v4111 = vpop.f32.mrb[0].mxu0
      %v4112 = vadd.f32 %v3823, %v4111
      %v4113 = vpop.f32.mrb[0].mxu0
      %v4114 = vpop.f32.mrb[0].mxu0
      %v4115 = vadd.f32 %v3826, %v4114
      %v4116 = vpop.f32.mrb[0].mxu0
      %4117 = vmatprep.mubr.bf16.mxu0 0
      %4118 = vmatmul.mubr.bf16.gmra.mrb[0].mxu0 %v1936
      %v4119 = vpop.f32.mrb[0].mxu0
      %v4120 = vadd.f32 %v3831, %v4119
      %v4121 = vpop.f32.mrb[0].mxu0
      %v4122 = vpop.f32.mrb[0].mxu0
      %v4123 = vadd.f32 %v3834, %v4122
      %v4124 = vpop.f32.mrb[0].mxu0
      %4125 = vmatprep.mubr.bf16.mxu0 0
      %4126 = vmatmul.mubr.bf16.gmra.mrb[0].mxu0 %v1945
      %v4127 = vpop.f32.mrb[0].mxu0
      %v4128 = vadd.f32 %v3839, %v4127
      %v4129 = vpop.f32.mrb[0].mxu0
      %v4130 = vpop.f32.mrb[0].mxu0
      %v4131 = vadd.f32 %v3842, %v4130
      %v4132 = vpop.f32.mrb[0].mxu0
      %4133 = vmatprep.mubr.bf16.mxu0 0
      %4134 = vmatmul.mubr.bf16.gmra.mrb[0].mxu0 %v1954
      %v4135 = vpop.f32.mrb[0].mxu0
      %v4136 = vadd.f32 %v3847, %v4135
      %v4137 = vpop.f32.mrb[0].mxu0
      %v4138 = vpop.f32.mrb[0].mxu0
      %v4139 = vadd.f32 %v3850, %v4138
      %v4140 = vpop.f32.mrb[0].mxu0
      %4141 = vmatprep.mubr.bf16.mxu0 0
      %4142 = vmatmul.mubr.bf16.gmra.mrb[0].mxu0 %v1963
      %v4143 = vpop.f32.mrb[0].mxu0
      %v4144 = vadd.f32 %v3855, %v4143
      %v4145 = vpop.f32.mrb[0].mxu0
      %v4146 = vpop.f32.mrb[0].mxu0
      %v4147 = vadd.f32 %v3858, %v4146
      %v4148 = vpop.f32.mrb[0].mxu0
      %4149 = vmatprep.mubr.bf16.mxu0 0
      %4150 = vmatmul.mubr.bf16.gmra.mrb[0].mxu0 %v1972
      %v4151 = vpop.f32.mrb[0].mxu0
      %v4152 = vadd.f32 %v3863, %v4151
      %v4153 = vpop.f32.mrb[0].mxu0
      %v4154 = vpop.f32.mrb[0].mxu0
      %v4155 = vadd.f32 %v3866, %v4154
      %v4156 = vpop.f32.mrb[0].mxu0
      %4157 = vmatprep.mubr.bf16.mxu0 0
      %4158 = vmatmul.mubr.bf16.gmra.mrb[0].mxu0 %v1981
      %v4159 = vpop.f32.mrb[0].mxu0
      %v4160 = vadd.f32 %v3871, %v4159
      %v4161 = vpop.f32.mrb[0].mxu0
      %v4162 = vpop.f32.mrb[0].mxu0
      %v4163 = vadd.f32 %v3874, %v4162
      %v4164 = vpop.f32.mrb[0].mxu0
      %4165 = vmatprep.mubr.bf16.mxu0 0
      %4166 = vmatmul.mubr.bf16.gmra.mrb[0].mxu0 %v1990
      %v4167 = vpop.f32.mrb[0].mxu0
      %v4168 = vadd.f32 %v3879, %v4167
      %v4169 = vpop.f32.mrb[0].mxu0
      %v4170 = vpop.f32.mrb[0].mxu0
      %v4171 = vadd.f32 %v3882, %v4170
      %v4172 = vpop.f32.mrb[0].mxu0
      %4173 = vmatprep.mubr.bf16.mxu0 0
      %4174 = vmatmul.mubr.bf16.gmra.mrb[0].mxu0 %v1999
      %v4175 = vpop.f32.mrb[0].mxu0
      %v4176 = vadd.f32 %v3887, %v4175
      %v4177 = vpop.f32.mrb[0].mxu0
      %v4178 = vpop.f32.mrb[0].mxu0
      %v4179 = vadd.f32 %v3890, %v4178
      %v4180 = vpop.f32.mrb[0].mxu0
      %4181 = vmatprep.mubr.bf16.mxu0 0
      %4182 = vmatmul.mubr.bf16.gmra.mrb[0].mxu0 %v2008
      %v4183 = vpop.f32.mrb[0].mxu0
      %v4184 = vadd.f32 %v3895, %v4183
      %v4185 = vpop.f32.mrb[0].mxu0
      %v4186 = vpop.f32.mrb[0].mxu0
      %v4187 = vadd.f32 %v3898, %v4186
      %v4188 = vpop.f32.mrb[0].mxu0
      %4189 = vmatprep.mubr.bf16.mxu0 0
      %4190 = vmatmul.mubr.bf16.gmra.mrb[0].mxu0 %v2017
      %v4191 = vpop.f32.mrb[0].mxu0
      %v4192 = vadd.f32 %v3903, %v4191
      %v4193 = vpop.f32.mrb[0].mxu0
      %v4194 = vpop.f32.mrb[0].mxu0
      %v4195 = vadd.f32 %v3906, %v4194
      %v4196 = vpop.f32.mrb[0].mxu0
      %4197 = vmatprep.mubr.bf16.mxu0 0
      %4198 = vmatmul.mubr.bf16.gmra.mrb[0].mxu0 %v2026
      %v4199 = vpop.f32.mrb[0].mxu0
      %v4200 = vadd.f32 %v3911, %v4199
      %v4201 = vpop.f32.mrb[0].mxu0
      %v4202 = vpop.f32.mrb[0].mxu0
      %v4203 = vadd.f32 %v3914, %v4202
      %v4204 = vpop.f32.mrb[0].mxu0
      %4205 = vmatprep.mubr.bf16.mxu0 0
      %4206 = vmatmul.mubr.bf16.gmra.mrb[0].mxu0 %v2035
      %v4207 = vpop.f32.mrb[0].mxu0
      %v4208 = vadd.f32 %v3919, %v4207
      %v4209 = vpop.f32.mrb[0].mxu0
      %v4210 = vpop.f32.mrb[0].mxu0
      %v4211 = vadd.f32 %v3922, %v4210
      %v4212 = vpop.f32.mrb[0].mxu0
      %4213 = vmatprep.mubr.bf16.mxu0 0
      %4214 = vmatmul.mubr.bf16.gmra.mrb[0].mxu0 %v2044
      %v4215 = vpop.f32.mrb[0].mxu0
      %v4216 = vadd.f32 %v3927, %v4215
      %v4217 = vpop.f32.mrb[0].mxu0
      %v4218 = vpop.f32.mrb[0].mxu0
      %v4219 = vadd.f32 %v3930, %v4218
      %v4220 = vpop.f32.mrb[0].mxu0
      %4221 = vmatprep.mubr.bf16.mxu0 0
      %4222 = vmatmul.mubr.bf16.gmra.mrb[0].mxu0 %v2053
      %v4223 = vpop.f32.mrb[0].mxu0
      %v4224 = vadd.f32 %v3935, %v4223
      %v4225 = vpop.f32.mrb[0].mxu0
      %v4226 = vpop.f32.mrb[0].mxu0
      %v4227 = vadd.f32 %v3938, %v4226
      %v4228 = vpop.f32.mrb[0].mxu0
      %4229 = vmatprep.mubr.bf16.mxu0 0
      %4230 = vmatmul.mubr.bf16.gmra.mrb[0].mxu0 %v2062
      %v4231 = vpop.f32.mrb[0].mxu0
      %v4232 = vadd.f32 %v3943, %v4231
      %v4233 = vpop.f32.mrb[0].mxu0
      %v4234 = vpop.f32.mrb[0].mxu0
      %v4235 = vadd.f32 %v3946, %v4234
      %v4236 = vpop.f32.mrb[0].mxu0
      %4237 = vmatprep.mubr.bf16.mxu0 0
      %4238 = vmatmul.mubr.bf16.gmra.mrb[0].mxu0 %v2071
      %v4239 = vpop.f32.mrb[0].mxu0
      %v4240 = vadd.f32 %v3951, %v4239
      %v4241 = vpop.f32.mrb[0].mxu0
      %v4242 = vpop.f32.mrb[0].mxu0
      %v4243 = vadd.f32 %v3954, %v4242
      %v4244 = vpop.f32.mrb[0].mxu0
      %4245 = vmatprep.mubr.bf16.mxu0 0
      %4246 = vmatmul.mubr.bf16.gmra.mrb[0].mxu0 %v2080
      %v4247 = vpop.f32.mrb[0].mxu0
      %v4248 = vadd.f32 %v3959, %v4247
      %v4249 = vpop.f32.mrb[0].mxu0
      %v4250 = vpop.f32.mrb[0].mxu0
      %v4251 = vadd.f32 %v3962, %v4250
      %v4252 = vpop.f32.mrb[0].mxu0
      %4253 = vmatprep.mubr.bf16.mxu0 0
      %4254 = vmatmul.mubr.bf16.gmra.mrb[0].mxu0 %v2089
      %v4255 = vpop.f32.mrb[0].mxu0
      %v4256 = vadd.f32 %v3967, %v4255
      %v4257 = vpop.f32.mrb[0].mxu0
      %v4258 = vpop.f32.mrb[0].mxu0
      %v4259 = vadd.f32 %v3970, %v4258
      %v4260 = vpop.f32.mrb[0].mxu0
      %4261 = vmatprep.mubr.bf16.mxu0 0
      %4262 = vmatmul.mubr.bf16.gmra.mrb[0].mxu0 %v2098
      %v4263 = vpop.f32.mrb[0].mxu0
      %v4264 = vadd.f32 %v3975, %v4263
      %v4265 = vpop.f32.mrb[0].mxu0
      %v4266 = vpop.f32.mrb[0].mxu0
      %v4267 = vadd.f32 %v3978, %v4266
      %v4268 = vpop.f32.mrb[0].mxu0
      %4269 = vmatprep.mubr.bf16.mxu0 0
      %4270 = vmatmul.mubr.bf16.gmra.mrb[0].mxu0 %v2107
      %v4271 = vpop.f32.mrb[0].mxu0
      %v4272 = vadd.f32 %v3983, %v4271
      %v4273 = vpop.f32.mrb[0].mxu0
      %v4274 = vpop.f32.mrb[0].mxu0
      %v4275 = vadd.f32 %v3986, %v4274
      %v4276 = vpop.f32.mrb[0].mxu0
      %4277 = vmatprep.mubr.bf16.mxu0 0
      %4278 = vmatmul.mubr.bf16.gmra.mrb[0].mxu0 %v2116
      %v4279 = vpop.f32.mrb[0].mxu0
      %v4280 = vadd.f32 %v3991, %v4279
      %v4281 = vpop.f32.mrb[0].mxu0
      %v4282 = vpop.f32.mrb[0].mxu0
      %v4283 = vadd.f32 %v3994, %v4282
      %v4284 = vpop.f32.mrb[0].mxu0
      %4285 = vmatprep.mubr.bf16.mxu0 0
      %4286 = vmatmul.mubr.bf16.gmra.mrb[0].mxu0 %v2125
      %v4287 = vpop.f32.mrb[0].mxu0
      %v4288 = vadd.f32 %v3999, %v4287
      %v4289 = vpop.f32.mrb[0].mxu0
      %v4290 = vpop.f32.mrb[0].mxu0
      %v4291 = vadd.f32 %v4002, %v4290
      %v4292 = vpop.f32.mrb[0].mxu0
      %4293 = vmatprep.mubr.bf16.mxu0 0
      %4294 = vmatmul.mubr.bf16.gmra.mrb[0].mxu0 %v2134
      %v4295 = vpop.f32.mrb[0].mxu0
      %v4296 = vadd.f32 %v4007, %v4295
      %v4297 = vpop.f32.mrb[0].mxu0
      %v4298 = vpop.f32.mrb[0].mxu0
      %v4299 = vadd.f32 %v4010, %v4298
      %v4300 = vpop.f32.mrb[0].mxu0
      %4301 = vmatprep.mubr.bf16.mxu0 0
      %4302 = vmatmul.mubr.bf16.gmra.mrb[0].mxu0 %v2143
      %v4303 = vpop.f32.mrb[0].mxu0
      %v4304 = vadd.f32 %v4015, %v4303
      %v4305 = vpop.f32.mrb[0].mxu0
      %v4306 = vpop.f32.mrb[0].mxu0
      %v4307 = vadd.f32 %v4018, %v4306
      %v4308 = vpop.f32.mrb[0].mxu0
      %4309 = vmatprep.mubr.bf16.mxu0 0
      %4310 = vmatmul.mubr.bf16.gmra.mrb[0].mxu0 %v2152
      %v4311 = vpop.f32.mrb[0].mxu0
      %v4312 = vadd.f32 %v4023, %v4311
      %v4313 = vpop.f32.mrb[0].mxu0
      %v4314 = vpop.f32.mrb[0].mxu0
      %v4315 = vadd.f32 %v4026, %v4314
      %v4316 = vpop.f32.mrb[0].mxu0
      %4317 = vdwg.mxu0
      %v4318 = vpack.c.bf16 %v4067, %v4064
      %v4319 = vpack.c.bf16 %v4075, %v4072
      %v4320 = vpack.c.bf16 %v4083, %v4080
      %v4321 = vpack.c.bf16 %v4091, %v4088
      %v4322 = vpack.c.bf16 %v4099, %v4096
      %v4323 = vpack.c.bf16 %v4107, %v4104
      %v4324 = vpack.c.bf16 %v4115, %v4112
      %v4325 = vpack.c.bf16 %v4123, %v4120
      %v4326 = vpack.c.bf16 %v4131, %v4128
      %v4327 = vpack.c.bf16 %v4139, %v4136
      %v4328 = vpack.c.bf16 %v4147, %v4144
      %v4329 = vpack.c.bf16 %v4155, %v4152
      %v4330 = vpack.c.bf16 %v4163, %v4160
      %v4331 = vpack.c.bf16 %v4171, %v4168
      %v4332 = vpack.c.bf16 %v4179, %v4176
      %v4333 = vpack.c.bf16 %v4187, %v4184
      %v4334 = vpack.c.bf16 %v4195, %v4192
      %v4335 = vpack.c.bf16 %v4203, %v4200
      %v4336 = vpack.c.bf16 %v4211, %v4208
      %v4337 = vpack.c.bf16 %v4219, %v4216
      %v4338 = vpack.c.bf16 %v4227, %v4224
      %v4339 = vpack.c.bf16 %v4235, %v4232
      %v4340 = vpack.c.bf16 %v4243, %v4240
      %v4341 = vpack.c.bf16 %v4251, %v4248
      %v4342 = vpack.c.bf16 %v4259, %v4256
      %v4343 = vpack.c.bf16 %v4267, %v4264
      %v4344 = vpack.c.bf16 %v4275, %v4272
      %v4345 = vpack.c.bf16 %v4283, %v4280
      %v4346 = vpack.c.bf16 %v4291, %v4288
      %v4347 = vpack.c.bf16 %v4299, %v4296
      %v4348 = vpack.c.bf16 %v4307, %v4304
      %v4349 = vpack.c.bf16 %v4315, %v4312
      %v4382 = vunpack.c.l.b16 %v4318
      %v4383 = vunpack.c.h.b16 %v4318
      %v4384 = vunpack.c.l.b16 %v4319
      %v4385 = vunpack.c.h.b16 %v4319
      %v4386 = vunpack.c.l.b16 %v4320
      %v4387 = vunpack.c.h.b16 %v4320
      %v4388 = vunpack.c.l.b16 %v4321
      %v4389 = vunpack.c.h.b16 %v4321
      %v4390 = vunpack.c.l.b16 %v4322
      %v4391 = vunpack.c.h.b16 %v4322
      %v4392 = vunpack.c.l.b16 %v4323
      %v4393 = vunpack.c.h.b16 %v4323
      %v4394 = vunpack.c.l.b16 %v4324
      %v4395 = vunpack.c.h.b16 %v4324
      %v4396 = vunpack.c.l.b16 %v4325
      %v4397 = vunpack.c.h.b16 %v4325
      %v4398 = vunpack.c.l.b16 %v4326
      %v4399 = vunpack.c.h.b16 %v4326
      %v4400 = vunpack.c.l.b16 %v4327
      %v4401 = vunpack.c.h.b16 %v4327
      %v4402 = vunpack.c.l.b16 %v4328
      %v4403 = vunpack.c.h.b16 %v4328
      %v4404 = vunpack.c.l.b16 %v4329
      %v4405 = vunpack.c.h.b16 %v4329
      %v4406 = vunpack.c.l.b16 %v4330
      %v4407 = vunpack.c.h.b16 %v4330
      %v4408 = vunpack.c.l.b16 %v4331
      %v4409 = vunpack.c.h.b16 %v4331
      %v4410 = vunpack.c.l.b16 %v4332
      %v4411 = vunpack.c.h.b16 %v4332
      %v4412 = vunpack.c.l.b16 %v4333
      %v4413 = vunpack.c.h.b16 %v4333
      %v4414 = vunpack.c.l.b16 %v4334
      %v4415 = vunpack.c.h.b16 %v4334
      %v4416 = vunpack.c.l.b16 %v4335
      %v4417 = vunpack.c.h.b16 %v4335
      %v4418 = vunpack.c.l.b16 %v4336
      %v4419 = vunpack.c.h.b16 %v4336
      %v4420 = vunpack.c.l.b16 %v4337
      %v4421 = vunpack.c.h.b16 %v4337
      %v4422 = vunpack.c.l.b16 %v4338
      %v4423 = vunpack.c.h.b16 %v4338
      %v4424 = vunpack.c.l.b16 %v4339
      %v4425 = vunpack.c.h.b16 %v4339
      %v4426 = vunpack.c.l.b16 %v4340
      %v4427 = vunpack.c.h.b16 %v4340
      %v4428 = vunpack.c.l.b16 %v4341
      %v4429 = vunpack.c.h.b16 %v4341
      %v4430 = vunpack.c.l.b16 %v4342
      %v4431 = vunpack.c.h.b16 %v4342
      %v4432 = vunpack.c.l.b16 %v4343
      %v4433 = vunpack.c.h.b16 %v4343
      %v4434 = vunpack.c.l.b16 %v4344
      %v4435 = vunpack.c.h.b16 %v4344
      %v4436 = vunpack.c.l.b16 %v4345
      %v4437 = vunpack.c.h.b16 %v4345
      %v4438 = vunpack.c.l.b16 %v4346
      %v4439 = vunpack.c.h.b16 %v4346
      %v4440 = vunpack.c.l.b16 %v4347
      %v4441 = vunpack.c.h.b16 %v4347
      %v4442 = vunpack.c.l.b16 %v4348
      %v4443 = vunpack.c.h.b16 %v4348
      %v4444 = vunpack.c.l.b16 %v4349
      %v4445 = vunpack.c.h.b16 %v4349
      %v4446 = vpack.c.b16 %v4382, %v4382
      %v4447 = vpack.c.b16 %v4383, %v4383
      %v4448 = vpack.c.b16 %v4384, %v4384
      %v4449 = vpack.c.b16 %v4385, %v4385
      %v4450 = vpack.c.b16 %v4386, %v4386
      %v4451 = vpack.c.b16 %v4387, %v4387
      %v4452 = vpack.c.b16 %v4388, %v4388
      %v4453 = vpack.c.b16 %v4389, %v4389
      %v4454 = vpack.c.b16 %v4390, %v4390
      %v4455 = vpack.c.b16 %v4391, %v4391
      %v4456 = vpack.c.b16 %v4392, %v4392
      %v4457 = vpack.c.b16 %v4393, %v4393
      %v4458 = vpack.c.b16 %v4394, %v4394
      %v4459 = vpack.c.b16 %v4395, %v4395
      %v4460 = vpack.c.b16 %v4396, %v4396
      %v4461 = vpack.c.b16 %v4397, %v4397
      %v4462 = vpack.c.b16 %v4398, %v4398
      %v4463 = vpack.c.b16 %v4399, %v4399
      %v4464 = vpack.c.b16 %v4400, %v4400
      %v4465 = vpack.c.b16 %v4401, %v4401
      %v4466 = vpack.c.b16 %v4402, %v4402
      %v4467 = vpack.c.b16 %v4403, %v4403
      %v4468 = vpack.c.b16 %v4404, %v4404
      %v4469 = vpack.c.b16 %v4405, %v4405
      %v4470 = vpack.c.b16 %v4406, %v4406
      %v4471 = vpack.c.b16 %v4407, %v4407
      %v4472 = vpack.c.b16 %v4408, %v4408
      %v4473 = vpack.c.b16 %v4409, %v4409
      %v4474 = vpack.c.b16 %v4410, %v4410
      %v4475 = vpack.c.b16 %v4411, %v4411
      %v4476 = vpack.c.b16 %v4412, %v4412
      %v4477 = vpack.c.b16 %v4413, %v4413
      %v4478 = vpack.c.b16 %v4414, %v4414
      %v4479 = vpack.c.b16 %v4415, %v4415
      %v4480 = vpack.c.b16 %v4416, %v4416
      %v4481 = vpack.c.b16 %v4417, %v4417
      %v4482 = vpack.c.b16 %v4418, %v4418
      %v4483 = vpack.c.b16 %v4419, %v4419
      %v4484 = vpack.c.b16 %v4420, %v4420
      %v4485 = vpack.c.b16 %v4421, %v4421
      %v4486 = vpack.c.b16 %v4422, %v4422
      %v4487 = vpack.c.b16 %v4423, %v4423
      %v4488 = vpack.c.b16 %v4424, %v4424
      %v4489 = vpack.c.b16 %v4425, %v4425
      %v4490 = vpack.c.b16 %v4426, %v4426
      %v4491 = vpack.c.b16 %v4427, %v4427
      %v4492 = vpack.c.b16 %v4428, %v4428
      %v4493 = vpack.c.b16 %v4429, %v4429
      %v4494 = vpack.c.b16 %v4430, %v4430
      %v4495 = vpack.c.b16 %v4431, %v4431
      %v4496 = vpack.c.b16 %v4432, %v4432
      %v4497 = vpack.c.b16 %v4433, %v4433
      %v4498 = vpack.c.b16 %v4434, %v4434
      %v4499 = vpack.c.b16 %v4435, %v4435
      %v4500 = vpack.c.b16 %v4436, %v4436
      %v4501 = vpack.c.b16 %v4437, %v4437
      %v4502 = vpack.c.b16 %v4438, %v4438
      %v4503 = vpack.c.b16 %v4439, %v4439
      %v4504 = vpack.c.b16 %v4440, %v4440
      %v4505 = vpack.c.b16 %v4441, %v4441
      %v4506 = vpack.c.b16 %v4442, %v4442
      %v4507 = vpack.c.b16 %v4443, %v4443
      %v4508 = vpack.c.b16 %v4444, %v4444
      %v4509 = vpack.c.b16 %v4445, %v4445
      %4574 = vst [vmem:[%s175] sm:$0xf] %v4446
      %4575 = vst [vmem:[%s175 + $0x4] sm:$0xf] %v4447
      %4576 = vst [vmem:[%s175 + $0x8] sm:$0xf] %v4448
      %4577 = vst [vmem:[%s175 + $0xc] sm:$0xf] %v4449
      %4578 = vst [vmem:[%s175 + $0x10] sm:$0xf] %v4450
      %4579 = vst [vmem:[%s175 + $0x14] sm:$0xf] %v4451
      %4580 = vst [vmem:[%s175 + $0x18] sm:$0xf] %v4452
      %4581 = vst [vmem:[%s175 + $0x1c] sm:$0xf] %v4453
      %4582 = vst [vmem:[%s175 + $0x20] sm:$0xf] %v4454
      %4583 = vst [vmem:[%s175 + $0x24] sm:$0xf] %v4455
      %4584 = vst [vmem:[%s175 + $0x28] sm:$0xf] %v4456
      %4585 = vst [vmem:[%s175 + $0x2c] sm:$0xf] %v4457
      %4586 = vst [vmem:[%s175 + $0x30] sm:$0xf] %v4458
      %4587 = vst [vmem:[%s175 + $0x34] sm:$0xf] %v4459
      %4588 = vst [vmem:[%s175 + $0x38] sm:$0xf] %v4460
      %4589 = vst [vmem:[%s175 + $0x3c] sm:$0xf] %v4461
      %4590 = vst [vmem:[%s175 + $0x40] sm:$0xf] %v4462
      %4591 = vst [vmem:[%s175 + $0x44] sm:$0xf] %v4463
      %4592 = vst [vmem:[%s175 + $0x48] sm:$0xf] %v4464
      %4593 = vst [vmem:[%s175 + $0x4c] sm:$0xf] %v4465
      %4594 = vst [vmem:[%s175 + $0x50] sm:$0xf] %v4466
      %4595 = vst [vmem:[%s175 + $0x54] sm:$0xf] %v4467
      %4596 = vst [vmem:[%s175 + $0x58] sm:$0xf] %v4468
      %4597 = vst [vmem:[%s175 + $0x5c] sm:$0xf] %v4469
      %4598 = vst [vmem:[%s175 + $0x60] sm:$0xf] %v4470
      %4599 = vst [vmem:[%s175 + $0x64] sm:$0xf] %v4471
      %4600 = vst [vmem:[%s175 + $0x68] sm:$0xf] %v4472
      %4601 = vst [vmem:[%s175 + $0x6c] sm:$0xf] %v4473
      %4602 = vst [vmem:[%s175 + $0x70] sm:$0xf] %v4474
      %4603 = vst [vmem:[%s175 + $0x74] sm:$0xf] %v4475
      %4604 = vst [vmem:[%s175 + $0x78] sm:$0xf] %v4476
      %4605 = vst [vmem:[%s175 + $0x7c] sm:$0xf] %v4477
      %4606 = vst [vmem:[%s175 + $0x80] sm:$0xf] %v4478
      %4607 = vst [vmem:[%s175 + $0x84] sm:$0xf] %v4479
      %4608 = vst [vmem:[%s175 + $0x88] sm:$0xf] %v4480
      %4609 = vst [vmem:[%s175 + $0x8c] sm:$0xf] %v4481
      %4610 = vst [vmem:[%s175 + $0x90] sm:$0xf] %v4482
      %4611 = vst [vmem:[%s175 + $0x94] sm:$0xf] %v4483
      %4612 = vst [vmem:[%s175 + $0x98] sm:$0xf] %v4484
      %4613 = vst [vmem:[%s175 + $0x9c] sm:$0xf] %v4485
      %4614 = vst [vmem:[%s175 + $0xa0] sm:$0xf] %v4486
      %4615 = vst [vmem:[%s175 + $0xa4] sm:$0xf] %v4487
      %4616 = vst [vmem:[%s175 + $0xa8] sm:$0xf] %v4488
      %4617 = vst [vmem:[%s175 + $0xac] sm:$0xf] %v4489
      %4618 = vst [vmem:[%s175 + $0xb0] sm:$0xf] %v4490
      %4619 = vst [vmem:[%s175 + $0xb4] sm:$0xf] %v4491
      %4620 = vst [vmem:[%s175 + $0xb8] sm:$0xf] %v4492
      %4621 = vst [vmem:[%s175 + $0xbc] sm:$0xf] %v4493
      %4622 = vst [vmem:[%s175 + $0xc0] sm:$0xf] %v4494
      %4623 = vst [vmem:[%s175 + $0xc4] sm:$0xf] %v4495
      %4624 = vst [vmem:[%s175 + $0xc8] sm:$0xf] %v4496
      %4625 = vst [vmem:[%s175 + $0xcc] sm:$0xf] %v4497
      %4626 = vst [vmem:[%s175 + $0xd0] sm:$0xf] %v4498
      %4627 = vst [vmem:[%s175 + $0xd4] sm:$0xf] %v4499
      %4628 = vst [vmem:[%s175 + $0xd8] sm:$0xf] %v4500
      %4629 = vst [vmem:[%s175 + $0xdc] sm:$0xf] %v4501
      %4630 = vst [vmem:[%s175 + $0xe0] sm:$0xf] %v4502
      %4631 = vst [vmem:[%s175 + $0xe4] sm:$0xf] %v4503
      %4632 = vst [vmem:[%s175 + $0xe8] sm:$0xf] %v4504
      %4633 = vst [vmem:[%s175 + $0xec] sm:$0xf] %v4505
      %4634 = vst [vmem:[%s175 + $0xf0] sm:$0xf] %v4506
      %4635 = vst [vmem:[%s175 + $0xf4] sm:$0xf] %v4507
      %4636 = vst [vmem:[%s175 + $0xf8] sm:$0xf] %v4508
      %4637 = vst [vmem:[%s175 + $0xfc] sm:$0xf] %v4509
      %s4638 = smul.u32 64, %s14
      %p4639 = scmp.lt.s32.totalorder %s4638, 255
      %s4640 = scalar_select %p4639, %s4638, 255
      %s4641 = smul.addr %s4640, 4
      %s4642 = scalar_lea.vmem %s3, %s4641
      // Predicated region
      $region33: #{discriminator32_forward.12} parent=31 // pred_check
        %p4643 = pneg %p100
      $region34: #{discriminator32_forward.12} parent=31 // pred_check_branch
        %4645 = sbr.rel (%p4643) target = $region36
      $region35: #{discriminator32_forward.12} parent=31 // pred_region
        %s4646 = smul.u32 64, %s14
      $region36: #{discriminator32_forward.12} parent=31 // pred_fallthru
        _
    $region32: #{discriminator32_forward.12} parent=5 // pred_fallthru
      _
    %p4647 = scmp.le.s32.totalorder 2, %s9
    // Predicated region
    $region37: #{discriminator32_forward.12} parent=5 // pred_check
      %p4648 = pneg %p4647
    $region38: #{discriminator32_forward.12} parent=5 // pred_check_branch
      %4650 = sbr.rel (%p4648) target = $region40
    $region39: #{discriminator32_forward.12} parent=5 // pred_region
      %s4651 = ssub.s32 %s9, 2
      // Predicated region
      $region41: #{discriminator32_forward.12} parent=39 // pred_check
        %p4652 = pneg %p106
      $region42: #{discriminator32_forward.12} parent=39 // pred_check_branch
        %4654 = sbr.rel (%p4652) target = $region44
      $region43: #{discriminator32_forward.12} parent=39 // pred_region
        %s4655 = smul.u32 64, %s15
        %p4656 = scmp.lt.s32.totalorder %s4655, 255
        %s4657 = scalar_select %p4656, %s4655, 255
        %s4658 = smul.addr %s4657, 4
        %s4659 = scalar_lea.vmem %s3, %s4658
      $region44: #{discriminator32_forward.12} parent=39 // pred_fallthru
        _
    $region40: #{discriminator32_forward.12} parent=5 // pred_fallthru
      _
  $region6: #{discriminator32_forward.12} parent=0 // loop_footer
    %s13 = sadd.s32 1, %s9
  $region7: #{discriminator32_forward.12} parent=0 // loop_footer_branch
    %8 = sbr.rel target = $region3
  $region8: #{discriminator32_forward.12} parent=0 // loop_exit
    _

// kernel: discriminator32_forward.13
$region0: #{discriminator32_forward.13}
  #allocation0 [shape = 'u32[]', space=smem, size = 0x4, offset = 0x4, fixed_abs, tag = 'smem constant byte address 0x4 - core index']
  #allocation1 [shape = 'u32[144,128]{1,0:T(1,128)}', space=vmem, size = 0x12000, scoped, tag = 'internal scratch']
  %s0 = inlined_call_operand.vmem [shape: bf16[512,128], index: 0, kind: input, shape index: {}]
  %s1 = inlined_call_operand.vmem [shape: bf16[128,128], index: 1, kind: input, shape index: {}]
  %s2 = inlined_call_operand.vmem [shape: f32[1,128], index: 2, kind: input, shape index: {}]
  %s3 = inlined_call_operand.vmem [shape: bf16[512,128], index: 3, kind: input, shape index: {}]
  %s4 = inlined_call_operand.vmem [shape: bf16[512,128], index: 4, kind: output, shape index: {}]
  %s5 = sld [smem:[#allocation0]]
  $region49: #{discriminator32_forward.13} parent=0
    _
  %s7 = ssub.s32 1, %s5
  %s8 = scalar_select 0, %s7, %s5
  loop: start=0, step=1, limit=4
  $region2: #{discriminator32_forward.13} parent=0 // loop_pre_header
    _
  $region3: #{discriminator32_forward.13} parent=0 // loop_header
    %s10 = sphi 0, %s14
    %p11 = scmp.ge.s32.totalorder %s10, 4
    %s20 = sphi 0, %s22
    %s23 = sphi 0, %s20
    %s24 = sphi 0, %s23
    %s40 = sphi 0, %s24
    %s44 = sphi 0, %s44
    %s46 = sphi 0, %s44
    %s47 = sphi 0, %s46
    %s61 = sphi 0, %s47
    %s65 = sphi 0, %s65
    %s67 = sphi 0, %s65
    %s68 = sphi 0, %s67
    %s82 = sphi 0, %s68
    %s88 = sphi 0, %s90
    %s91 = sphi 0, %s88
    %s92 = sphi 0, %s91
    %s108 = sphi 0, %s92
    %s114 = sphi 0, %s116
    %s117 = sphi 0, %s114
    %s118 = sphi 0, %s117
    %s134 = sphi 0, %s118
  $region4: #{discriminator32_forward.13} parent=0 // loop_header_branch
    %13 = sbr.rel (%p11) target = $region8
  $region5: #{discriminator32_forward.13} parent=0 // loop_body
    %s15 = ssub.s32 %s10, 1
    %s16 = ssub.s32 %s10, 2
    %s17 = sadd.s32 %s10, 1
    %s18 = ssub.s32 %s10, %s17
    %p19 = scmp.eq.s32.totalorder %s18, 0
    %s21 = sadd.s32 %s20, 1
    %s22 = scalar_select %p19, %s20, %s21
    %p25 = pneg %p19
    %p26 = scmp.eq.s32.totalorder %s10, 1
    %p27 = por %p25, %p26
    %p28 = scmp.ne.s32.totalorder %s20, %s23
    %p29 = scmp.eq.s32.totalorder %s10, 0
    %p30 = por %p28, %p29
    %p31 = scmp.ne.s32.totalorder %s20, %s23
    %p32 = scmp.eq.s32.totalorder %s15, 1
    %p33 = por %p31, %p32
    %p34 = scmp.ne.s32.totalorder %s23, %s24
    %p35 = scmp.eq.s32.totalorder %s15, 0
    %p36 = por %p34, %p35
    %p37 = scmp.ne.s32.totalorder %s23, %s24
    %p38 = scmp.eq.s32.totalorder %s16, 1
    %p39 = por %p37, %p38
    %p41 = scmp.ne.s32.totalorder %s24, %s40
    %p42 = scmp.eq.s32.totalorder %s16, 0
    %p43 = por %p41, %p42
    %s45 = sadd.s32 %s44, 1
    %p48 = scmp.eq.s32.totalorder %s10, 1
    %p49 = scmp.ne.s32.totalorder %s44, %s46
    %p50 = scmp.eq.s32.totalorder %s10, 0
    %p51 = por %p49, %p50
    %p52 = scmp.ne.s32.totalorder %s44, %s46
    %p53 = scmp.eq.s32.totalorder %s15, 1
    %p54 = por %p52, %p53
    %p55 = scmp.ne.s32.totalorder %s46, %s47
    %p56 = scmp.eq.s32.totalorder %s15, 0
    %p57 = por %p55, %p56
    %p58 = scmp.ne.s32.totalorder %s46, %s47
    %p59 = scmp.eq.s32.totalorder %s16, 1
    %p60 = por %p58, %p59
    %p62 = scmp.ne.s32.totalorder %s47, %s61
    %p63 = scmp.eq.s32.totalorder %s16, 0
    %p64 = por %p62, %p63
    %s66 = sadd.s32 %s65, 1
    %p69 = scmp.eq.s32.totalorder %s10, 1
    %p70 = scmp.ne.s32.totalorder %s65, %s67
    %p71 = scmp.eq.s32.totalorder %s10, 0
    %p72 = por %p70, %p71
    %p73 = scmp.ne.s32.totalorder %s65, %s67
    %p74 = scmp.eq.s32.totalorder %s15, 1
    %p75 = por %p73, %p74
    %p76 = scmp.ne.s32.totalorder %s67, %s68
    %p77 = scmp.eq.s32.totalorder %s15, 0
    %p78 = por %p76, %p77
    %p79 = scmp.ne.s32.totalorder %s67, %s68
    %p80 = scmp.eq.s32.totalorder %s16, 1
    %p81 = por %p79, %p80
    %p83 = scmp.ne.s32.totalorder %s68, %s82
    %p84 = scmp.eq.s32.totalorder %s16, 0
    %p85 = por %p83, %p84
    %s86 = ssub.s32 %s10, %s17
    %p87 = scmp.eq.s32.totalorder %s86, 0
    %s89 = sadd.s32 %s88, 1
    %s90 = scalar_select %p87, %s88, %s89
    %p93 = pneg %p87
    %p94 = scmp.eq.s32.totalorder %s10, 1
    %p95 = por %p93, %p94
    %p96 = scmp.ne.s32.totalorder %s88, %s91
    %p97 = scmp.eq.s32.totalorder %s10, 0
    %p98 = por %p96, %p97
    %p99 = scmp.ne.s32.totalorder %s88, %s91
    %p100 = scmp.eq.s32.totalorder %s15, 1
    %p101 = por %p99, %p100
    %p102 = scmp.ne.s32.totalorder %s91, %s92
    %p103 = scmp.eq.s32.totalorder %s15, 0
    %p104 = por %p102, %p103
    %p105 = scmp.ne.s32.totalorder %s91, %s92
    %p106 = scmp.eq.s32.totalorder %s16, 1
    %p107 = por %p105, %p106
    %p109 = scmp.ne.s32.totalorder %s92, %s108
    %p110 = scmp.eq.s32.totalorder %s16, 0
    %p111 = por %p109, %p110
    %s112 = ssub.s32 %s10, %s17
    %p113 = scmp.eq.s32.totalorder %s112, 0
    %s115 = sadd.s32 %s114, 1
    %s116 = scalar_select %p113, %s114, %s115
    %p119 = pneg %p113
    %p120 = scmp.eq.s32.totalorder %s10, 1
    %p121 = por %p119, %p120
    %p122 = scmp.ne.s32.totalorder %s114, %s117
    %p123 = scmp.eq.s32.totalorder %s10, 0
    %p124 = por %p122, %p123
    %p125 = scmp.ne.s32.totalorder %s114, %s117
    %p126 = scmp.eq.s32.totalorder %s15, 1
    %p127 = por %p125, %p126
    %p128 = scmp.ne.s32.totalorder %s117, %s118
    %p129 = scmp.eq.s32.totalorder %s15, 0
    %p130 = por %p128, %p129
    %p131 = scmp.ne.s32.totalorder %s117, %s118
    %p132 = scmp.eq.s32.totalorder %s16, 1
    %p133 = por %p131, %p132
    %p135 = scmp.ne.s32.totalorder %s118, %s134
    %p136 = scmp.eq.s32.totalorder %s16, 0
    %p137 = por %p135, %p136
    %p138 = scmp.le.s32.totalorder 1, %s10
    %p139 = scmp.lt.s32.totalorder %s10, 3
    %p140 = pnand %p138, %p139
    %p141 = pneg %p140
    // Predicated region
    $region9: #{discriminator32_forward.13} parent=5 // pred_check
      _
    $region10: #{discriminator32_forward.13} parent=5 // pred_check_branch
      %143 = sbr.rel (%p140) target = $region12
    $region11: #{discriminator32_forward.13} parent=5 // pred_region
      %s144 = ssub.s32 %s10, 1
      // Predicated region
      $region13: #{discriminator32_forward.13} parent=11 // pred_check
        %p145 = pneg %p57
      $region14: #{discriminator32_forward.13} parent=11 // pred_check_branch
        %147 = sbr.rel (%p145) target = $region16
      $region15: #{discriminator32_forward.13} parent=11 // pred_region
        _
      $region16: #{discriminator32_forward.13} parent=11 // pred_fallthru
        _
      // Predicated region
      $region17: #{discriminator32_forward.13} parent=11 // pred_check
        %p148 = pneg %p78
      $region18: #{discriminator32_forward.13} parent=11 // pred_check_branch
        %150 = sbr.rel (%p148) target = $region20
      $region19: #{discriminator32_forward.13} parent=11 // pred_region
        _
      $region20: #{discriminator32_forward.13} parent=11 // pred_fallthru
        _
    $region12: #{discriminator32_forward.13} parent=5 // pred_fallthru
      _
    %p151 = scmp.lt.s32.totalorder %s10, 2
    // Predicated region
    $region21: #{discriminator32_forward.13} parent=5 // pred_check
      %p152 = pneg %p151
    $region22: #{discriminator32_forward.13} parent=5 // pred_check_branch
      %154 = sbr.rel (%p152) target = $region24
    $region23: #{discriminator32_forward.13} parent=5 // pred_region
      // Predicated region
      $region25: #{discriminator32_forward.13} parent=23 // pred_check
        %p155 = pneg %p30
      $region26: #{discriminator32_forward.13} parent=23 // pred_check_branch
        %157 = sbr.rel (%p155) target = $region28
      $region27: #{discriminator32_forward.13} parent=23 // pred_region
        %s158 = smul.u32 32, %s10
        %p159 = scmp.lt.s32.totalorder %s158, 63
        %s160 = scalar_select %p159, %s158, 63
        %s161 = smul.addr %s160, 4
        %s162 = scalar_lea.vmem %s0, %s161
        %s163 = smul.u32 32, %s10
      $region28: #{discriminator32_forward.13} parent=23 // pred_fallthru
        _
      // Predicated region
      $region29: #{discriminator32_forward.13} parent=23 // pred_check
        %p164 = pneg %p98
      $region30: #{discriminator32_forward.13} parent=23 // pred_check_branch
        %166 = sbr.rel (%p164) target = $region32
      $region31: #{discriminator32_forward.13} parent=23 // pred_region
        %s167 = smul.u32 32, %s10
        %p168 = scmp.lt.s32.totalorder %s167, 63
        %s169 = scalar_select %p168, %s167, 63
        %s170 = smul.addr %s169, 4
        %s171 = scalar_lea.vmem %s3, %s170
        %s172 = smul.u32 32, %s10
      $region32: #{discriminator32_forward.13} parent=23 // pred_fallthru
        _
    $region24: #{discriminator32_forward.13} parent=5 // pred_fallthru
      _
    %p173 = scmp.le.s32.totalorder 1, %s10
    %p174 = scmp.lt.s32.totalorder %s10, 3
    %p175 = pnand %p173, %p174
    %p176 = pneg %p175
    // Predicated region
    $region33: #{discriminator32_forward.13} parent=5 // pred_check
      _
    $region34: #{discriminator32_forward.13} parent=5 // pred_check_branch
      %178 = sbr.rel (%p175) target = $region36
    $region35: #{discriminator32_forward.13} parent=5 // pred_region
      %s179 = ssub.s32 %s10, 1
      %s180 = smul.u32 32, %s15
      %p181 = scmp.lt.s32.totalorder %s180, 63
      %s182 = scalar_select %p181, %s180, 63
      %s183 = smul.addr %s182, 4
      %s184 = scalar_lea.vmem %s0, %s183
      %p185 = pneg %p36
      %p186 = pneg %p33
      %p187 = pneg %p57
      %p188 = pneg %p54
      %p189 = pneg %p78
      %p190 = pneg %p75
      %s191 = smul.u32 32, %s15
      %p192 = scmp.lt.s32.totalorder %s191, 63
      %s193 = scalar_select %p192, %s191, 63
      %s194 = smul.addr %s193, 4
      %s195 = scalar_lea.vmem %s3, %s194
      %p196 = pneg %p104
      %p197 = pneg %p101
      %p198 = pneg %p130
      %p199 = pneg %p127
      %s200 = smul.u32 32, %s15
      %p201 = scmp.lt.s32.totalorder %s200, 63
      %s202 = scalar_select %p201, %s200, 63
      %s203 = smul.addr %s202, 4
      %s204 = scalar_lea.vmem %s4, %s203
      %s205 = smul.u32 32, %s15
      %p206 = scmp.lt.s32.totalorder %s205, 63
      %s207 = scalar_select %p206, %s205, 63
      %s208 = smul.addr %s207, 4
      %s209 = scalar_lea.vmem %s0, %s208
      %s210 = smul.u32 32, %s15
      %s211 = smul.u32 32, %s15
      %p212 = scmp.lt.s32.totalorder %s211, 63
      %s213 = scalar_select %p212, %s211, 63
      %s214 = smul.addr %s213, 4
      %s215 = scalar_lea.vmem %s3, %s214
      %s216 = smul.u32 32, %s15
      %s217 = smul.u32 32, %s15
      %p218 = scmp.lt.s32.totalorder %s217, 63
      %s219 = scalar_select %p218, %s217, 63
      %s220 = smul.addr %s219, 4
      %s221 = scalar_lea.vmem %s4, %s220
      %s222 = smul.u32 32, %s15
      %v224 = vld [vmem:[%s209] sm:$0xf]
      %v225 = vld [vmem:[%s209 + $0x4] sm:$0xf]
      %v226 = vld [vmem:[%s209 + $0x8] sm:$0xf]
      %v227 = vld [vmem:[%s209 + $0xc] sm:$0xf]
      %v228 = vld [vmem:[%s209 + $0x10] sm:$0xf]
      %v229 = vld [vmem:[%s209 + $0x14] sm:$0xf]
      %v230 = vld [vmem:[%s209 + $0x18] sm:$0xf]
      %v231 = vld [vmem:[%s209 + $0x1c] sm:$0xf]
      %v232 = vld [vmem:[%s209 + $0x20] sm:$0xf]
      %v233 = vld [vmem:[%s209 + $0x24] sm:$0xf]
      %v234 = vld [vmem:[%s209 + $0x28] sm:$0xf]
      %v235 = vld [vmem:[%s209 + $0x2c] sm:$0xf]
      %v236 = vld [vmem:[%s209 + $0x30] sm:$0xf]
      %v237 = vld [vmem:[%s209 + $0x34] sm:$0xf]
      %v238 = vld [vmem:[%s209 + $0x38] sm:$0xf]
      %v239 = vld [vmem:[%s209 + $0x3c] sm:$0xf]
      %v240 = vld [vmem:[%s209 + $0x40] sm:$0xf]
      %v241 = vld [vmem:[%s209 + $0x44] sm:$0xf]
      %v242 = vld [vmem:[%s209 + $0x48] sm:$0xf]
      %v243 = vld [vmem:[%s209 + $0x4c] sm:$0xf]
      %v244 = vld [vmem:[%s209 + $0x50] sm:$0xf]
      %v245 = vld [vmem:[%s209 + $0x54] sm:$0xf]
      %v246 = vld [vmem:[%s209 + $0x58] sm:$0xf]
      %v247 = vld [vmem:[%s209 + $0x5c] sm:$0xf]
      %v248 = vld [vmem:[%s209 + $0x60] sm:$0xf]
      %v249 = vld [vmem:[%s209 + $0x64] sm:$0xf]
      %v250 = vld [vmem:[%s209 + $0x68] sm:$0xf]
      %v251 = vld [vmem:[%s209 + $0x6c] sm:$0xf]
      %v252 = vld [vmem:[%s209 + $0x70] sm:$0xf]
      %v253 = vld [vmem:[%s209 + $0x74] sm:$0xf]
      %v254 = vld [vmem:[%s209 + $0x78] sm:$0xf]
      %v255 = vld [vmem:[%s209 + $0x7c] sm:$0xf]
      %v256 = vld [vmem:[%s1] sm:$0xf]
      %v257 = vld [vmem:[%s1 + $0x4] sm:$0xf]
      %v258 = vld [vmem:[%s1 + $0x8] sm:$0xf]
      %v259 = vld [vmem:[%s1 + $0xc] sm:$0xf]
      %v260 = vld [vmem:[%s1 + $0x10] sm:$0xf]
      %v261 = vld [vmem:[%s1 + $0x14] sm:$0xf]
      %v262 = vld [vmem:[%s1 + $0x18] sm:$0xf]
      %v263 = vld [vmem:[%s1 + $0x1c] sm:$0xf]
      %v264 = vld [vmem:[%s1 + $0x20] sm:$0xf]
      %v265 = vld [vmem:[%s1 + $0x24] sm:$0xf]
      %v266 = vld [vmem:[%s1 + $0x28] sm:$0xf]
      %v267 = vld [vmem:[%s1 + $0x2c] sm:$0xf]
      %v268 = vld [vmem:[%s1 + $0x30] sm:$0xf]
      %v269 = vld [vmem:[%s1 + $0x34] sm:$0xf]
      %v270 = vld [vmem:[%s1 + $0x38] sm:$0xf]
      %v271 = vld [vmem:[%s1 + $0x3c] sm:$0xf]
      %v272 = vld [vmem:[%s2] sm:$0x1]
      %v274 = vlaneseq
      %v275 = vshrl.u32 %v274, 7
      %v276 = vsub.s32 0, %v275
      %v277 = vrot.slane %v272, %v276
      %v311 = vunpack.c.l.b16 %v224
      %v312 = vunpack.c.l.b16 %v225
      %v313 = vunpack.c.l.b16 %v226
      %v314 = vunpack.c.l.b16 %v227
      %v315 = vunpack.c.l.b16 %v228
      %v316 = vunpack.c.l.b16 %v229
      %v317 = vunpack.c.l.b16 %v230
      %v318 = vunpack.c.l.b16 %v231
      %v319 = vunpack.c.l.b16 %v232
      %v320 = vunpack.c.l.b16 %v233
      %v321 = vunpack.c.l.b16 %v234
      %v322 = vunpack.c.l.b16 %v235
      %v323 = vunpack.c.l.b16 %v236
      %v324 = vunpack.c.l.b16 %v237
      %v325 = vunpack.c.l.b16 %v238
      %v326 = vunpack.c.l.b16 %v239
      %v327 = vunpack.c.l.b16 %v240
      %v328 = vunpack.c.l.b16 %v241
      %v329 = vunpack.c.l.b16 %v242
      %v330 = vunpack.c.l.b16 %v243
      %v331 = vunpack.c.l.b16 %v244
      %v332 = vunpack.c.l.b16 %v245
      %v333 = vunpack.c.l.b16 %v246
      %v334 = vunpack.c.l.b16 %v247
      %v335 = vunpack.c.l.b16 %v248
      %v336 = vunpack.c.l.b16 %v249
      %v337 = vunpack.c.l.b16 %v250
      %v338 = vunpack.c.l.b16 %v251
      %v339 = vunpack.c.l.b16 %v252
      %v340 = vunpack.c.l.b16 %v253
      %v341 = vunpack.c.l.b16 %v254
      %v342 = vunpack.c.l.b16 %v255
      %v343 = vpack.c.b16 %v312, %v311
      %v344 = vpack.c.b16 %v314, %v313
      %v345 = vpack.c.b16 %v316, %v315
      %v346 = vpack.c.b16 %v318, %v317
      %v347 = vpack.c.b16 %v320, %v319
      %v348 = vpack.c.b16 %v322, %v321
      %v349 = vpack.c.b16 %v324, %v323
      %v350 = vpack.c.b16 %v326, %v325
      %v351 = vpack.c.b16 %v328, %v327
      %v352 = vpack.c.b16 %v330, %v329
      %v353 = vpack.c.b16 %v332, %v331
      %v354 = vpack.c.b16 %v334, %v333
      %v355 = vpack.c.b16 %v336, %v335
      %v356 = vpack.c.b16 %v338, %v337
      %v357 = vpack.c.b16 %v340, %v339
      %v358 = vpack.c.b16 %v342, %v341
      %v391 = vunpack.c.l.b16 %v256
      %v392 = vunpack.c.l.b16 %v257
      %v393 = vunpack.c.l.b16 %v258
      %v394 = vunpack.c.l.b16 %v259
      %v395 = vunpack.c.l.b16 %v260
      %v396 = vunpack.c.l.b16 %v261
      %v397 = vunpack.c.l.b16 %v262
      %v398 = vunpack.c.l.b16 %v263
      %v399 = vunpack.c.l.b16 %v264
      %v400 = vunpack.c.l.b16 %v265
      %v401 = vunpack.c.l.b16 %v266
      %v402 = vunpack.c.l.b16 %v267
      %v403 = vunpack.c.l.b16 %v268
      %v404 = vunpack.c.l.b16 %v269
      %v405 = vunpack.c.l.b16 %v270
      %v406 = vunpack.c.l.b16 %v271
      %v407 = vpack.c.b16 %v392, %v391
      %v408 = vpack.c.b16 %v394, %v393
      %v409 = vpack.c.b16 %v396, %v395
      %v410 = vpack.c.b16 %v398, %v397
      %v411 = vpack.c.b16 %v400, %v399
      %v412 = vpack.c.b16 %v402, %v401
      %v413 = vpack.c.b16 %v404, %v403
      %v414 = vpack.c.b16 %v406, %v405
      %423 = vmatprep.subr.bf16.mxu0 0
      %424 = vmatpush1.bf16.msra.mxu0 %v407
      %425 = vmatprep.subr.bf16.mxu0 0
      %426 = vmatpush1.bf16.msra.mxu0 %v408
      %427 = vmatprep.subr.bf16.mxu0 0
      %428 = vmatpush1.bf16.msra.mxu0 %v409
      %429 = vmatprep.subr.bf16.mxu0 0
      %430 = vmatpush1.bf16.msra.mxu0 %v410
      %431 = vmatprep.subr.bf16.mxu0 0
      %432 = vmatpush1.bf16.msra.mxu0 %v411
      %433 = vmatprep.subr.bf16.mxu0 0
      %434 = vmatpush1.bf16.msra.mxu0 %v412
      %435 = vmatprep.subr.bf16.mxu0 0
      %436 = vmatpush1.bf16.msra.mxu0 %v413
      %437 = vmatprep.subr.bf16.mxu0 0
      %438 = vmatpush1.bf16.msra.mxu0 %v414
      %439 = vmatprep.subr.bf16.mxu0 0
      %440 = vmatpush1.bf16.msra.mxu0 0
      %441 = vmatprep.subr.bf16.mxu0 0
      %442 = vmatpush1.bf16.msra.mxu0 0
      %443 = vmatprep.subr.bf16.mxu0 0
      %444 = vmatpush1.bf16.msra.mxu0 0
      %445 = vmatprep.subr.bf16.mxu0 0
      %446 = vmatpush1.bf16.msra.mxu0 0
      %447 = vmatprep.subr.bf16.mxu0 0
      %448 = vmatpush1.bf16.msra.mxu0 0
      %449 = vmatprep.subr.bf16.mxu0 0
      %450 = vmatpush1.bf16.msra.mxu0 0
      %451 = vmatprep.subr.bf16.mxu0 0
      %452 = vmatpush1.bf16.msra.mxu0 0
      %453 = vmatprep.subr.bf16.mxu0 0
      %454 = vmatpush1.bf16.msra.mxu0 0
      %455 = vmatprep.mubr.bf16.mxu0 0
      %456 = vmatmul.mubr.bf16.gmra.mrb[0].mxu0 %v343
      %v457 = vpop.f32.mrb[0].mxu0
      %v458 = vadd.f32 %v277, %v457
      %v459 = vpop.f32.mrb[0].mxu0
      %v460 = vpop.f32.mrb[0].mxu0
      %v461 = vadd.f32 %v277, %v460
      %v462 = vpop.f32.mrb[0].mxu0
      %463 = vmatprep.mubr.bf16.mxu0 0
      %464 = vmatmul.mubr.bf16.gmra.mrb[0].mxu0 %v344
      %v465 = vpop.f32.mrb[0].mxu0
      %v466 = vadd.f32 %v277, %v465
      %v467 = vpop.f32.mrb[0].mxu0
      %v468 = vpop.f32.mrb[0].mxu0
      %v469 = vadd.f32 %v277, %v468
      %v470 = vpop.f32.mrb[0].mxu0
      %471 = vmatprep.mubr.bf16.mxu0 0
      %472 = vmatmul.mubr.bf16.gmra.mrb[0].mxu0 %v345
      %v473 = vpop.f32.mrb[0].mxu0
      %v474 = vadd.f32 %v277, %v473
      %v475 = vpop.f32.mrb[0].mxu0
      %v476 = vpop.f32.mrb[0].mxu0
      %v477 = vadd.f32 %v277, %v476
      %v478 = vpop.f32.mrb[0].mxu0
      %479 = vmatprep.mubr.bf16.mxu0 0
      %480 = vmatmul.mubr.bf16.gmra.mrb[0].mxu0 %v346
      %v481 = vpop.f32.mrb[0].mxu0
      %v482 = vadd.f32 %v277, %v481
      %v483 = vpop.f32.mrb[0].mxu0
      %v484 = vpop.f32.mrb[0].mxu0
      %v485 = vadd.f32 %v277, %v484
      %v486 = vpop.f32.mrb[0].mxu0
      %487 = vmatprep.mubr.bf16.mxu0 0
      %488 = vmatmul.mubr.bf16.gmra.mrb[0].mxu0 %v347
      %v489 = vpop.f32.mrb[0].mxu0
      %v490 = vadd.f32 %v277, %v489
      %v491 = vpop.f32.mrb[0].mxu0
      %v492 = vpop.f32.mrb[0].mxu0
      %v493 = vadd.f32 %v277, %v492
      %v494 = vpop.f32.mrb[0].mxu0
      %495 = vmatprep.mubr.bf16.mxu0 0
      %496 = vmatmul.mubr.bf16.gmra.mrb[0].mxu0 %v348
      %v497 = vpop.f32.mrb[0].mxu0
      %v498 = vadd.f32 %v277, %v497
      %v499 = vpop.f32.mrb[0].mxu0
      %v500 = vpop.f32.mrb[0].mxu0
      %v501 = vadd.f32 %v277, %v500
      %v502 = vpop.f32.mrb[0].mxu0
      %503 = vmatprep.mubr.bf16.mxu0 0
      %504 = vmatmul.mubr.bf16.gmra.mrb[0].mxu0 %v349
      %v505 = vpop.f32.mrb[0].mxu0
      %v506 = vadd.f32 %v277, %v505
      %v507 = vpop.f32.mrb[0].mxu0
      %v508 = vpop.f32.mrb[0].mxu0
      %v509 = vadd.f32 %v277, %v508
      %v510 = vpop.f32.mrb[0].mxu0
      %511 = vmatprep.mubr.bf16.mxu0 0
      %512 = vmatmul.mubr.bf16.gmra.mrb[0].mxu0 %v350
      %v513 = vpop.f32.mrb[0].mxu0
      %v514 = vadd.f32 %v277, %v513
      %v515 = vpop.f32.mrb[0].mxu0
      %v516 = vpop.f32.mrb[0].mxu0
      %v517 = vadd.f32 %v277, %v516
      %v518 = vpop.f32.mrb[0].mxu0
      %519 = vmatprep.mubr.bf16.mxu0 0
      %520 = vmatmul.mubr.bf16.gmra.mrb[0].mxu0 %v351
      %v521 = vpop.f32.mrb[0].mxu0
      %v522 = vadd.f32 %v277, %v521
      %v523 = vpop.f32.mrb[0].mxu0
      %v524 = vpop.f32.mrb[0].mxu0
      %v525 = vadd.f32 %v277, %v524
      %v526 = vpop.f32.mrb[0].mxu0
      %527 = vmatprep.mubr.bf16.mxu0 0
      %528 = vmatmul.mubr.bf16.gmra.mrb[0].mxu0 %v352
      %v529 = vpop.f32.mrb[0].mxu0
      %v530 = vadd.f32 %v277, %v529
      %v531 = vpop.f32.mrb[0].mxu0
      %v532 = vpop.f32.mrb[0].mxu0
      %v533 = vadd.f32 %v277, %v532
      %v534 = vpop.f32.mrb[0].mxu0
      %535 = vmatprep.mubr.bf16.mxu0 0
      %536 = vmatmul.mubr.bf16.gmra.mrb[0].mxu0 %v353
      %v537 = vpop.f32.mrb[0].mxu0
      %v538 = vadd.f32 %v277, %v537
      %v539 = vpop.f32.mrb[0].mxu0
      %v540 = vpop.f32.mrb[0].mxu0
      %v541 = vadd.f32 %v277, %v540
      %v542 = vpop.f32.mrb[0].mxu0
      %543 = vmatprep.mubr.bf16.mxu0 0
      %544 = vmatmul.mubr.bf16.gmra.mrb[0].mxu0 %v354
      %v545 = vpop.f32.mrb[0].mxu0
      %v546 = vadd.f32 %v277, %v545
      %v547 = vpop.f32.mrb[0].mxu0
      %v548 = vpop.f32.mrb[0].mxu0
      %v549 = vadd.f32 %v277, %v548
      %v550 = vpop.f32.mrb[0].mxu0
      %551 = vmatprep.mubr.bf16.mxu0 0
      %552 = vmatmul.mubr.bf16.gmra.mrb[0].mxu0 %v355
      %v553 = vpop.f32.mrb[0].mxu0
      %v554 = vadd.f32 %v277, %v553
      %v555 = vpop.f32.mrb[0].mxu0
      %v556 = vpop.f32.mrb[0].mxu0
      %v557 = vadd.f32 %v277, %v556
      %v558 = vpop.f32.mrb[0].mxu0
      %559 = vmatprep.mubr.bf16.mxu0 0
      %560 = vmatmul.mubr.bf16.gmra.mrb[0].mxu0 %v356
      %v561 = vpop.f32.mrb[0].mxu0
      %v562 = vadd.f32 %v277, %v561
      %v563 = vpop.f32.mrb[0].mxu0
      %v564 = vpop.f32.mrb[0].mxu0
      %v565 = vadd.f32 %v277, %v564
      %v566 = vpop.f32.mrb[0].mxu0
      %567 = vmatprep.mubr.bf16.mxu0 0
      %568 = vmatmul.mubr.bf16.gmra.mrb[0].mxu0 %v357
      %v569 = vpop.f32.mrb[0].mxu0
      %v570 = vadd.f32 %v277, %v569
      %v571 = vpop.f32.mrb[0].mxu0
      %v572 = vpop.f32.mrb[0].mxu0
      %v573 = vadd.f32 %v277, %v572
      %v574 = vpop.f32.mrb[0].mxu0
      %575 = vmatprep.mubr.bf16.mxu0 0
      %576 = vmatmul.mubr.bf16.gmra.mrb[0].mxu0 %v358
      %v577 = vpop.f32.mrb[0].mxu0
      %v578 = vadd.f32 %v277, %v577
      %v579 = vpop.f32.mrb[0].mxu0
      %v580 = vpop.f32.mrb[0].mxu0
      %v581 = vadd.f32 %v277, %v580
      %v582 = vpop.f32.mrb[0].mxu0
      %583 = vdwg.mxu0
      %v584 = vld [vmem:[%s215] sm:$0xf]
      %v585 = vld [vmem:[%s215 + $0x4] sm:$0xf]
      %v586 = vld [vmem:[%s215 + $0x8] sm:$0xf]
      %v587 = vld [vmem:[%s215 + $0xc] sm:$0xf]
      %v588 = vld [vmem:[%s215 + $0x10] sm:$0xf]
      %v589 = vld [vmem:[%s215 + $0x14] sm:$0xf]
      %v590 = vld [vmem:[%s215 + $0x18] sm:$0xf]
      %v591 = vld [vmem:[%s215 + $0x1c] sm:$0xf]
      %v592 = vld [vmem:[%s215 + $0x20] sm:$0xf]
      %v593 = vld [vmem:[%s215 + $0x24] sm:$0xf]
      %v594 = vld [vmem:[%s215 + $0x28] sm:$0xf]
      %v595 = vld [vmem:[%s215 + $0x2c] sm:$0xf]
      %v596 = vld [vmem:[%s215 + $0x30] sm:$0xf]
      %v597 = vld [vmem:[%s215 + $0x34] sm:$0xf]
      %v598 = vld [vmem:[%s215 + $0x38] sm:$0xf]
      %v599 = vld [vmem:[%s215 + $0x3c] sm:$0xf]
      %v600 = vld [vmem:[%s215 + $0x40] sm:$0xf]
      %v601 = vld [vmem:[%s215 + $0x44] sm:$0xf]
      %v602 = vld [vmem:[%s215 + $0x48] sm:$0xf]
      %v603 = vld [vmem:[%s215 + $0x4c] sm:$0xf]
      %v604 = vld [vmem:[%s215 + $0x50] sm:$0xf]
      %v605 = vld [vmem:[%s215 + $0x54] sm:$0xf]
      %v606 = vld [vmem:[%s215 + $0x58] sm:$0xf]
      %v607 = vld [vmem:[%s215 + $0x5c] sm:$0xf]
      %v608 = vld [vmem:[%s215 + $0x60] sm:$0xf]
      %v609 = vld [vmem:[%s215 + $0x64] sm:$0xf]
      %v610 = vld [vmem:[%s215 + $0x68] sm:$0xf]
      %v611 = vld [vmem:[%s215 + $0x6c] sm:$0xf]
      %v612 = vld [vmem:[%s215 + $0x70] sm:$0xf]
      %v613 = vld [vmem:[%s215 + $0x74] sm:$0xf]
      %v614 = vld [vmem:[%s215 + $0x78] sm:$0xf]
      %v615 = vld [vmem:[%s215 + $0x7c] sm:$0xf]
      %v616 = vunpack.c.l.bf16 %v584
      %v617 = vunpack.c.l.bf16 %v585
      %v618 = vunpack.c.l.bf16 %v586
      %v619 = vunpack.c.l.bf16 %v587
      %v620 = vunpack.c.l.bf16 %v588
      %v621 = vunpack.c.l.bf16 %v589
      %v622 = vunpack.c.l.bf16 %v590
      %v623 = vunpack.c.l.bf16 %v591
      %v624 = vunpack.c.l.bf16 %v592
      %v625 = vunpack.c.l.bf16 %v593
      %v626 = vunpack.c.l.bf16 %v594
      %v627 = vunpack.c.l.bf16 %v595
      %v628 = vunpack.c.l.bf16 %v596
      %v629 = vunpack.c.l.bf16 %v597
      %v630 = vunpack.c.l.bf16 %v598
      %v631 = vunpack.c.l.bf16 %v599
      %v632 = vunpack.c.l.bf16 %v600
      %v633 = vunpack.c.l.bf16 %v601
      %v634 = vunpack.c.l.bf16 %v602
      %v635 = vunpack.c.l.bf16 %v603
      %v636 = vunpack.c.l.bf16 %v604
      %v637 = vunpack.c.l.bf16 %v605
      %v638 = vunpack.c.l.bf16 %v606
      %v639 = vunpack.c.l.bf16 %v607
      %v640 = vunpack.c.l.bf16 %v608
      %v641 = vunpack.c.l.bf16 %v609
      %v642 = vunpack.c.l.bf16 %v610
      %v643 = vunpack.c.l.bf16 %v611
      %v644 = vunpack.c.l.bf16 %v612
      %v645 = vunpack.c.l.bf16 %v613
      %v646 = vunpack.c.l.bf16 %v614
      %v647 = vunpack.c.l.bf16 %v615
      %v648 = vadd.f32 %v458, %v616
      %v649 = vadd.f32 %v461, %v617
      %v650 = vadd.f32 %v466, %v618
      %v651 = vadd.f32 %v469, %v619
      %v652 = vadd.f32 %v474, %v620
      %v653 = vadd.f32 %v477, %v621
      %v654 = vadd.f32 %v482, %v622
      %v655 = vadd.f32 %v485, %v623
      %v656 = vadd.f32 %v490, %v624
      %v657 = vadd.f32 %v493, %v625
      %v658 = vadd.f32 %v498, %v626
      %v659 = vadd.f32 %v501, %v627
      %v660 = vadd.f32 %v506, %v628
      %v661 = vadd.f32 %v509, %v629
      %v662 = vadd.f32 %v514, %v630
      %v663 = vadd.f32 %v517, %v631
      %v664 = vadd.f32 %v522, %v632
      %v665 = vadd.f32 %v525, %v633
      %v666 = vadd.f32 %v530, %v634
      %v667 = vadd.f32 %v533, %v635
      %v668 = vadd.f32 %v538, %v636
      %v669 = vadd.f32 %v541, %v637
      %v670 = vadd.f32 %v546, %v638
      %v671 = vadd.f32 %v549, %v639
      %v672 = vadd.f32 %v554, %v640
      %v673 = vadd.f32 %v557, %v641
      %v674 = vadd.f32 %v562, %v642
      %v675 = vadd.f32 %v565, %v643
      %v676 = vadd.f32 %v570, %v644
      %v677 = vadd.f32 %v573, %v645
      %v678 = vadd.f32 %v578, %v646
      %v679 = vadd.f32 %v581, %v647
      %v680 = vpack.c.bf16 %v649, %v648
      %v681 = vpack.c.bf16 %v651, %v650
      %v682 = vpack.c.bf16 %v653, %v652
      %v683 = vpack.c.bf16 %v655, %v654
      %v684 = vpack.c.bf16 %v657, %v656
      %v685 = vpack.c.bf16 %v659, %v658
      %v686 = vpack.c.bf16 %v661, %v660
      %v687 = vpack.c.bf16 %v663, %v662
      %v688 = vpack.c.bf16 %v665, %v664
      %v689 = vpack.c.bf16 %v667, %v666
      %v690 = vpack.c.bf16 %v669, %v668
      %v691 = vpack.c.bf16 %v671, %v670
      %v692 = vpack.c.bf16 %v673, %v672
      %v693 = vpack.c.bf16 %v675, %v674
      %v694 = vpack.c.bf16 %v677, %v676
      %v695 = vpack.c.bf16 %v679, %v678
      %v712 = vunpack.c.l.b16 %v680
      %v713 = vunpack.c.h.b16 %v680
      %v714 = vunpack.c.l.b16 %v681
      %v715 = vunpack.c.h.b16 %v681
      %v716 = vunpack.c.l.b16 %v682
      %v717 = vunpack.c.h.b16 %v682
      %v718 = vunpack.c.l.b16 %v683
      %v719 = vunpack.c.h.b16 %v683
      %v720 = vunpack.c.l.b16 %v684
      %v721 = vunpack.c.h.b16 %v684
      %v722 = vunpack.c.l.b16 %v685
      %v723 = vunpack.c.h.b16 %v685
      %v724 = vunpack.c.l.b16 %v686
      %v725 = vunpack.c.h.b16 %v686
      %v726 = vunpack.c.l.b16 %v687
      %v727 = vunpack.c.h.b16 %v687
      %v728 = vunpack.c.l.b16 %v688
      %v729 = vunpack.c.h.b16 %v688
      %v730 = vunpack.c.l.b16 %v689
      %v731 = vunpack.c.h.b16 %v689
      %v732 = vunpack.c.l.b16 %v690
      %v733 = vunpack.c.h.b16 %v690
      %v734 = vunpack.c.l.b16 %v691
      %v735 = vunpack.c.h.b16 %v691
      %v736 = vunpack.c.l.b16 %v692
      %v737 = vunpack.c.h.b16 %v692
      %v738 = vunpack.c.l.b16 %v693
      %v739 = vunpack.c.h.b16 %v693
      %v740 = vunpack.c.l.b16 %v694
      %v741 = vunpack.c.h.b16 %v694
      %v742 = vunpack.c.l.b16 %v695
      %v743 = vunpack.c.h.b16 %v695
      %v744 = vpack.c.b16 %v712, %v712
      %v745 = vpack.c.b16 %v713, %v713
      %v746 = vpack.c.b16 %v714, %v714
      %v747 = vpack.c.b16 %v715, %v715
      %v748 = vpack.c.b16 %v716, %v716
      %v749 = vpack.c.b16 %v717, %v717
      %v750 = vpack.c.b16 %v718, %v718
      %v751 = vpack.c.b16 %v719, %v719
      %v752 = vpack.c.b16 %v720, %v720
      %v753 = vpack.c.b16 %v721, %v721
      %v754 = vpack.c.b16 %v722, %v722
      %v755 = vpack.c.b16 %v723, %v723
      %v756 = vpack.c.b16 %v724, %v724
      %v757 = vpack.c.b16 %v725, %v725
      %v758 = vpack.c.b16 %v726, %v726
      %v759 = vpack.c.b16 %v727, %v727
      %v760 = vpack.c.b16 %v728, %v728
      %v761 = vpack.c.b16 %v729, %v729
      %v762 = vpack.c.b16 %v730, %v730
      %v763 = vpack.c.b16 %v731, %v731
      %v764 = vpack.c.b16 %v732, %v732
      %v765 = vpack.c.b16 %v733, %v733
      %v766 = vpack.c.b16 %v734, %v734
      %v767 = vpack.c.b16 %v735, %v735
      %v768 = vpack.c.b16 %v736, %v736
      %v769 = vpack.c.b16 %v737, %v737
      %v770 = vpack.c.b16 %v738, %v738
      %v771 = vpack.c.b16 %v739, %v739
      %v772 = vpack.c.b16 %v740, %v740
      %v773 = vpack.c.b16 %v741, %v741
      %v774 = vpack.c.b16 %v742, %v742
      %v775 = vpack.c.b16 %v743, %v743
      %808 = vst [vmem:[%s221] sm:$0xf] %v744
      %809 = vst [vmem:[%s221 + $0x4] sm:$0xf] %v745
      %810 = vst [vmem:[%s221 + $0x8] sm:$0xf] %v746
      %811 = vst [vmem:[%s221 + $0xc] sm:$0xf] %v747
      %812 = vst [vmem:[%s221 + $0x10] sm:$0xf] %v748
      %813 = vst [vmem:[%s221 + $0x14] sm:$0xf] %v749
      %814 = vst [vmem:[%s221 + $0x18] sm:$0xf] %v750
      %815 = vst [vmem:[%s221 + $0x1c] sm:$0xf] %v751
      %816 = vst [vmem:[%s221 + $0x20] sm:$0xf] %v752
      %817 = vst [vmem:[%s221 + $0x24] sm:$0xf] %v753
      %818 = vst [vmem:[%s221 + $0x28] sm:$0xf] %v754
      %819 = vst [vmem:[%s221 + $0x2c] sm:$0xf] %v755
      %820 = vst [vmem:[%s221 + $0x30] sm:$0xf] %v756
      %821 = vst [vmem:[%s221 + $0x34] sm:$0xf] %v757
      %822 = vst [vmem:[%s221 + $0x38] sm:$0xf] %v758
      %823 = vst [vmem:[%s221 + $0x3c] sm:$0xf] %v759
      %824 = vst [vmem:[%s221 + $0x40] sm:$0xf] %v760
      %825 = vst [vmem:[%s221 + $0x44] sm:$0xf] %v761
      %826 = vst [vmem:[%s221 + $0x48] sm:$0xf] %v762
      %827 = vst [vmem:[%s221 + $0x4c] sm:$0xf] %v763
      %828 = vst [vmem:[%s221 + $0x50] sm:$0xf] %v764
      %829 = vst [vmem:[%s221 + $0x54] sm:$0xf] %v765
      %830 = vst [vmem:[%s221 + $0x58] sm:$0xf] %v766
      %831 = vst [vmem:[%s221 + $0x5c] sm:$0xf] %v767
      %832 = vst [vmem:[%s221 + $0x60] sm:$0xf] %v768
      %833 = vst [vmem:[%s221 + $0x64] sm:$0xf] %v769
      %834 = vst [vmem:[%s221 + $0x68] sm:$0xf] %v770
      %835 = vst [vmem:[%s221 + $0x6c] sm:$0xf] %v771
      %836 = vst [vmem:[%s221 + $0x70] sm:$0xf] %v772
      %837 = vst [vmem:[%s221 + $0x74] sm:$0xf] %v773
      %838 = vst [vmem:[%s221 + $0x78] sm:$0xf] %v774
      %839 = vst [vmem:[%s221 + $0x7c] sm:$0xf] %v775
      %s840 = smul.u32 32, %s15
      %p841 = scmp.lt.s32.totalorder %s840, 63
      %s842 = scalar_select %p841, %s840, 63
      %s843 = smul.addr %s842, 4
      %s844 = scalar_lea.vmem %s4, %s843
      // Predicated region
      $region37: #{discriminator32_forward.13} parent=35 // pred_check
        %p845 = pneg %p127
      $region38: #{discriminator32_forward.13} parent=35 // pred_check_branch
        %847 = sbr.rel (%p845) target = $region40
      $region39: #{discriminator32_forward.13} parent=35 // pred_region
        %s848 = smul.u32 32, %s15
      $region40: #{discriminator32_forward.13} parent=35 // pred_fallthru
        _
    $region36: #{discriminator32_forward.13} parent=5 // pred_fallthru
      _
    %p849 = scmp.le.s32.totalorder 2, %s10
    // Predicated region
    $region41: #{discriminator32_forward.13} parent=5 // pred_check
      %p850 = pneg %p849
    $region42: #{discriminator32_forward.13} parent=5 // pred_check_branch
      %852 = sbr.rel (%p850) target = $region44
    $region43: #{discriminator32_forward.13} parent=5 // pred_region
      %s853 = ssub.s32 %s10, 2
      // Predicated region
      $region45: #{discriminator32_forward.13} parent=43 // pred_check
        %p854 = pneg %p133
      $region46: #{discriminator32_forward.13} parent=43 // pred_check_branch
        %856 = sbr.rel (%p854) target = $region48
      $region47: #{discriminator32_forward.13} parent=43 // pred_region
        %s857 = smul.u32 32, %s16
        %p858 = scmp.lt.s32.totalorder %s857, 63
        %s859 = scalar_select %p858, %s857, 63
        %s860 = smul.addr %s859, 4
        %s861 = scalar_lea.vmem %s4, %s860
      $region48: #{discriminator32_forward.13} parent=43 // pred_fallthru
        _
    $region44: #{discriminator32_forward.13} parent=5 // pred_fallthru
      _
  $region6: #{discriminator32_forward.13} parent=0 // loop_footer
    %s14 = sadd.s32 1, %s10
  $region7: #{discriminator32_forward.13} parent=0 // loop_footer_branch
    %9 = sbr.rel target = $region3
  $region8: #{discriminator32_forward.13} parent=0 // loop_exit
    _

// kernel: discriminator32_forward.14
$region0: #{discriminator32_forward.14}
  #allocation0 [shape = 'u32[]', space=smem, size = 0x4, offset = 0x4, fixed_abs, tag = 'smem constant byte address 0x4 - core index']
  #allocation1 [shape = 'u32[144,128]{1,0:T(1,128)}', space=vmem, size = 0x12000, scoped, tag = 'internal scratch']
  %s0 = inlined_call_operand.vmem [shape: bf16[512,1152], index: 0, kind: input, shape index: {}]
  %s1 = inlined_call_operand.vmem [shape: bf16[1152,128], index: 1, kind: input, shape index: {}]
  %s2 = inlined_call_operand.vmem [shape: f32[1,128], index: 2, kind: input, shape index: {}]
  %s3 = inlined_call_operand.vmem [shape: bf16[512,128], index: 3, kind: output, shape index: {}]
  %s4 = sld [smem:[#allocation0]]
  $region45: #{discriminator32_forward.14} parent=0
    _
  %s6 = ssub.s32 1, %s4
  %s7 = scalar_select 0, %s6, %s4
  loop: start=0, step=1, limit=4
  $region2: #{discriminator32_forward.14} parent=0 // loop_pre_header
    _
  $region3: #{discriminator32_forward.14} parent=0 // loop_header
    %s9 = sphi 0, %s13
    %p10 = scmp.ge.s32.totalorder %s9, 4
    %s19 = sphi 0, %s21
    %s22 = sphi 0, %s19
    %s23 = sphi 0, %s22
    %s39 = sphi 0, %s23
    %s43 = sphi 0, %s43
    %s45 = sphi 0, %s43
    %s46 = sphi 0, %s45
    %s60 = sphi 0, %s46
    %s64 = sphi 0, %s64
    %s66 = sphi 0, %s64
    %s67 = sphi 0, %s66
    %s81 = sphi 0, %s67
    %s87 = sphi 0, %s89
    %s90 = sphi 0, %s87
    %s91 = sphi 0, %s90
    %s107 = sphi 0, %s91
  $region4: #{discriminator32_forward.14} parent=0 // loop_header_branch
    %12 = sbr.rel (%p10) target = $region8
  $region5: #{discriminator32_forward.14} parent=0 // loop_body
    %s14 = ssub.s32 %s9, 1
    %s15 = ssub.s32 %s9, 2
    %s16 = sadd.s32 %s9, 1
    %s17 = ssub.s32 %s9, %s16
    %p18 = scmp.eq.s32.totalorder %s17, 0
    %s20 = sadd.s32 %s19, 1
    %s21 = scalar_select %p18, %s19, %s20
    %p24 = pneg %p18
    %p25 = scmp.eq.s32.totalorder %s9, 1
    %p26 = por %p24, %p25
    %p27 = scmp.ne.s32.totalorder %s19, %s22
    %p28 = scmp.eq.s32.totalorder %s9, 0
    %p29 = por %p27, %p28
    %p30 = scmp.ne.s32.totalorder %s19, %s22
    %p31 = scmp.eq.s32.totalorder %s14, 1
    %p32 = por %p30, %p31
    %p33 = scmp.ne.s32.totalorder %s22, %s23
    %p34 = scmp.eq.s32.totalorder %s14, 0
    %p35 = por %p33, %p34
    %p36 = scmp.ne.s32.totalorder %s22, %s23
    %p37 = scmp.eq.s32.totalorder %s15, 1
    %p38 = por %p36, %p37
    %p40 = scmp.ne.s32.totalorder %s23, %s39
    %p41 = scmp.eq.s32.totalorder %s15, 0
    %p42 = por %p40, %p41
    %s44 = sadd.s32 %s43, 1
    %p47 = scmp.eq.s32.totalorder %s9, 1
    %p48 = scmp.ne.s32.totalorder %s43, %s45
    %p49 = scmp.eq.s32.totalorder %s9, 0
    %p50 = por %p48, %p49
    %p51 = scmp.ne.s32.totalorder %s43, %s45
    %p52 = scmp.eq.s32.totalorder %s14, 1
    %p53 = por %p51, %p52
    %p54 = scmp.ne.s32.totalorder %s45, %s46
    %p55 = scmp.eq.s32.totalorder %s14, 0
    %p56 = por %p54, %p55
    %p57 = scmp.ne.s32.totalorder %s45, %s46
    %p58 = scmp.eq.s32.totalorder %s15, 1
    %p59 = por %p57, %p58
    %p61 = scmp.ne.s32.totalorder %s46, %s60
    %p62 = scmp.eq.s32.totalorder %s15, 0
    %p63 = por %p61, %p62
    %s65 = sadd.s32 %s64, 1
    %p68 = scmp.eq.s32.totalorder %s9, 1
    %p69 = scmp.ne.s32.totalorder %s64, %s66
    %p70 = scmp.eq.s32.totalorder %s9, 0
    %p71 = por %p69, %p70
    %p72 = scmp.ne.s32.totalorder %s64, %s66
    %p73 = scmp.eq.s32.totalorder %s14, 1
    %p74 = por %p72, %p73
    %p75 = scmp.ne.s32.totalorder %s66, %s67
    %p76 = scmp.eq.s32.totalorder %s14, 0
    %p77 = por %p75, %p76
    %p78 = scmp.ne.s32.totalorder %s66, %s67
    %p79 = scmp.eq.s32.totalorder %s15, 1
    %p80 = por %p78, %p79
    %p82 = scmp.ne.s32.totalorder %s67, %s81
    %p83 = scmp.eq.s32.totalorder %s15, 0
    %p84 = por %p82, %p83
    %s85 = ssub.s32 %s9, %s16
    %p86 = scmp.eq.s32.totalorder %s85, 0
    %s88 = sadd.s32 %s87, 1
    %s89 = scalar_select %p86, %s87, %s88
    %p92 = pneg %p86
    %p93 = scmp.eq.s32.totalorder %s9, 1
    %p94 = por %p92, %p93
    %p95 = scmp.ne.s32.totalorder %s87, %s90
    %p96 = scmp.eq.s32.totalorder %s9, 0
    %p97 = por %p95, %p96
    %p98 = scmp.ne.s32.totalorder %s87, %s90
    %p99 = scmp.eq.s32.totalorder %s14, 1
    %p100 = por %p98, %p99
    %p101 = scmp.ne.s32.totalorder %s90, %s91
    %p102 = scmp.eq.s32.totalorder %s14, 0
    %p103 = por %p101, %p102
    %p104 = scmp.ne.s32.totalorder %s90, %s91
    %p105 = scmp.eq.s32.totalorder %s15, 1
    %p106 = por %p104, %p105
    %p108 = scmp.ne.s32.totalorder %s91, %s107
    %p109 = scmp.eq.s32.totalorder %s15, 0
    %p110 = por %p108, %p109
    %p111 = scmp.le.s32.totalorder 1, %s9
    %p112 = scmp.lt.s32.totalorder %s9, 3
    %p113 = pnand %p111, %p112
    %p114 = pneg %p113
    // Predicated region
    $region9: #{discriminator32_forward.14} parent=5 // pred_check
      _
    $region10: #{discriminator32_forward.14} parent=5 // pred_check_branch
      %116 = sbr.rel (%p113) target = $region12
    $region11: #{discriminator32_forward.14} parent=5 // pred_region
      %s117 = ssub.s32 %s9, 1
      // Predicated region
      $region13: #{discriminator32_forward.14} parent=11 // pred_check
        %p118 = pneg %p56
      $region14: #{discriminator32_forward.14} parent=11 // pred_check_branch
        %120 = sbr.rel (%p118) target = $region16
      $region15: #{discriminator32_forward.14} parent=11 // pred_region
        _
      $region16: #{discriminator32_forward.14} parent=11 // pred_fallthru
        _
      // Predicated region
      $region17: #{discriminator32_forward.14} parent=11 // pred_check
        %p121 = pneg %p77
      $region18: #{discriminator32_forward.14} parent=11 // pred_check_branch
        %123 = sbr.rel (%p121) target = $region20
      $region19: #{discriminator32_forward.14} parent=11 // pred_region
        _
      $region20: #{discriminator32_forward.14} parent=11 // pred_fallthru
        _
    $region12: #{discriminator32_forward.14} parent=5 // pred_fallthru
      _
    %p124 = scmp.lt.s32.totalorder %s9, 2
    // Predicated region
    $region21: #{discriminator32_forward.14} parent=5 // pred_check
      %p125 = pneg %p124
    $region22: #{discriminator32_forward.14} parent=5 // pred_check_branch
      %127 = sbr.rel (%p125) target = $region24
    $region23: #{discriminator32_forward.14} parent=5 // pred_region
      // Predicated region
      $region25: #{discriminator32_forward.14} parent=23 // pred_check
        %p128 = pneg %p29
      $region26: #{discriminator32_forward.14} parent=23 // pred_check_branch
        %130 = sbr.rel (%p128) target = $region28
      $region27: #{discriminator32_forward.14} parent=23 // pred_region
        %s131 = smul.u32 32, %s9
        %p132 = scmp.lt.s32.totalorder %s131, 63
        %s133 = scalar_select %p132, %s131, 63
        %s134 = smul.addr %s133, 9
        %s135 = smul.addr %s134, 4
        %s136 = scalar_lea.vmem %s0, %s135
        %s137 = smul.u32 32, %s9
      $region28: #{discriminator32_forward.14} parent=23 // pred_fallthru
        _
    $region24: #{discriminator32_forward.14} parent=5 // pred_fallthru
      _
    %p138 = scmp.le.s32.totalorder 1, %s9
    %p139 = scmp.lt.s32.totalorder %s9, 3
    %p140 = pnand %p138, %p139
    %p141 = pneg %p140
    // Predicated region
    $region29: #{discriminator32_forward.14} parent=5 // pred_check
      _
    $region30: #{discriminator32_forward.14} parent=5 // pred_check_branch
      %143 = sbr.rel (%p140) target = $region32
    $region31: #{discriminator32_forward.14} parent=5 // pred_region
      %s144 = ssub.s32 %s9, 1
      %s145 = smul.u32 32, %s14
      %p146 = scmp.lt.s32.totalorder %s145, 63
      %s147 = scalar_select %p146, %s145, 63
      %s148 = smul.addr %s147, 9
      %s149 = smul.addr %s148, 4
      %s150 = scalar_lea.vmem %s0, %s149
      %p151 = pneg %p35
      %p152 = pneg %p32
      %p153 = pneg %p56
      %p154 = pneg %p53
      %p155 = pneg %p77
      %p156 = pneg %p74
      %p157 = pneg %p103
      %p158 = pneg %p100
      %s159 = smul.u32 32, %s14
      %p160 = scmp.lt.s32.totalorder %s159, 63
      %s161 = scalar_select %p160, %s159, 63
      %s162 = smul.addr %s161, 4
      %s163 = scalar_lea.vmem %s3, %s162
      %s164 = smul.u32 32, %s14
      %p165 = scmp.lt.s32.totalorder %s164, 63
      %s166 = scalar_select %p165, %s164, 63
      %s167 = smul.addr %s166, 9
      %s168 = smul.addr %s167, 4
      %s169 = scalar_lea.vmem %s0, %s168
      %s170 = smul.u32 32, %s14
      %s171 = smul.u32 32, %s14
      %p172 = scmp.lt.s32.totalorder %s171, 63
      %s173 = scalar_select %p172, %s171, 63
      %s174 = smul.addr %s173, 4
      %s175 = scalar_lea.vmem %s3, %s174
      %s176 = smul.u32 32, %s14
      %v178 = vld [vmem:[%s169] sm:$0xff]
      %v179 = vld [vmem:[%s169 + $0x8] sm:$0xff]
      %v180 = vld [vmem:[%s169 + $0x10] sm:$0xff]
      %v181 = vld [vmem:[%s169 + $0x18] sm:$0xff]
      %v182 = vld [vmem:[%s169 + $0x20] sm:$0xf]
      %v183 = vld [vmem:[%s169 + $0x24] sm:$0xff]
      %v184 = vld [vmem:[%s169 + $0x2c] sm:$0xff]
      %v185 = vld [vmem:[%s169 + $0x34] sm:$0xff]
      %v186 = vld [vmem:[%s169 + $0x3c] sm:$0xff]
      %v187 = vld [vmem:[%s169 + $0x44] sm:$0xf]
      %v188 = vld [vmem:[%s169 + $0x48] sm:$0xff]
      %v189 = vld [vmem:[%s169 + $0x50] sm:$0xff]
      %v190 = vld [vmem:[%s169 + $0x58] sm:$0xff]
      %v191 = vld [vmem:[%s169 + $0x60] sm:$0xff]
      %v192 = vld [vmem:[%s169 + $0x68] sm:$0xf]
      %v193 = vld [vmem:[%s169 + $0x6c] sm:$0xff]
      %v194 = vld [vmem:[%s169 + $0x74] sm:$0xff]
      %v195 = vld [vmem:[%s169 + $0x7c] sm:$0xff]
      %v196 = vld [vmem:[%s169 + $0x84] sm:$0xff]
      %v197 = vld [vmem:[%s169 + $0x8c] sm:$0xf]
      %v198 = vld [vmem:[%s169 + $0x90] sm:$0xff]
      %v199 = vld [vmem:[%s169 + $0x98] sm:$0xff]
      %v200 = vld [vmem:[%s169 + $0xa0] sm:$0xff]
      %v201 = vld [vmem:[%s169 + $0xa8] sm:$0xff]
      %v202 = vld [vmem:[%s169 + $0xb0] sm:$0xf]
      %v203 = vld [vmem:[%s169 + $0xb4] sm:$0xff]
      %v204 = vld [vmem:[%s169 + $0xbc] sm:$0xff]
      %v205 = vld [vmem:[%s169 + $0xc4] sm:$0xff]
      %v206 = vld [vmem:[%s169 + $0xcc] sm:$0xff]
      %v207 = vld [vmem:[%s169 + $0xd4] sm:$0xf]
      %v208 = vld [vmem:[%s169 + $0xd8] sm:$0xff]
      %v209 = vld [vmem:[%s169 + $0xe0] sm:$0xff]
      %v210 = vld [vmem:[%s169 + $0xe8] sm:$0xff]
      %v211 = vld [vmem:[%s169 + $0xf0] sm:$0xff]
      %v212 = vld [vmem:[%s169 + $0xf8] sm:$0xf]
      %v213 = vld [vmem:[%s169 + $0xfc] sm:$0xff]
      %v214 = vld [vmem:[%s169 + $0x104] sm:$0xff]
      %v215 = vld [vmem:[%s169 + $0x10c] sm:$0xff]
      %v216 = vld [vmem:[%s169 + $0x114] sm:$0xff]
      %v217 = vld [vmem:[%s169 + $0x11c] sm:$0xf]
      %v218 = vld [vmem:[%s169 + $0x120] sm:$0xff]
      %v219 = vld [vmem:[%s169 + $0x128] sm:$0xff]
      %v220 = vld [vmem:[%s169 + $0x130] sm:$0xff]
      %v221 = vld [vmem:[%s169 + $0x138] sm:$0xff]
      %v222 = vld [vmem:[%s169 + $0x140] sm:$0xf]
      %v223 = vld [vmem:[%s169 + $0x144] sm:$0xff]
      %v224 = vld [vmem:[%s169 + $0x14c] sm:$0xff]
      %v225 = vld [vmem:[%s169 + $0x154] sm:$0xff]
      %v226 = vld [vmem:[%s169 + $0x15c] sm:$0xff]
      %v227 = vld [vmem:[%s169 + $0x164] sm:$0xf]
      %v228 = vld [vmem:[%s169 + $0x168] sm:$0xff]
      %v229 = vld [vmem:[%s169 + $0x170] sm:$0xff]
      %v230 = vld [vmem:[%s169 + $0x178] sm:$0xff]
      %v231 = vld [vmem:[%s169 + $0x180] sm:$0xff]
      %v232 = vld [vmem:[%s169 + $0x188] sm:$0xf]
      %v233 = vld [vmem:[%s169 + $0x18c] sm:$0xff]
      %v234 = vld [vmem:[%s169 + $0x194] sm:$0xff]
      %v235 = vld [vmem:[%s169 + $0x19c] sm:$0xff]
      %v236 = vld [vmem:[%s169 + $0x1a4] sm:$0xff]
      %v237 = vld [vmem:[%s169 + $0x1ac] sm:$0xf]
      %v238 = vld [vmem:[%s169 + $0x1b0] sm:$0xff]
      %v239 = vld [vmem:[%s169 + $0x1b8] sm:$0xff]
      %v240 = vld [vmem:[%s169 + $0x1c0] sm:$0xff]
      %v241 = vld [vmem:[%s169 + $0x1c8] sm:$0xff]
      %v242 = vld [vmem:[%s169 + $0x1d0] sm:$0xf]
      %v243 = vld [vmem:[%s169 + $0x1d4] sm:$0xff]
      %v244 = vld [vmem:[%s169 + $0x1dc] sm:$0xff]
      %v245 = vld [vmem:[%s169 + $0x1e4] sm:$0xff]
      %v246 = vld [vmem:[%s169 + $0x1ec] sm:$0xff]
      %v247 = vld [vmem:[%s169 + $0x1f4] sm:$0xf]
      %v248 = vld [vmem:[%s169 + $0x1f8] sm:$0xff]
      %v249 = vld [vmem:[%s169 + $0x200] sm:$0xff]
      %v250 = vld [vmem:[%s169 + $0x208] sm:$0xff]
      %v251 = vld [vmem:[%s169 + $0x210] sm:$0xff]
      %v252 = vld [vmem:[%s169 + $0x218] sm:$0xf]
      %v253 = vld [vmem:[%s169 + $0x21c] sm:$0xff]
      %v254 = vld [vmem:[%s169 + $0x224] sm:$0xff]
      %v255 = vld [vmem:[%s169 + $0x22c] sm:$0xff]
      %v256 = vld [vmem:[%s169 + $0x234] sm:$0xff]
      %v257 = vld [vmem:[%s169 + $0x23c] sm:$0xf]
      %v258 = vld [vmem:[%s169 + $0x240] sm:$0xff]
      %v259 = vld [vmem:[%s169 + $0x248] sm:$0xff]
      %v260 = vld [vmem:[%s169 + $0x250] sm:$0xff]
      %v261 = vld [vmem:[%s169 + $0x258] sm:$0xff]
      %v262 = vld [vmem:[%s169 + $0x260] sm:$0xf]
      %v263 = vld [vmem:[%s169 + $0x264] sm:$0xff]
      %v264 = vld [vmem:[%s169 + $0x26c] sm:$0xff]
      %v265 = vld [vmem:[%s169 + $0x274] sm:$0xff]
      %v266 = vld [vmem:[%s169 + $0x27c] sm:$0xff]
      %v267 = vld [vmem:[%s169 + $0x284] sm:$0xf]
      %v268 = vld [vmem:[%s169 + $0x288] sm:$0xff]
      %v269 = vld [vmem:[%s169 + $0x290] sm:$0xff]
      %v270 = vld [vmem:[%s169 + $0x298] sm:$0xff]
      %v271 = vld [vmem:[%s169 + $0x2a0] sm:$0xff]
      %v272 = vld [vmem:[%s169 + $0x2a8] sm:$0xf]
      %v273 = vld [vmem:[%s169 + $0x2ac] sm:$0xff]
      %v274 = vld [vmem:[%s169 + $0x2b4] sm:$0xff]
      %v275 = vld [vmem:[%s169 + $0x2bc] sm:$0xff]
      %v276 = vld [vmem:[%s169 + $0x2c4] sm:$0xff]
      %v277 = vld [vmem:[%s169 + $0x2cc] sm:$0xf]
      %v278 = vld [vmem:[%s169 + $0x2d0] sm:$0xff]
      %v279 = vld [vmem:[%s169 + $0x2d8] sm:$0xff]
      %v280 = vld [vmem:[%s169 + $0x2e0] sm:$0xff]
      %v281 = vld [vmem:[%s169 + $0x2e8] sm:$0xff]
      %v282 = vld [vmem:[%s169 + $0x2f0] sm:$0xf]
      %v283 = vld [vmem:[%s169 + $0x2f4] sm:$0xff]
      %v284 = vld [vmem:[%s169 + $0x2fc] sm:$0xff]
      %v285 = vld [vmem:[%s169 + $0x304] sm:$0xff]
      %v286 = vld [vmem:[%s169 + $0x30c] sm:$0xff]
      %v287 = vld [vmem:[%s169 + $0x314] sm:$0xf]
      %v288 = vld [vmem:[%s169 + $0x318] sm:$0xff]
      %v289 = vld [vmem:[%s169 + $0x320] sm:$0xff]
      %v290 = vld [vmem:[%s169 + $0x328] sm:$0xff]
      %v291 = vld [vmem:[%s169 + $0x330] sm:$0xff]
      %v292 = vld [vmem:[%s169 + $0x338] sm:$0xf]
      %v293 = vld [vmem:[%s169 + $0x33c] sm:$0xff]
      %v294 = vld [vmem:[%s169 + $0x344] sm:$0xff]
      %v295 = vld [vmem:[%s169 + $0x34c] sm:$0xff]
      %v296 = vld [vmem:[%s169 + $0x354] sm:$0xff]
      %v297 = vld [vmem:[%s169 + $0x35c] sm:$0xf]
      %v298 = vld [vmem:[%s169 + $0x360] sm:$0xff]
      %v299 = vld [vmem:[%s169 + $0x368] sm:$0xff]
      %v300 = vld [vmem:[%s169 + $0x370] sm:$0xff]
      %v301 = vld [vmem:[%s169 + $0x378] sm:$0xff]
      %v302 = vld [vmem:[%s169 + $0x380] sm:$0xf]
      %v303 = vld [vmem:[%s169 + $0x384] sm:$0xff]
      %v304 = vld [vmem:[%s169 + $0x38c] sm:$0xff]
      %v305 = vld [vmem:[%s169 + $0x394] sm:$0xff]
      %v306 = vld [vmem:[%s169 + $0x39c] sm:$0xff]
      %v307 = vld [vmem:[%s169 + $0x3a4] sm:$0xf]
      %v308 = vld [vmem:[%s169 + $0x3a8] sm:$0xff]
      %v309 = vld [vmem:[%s169 + $0x3b0] sm:$0xff]
      %v310 = vld [vmem:[%s169 + $0x3b8] sm:$0xff]
      %v311 = vld [vmem:[%s169 + $0x3c0] sm:$0xff]
      %v312 = vld [vmem:[%s169 + $0x3c8] sm:$0xf]
      %v313 = vld [vmem:[%s169 + $0x3cc] sm:$0xff]
      %v314 = vld [vmem:[%s169 + $0x3d4] sm:$0xff]
      %v315 = vld [vmem:[%s169 + $0x3dc] sm:$0xff]
      %v316 = vld [vmem:[%s169 + $0x3e4] sm:$0xff]
      %v317 = vld [vmem:[%s169 + $0x3ec] sm:$0xf]
      %v318 = vld [vmem:[%s169 + $0x3f0] sm:$0xff]
      %v319 = vld [vmem:[%s169 + $0x3f8] sm:$0xff]
      %v320 = vld [vmem:[%s169 + $0x400] sm:$0xff]
      %v321 = vld [vmem:[%s169 + $0x408] sm:$0xff]
      %v322 = vld [vmem:[%s169 + $0x410] sm:$0xf]
      %v323 = vld [vmem:[%s169 + $0x414] sm:$0xff]
      %v324 = vld [vmem:[%s169 + $0x41c] sm:$0xff]
      %v325 = vld [vmem:[%s169 + $0x424] sm:$0xff]
      %v326 = vld [vmem:[%s169 + $0x42c] sm:$0xff]
      %v327 = vld [vmem:[%s169 + $0x434] sm:$0xf]
      %v328 = vld [vmem:[%s169 + $0x438] sm:$0xff]
      %v329 = vld [vmem:[%s169 + $0x440] sm:$0xff]
      %v330 = vld [vmem:[%s169 + $0x448] sm:$0xff]
      %v331 = vld [vmem:[%s169 + $0x450] sm:$0xff]
      %v332 = vld [vmem:[%s169 + $0x458] sm:$0xf]
      %v333 = vld [vmem:[%s169 + $0x45c] sm:$0xff]
      %v334 = vld [vmem:[%s169 + $0x464] sm:$0xff]
      %v335 = vld [vmem:[%s169 + $0x46c] sm:$0xff]
      %v336 = vld [vmem:[%s169 + $0x474] sm:$0xff]
      %v337 = vld [vmem:[%s169 + $0x47c] sm:$0xf]
      %v338 = vmax.bf16 %v178, 0
      %v339 = vmax.bf16 %v179, 0
      %v340 = vmax.bf16 %v180, 0
      %v341 = vmax.bf16 %v181, 0
      %v342 = vmax.bf16 %v182, 0
      %v343 = vmax.bf16 %v183, 0
      %v344 = vmax.bf16 %v184, 0
      %v345 = vmax.bf16 %v185, 0
      %v346 = vmax.bf16 %v186, 0
      %v347 = vmax.bf16 %v187, 0
      %v348 = vmax.bf16 %v188, 0
      %v349 = vmax.bf16 %v189, 0
      %v350 = vmax.bf16 %v190, 0
      %v351 = vmax.bf16 %v191, 0
      %v352 = vmax.bf16 %v192, 0
      %v353 = vmax.bf16 %v193, 0
      %v354 = vmax.bf16 %v194, 0
      %v355 = vmax.bf16 %v195, 0
      %v356 = vmax.bf16 %v196, 0
      %v357 = vmax.bf16 %v197, 0
      %v358 = vmax.bf16 %v198, 0
      %v359 = vmax.bf16 %v199, 0
      %v360 = vmax.bf16 %v200, 0
      %v361 = vmax.bf16 %v201, 0
      %v362 = vmax.bf16 %v202, 0
      %v363 = vmax.bf16 %v203, 0
      %v364 = vmax.bf16 %v204, 0
      %v365 = vmax.bf16 %v205, 0
      %v366 = vmax.bf16 %v206, 0
      %v367 = vmax.bf16 %v207, 0
      %v368 = vmax.bf16 %v208, 0
      %v369 = vmax.bf16 %v209, 0
      %v370 = vmax.bf16 %v210, 0
      %v371 = vmax.bf16 %v211, 0
      %v372 = vmax.bf16 %v212, 0
      %v373 = vmax.bf16 %v213, 0
      %v374 = vmax.bf16 %v214, 0
      %v375 = vmax.bf16 %v215, 0
      %v376 = vmax.bf16 %v216, 0
      %v377 = vmax.bf16 %v217, 0
      %v378 = vmax.bf16 %v218, 0
      %v379 = vmax.bf16 %v219, 0
      %v380 = vmax.bf16 %v220, 0
      %v381 = vmax.bf16 %v221, 0
      %v382 = vmax.bf16 %v222, 0
      %v383 = vmax.bf16 %v223, 0
      %v384 = vmax.bf16 %v224, 0
      %v385 = vmax.bf16 %v225, 0
      %v386 = vmax.bf16 %v226, 0
      %v387 = vmax.bf16 %v227, 0
      %v388 = vmax.bf16 %v228, 0
      %v389 = vmax.bf16 %v229, 0
      %v390 = vmax.bf16 %v230, 0
      %v391 = vmax.bf16 %v231, 0
      %v392 = vmax.bf16 %v232, 0
      %v393 = vmax.bf16 %v233, 0
      %v394 = vmax.bf16 %v234, 0
      %v395 = vmax.bf16 %v235, 0
      %v396 = vmax.bf16 %v236, 0
      %v397 = vmax.bf16 %v237, 0
      %v398 = vmax.bf16 %v238, 0
      %v399 = vmax.bf16 %v239, 0
      %v400 = vmax.bf16 %v240, 0
      %v401 = vmax.bf16 %v241, 0
      %v402 = vmax.bf16 %v242, 0
      %v403 = vmax.bf16 %v243, 0
      %v404 = vmax.bf16 %v244, 0
      %v405 = vmax.bf16 %v245, 0
      %v406 = vmax.bf16 %v246, 0
      %v407 = vmax.bf16 %v247, 0
      %v408 = vmax.bf16 %v248, 0
      %v409 = vmax.bf16 %v249, 0
      %v410 = vmax.bf16 %v250, 0
      %v411 = vmax.bf16 %v251, 0
      %v412 = vmax.bf16 %v252, 0
      %v413 = vmax.bf16 %v253, 0
      %v414 = vmax.bf16 %v254, 0
      %v415 = vmax.bf16 %v255, 0
      %v416 = vmax.bf16 %v256, 0
      %v417 = vmax.bf16 %v257, 0
      %v418 = vmax.bf16 %v258, 0
      %v419 = vmax.bf16 %v259, 0
      %v420 = vmax.bf16 %v260, 0
      %v421 = vmax.bf16 %v261, 0
      %v422 = vmax.bf16 %v262, 0
      %v423 = vmax.bf16 %v263, 0
      %v424 = vmax.bf16 %v264, 0
      %v425 = vmax.bf16 %v265, 0
      %v426 = vmax.bf16 %v266, 0
      %v427 = vmax.bf16 %v267, 0
      %v428 = vmax.bf16 %v268, 0
      %v429 = vmax.bf16 %v269, 0
      %v430 = vmax.bf16 %v270, 0
      %v431 = vmax.bf16 %v271, 0
      %v432 = vmax.bf16 %v272, 0
      %v433 = vmax.bf16 %v273, 0
      %v434 = vmax.bf16 %v274, 0
      %v435 = vmax.bf16 %v275, 0
      %v436 = vmax.bf16 %v276, 0
      %v437 = vmax.bf16 %v277, 0
      %v438 = vmax.bf16 %v278, 0
      %v439 = vmax.bf16 %v279, 0
      %v440 = vmax.bf16 %v280, 0
      %v441 = vmax.bf16 %v281, 0
      %v442 = vmax.bf16 %v282, 0
      %v443 = vmax.bf16 %v283, 0
      %v444 = vmax.bf16 %v284, 0
      %v445 = vmax.bf16 %v285, 0
      %v446 = vmax.bf16 %v286, 0
      %v447 = vmax.bf16 %v287, 0
      %v448 = vmax.bf16 %v288, 0
      %v449 = vmax.bf16 %v289, 0
      %v450 = vmax.bf16 %v290, 0
      %v451 = vmax.bf16 %v291, 0
      %v452 = vmax.bf16 %v292, 0
      %v453 = vmax.bf16 %v293, 0
      %v454 = vmax.bf16 %v294, 0
      %v455 = vmax.bf16 %v295, 0
      %v456 = vmax.bf16 %v296, 0
      %v457 = vmax.bf16 %v297, 0
      %v458 = vmax.bf16 %v298, 0
      %v459 = vmax.bf16 %v299, 0
      %v460 = vmax.bf16 %v300, 0
      %v461 = vmax.bf16 %v301, 0
      %v462 = vmax.bf16 %v302, 0
      %v463 = vmax.bf16 %v303, 0
      %v464 = vmax.bf16 %v304, 0
      %v465 = vmax.bf16 %v305, 0
      %v466 = vmax.bf16 %v306, 0
      %v467 = vmax.bf16 %v307, 0
      %v468 = vmax.bf16 %v308, 0
      %v469 = vmax.bf16 %v309, 0
      %v470 = vmax.bf16 %v310, 0
      %v471 = vmax.bf16 %v311, 0
      %v472 = vmax.bf16 %v312, 0
      %v473 = vmax.bf16 %v313, 0
      %v474 = vmax.bf16 %v314, 0
      %v475 = vmax.bf16 %v315, 0
      %v476 = vmax.bf16 %v316, 0
      %v477 = vmax.bf16 %v317, 0
      %v478 = vmax.bf16 %v318, 0
      %v479 = vmax.bf16 %v319, 0
      %v480 = vmax.bf16 %v320, 0
      %v481 = vmax.bf16 %v321, 0
      %v482 = vmax.bf16 %v322, 0
      %v483 = vmax.bf16 %v323, 0
      %v484 = vmax.bf16 %v324, 0
      %v485 = vmax.bf16 %v325, 0
      %v486 = vmax.bf16 %v326, 0
      %v487 = vmax.bf16 %v327, 0
      %v488 = vmax.bf16 %v328, 0
      %v489 = vmax.bf16 %v329, 0
      %v490 = vmax.bf16 %v330, 0
      %v491 = vmax.bf16 %v331, 0
      %v492 = vmax.bf16 %v332, 0
      %v493 = vmax.bf16 %v333, 0
      %v494 = vmax.bf16 %v334, 0
      %v495 = vmax.bf16 %v335, 0
      %v496 = vmax.bf16 %v336, 0
      %v497 = vmax.bf16 %v337, 0
      %v498 = vld [vmem:[%s1] sm:$0xf]
      %v499 = vld [vmem:[%s1 + $0x4] sm:$0xf]
      %v500 = vld [vmem:[%s1 + $0x8] sm:$0xf]
      %v501 = vld [vmem:[%s1 + $0xc] sm:$0xf]
      %v502 = vld [vmem:[%s1 + $0x10] sm:$0xf]
      %v503 = vld [vmem:[%s1 + $0x14] sm:$0xf]
      %v504 = vld [vmem:[%s1 + $0x18] sm:$0xf]
      %v505 = vld [vmem:[%s1 + $0x1c] sm:$0xf]
      %v506 = vld [vmem:[%s1 + $0x20] sm:$0xf]
      %v507 = vld [vmem:[%s1 + $0x24] sm:$0xf]
      %v508 = vld [vmem:[%s1 + $0x28] sm:$0xf]
      %v509 = vld [vmem:[%s1 + $0x2c] sm:$0xf]
      %v510 = vld [vmem:[%s1 + $0x30] sm:$0xf]
      %v511 = vld [vmem:[%s1 + $0x34] sm:$0xf]
      %v512 = vld [vmem:[%s1 + $0x38] sm:$0xf]
      %v513 = vld [vmem:[%s1 + $0x3c] sm:$0xf]
      %v514 = vld [vmem:[%s1 + $0x40] sm:$0xf]
      %v515 = vld [vmem:[%s1 + $0x44] sm:$0xf]
      %v516 = vld [vmem:[%s1 + $0x48] sm:$0xf]
      %v517 = vld [vmem:[%s1 + $0x4c] sm:$0xf]
      %v518 = vld [vmem:[%s1 + $0x50] sm:$0xf]
      %v519 = vld [vmem:[%s1 + $0x54] sm:$0xf]
      %v520 = vld [vmem:[%s1 + $0x58] sm:$0xf]
      %v521 = vld [vmem:[%s1 + $0x5c] sm:$0xf]
      %v522 = vld [vmem:[%s1 + $0x60] sm:$0xf]
      %v523 = vld [vmem:[%s1 + $0x64] sm:$0xf]
      %v524 = vld [vmem:[%s1 + $0x68] sm:$0xf]
      %v525 = vld [vmem:[%s1 + $0x6c] sm:$0xf]
      %v526 = vld [vmem:[%s1 + $0x70] sm:$0xf]
      %v527 = vld [vmem:[%s1 + $0x74] sm:$0xf]
      %v528 = vld [vmem:[%s1 + $0x78] sm:$0xf]
      %v529 = vld [vmem:[%s1 + $0x7c] sm:$0xf]
      %v530 = vld [vmem:[%s1 + $0x80] sm:$0xf]
      %v531 = vld [vmem:[%s1 + $0x84] sm:$0xf]
      %v532 = vld [vmem:[%s1 + $0x88] sm:$0xf]
      %v533 = vld [vmem:[%s1 + $0x8c] sm:$0xf]
      %v534 = vld [vmem:[%s1 + $0x90] sm:$0xf]
      %v535 = vld [vmem:[%s1 + $0x94] sm:$0xf]
      %v536 = vld [vmem:[%s1 + $0x98] sm:$0xf]
      %v537 = vld [vmem:[%s1 + $0x9c] sm:$0xf]
      %v538 = vld [vmem:[%s1 + $0xa0] sm:$0xf]
      %v539 = vld [vmem:[%s1 + $0xa4] sm:$0xf]
      %v540 = vld [vmem:[%s1 + $0xa8] sm:$0xf]
      %v541 = vld [vmem:[%s1 + $0xac] sm:$0xf]
      %v542 = vld [vmem:[%s1 + $0xb0] sm:$0xf]
      %v543 = vld [vmem:[%s1 + $0xb4] sm:$0xf]
      %v544 = vld [vmem:[%s1 + $0xb8] sm:$0xf]
      %v545 = vld [vmem:[%s1 + $0xbc] sm:$0xf]
      %v546 = vld [vmem:[%s1 + $0xc0] sm:$0xf]
      %v547 = vld [vmem:[%s1 + $0xc4] sm:$0xf]
      %v548 = vld [vmem:[%s1 + $0xc8] sm:$0xf]
      %v549 = vld [vmem:[%s1 + $0xcc] sm:$0xf]
      %v550 = vld [vmem:[%s1 + $0xd0] sm:$0xf]
      %v551 = vld [vmem:[%s1 + $0xd4] sm:$0xf]
      %v552 = vld [vmem:[%s1 + $0xd8] sm:$0xf]
      %v553 = vld [vmem:[%s1 + $0xdc] sm:$0xf]
      %v554 = vld [vmem:[%s1 + $0xe0] sm:$0xf]
      %v555 = vld [vmem:[%s1 + $0xe4] sm:$0xf]
      %v556 = vld [vmem:[%s1 + $0xe8] sm:$0xf]
      %v557 = vld [vmem:[%s1 + $0xec] sm:$0xf]
      %v558 = vld [vmem:[%s1 + $0xf0] sm:$0xf]
      %v559 = vld [vmem:[%s1 + $0xf4] sm:$0xf]
      %v560 = vld [vmem:[%s1 + $0xf8] sm:$0xf]
      %v561 = vld [vmem:[%s1 + $0xfc] sm:$0xf]
      %v562 = vld [vmem:[%s1 + $0x100] sm:$0xf]
      %v563 = vld [vmem:[%s1 + $0x104] sm:$0xf]
      %v564 = vld [vmem:[%s1 + $0x108] sm:$0xf]
      %v565 = vld [vmem:[%s1 + $0x10c] sm:$0xf]
      %v566 = vld [vmem:[%s1 + $0x110] sm:$0xf]
      %v567 = vld [vmem:[%s1 + $0x114] sm:$0xf]
      %v568 = vld [vmem:[%s1 + $0x118] sm:$0xf]
      %v569 = vld [vmem:[%s1 + $0x11c] sm:$0xf]
      %v570 = vld [vmem:[%s1 + $0x120] sm:$0xf]
      %v571 = vld [vmem:[%s1 + $0x124] sm:$0xf]
      %v572 = vld [vmem:[%s1 + $0x128] sm:$0xf]
      %v573 = vld [vmem:[%s1 + $0x12c] sm:$0xf]
      %v574 = vld [vmem:[%s1 + $0x130] sm:$0xf]
      %v575 = vld [vmem:[%s1 + $0x134] sm:$0xf]
      %v576 = vld [vmem:[%s1 + $0x138] sm:$0xf]
      %v577 = vld [vmem:[%s1 + $0x13c] sm:$0xf]
      %v578 = vld [vmem:[%s1 + $0x140] sm:$0xf]
      %v579 = vld [vmem:[%s1 + $0x144] sm:$0xf]
      %v580 = vld [vmem:[%s1 + $0x148] sm:$0xf]
      %v581 = vld [vmem:[%s1 + $0x14c] sm:$0xf]
      %v582 = vld [vmem:[%s1 + $0x150] sm:$0xf]
      %v583 = vld [vmem:[%s1 + $0x154] sm:$0xf]
      %v584 = vld [vmem:[%s1 + $0x158] sm:$0xf]
      %v585 = vld [vmem:[%s1 + $0x15c] sm:$0xf]
      %v586 = vld [vmem:[%s1 + $0x160] sm:$0xf]
      %v587 = vld [vmem:[%s1 + $0x164] sm:$0xf]
      %v588 = vld [vmem:[%s1 + $0x168] sm:$0xf]
      %v589 = vld [vmem:[%s1 + $0x16c] sm:$0xf]
      %v590 = vld [vmem:[%s1 + $0x170] sm:$0xf]
      %v591 = vld [vmem:[%s1 + $0x174] sm:$0xf]
      %v592 = vld [vmem:[%s1 + $0x178] sm:$0xf]
      %v593 = vld [vmem:[%s1 + $0x17c] sm:$0xf]
      %v594 = vld [vmem:[%s1 + $0x180] sm:$0xf]
      %v595 = vld [vmem:[%s1 + $0x184] sm:$0xf]
      %v596 = vld [vmem:[%s1 + $0x188] sm:$0xf]
      %v597 = vld [vmem:[%s1 + $0x18c] sm:$0xf]
      %v598 = vld [vmem:[%s1 + $0x190] sm:$0xf]
      %v599 = vld [vmem:[%s1 + $0x194] sm:$0xf]
      %v600 = vld [vmem:[%s1 + $0x198] sm:$0xf]
      %v601 = vld [vmem:[%s1 + $0x19c] sm:$0xf]
      %v602 = vld [vmem:[%s1 + $0x1a0] sm:$0xf]
      %v603 = vld [vmem:[%s1 + $0x1a4] sm:$0xf]
      %v604 = vld [vmem:[%s1 + $0x1a8] sm:$0xf]
      %v605 = vld [vmem:[%s1 + $0x1ac] sm:$0xf]
      %v606 = vld [vmem:[%s1 + $0x1b0] sm:$0xf]
      %v607 = vld [vmem:[%s1 + $0x1b4] sm:$0xf]
      %v608 = vld [vmem:[%s1 + $0x1b8] sm:$0xf]
      %v609 = vld [vmem:[%s1 + $0x1bc] sm:$0xf]
      %v610 = vld [vmem:[%s1 + $0x1c0] sm:$0xf]
      %v611 = vld [vmem:[%s1 + $0x1c4] sm:$0xf]
      %v612 = vld [vmem:[%s1 + $0x1c8] sm:$0xf]
      %v613 = vld [vmem:[%s1 + $0x1cc] sm:$0xf]
      %v614 = vld [vmem:[%s1 + $0x1d0] sm:$0xf]
      %v615 = vld [vmem:[%s1 + $0x1d4] sm:$0xf]
      %v616 = vld [vmem:[%s1 + $0x1d8] sm:$0xf]
      %v617 = vld [vmem:[%s1 + $0x1dc] sm:$0xf]
      %v618 = vld [vmem:[%s1 + $0x1e0] sm:$0xf]
      %v619 = vld [vmem:[%s1 + $0x1e4] sm:$0xf]
      %v620 = vld [vmem:[%s1 + $0x1e8] sm:$0xf]
      %v621 = vld [vmem:[%s1 + $0x1ec] sm:$0xf]
      %v622 = vld [vmem:[%s1 + $0x1f0] sm:$0xf]
      %v623 = vld [vmem:[%s1 + $0x1f4] sm:$0xf]
      %v624 = vld [vmem:[%s1 + $0x1f8] sm:$0xf]
      %v625 = vld [vmem:[%s1 + $0x1fc] sm:$0xf]
      %v626 = vld [vmem:[%s1 + $0x200] sm:$0xf]
      %v627 = vld [vmem:[%s1 + $0x204] sm:$0xf]
      %v628 = vld [vmem:[%s1 + $0x208] sm:$0xf]
      %v629 = vld [vmem:[%s1 + $0x20c] sm:$0xf]
      %v630 = vld [vmem:[%s1 + $0x210] sm:$0xf]
      %v631 = vld [vmem:[%s1 + $0x214] sm:$0xf]
      %v632 = vld [vmem:[%s1 + $0x218] sm:$0xf]
      %v633 = vld [vmem:[%s1 + $0x21c] sm:$0xf]
      %v634 = vld [vmem:[%s1 + $0x220] sm:$0xf]
      %v635 = vld [vmem:[%s1 + $0x224] sm:$0xf]
      %v636 = vld [vmem:[%s1 + $0x228] sm:$0xf]
      %v637 = vld [vmem:[%s1 + $0x22c] sm:$0xf]
      %v638 = vld [vmem:[%s1 + $0x230] sm:$0xf]
      %v639 = vld [vmem:[%s1 + $0x234] sm:$0xf]
      %v640 = vld [vmem:[%s1 + $0x238] sm:$0xf]
      %v641 = vld [vmem:[%s1 + $0x23c] sm:$0xf]
      %v642 = vld [vmem:[%s2] sm:$0x1]
      %v644 = vlaneseq
      %v645 = vshrl.u32 %v644, 7
      %v646 = vsub.s32 0, %v645
      %v647 = vrot.slane %v642, %v646
      %v809 = vunpack.c.l.b16 %v338
      %v810 = vunpack.c.h.b16 %v338
      %v811 = vunpack.c.l.b16 %v339
      %v812 = vunpack.c.h.b16 %v339
      %v813 = vunpack.c.l.b16 %v340
      %v814 = vunpack.c.h.b16 %v340
      %v815 = vunpack.c.l.b16 %v341
      %v816 = vunpack.c.h.b16 %v341
      %v817 = vunpack.c.l.b16 %v342
      %v818 = vunpack.c.l.b16 %v343
      %v819 = vunpack.c.h.b16 %v343
      %v820 = vunpack.c.l.b16 %v344
      %v821 = vunpack.c.h.b16 %v344
      %v822 = vunpack.c.l.b16 %v345
      %v823 = vunpack.c.h.b16 %v345
      %v824 = vunpack.c.l.b16 %v346
      %v825 = vunpack.c.h.b16 %v346
      %v826 = vunpack.c.l.b16 %v347
      %v827 = vunpack.c.l.b16 %v348
      %v828 = vunpack.c.h.b16 %v348
      %v829 = vunpack.c.l.b16 %v349
      %v830 = vunpack.c.h.b16 %v349
      %v831 = vunpack.c.l.b16 %v350
      %v832 = vunpack.c.h.b16 %v350
      %v833 = vunpack.c.l.b16 %v351
      %v834 = vunpack.c.h.b16 %v351
      %v835 = vunpack.c.l.b16 %v352
      %v836 = vunpack.c.l.b16 %v353
      %v837 = vunpack.c.h.b16 %v353
      %v838 = vunpack.c.l.b16 %v354
      %v839 = vunpack.c.h.b16 %v354
      %v840 = vunpack.c.l.b16 %v355
      %v841 = vunpack.c.h.b16 %v355
      %v842 = vunpack.c.l.b16 %v356
      %v843 = vunpack.c.h.b16 %v356
      %v844 = vunpack.c.l.b16 %v357
      %v845 = vunpack.c.l.b16 %v358
      %v846 = vunpack.c.h.b16 %v358
      %v847 = vunpack.c.l.b16 %v359
      %v848 = vunpack.c.h.b16 %v359
      %v849 = vunpack.c.l.b16 %v360
      %v850 = vunpack.c.h.b16 %v360
      %v851 = vunpack.c.l.b16 %v361
      %v852 = vunpack.c.h.b16 %v361
      %v853 = vunpack.c.l.b16 %v362
      %v854 = vunpack.c.l.b16 %v363
      %v855 = vunpack.c.h.b16 %v363
      %v856 = vunpack.c.l.b16 %v364
      %v857 = vunpack.c.h.b16 %v364
      %v858 = vunpack.c.l.b16 %v365
      %v859 = vunpack.c.h.b16 %v365
      %v860 = vunpack.c.l.b16 %v366
      %v861 = vunpack.c.h.b16 %v366
      %v862 = vunpack.c.l.b16 %v367
      %v863 = vunpack.c.l.b16 %v368
      %v864 = vunpack.c.h.b16 %v368
      %v865 = vunpack.c.l.b16 %v369
      %v866 = vunpack.c.h.b16 %v369
      %v867 = vunpack.c.l.b16 %v370
      %v868 = vunpack.c.h.b16 %v370
      %v869 = vunpack.c.l.b16 %v371
      %v870 = vunpack.c.h.b16 %v371
      %v871 = vunpack.c.l.b16 %v372
      %v872 = vunpack.c.l.b16 %v373
      %v873 = vunpack.c.h.b16 %v373
      %v874 = vunpack.c.l.b16 %v374
      %v875 = vunpack.c.h.b16 %v374
      %v876 = vunpack.c.l.b16 %v375
      %v877 = vunpack.c.h.b16 %v375
      %v878 = vunpack.c.l.b16 %v376
      %v879 = vunpack.c.h.b16 %v376
      %v880 = vunpack.c.l.b16 %v377
      %v881 = vunpack.c.l.b16 %v378
      %v882 = vunpack.c.h.b16 %v378
      %v883 = vunpack.c.l.b16 %v379
      %v884 = vunpack.c.h.b16 %v379
      %v885 = vunpack.c.l.b16 %v380
      %v886 = vunpack.c.h.b16 %v380
      %v887 = vunpack.c.l.b16 %v381
      %v888 = vunpack.c.h.b16 %v381
      %v889 = vunpack.c.l.b16 %v382
      %v890 = vunpack.c.l.b16 %v383
      %v891 = vunpack.c.h.b16 %v383
      %v892 = vunpack.c.l.b16 %v384
      %v893 = vunpack.c.h.b16 %v384
      %v894 = vunpack.c.l.b16 %v385
      %v895 = vunpack.c.h.b16 %v385
      %v896 = vunpack.c.l.b16 %v386
      %v897 = vunpack.c.h.b16 %v386
      %v898 = vunpack.c.l.b16 %v387
      %v899 = vunpack.c.l.b16 %v388
      %v900 = vunpack.c.h.b16 %v388
      %v901 = vunpack.c.l.b16 %v389
      %v902 = vunpack.c.h.b16 %v389
      %v903 = vunpack.c.l.b16 %v390
      %v904 = vunpack.c.h.b16 %v390
      %v905 = vunpack.c.l.b16 %v391
      %v906 = vunpack.c.h.b16 %v391
      %v907 = vunpack.c.l.b16 %v392
      %v908 = vunpack.c.l.b16 %v393
      %v909 = vunpack.c.h.b16 %v393
      %v910 = vunpack.c.l.b16 %v394
      %v911 = vunpack.c.h.b16 %v394
      %v912 = vunpack.c.l.b16 %v395
      %v913 = vunpack.c.h.b16 %v395
      %v914 = vunpack.c.l.b16 %v396
      %v915 = vunpack.c.h.b16 %v396
      %v916 = vunpack.c.l.b16 %v397
      %v917 = vunpack.c.l.b16 %v398
      %v918 = vunpack.c.h.b16 %v398
      %v919 = vunpack.c.l.b16 %v399
      %v920 = vunpack.c.h.b16 %v399
      %v921 = vunpack.c.l.b16 %v400
      %v922 = vunpack.c.h.b16 %v400
      %v923 = vunpack.c.l.b16 %v401
      %v924 = vunpack.c.h.b16 %v401
      %v925 = vunpack.c.l.b16 %v402
      %v926 = vunpack.c.l.b16 %v403
      %v927 = vunpack.c.h.b16 %v403
      %v928 = vunpack.c.l.b16 %v404
      %v929 = vunpack.c.h.b16 %v404
      %v930 = vunpack.c.l.b16 %v405
      %v931 = vunpack.c.h.b16 %v405
      %v932 = vunpack.c.l.b16 %v406
      %v933 = vunpack.c.h.b16 %v406
      %v934 = vunpack.c.l.b16 %v407
      %v935 = vunpack.c.l.b16 %v408
      %v936 = vunpack.c.h.b16 %v408
      %v937 = vunpack.c.l.b16 %v409
      %v938 = vunpack.c.h.b16 %v409
      %v939 = vunpack.c.l.b16 %v410
      %v940 = vunpack.c.h.b16 %v410
      %v941 = vunpack.c.l.b16 %v411
      %v942 = vunpack.c.h.b16 %v411
      %v943 = vunpack.c.l.b16 %v412
      %v944 = vunpack.c.l.b16 %v413
      %v945 = vunpack.c.h.b16 %v413
      %v946 = vunpack.c.l.b16 %v414
      %v947 = vunpack.c.h.b16 %v414
      %v948 = vunpack.c.l.b16 %v415
      %v949 = vunpack.c.h.b16 %v415
      %v950 = vunpack.c.l.b16 %v416
      %v951 = vunpack.c.h.b16 %v416
      %v952 = vunpack.c.l.b16 %v417
      %v953 = vunpack.c.l.b16 %v418
      %v954 = vunpack.c.h.b16 %v418
      %v955 = vunpack.c.l.b16 %v419
      %v956 = vunpack.c.h.b16 %v419
      %v957 = vunpack.c.l.b16 %v420
      %v958 = vunpack.c.h.b16 %v420
      %v959 = vunpack.c.l.b16 %v421
      %v960 = vunpack.c.h.b16 %v421
      %v961 = vunpack.c.l.b16 %v422
      %v962 = vunpack.c.l.b16 %v423
      %v963 = vunpack.c.h.b16 %v423
      %v964 = vunpack.c.l.b16 %v424
      %v965 = vunpack.c.h.b16 %v424
      %v966 = vunpack.c.l.b16 %v425
      %v967 = vunpack.c.h.b16 %v425
      %v968 = vunpack.c.l.b16 %v426
      %v969 = vunpack.c.h.b16 %v426
      %v970 = vunpack.c.l.b16 %v427
      %v971 = vunpack.c.l.b16 %v428
      %v972 = vunpack.c.h.b16 %v428
      %v973 = vunpack.c.l.b16 %v429
      %v974 = vunpack.c.h.b16 %v429
      %v975 = vunpack.c.l.b16 %v430
      %v976 = vunpack.c.h.b16 %v430
      %v977 = vunpack.c.l.b16 %v431
      %v978 = vunpack.c.h.b16 %v431
      %v979 = vunpack.c.l.b16 %v432
      %v980 = vunpack.c.l.b16 %v433
      %v981 = vunpack.c.h.b16 %v433
      %v982 = vunpack.c.l.b16 %v434
      %v983 = vunpack.c.h.b16 %v434
      %v984 = vunpack.c.l.b16 %v435
      %v985 = vunpack.c.h.b16 %v435
      %v986 = vunpack.c.l.b16 %v436
      %v987 = vunpack.c.h.b16 %v436
      %v988 = vunpack.c.l.b16 %v437
      %v989 = vunpack.c.l.b16 %v438
      %v990 = vunpack.c.h.b16 %v438
      %v991 = vunpack.c.l.b16 %v439
      %v992 = vunpack.c.h.b16 %v439
      %v993 = vunpack.c.l.b16 %v440
      %v994 = vunpack.c.h.b16 %v440
      %v995 = vunpack.c.l.b16 %v441
      %v996 = vunpack.c.h.b16 %v441
      %v997 = vunpack.c.l.b16 %v442
      %v998 = vunpack.c.l.b16 %v443
      %v999 = vunpack.c.h.b16 %v443
      %v1000 = vunpack.c.l.b16 %v444
      %v1001 = vunpack.c.h.b16 %v444
      %v1002 = vunpack.c.l.b16 %v445
      %v1003 = vunpack.c.h.b16 %v445
      %v1004 = vunpack.c.l.b16 %v446
      %v1005 = vunpack.c.h.b16 %v446
      %v1006 = vunpack.c.l.b16 %v447
      %v1007 = vunpack.c.l.b16 %v448
      %v1008 = vunpack.c.h.b16 %v448
      %v1009 = vunpack.c.l.b16 %v449
      %v1010 = vunpack.c.h.b16 %v449
      %v1011 = vunpack.c.l.b16 %v450
      %v1012 = vunpack.c.h.b16 %v450
      %v1013 = vunpack.c.l.b16 %v451
      %v1014 = vunpack.c.h.b16 %v451
      %v1015 = vunpack.c.l.b16 %v452
      %v1016 = vunpack.c.l.b16 %v453
      %v1017 = vunpack.c.h.b16 %v453
      %v1018 = vunpack.c.l.b16 %v454
      %v1019 = vunpack.c.h.b16 %v454
      %v1020 = vunpack.c.l.b16 %v455
      %v1021 = vunpack.c.h.b16 %v455
      %v1022 = vunpack.c.l.b16 %v456
      %v1023 = vunpack.c.h.b16 %v456
      %v1024 = vunpack.c.l.b16 %v457
      %v1025 = vunpack.c.l.b16 %v458
      %v1026 = vunpack.c.h.b16 %v458
      %v1027 = vunpack.c.l.b16 %v459
      %v1028 = vunpack.c.h.b16 %v459
      %v1029 = vunpack.c.l.b16 %v460
      %v1030 = vunpack.c.h.b16 %v460
      %v1031 = vunpack.c.l.b16 %v461
      %v1032 = vunpack.c.h.b16 %v461
      %v1033 = vunpack.c.l.b16 %v462
      %v1034 = vunpack.c.l.b16 %v463
      %v1035 = vunpack.c.h.b16 %v463
      %v1036 = vunpack.c.l.b16 %v464
      %v1037 = vunpack.c.h.b16 %v464
      %v1038 = vunpack.c.l.b16 %v465
      %v1039 = vunpack.c.h.b16 %v465
      %v1040 = vunpack.c.l.b16 %v466
      %v1041 = vunpack.c.h.b16 %v466
      %v1042 = vunpack.c.l.b16 %v467
      %v1043 = vunpack.c.l.b16 %v468
      %v1044 = vunpack.c.h.b16 %v468
      %v1045 = vunpack.c.l.b16 %v469
      %v1046 = vunpack.c.h.b16 %v469
      %v1047 = vunpack.c.l.b16 %v470
      %v1048 = vunpack.c.h.b16 %v470
      %v1049 = vunpack.c.l.b16 %v471
      %v1050 = vunpack.c.h.b16 %v471
      %v1051 = vunpack.c.l.b16 %v472
      %v1052 = vunpack.c.l.b16 %v473
      %v1053 = vunpack.c.h.b16 %v473
      %v1054 = vunpack.c.l.b16 %v474
      %v1055 = vunpack.c.h.b16 %v474
      %v1056 = vunpack.c.l.b16 %v475
      %v1057 = vunpack.c.h.b16 %v475
      %v1058 = vunpack.c.l.b16 %v476
      %v1059 = vunpack.c.h.b16 %v476
      %v1060 = vunpack.c.l.b16 %v477
      %v1061 = vunpack.c.l.b16 %v478
      %v1062 = vunpack.c.h.b16 %v478
      %v1063 = vunpack.c.l.b16 %v479
      %v1064 = vunpack.c.h.b16 %v479
      %v1065 = vunpack.c.l.b16 %v480
      %v1066 = vunpack.c.h.b16 %v480
      %v1067 = vunpack.c.l.b16 %v481
      %v1068 = vunpack.c.h.b16 %v481
      %v1069 = vunpack.c.l.b16 %v482
      %v1070 = vunpack.c.l.b16 %v483
      %v1071 = vunpack.c.h.b16 %v483
      %v1072 = vunpack.c.l.b16 %v484
      %v1073 = vunpack.c.h.b16 %v484
      %v1074 = vunpack.c.l.b16 %v485
      %v1075 = vunpack.c.h.b16 %v485
      %v1076 = vunpack.c.l.b16 %v486
      %v1077 = vunpack.c.h.b16 %v486
      %v1078 = vunpack.c.l.b16 %v487
      %v1079 = vunpack.c.l.b16 %v488
      %v1080 = vunpack.c.h.b16 %v488
      %v1081 = vunpack.c.l.b16 %v489
      %v1082 = vunpack.c.h.b16 %v489
      %v1083 = vunpack.c.l.b16 %v490
      %v1084 = vunpack.c.h.b16 %v490
      %v1085 = vunpack.c.l.b16 %v491
      %v1086 = vunpack.c.h.b16 %v491
      %v1087 = vunpack.c.l.b16 %v492
      %v1088 = vunpack.c.l.b16 %v493
      %v1089 = vunpack.c.h.b16 %v493
      %v1090 = vunpack.c.l.b16 %v494
      %v1091 = vunpack.c.h.b16 %v494
      %v1092 = vunpack.c.l.b16 %v495
      %v1093 = vunpack.c.h.b16 %v495
      %v1094 = vunpack.c.l.b16 %v496
      %v1095 = vunpack.c.h.b16 %v496
      %v1096 = vunpack.c.l.b16 %v497
      %v1097 = vpack.c.b16 %v818, %v809
      %v1098 = vpack.c.b16 %v819, %v810
      %v1099 = vpack.c.b16 %v820, %v811
      %v1100 = vpack.c.b16 %v821, %v812
      %v1101 = vpack.c.b16 %v822, %v813
      %v1102 = vpack.c.b16 %v823, %v814
      %v1103 = vpack.c.b16 %v824, %v815
      %v1104 = vpack.c.b16 %v825, %v816
      %v1105 = vpack.c.b16 %v826, %v817
      %v1106 = vpack.c.b16 %v836, %v827
      %v1107 = vpack.c.b16 %v837, %v828
      %v1108 = vpack.c.b16 %v838, %v829
      %v1109 = vpack.c.b16 %v839, %v830
      %v1110 = vpack.c.b16 %v840, %v831
      %v1111 = vpack.c.b16 %v841, %v832
      %v1112 = vpack.c.b16 %v842, %v833
      %v1113 = vpack.c.b16 %v843, %v834
      %v1114 = vpack.c.b16 %v844, %v835
      %v1115 = vpack.c.b16 %v854, %v845
      %v1116 = vpack.c.b16 %v855, %v846
      %v1117 = vpack.c.b16 %v856, %v847
      %v1118 = vpack.c.b16 %v857, %v848
      %v1119 = vpack.c.b16 %v858, %v849
      %v1120 = vpack.c.b16 %v859, %v850
      %v1121 = vpack.c.b16 %v860, %v851
      %v1122 = vpack.c.b16 %v861, %v852
      %v1123 = vpack.c.b16 %v862, %v853
      %v1124 = vpack.c.b16 %v872, %v863
      %v1125 = vpack.c.b16 %v873, %v864
      %v1126 = vpack.c.b16 %v874, %v865
      %v1127 = vpack.c.b16 %v875, %v866
      %v1128 = vpack.c.b16 %v876, %v867
      %v1129 = vpack.c.b16 %v877, %v868
      %v1130 = vpack.c.b16 %v878, %v869
      %v1131 = vpack.c.b16 %v879, %v870
      %v1132 = vpack.c.b16 %v880, %v871
      %v1133 = vpack.c.b16 %v890, %v881
      %v1134 = vpack.c.b16 %v891, %v882
      %v1135 = vpack.c.b16 %v892, %v883
      %v1136 = vpack.c.b16 %v893, %v884
      %v1137 = vpack.c.b16 %v894, %v885
      %v1138 = vpack.c.b16 %v895, %v886
      %v1139 = vpack.c.b16 %v896, %v887
      %v1140 = vpack.c.b16 %v897, %v888
      %v1141 = vpack.c.b16 %v898, %v889
      %v1142 = vpack.c.b16 %v908, %v899
      %v1143 = vpack.c.b16 %v909, %v900
      %v1144 = vpack.c.b16 %v910, %v901
      %v1145 = vpack.c.b16 %v911, %v902
      %v1146 = vpack.c.b16 %v912, %v903
      %v1147 = vpack.c.b16 %v913, %v904
      %v1148 = vpack.c.b16 %v914, %v905
      %v1149 = vpack.c.b16 %v915, %v906
      %v1150 = vpack.c.b16 %v916, %v907
      %v1151 = vpack.c.b16 %v926, %v917
      %v1152 = vpack.c.b16 %v927, %v918
      %v1153 = vpack.c.b16 %v928, %v919
      %v1154 = vpack.c.b16 %v929, %v920
      %v1155 = vpack.c.b16 %v930, %v921
      %v1156 = vpack.c.b16 %v931, %v922
      %v1157 = vpack.c.b16 %v932, %v923
      %v1158 = vpack.c.b16 %v933, %v924
      %v1159 = vpack.c.b16 %v934, %v925
      %v1160 = vpack.c.b16 %v944, %v935
      %v1161 = vpack.c.b16 %v945, %v936
      %v1162 = vpack.c.b16 %v946, %v937
      %v1163 = vpack.c.b16 %v947, %v938
      %v1164 = vpack.c.b16 %v948, %v939
      %v1165 = vpack.c.b16 %v949, %v940
      %v1166 = vpack.c.b16 %v950, %v941
      %v1167 = vpack.c.b16 %v951, %v942
      %v1168 = vpack.c.b16 %v952, %v943
      %v1169 = vpack.c.b16 %v962, %v953
      %v1170 = vpack.c.b16 %v963, %v954
      %v1171 = vpack.c.b16 %v964, %v955
      %v1172 = vpack.c.b16 %v965, %v956
      %v1173 = vpack.c.b16 %v966, %v957
      %v1174 = vpack.c.b16 %v967, %v958
      %v1175 = vpack.c.b16 %v968, %v959
      %v1176 = vpack.c.b16 %v969, %v960
      %v1177 = vpack.c.b16 %v970, %v961
      %v1178 = vpack.c.b16 %v980, %v971
      %v1179 = vpack.c.b16 %v981, %v972
      %v1180 = vpack.c.b16 %v982, %v973
      %v1181 = vpack.c.b16 %v983, %v974
      %v1182 = vpack.c.b16 %v984, %v975
      %v1183 = vpack.c.b16 %v985, %v976
      %v1184 = vpack.c.b16 %v986, %v977
      %v1185 = vpack.c.b16 %v987, %v978
      %v1186 = vpack.c.b16 %v988, %v979
      %v1187 = vpack.c.b16 %v998, %v989
      %v1188 = vpack.c.b16 %v999, %v990
      %v1189 = vpack.c.b16 %v1000, %v991
      %v1190 = vpack.c.b16 %v1001, %v992
      %v1191 = vpack.c.b16 %v1002, %v993
      %v1192 = vpack.c.b16 %v1003, %v994
      %v1193 = vpack.c.b16 %v1004, %v995
      %v1194 = vpack.c.b16 %v1005, %v996
      %v1195 = vpack.c.b16 %v1006, %v997
      %v1196 = vpack.c.b16 %v1016, %v1007
      %v1197 = vpack.c.b16 %v1017, %v1008
      %v1198 = vpack.c.b16 %v1018, %v1009
      %v1199 = vpack.c.b16 %v1019, %v1010
      %v1200 = vpack.c.b16 %v1020, %v1011
      %v1201 = vpack.c.b16 %v1021, %v1012
      %v1202 = vpack.c.b16 %v1022, %v1013
      %v1203 = vpack.c.b16 %v1023, %v1014
      %v1204 = vpack.c.b16 %v1024, %v1015
      %v1205 = vpack.c.b16 %v1034, %v1025
      %v1206 = vpack.c.b16 %v1035, %v1026
      %v1207 = vpack.c.b16 %v1036, %v1027
      %v1208 = vpack.c.b16 %v1037, %v1028
      %v1209 = vpack.c.b16 %v1038, %v1029
      %v1210 = vpack.c.b16 %v1039, %v1030
      %v1211 = vpack.c.b16 %v1040, %v1031
      %v1212 = vpack.c.b16 %v1041, %v1032
      %v1213 = vpack.c.b16 %v1042, %v1033
      %v1214 = vpack.c.b16 %v1052, %v1043
      %v1215 = vpack.c.b16 %v1053, %v1044
      %v1216 = vpack.c.b16 %v1054, %v1045
      %v1217 = vpack.c.b16 %v1055, %v1046
      %v1218 = vpack.c.b16 %v1056, %v1047
      %v1219 = vpack.c.b16 %v1057, %v1048
      %v1220 = vpack.c.b16 %v1058, %v1049
      %v1221 = vpack.c.b16 %v1059, %v1050
      %v1222 = vpack.c.b16 %v1060, %v1051
      %v1223 = vpack.c.b16 %v1070, %v1061
      %v1224 = vpack.c.b16 %v1071, %v1062
      %v1225 = vpack.c.b16 %v1072, %v1063
      %v1226 = vpack.c.b16 %v1073, %v1064
      %v1227 = vpack.c.b16 %v1074, %v1065
      %v1228 = vpack.c.b16 %v1075, %v1066
      %v1229 = vpack.c.b16 %v1076, %v1067
      %v1230 = vpack.c.b16 %v1077, %v1068
      %v1231 = vpack.c.b16 %v1078, %v1069
      %v1232 = vpack.c.b16 %v1088, %v1079
      %v1233 = vpack.c.b16 %v1089, %v1080
      %v1234 = vpack.c.b16 %v1090, %v1081
      %v1235 = vpack.c.b16 %v1091, %v1082
      %v1236 = vpack.c.b16 %v1092, %v1083
      %v1237 = vpack.c.b16 %v1093, %v1084
      %v1238 = vpack.c.b16 %v1094, %v1085
      %v1239 = vpack.c.b16 %v1095, %v1086
      %v1240 = vpack.c.b16 %v1096, %v1087
      %v1529 = vunpack.c.l.b16 %v498
      %v1530 = vunpack.c.l.b16 %v499
      %v1531 = vunpack.c.l.b16 %v500
      %v1532 = vunpack.c.l.b16 %v501
      %v1533 = vunpack.c.l.b16 %v502
      %v1534 = vunpack.c.l.b16 %v503
      %v1535 = vunpack.c.l.b16 %v504
      %v1536 = vunpack.c.l.b16 %v505
      %v1537 = vunpack.c.l.b16 %v506
      %v1538 = vunpack.c.l.b16 %v507
      %v1539 = vunpack.c.l.b16 %v508
      %v1540 = vunpack.c.l.b16 %v509
      %v1541 = vunpack.c.l.b16 %v510
      %v1542 = vunpack.c.l.b16 %v511
      %v1543 = vunpack.c.l.b16 %v512
      %v1544 = vunpack.c.l.b16 %v513
      %v1545 = vunpack.c.l.b16 %v514
      %v1546 = vunpack.c.l.b16 %v515
      %v1547 = vunpack.c.l.b16 %v516
      %v1548 = vunpack.c.l.b16 %v517
      %v1549 = vunpack.c.l.b16 %v518
      %v1550 = vunpack.c.l.b16 %v519
      %v1551 = vunpack.c.l.b16 %v520
      %v1552 = vunpack.c.l.b16 %v521
      %v1553 = vunpack.c.l.b16 %v522
      %v1554 = vunpack.c.l.b16 %v523
      %v1555 = vunpack.c.l.b16 %v524
      %v1556 = vunpack.c.l.b16 %v525
      %v1557 = vunpack.c.l.b16 %v526
      %v1558 = vunpack.c.l.b16 %v527
      %v1559 = vunpack.c.l.b16 %v528
      %v1560 = vunpack.c.l.b16 %v529
      %v1561 = vunpack.c.l.b16 %v530
      %v1562 = vunpack.c.l.b16 %v531
      %v1563 = vunpack.c.l.b16 %v532
      %v1564 = vunpack.c.l.b16 %v533
      %v1565 = vunpack.c.l.b16 %v534
      %v1566 = vunpack.c.l.b16 %v535
      %v1567 = vunpack.c.l.b16 %v536
      %v1568 = vunpack.c.l.b16 %v537
      %v1569 = vunpack.c.l.b16 %v538
      %v1570 = vunpack.c.l.b16 %v539
      %v1571 = vunpack.c.l.b16 %v540
      %v1572 = vunpack.c.l.b16 %v541
      %v1573 = vunpack.c.l.b16 %v542
      %v1574 = vunpack.c.l.b16 %v543
      %v1575 = vunpack.c.l.b16 %v544
      %v1576 = vunpack.c.l.b16 %v545
      %v1577 = vunpack.c.l.b16 %v546
      %v1578 = vunpack.c.l.b16 %v547
      %v1579 = vunpack.c.l.b16 %v548
      %v1580 = vunpack.c.l.b16 %v549
      %v1581 = vunpack.c.l.b16 %v550
      %v1582 = vunpack.c.l.b16 %v551
      %v1583 = vunpack.c.l.b16 %v552
      %v1584 = vunpack.c.l.b16 %v553
      %v1585 = vunpack.c.l.b16 %v554
      %v1586 = vunpack.c.l.b16 %v555
      %v1587 = vunpack.c.l.b16 %v556
      %v1588 = vunpack.c.l.b16 %v557
      %v1589 = vunpack.c.l.b16 %v558
      %v1590 = vunpack.c.l.b16 %v559
      %v1591 = vunpack.c.l.b16 %v560
      %v1592 = vunpack.c.l.b16 %v561
      %v1593 = vunpack.c.l.b16 %v562
      %v1594 = vunpack.c.l.b16 %v563
      %v1595 = vunpack.c.l.b16 %v564
      %v1596 = vunpack.c.l.b16 %v565
      %v1597 = vunpack.c.l.b16 %v566
      %v1598 = vunpack.c.l.b16 %v567
      %v1599 = vunpack.c.l.b16 %v568
      %v1600 = vunpack.c.l.b16 %v569
      %v1601 = vunpack.c.l.b16 %v570
      %v1602 = vunpack.c.l.b16 %v571
      %v1603 = vunpack.c.l.b16 %v572
      %v1604 = vunpack.c.l.b16 %v573
      %v1605 = vunpack.c.l.b16 %v574
      %v1606 = vunpack.c.l.b16 %v575
      %v1607 = vunpack.c.l.b16 %v576
      %v1608 = vunpack.c.l.b16 %v577
      %v1609 = vunpack.c.l.b16 %v578
      %v1610 = vunpack.c.l.b16 %v579
      %v1611 = vunpack.c.l.b16 %v580
      %v1612 = vunpack.c.l.b16 %v581
      %v1613 = vunpack.c.l.b16 %v582
      %v1614 = vunpack.c.l.b16 %v583
      %v1615 = vunpack.c.l.b16 %v584
      %v1616 = vunpack.c.l.b16 %v585
      %v1617 = vunpack.c.l.b16 %v586
      %v1618 = vunpack.c.l.b16 %v587
      %v1619 = vunpack.c.l.b16 %v588
      %v1620 = vunpack.c.l.b16 %v589
      %v1621 = vunpack.c.l.b16 %v590
      %v1622 = vunpack.c.l.b16 %v591
      %v1623 = vunpack.c.l.b16 %v592
      %v1624 = vunpack.c.l.b16 %v593
      %v1625 = vunpack.c.l.b16 %v594
      %v1626 = vunpack.c.l.b16 %v595
      %v1627 = vunpack.c.l.b16 %v596
      %v1628 = vunpack.c.l.b16 %v597
      %v1629 = vunpack.c.l.b16 %v598
      %v1630 = vunpack.c.l.b16 %v599
      %v1631 = vunpack.c.l.b16 %v600
      %v1632 = vunpack.c.l.b16 %v601
      %v1633 = vunpack.c.l.b16 %v602
      %v1634 = vunpack.c.l.b16 %v603
      %v1635 = vunpack.c.l.b16 %v604
      %v1636 = vunpack.c.l.b16 %v605
      %v1637 = vunpack.c.l.b16 %v606
      %v1638 = vunpack.c.l.b16 %v607
      %v1639 = vunpack.c.l.b16 %v608
      %v1640 = vunpack.c.l.b16 %v609
      %v1641 = vunpack.c.l.b16 %v610
      %v1642 = vunpack.c.l.b16 %v611
      %v1643 = vunpack.c.l.b16 %v612
      %v1644 = vunpack.c.l.b16 %v613
      %v1645 = vunpack.c.l.b16 %v614
      %v1646 = vunpack.c.l.b16 %v615
      %v1647 = vunpack.c.l.b16 %v616
      %v1648 = vunpack.c.l.b16 %v617
      %v1649 = vunpack.c.l.b16 %v618
      %v1650 = vunpack.c.l.b16 %v619
      %v1651 = vunpack.c.l.b16 %v620
      %v1652 = vunpack.c.l.b16 %v621
      %v1653 = vunpack.c.l.b16 %v622
      %v1654 = vunpack.c.l.b16 %v623
      %v1655 = vunpack.c.l.b16 %v624
      %v1656 = vunpack.c.l.b16 %v625
      %v1657 = vunpack.c.l.b16 %v626
      %v1658 = vunpack.c.l.b16 %v627
      %v1659 = vunpack.c.l.b16 %v628
      %v1660 = vunpack.c.l.b16 %v629
      %v1661 = vunpack.c.l.b16 %v630
      %v1662 = vunpack.c.l.b16 %v631
      %v1663 = vunpack.c.l.b16 %v632
      %v1664 = vunpack.c.l.b16 %v633
      %v1665 = vunpack.c.l.b16 %v634
      %v1666 = vunpack.c.l.b16 %v635
      %v1667 = vunpack.c.l.b16 %v636
      %v1668 = vunpack.c.l.b16 %v637
      %v1669 = vunpack.c.l.b16 %v638
      %v1670 = vunpack.c.l.b16 %v639
      %v1671 = vunpack.c.l.b16 %v640
      %v1672 = vunpack.c.l.b16 %v641
      %v1673 = vpack.c.b16 %v1530, %v1529
      %v1674 = vpack.c.b16 %v1532, %v1531
      %v1675 = vpack.c.b16 %v1534, %v1533
      %v1676 = vpack.c.b16 %v1536, %v1535
      %v1677 = vpack.c.b16 %v1538, %v1537
      %v1678 = vpack.c.b16 %v1540, %v1539
      %v1679 = vpack.c.b16 %v1542, %v1541
      %v1680 = vpack.c.b16 %v1544, %v1543
      %v1681 = vpack.c.b16 %v1546, %v1545
      %v1682 = vpack.c.b16 %v1548, %v1547
      %v1683 = vpack.c.b16 %v1550, %v1549
      %v1684 = vpack.c.b16 %v1552, %v1551
      %v1685 = vpack.c.b16 %v1554, %v1553
      %v1686 = vpack.c.b16 %v1556, %v1555
      %v1687 = vpack.c.b16 %v1558, %v1557
      %v1688 = vpack.c.b16 %v1560, %v1559
      %v1689 = vpack.c.b16 %v1562, %v1561
      %v1690 = vpack.c.b16 %v1564, %v1563
      %v1691 = vpack.c.b16 %v1566, %v1565
      %v1692 = vpack.c.b16 %v1568, %v1567
      %v1693 = vpack.c.b16 %v1570, %v1569
      %v1694 = vpack.c.b16 %v1572, %v1571
      %v1695 = vpack.c.b16 %v1574, %v1573
      %v1696 = vpack.c.b16 %v1576, %v1575
      %v1697 = vpack.c.b16 %v1578, %v1577
      %v1698 = vpack.c.b16 %v1580, %v1579
      %v1699 = vpack.c.b16 %v1582, %v1581
      %v1700 = vpack.c.b16 %v1584, %v1583
      %v1701 = vpack.c.b16 %v1586, %v1585
      %v1702 = vpack.c.b16 %v1588, %v1587
      %v1703 = vpack.c.b16 %v1590, %v1589
      %v1704 = vpack.c.b16 %v1592, %v1591
      %v1705 = vpack.c.b16 %v1594, %v1593
      %v1706 = vpack.c.b16 %v1596, %v1595
      %v1707 = vpack.c.b16 %v1598, %v1597
      %v1708 = vpack.c.b16 %v1600, %v1599
      %v1709 = vpack.c.b16 %v1602, %v1601
      %v1710 = vpack.c.b16 %v1604, %v1603
      %v1711 = vpack.c.b16 %v1606, %v1605
      %v1712 = vpack.c.b16 %v1608, %v1607
      %v1713 = vpack.c.b16 %v1610, %v1609
      %v1714 = vpack.c.b16 %v1612, %v1611
      %v1715 = vpack.c.b16 %v1614, %v1613
      %v1716 = vpack.c.b16 %v1616, %v1615
      %v1717 = vpack.c.b16 %v1618, %v1617
      %v1718 = vpack.c.b16 %v1620, %v1619
      %v1719 = vpack.c.b16 %v1622, %v1621
      %v1720 = vpack.c.b16 %v1624, %v1623
      %v1721 = vpack.c.b16 %v1626, %v1625
      %v1722 = vpack.c.b16 %v1628, %v1627
      %v1723 = vpack.c.b16 %v1630, %v1629
      %v1724 = vpack.c.b16 %v1632, %v1631
      %v1725 = vpack.c.b16 %v1634, %v1633
      %v1726 = vpack.c.b16 %v1636, %v1635
      %v1727 = vpack.c.b16 %v1638, %v1637
      %v1728 = vpack.c.b16 %v1640, %v1639
      %v1729 = vpack.c.b16 %v1642, %v1641
      %v1730 = vpack.c.b16 %v1644, %v1643
      %v1731 = vpack.c.b16 %v1646, %v1645
      %v1732 = vpack.c.b16 %v1648, %v1647
      %v1733 = vpack.c.b16 %v1650, %v1649
      %v1734 = vpack.c.b16 %v1652, %v1651
      %v1735 = vpack.c.b16 %v1654, %v1653
      %v1736 = vpack.c.b16 %v1656, %v1655
      %v1737 = vpack.c.b16 %v1658, %v1657
      %v1738 = vpack.c.b16 %v1660, %v1659
      %v1739 = vpack.c.b16 %v1662, %v1661
      %v1740 = vpack.c.b16 %v1664, %v1663
      %v1741 = vpack.c.b16 %v1666, %v1665
      %v1742 = vpack.c.b16 %v1668, %v1667
      %v1743 = vpack.c.b16 %v1670, %v1669
      %v1744 = vpack.c.b16 %v1672, %v1671
      %1817 = vmatprep.subr.bf16.mxu0 0
      %1818 = vmatpush1.bf16.msra.mxu0 %v1673
      %1819 = vmatprep.subr.bf16.mxu0 0
      %1820 = vmatpush1.bf16.msra.mxu0 %v1674
      %1821 = vmatprep.subr.bf16.mxu0 0
      %1822 = vmatpush1.bf16.msra.mxu0 %v1675
      %1823 = vmatprep.subr.bf16.mxu0 0
      %1824 = vmatpush1.bf16.msra.mxu0 %v1676
      %1825 = vmatprep.subr.bf16.mxu0 0
      %1826 = vmatpush1.bf16.msra.mxu0 %v1677
      %1827 = vmatprep.subr.bf16.mxu0 0
      %1828 = vmatpush1.bf16.msra.mxu0 %v1678
      %1829 = vmatprep.subr.bf16.mxu0 0
      %1830 = vmatpush1.bf16.msra.mxu0 %v1679
      %1831 = vmatprep.subr.bf16.mxu0 0
      %1832 = vmatpush1.bf16.msra.mxu0 %v1680
      %1833 = vmatprep.subr.bf16.mxu0 0
      %1834 = vmatpush1.bf16.msra.mxu0 %v1681
      %1835 = vmatprep.subr.bf16.mxu0 0
      %1836 = vmatpush1.bf16.msra.mxu0 %v1682
      %1837 = vmatprep.subr.bf16.mxu0 0
      %1838 = vmatpush1.bf16.msra.mxu0 %v1683
      %1839 = vmatprep.subr.bf16.mxu0 0
      %1840 = vmatpush1.bf16.msra.mxu0 %v1684
      %1841 = vmatprep.subr.bf16.mxu0 0
      %1842 = vmatpush1.bf16.msra.mxu0 %v1685
      %1843 = vmatprep.subr.bf16.mxu0 0
      %1844 = vmatpush1.bf16.msra.mxu0 %v1686
      %1845 = vmatprep.subr.bf16.mxu0 0
      %1846 = vmatpush1.bf16.msra.mxu0 %v1687
      %1847 = vmatprep.subr.bf16.mxu0 0
      %1848 = vmatpush1.bf16.msra.mxu0 %v1688
      %1849 = vmatprep.mubr.bf16.mxu0 %v1098
      %1850 = vmatmul.mubr.bf16.gmra.mrb[0].mxu0 %v1097
      %v1851 = vpop.f32.mrb[0].mxu0
      %v1852 = vadd.f32 %v647, %v1851
      %v1853 = vpop.f32.mrb[0].mxu0
      %v1854 = vpop.f32.mrb[0].mxu0
      %v1855 = vadd.f32 %v647, %v1854
      %v1856 = vpop.f32.mrb[0].mxu0
      %1857 = vmatprep.mubr.bf16.mxu0 %v1107
      %1858 = vmatmul.mubr.bf16.gmra.mrb[0].mxu0 %v1106
      %v1859 = vpop.f32.mrb[0].mxu0
      %v1860 = vadd.f32 %v647, %v1859
      %v1861 = vpop.f32.mrb[0].mxu0
      %v1862 = vpop.f32.mrb[0].mxu0
      %v1863 = vadd.f32 %v647, %v1862
      %v1864 = vpop.f32.mrb[0].mxu0
      %1865 = vmatprep.mubr.bf16.mxu0 %v1116
      %1866 = vmatmul.mubr.bf16.gmra.mrb[0].mxu0 %v1115
      %v1867 = vpop.f32.mrb[0].mxu0
      %v1868 = vadd.f32 %v647, %v1867
      %v1869 = vpop.f32.mrb[0].mxu0
      %v1870 = vpop.f32.mrb[0].mxu0
      %v1871 = vadd.f32 %v647, %v1870
      %v1872 = vpop.f32.mrb[0].mxu0
      %1873 = vmatprep.mubr.bf16.mxu0 %v1125
      %1874 = vmatmul.mubr.bf16.gmra.mrb[0].mxu0 %v1124
      %v1875 = vpop.f32.mrb[0].mxu0
      %v1876 = vadd.f32 %v647, %v1875
      %v1877 = vpop.f32.mrb[0].mxu0
      %v1878 = vpop.f32.mrb[0].mxu0
      %v1879 = vadd.f32 %v647, %v1878
      %v1880 = vpop.f32.mrb[0].mxu0
      %1881 = vmatprep.mubr.bf16.mxu0 %v1134
      %1882 = vmatmul.mubr.bf16.gmra.mrb[0].mxu0 %v1133
      %v1883 = vpop.f32.mrb[0].mxu0
      %v1884 = vadd.f32 %v647, %v1883
      %v1885 = vpop.f32.mrb[0].mxu0
      %v1886 = vpop.f32.mrb[0].mxu0
      %v1887 = vadd.f32 %v647, %v1886
      %v1888 = vpop.f32.mrb[0].mxu0
      %1889 = vmatprep.mubr.bf16.mxu0 %v1143
      %1890 = vmatmul.mubr.bf16.gmra.mrb[0].mxu0 %v1142
      %v1891 = vpop.f32.mrb[0].mxu0
      %v1892 = vadd.f32 %v647, %v1891
      %v1893 = vpop.f32.mrb[0].mxu0
      %v1894 = vpop.f32.mrb[0].mxu0
      %v1895 = vadd.f32 %v647, %v1894
      %v1896 = vpop.f32.mrb[0].mxu0
      %1897 = vmatprep.mubr.bf16.mxu0 %v1152
      %1898 = vmatmul.mubr.bf16.gmra.mrb[0].mxu0 %v1151
      %v1899 = vpop.f32.mrb[0].mxu0
      %v1900 = vadd.f32 %v647, %v1899
      %v1901 = vpop.f32.mrb[0].mxu0
      %v1902 = vpop.f32.mrb[0].mxu0
      %v1903 = vadd.f32 %v647, %v1902
      %v1904 = vpop.f32.mrb[0].mxu0
      %1905 = vmatprep.mubr.bf16.mxu0 %v1161
      %1906 = vmatmul.mubr.bf16.gmra.mrb[0].mxu0 %v1160
      %v1907 = vpop.f32.mrb[0].mxu0
      %v1908 = vadd.f32 %v647, %v1907
      %v1909 = vpop.f32.mrb[0].mxu0
      %v1910 = vpop.f32.mrb[0].mxu0
      %v1911 = vadd.f32 %v647, %v1910
      %v1912 = vpop.f32.mrb[0].mxu0
      %1913 = vmatprep.mubr.bf16.mxu0 %v1170
      %1914 = vmatmul.mubr.bf16.gmra.mrb[0].mxu0 %v1169
      %v1915 = vpop.f32.mrb[0].mxu0
      %v1916 = vadd.f32 %v647, %v1915
      %v1917 = vpop.f32.mrb[0].mxu0
      %v1918 = vpop.f32.mrb[0].mxu0
      %v1919 = vadd.f32 %v647, %v1918
      %v1920 = vpop.f32.mrb[0].mxu0
      %1921 = vmatprep.mubr.bf16.mxu0 %v1179
      %1922 = vmatmul.mubr.bf16.gmra.mrb[0].mxu0 %v1178
      %v1923 = vpop.f32.mrb[0].mxu0
      %v1924 = vadd.f32 %v647, %v1923
      %v1925 = vpop.f32.mrb[0].mxu0
      %v1926 = vpop.f32.mrb[0].mxu0
      %v1927 = vadd.f32 %v647, %v1926
      %v1928 = vpop.f32.mrb[0].mxu0
      %1929 = vmatprep.mubr.bf16.mxu0 %v1188
      %1930 = vmatmul.mubr.bf16.gmra.mrb[0].mxu0 %v1187
      %v1931 = vpop.f32.mrb[0].mxu0
      %v1932 = vadd.f32 %v647, %v1931
      %v1933 = vpop.f32.mrb[0].mxu0
      %v1934 = vpop.f32.mrb[0].mxu0
      %v1935 = vadd.f32 %v647, %v1934
      %v1936 = vpop.f32.mrb[0].mxu0
      %1937 = vmatprep.mubr.bf16.mxu0 %v1197
      %1938 = vmatmul.mubr.bf16.gmra.mrb[0].mxu0 %v1196
      %v1939 = vpop.f32.mrb[0].mxu0
      %v1940 = vadd.f32 %v647, %v1939
      %v1941 = vpop.f32.mrb[0].mxu0
      %v1942 = vpop.f32.mrb[0].mxu0
      %v1943 = vadd.f32 %v647, %v1942
      %v1944 = vpop.f32.mrb[0].mxu0
      %1945 = vmatprep.mubr.bf16.mxu0 %v1206
      %1946 = vmatmul.mubr.bf16.gmra.mrb[0].mxu0 %v1205
      %v1947 = vpop.f32.mrb[0].mxu0
      %v1948 = vadd.f32 %v647, %v1947
      %v1949 = vpop.f32.mrb[0].mxu0
      %v1950 = vpop.f32.mrb[0].mxu0
      %v1951 = vadd.f32 %v647, %v1950
      %v1952 = vpop.f32.mrb[0].mxu0
      %1953 = vmatprep.mubr.bf16.mxu0 %v1215
      %1954 = vmatmul.mubr.bf16.gmra.mrb[0].mxu0 %v1214
      %v1955 = vpop.f32.mrb[0].mxu0
      %v1956 = vadd.f32 %v647, %v1955
      %v1957 = vpop.f32.mrb[0].mxu0
      %v1958 = vpop.f32.mrb[0].mxu0
      %v1959 = vadd.f32 %v647, %v1958
      %v1960 = vpop.f32.mrb[0].mxu0
      %1961 = vmatprep.mubr.bf16.mxu0 %v1224
      %1962 = vmatmul.mubr.bf16.gmra.mrb[0].mxu0 %v1223
      %v1963 = vpop.f32.mrb[0].mxu0
      %v1964 = vadd.f32 %v647, %v1963
      %v1965 = vpop.f32.mrb[0].mxu0
      %v1966 = vpop.f32.mrb[0].mxu0
      %v1967 = vadd.f32 %v647, %v1966
      %v1968 = vpop.f32.mrb[0].mxu0
      %1969 = vmatprep.mubr.bf16.mxu0 %v1233
      %1970 = vmatmul.mubr.bf16.gmra.mrb[0].mxu0 %v1232
      %v1971 = vpop.f32.mrb[0].mxu0
      %v1972 = vadd.f32 %v647, %v1971
      %v1973 = vpop.f32.mrb[0].mxu0
      %v1974 = vpop.f32.mrb[0].mxu0
      %v1975 = vadd.f32 %v647, %v1974
      %v1976 = vpop.f32.mrb[0].mxu0
      %1977 = vdwg.mxu0
      %1978 = vmatprep.subr.bf16.mxu0 0
      %1979 = vmatpush1.bf16.msra.mxu0 %v1689
      %1980 = vmatprep.subr.bf16.mxu0 0
      %1981 = vmatpush1.bf16.msra.mxu0 %v1690
      %1982 = vmatprep.subr.bf16.mxu0 0
      %1983 = vmatpush1.bf16.msra.mxu0 %v1691
      %1984 = vmatprep.subr.bf16.mxu0 0
      %1985 = vmatpush1.bf16.msra.mxu0 %v1692
      %1986 = vmatprep.subr.bf16.mxu0 0
      %1987 = vmatpush1.bf16.msra.mxu0 %v1693
      %1988 = vmatprep.subr.bf16.mxu0 0
      %1989 = vmatpush1.bf16.msra.mxu0 %v1694
      %1990 = vmatprep.subr.bf16.mxu0 0
      %1991 = vmatpush1.bf16.msra.mxu0 %v1695
      %1992 = vmatprep.subr.bf16.mxu0 0
      %1993 = vmatpush1.bf16.msra.mxu0 %v1696
      %1994 = vmatprep.subr.bf16.mxu0 0
      %1995 = vmatpush1.bf16.msra.mxu0 %v1697
      %1996 = vmatprep.subr.bf16.mxu0 0
      %1997 = vmatpush1.bf16.msra.mxu0 %v1698
      %1998 = vmatprep.subr.bf16.mxu0 0
      %1999 = vmatpush1.bf16.msra.mxu0 %v1699
      %2000 = vmatprep.subr.bf16.mxu0 0
      %2001 = vmatpush1.bf16.msra.mxu0 %v1700
      %2002 = vmatprep.subr.bf16.mxu0 0
      %2003 = vmatpush1.bf16.msra.mxu0 %v1701
      %2004 = vmatprep.subr.bf16.mxu0 0
      %2005 = vmatpush1.bf16.msra.mxu0 %v1702
      %2006 = vmatprep.subr.bf16.mxu0 0
      %2007 = vmatpush1.bf16.msra.mxu0 %v1703
      %2008 = vmatprep.subr.bf16.mxu0 0
      %2009 = vmatpush1.bf16.msra.mxu0 %v1704
      %2010 = vmatprep.mubr.bf16.mxu0 %v1100
      %2011 = vmatmul.mubr.bf16.gmra.mrb[0].mxu0 %v1099
      %v2012 = vpop.f32.mrb[0].mxu0
      %v2013 = vadd.f32 %v1852, %v2012
      %v2014 = vpop.f32.mrb[0].mxu0
      %v2015 = vpop.f32.mrb[0].mxu0
      %v2016 = vadd.f32 %v1855, %v2015
      %v2017 = vpop.f32.mrb[0].mxu0
      %2018 = vmatprep.mubr.bf16.mxu0 %v1109
      %2019 = vmatmul.mubr.bf16.gmra.mrb[0].mxu0 %v1108
      %v2020 = vpop.f32.mrb[0].mxu0
      %v2021 = vadd.f32 %v1860, %v2020
      %v2022 = vpop.f32.mrb[0].mxu0
      %v2023 = vpop.f32.mrb[0].mxu0
      %v2024 = vadd.f32 %v1863, %v2023
      %v2025 = vpop.f32.mrb[0].mxu0
      %2026 = vmatprep.mubr.bf16.mxu0 %v1118
      %2027 = vmatmul.mubr.bf16.gmra.mrb[0].mxu0 %v1117
      %v2028 = vpop.f32.mrb[0].mxu0
      %v2029 = vadd.f32 %v1868, %v2028
      %v2030 = vpop.f32.mrb[0].mxu0
      %v2031 = vpop.f32.mrb[0].mxu0
      %v2032 = vadd.f32 %v1871, %v2031
      %v2033 = vpop.f32.mrb[0].mxu0
      %2034 = vmatprep.mubr.bf16.mxu0 %v1127
      %2035 = vmatmul.mubr.bf16.gmra.mrb[0].mxu0 %v1126
      %v2036 = vpop.f32.mrb[0].mxu0
      %v2037 = vadd.f32 %v1876, %v2036
      %v2038 = vpop.f32.mrb[0].mxu0
      %v2039 = vpop.f32.mrb[0].mxu0
      %v2040 = vadd.f32 %v1879, %v2039
      %v2041 = vpop.f32.mrb[0].mxu0
      %2042 = vmatprep.mubr.bf16.mxu0 %v1136
      %2043 = vmatmul.mubr.bf16.gmra.mrb[0].mxu0 %v1135
      %v2044 = vpop.f32.mrb[0].mxu0
      %v2045 = vadd.f32 %v1884, %v2044
      %v2046 = vpop.f32.mrb[0].mxu0
      %v2047 = vpop.f32.mrb[0].mxu0
      %v2048 = vadd.f32 %v1887, %v2047
      %v2049 = vpop.f32.mrb[0].mxu0
      %2050 = vmatprep.mubr.bf16.mxu0 %v1145
      %2051 = vmatmul.mubr.bf16.gmra.mrb[0].mxu0 %v1144
      %v2052 = vpop.f32.mrb[0].mxu0
      %v2053 = vadd.f32 %v1892, %v2052
      %v2054 = vpop.f32.mrb[0].mxu0
      %v2055 = vpop.f32.mrb[0].mxu0
      %v2056 = vadd.f32 %v1895, %v2055
      %v2057 = vpop.f32.mrb[0].mxu0
      %2058 = vmatprep.mubr.bf16.mxu0 %v1154
      %2059 = vmatmul.mubr.bf16.gmra.mrb[0].mxu0 %v1153
      %v2060 = vpop.f32.mrb[0].mxu0
      %v2061 = vadd.f32 %v1900, %v2060
      %v2062 = vpop.f32.mrb[0].mxu0
      %v2063 = vpop.f32.mrb[0].mxu0
      %v2064 = vadd.f32 %v1903, %v2063
      %v2065 = vpop.f32.mrb[0].mxu0
      %2066 = vmatprep.mubr.bf16.mxu0 %v1163
      %2067 = vmatmul.mubr.bf16.gmra.mrb[0].mxu0 %v1162
      %v2068 = vpop.f32.mrb[0].mxu0
      %v2069 = vadd.f32 %v1908, %v2068
      %v2070 = vpop.f32.mrb[0].mxu0
      %v2071 = vpop.f32.mrb[0].mxu0
      %v2072 = vadd.f32 %v1911, %v2071
      %v2073 = vpop.f32.mrb[0].mxu0
      %2074 = vmatprep.mubr.bf16.mxu0 %v1172
      %2075 = vmatmul.mubr.bf16.gmra.mrb[0].mxu0 %v1171
      %v2076 = vpop.f32.mrb[0].mxu0
      %v2077 = vadd.f32 %v1916, %v2076
      %v2078 = vpop.f32.mrb[0].mxu0
      %v2079 = vpop.f32.mrb[0].mxu0
      %v2080 = vadd.f32 %v1919, %v2079
      %v2081 = vpop.f32.mrb[0].mxu0
      %2082 = vmatprep.mubr.bf16.mxu0 %v1181
      %2083 = vmatmul.mubr.bf16.gmra.mrb[0].mxu0 %v1180
      %v2084 = vpop.f32.mrb[0].mxu0
      %v2085 = vadd.f32 %v1924, %v2084
      %v2086 = vpop.f32.mrb[0].mxu0
      %v2087 = vpop.f32.mrb[0].mxu0
      %v2088 = vadd.f32 %v1927, %v2087
      %v2089 = vpop.f32.mrb[0].mxu0
      %2090 = vmatprep.mubr.bf16.mxu0 %v1190
      %2091 = vmatmul.mubr.bf16.gmra.mrb[0].mxu0 %v1189
      %v2092 = vpop.f32.mrb[0].mxu0
      %v2093 = vadd.f32 %v1932, %v2092
      %v2094 = vpop.f32.mrb[0].mxu0
      %v2095 = vpop.f32.mrb[0].mxu0
      %v2096 = vadd.f32 %v1935, %v2095
      %v2097 = vpop.f32.mrb[0].mxu0
      %2098 = vmatprep.mubr.bf16.mxu0 %v1199
      %2099 = vmatmul.mubr.bf16.gmra.mrb[0].mxu0 %v1198
      %v2100 = vpop.f32.mrb[0].mxu0
      %v2101 = vadd.f32 %v1940, %v2100
      %v2102 = vpop.f32.mrb[0].mxu0
      %v2103 = vpop.f32.mrb[0].mxu0
      %v2104 = vadd.f32 %v1943, %v2103
      %v2105 = vpop.f32.mrb[0].mxu0
      %2106 = vmatprep.mubr.bf16.mxu0 %v1208
      %2107 = vmatmul.mubr.bf16.gmra.mrb[0].mxu0 %v1207
      %v2108 = vpop.f32.mrb[0].mxu0
      %v2109 = vadd.f32 %v1948, %v2108
      %v2110 = vpop.f32.mrb[0].mxu0
      %v2111 = vpop.f32.mrb[0].mxu0
      %v2112 = vadd.f32 %v1951, %v2111
      %v2113 = vpop.f32.mrb[0].mxu0
      %2114 = vmatprep.mubr.bf16.mxu0 %v1217
      %2115 = vmatmul.mubr.bf16.gmra.mrb[0].mxu0 %v1216
      %v2116 = vpop.f32.mrb[0].mxu0
      %v2117 = vadd.f32 %v1956, %v2116
      %v2118 = vpop.f32.mrb[0].mxu0
      %v2119 = vpop.f32.mrb[0].mxu0
      %v2120 = vadd.f32 %v1959, %v2119
      %v2121 = vpop.f32.mrb[0].mxu0
      %2122 = vmatprep.mubr.bf16.mxu0 %v1226
      %2123 = vmatmul.mubr.bf16.gmra.mrb[0].mxu0 %v1225
      %v2124 = vpop.f32.mrb[0].mxu0
      %v2125 = vadd.f32 %v1964, %v2124
      %v2126 = vpop.f32.mrb[0].mxu0
      %v2127 = vpop.f32.mrb[0].mxu0
      %v2128 = vadd.f32 %v1967, %v2127
      %v2129 = vpop.f32.mrb[0].mxu0
      %2130 = vmatprep.mubr.bf16.mxu0 %v1235
      %2131 = vmatmul.mubr.bf16.gmra.mrb[0].mxu0 %v1234
      %v2132 = vpop.f32.mrb[0].mxu0
      %v2133 = vadd.f32 %v1972, %v2132
      %v2134 = vpop.f32.mrb[0].mxu0
      %v2135 = vpop.f32.mrb[0].mxu0
      %v2136 = vadd.f32 %v1975, %v2135
      %v2137 = vpop.f32.mrb[0].mxu0
      %2138 = vdwg.mxu0
      %2139 = vmatprep.subr.bf16.mxu0 0
      %2140 = vmatpush1.bf16.msra.mxu0 %v1705
      %2141 = vmatprep.subr.bf16.mxu0 0
      %2142 = vmatpush1.bf16.msra.mxu0 %v1706
      %2143 = vmatprep.subr.bf16.mxu0 0
      %2144 = vmatpush1.bf16.msra.mxu0 %v1707
      %2145 = vmatprep.subr.bf16.mxu0 0
      %2146 = vmatpush1.bf16.msra.mxu0 %v1708
      %2147 = vmatprep.subr.bf16.mxu0 0
      %2148 = vmatpush1.bf16.msra.mxu0 %v1709
      %2149 = vmatprep.subr.bf16.mxu0 0
      %2150 = vmatpush1.bf16.msra.mxu0 %v1710
      %2151 = vmatprep.subr.bf16.mxu0 0
      %2152 = vmatpush1.bf16.msra.mxu0 %v1711
      %2153 = vmatprep.subr.bf16.mxu0 0
      %2154 = vmatpush1.bf16.msra.mxu0 %v1712
      %2155 = vmatprep.subr.bf16.mxu0 0
      %2156 = vmatpush1.bf16.msra.mxu0 %v1713
      %2157 = vmatprep.subr.bf16.mxu0 0
      %2158 = vmatpush1.bf16.msra.mxu0 %v1714
      %2159 = vmatprep.subr.bf16.mxu0 0
      %2160 = vmatpush1.bf16.msra.mxu0 %v1715
      %2161 = vmatprep.subr.bf16.mxu0 0
      %2162 = vmatpush1.bf16.msra.mxu0 %v1716
      %2163 = vmatprep.subr.bf16.mxu0 0
      %2164 = vmatpush1.bf16.msra.mxu0 %v1717
      %2165 = vmatprep.subr.bf16.mxu0 0
      %2166 = vmatpush1.bf16.msra.mxu0 %v1718
      %2167 = vmatprep.subr.bf16.mxu0 0
      %2168 = vmatpush1.bf16.msra.mxu0 %v1719
      %2169 = vmatprep.subr.bf16.mxu0 0
      %2170 = vmatpush1.bf16.msra.mxu0 %v1720
      %2171 = vmatprep.mubr.bf16.mxu0 %v1102
      %2172 = vmatmul.mubr.bf16.gmra.mrb[0].mxu0 %v1101
      %v2173 = vpop.f32.mrb[0].mxu0
      %v2174 = vadd.f32 %v2013, %v2173
      %v2175 = vpop.f32.mrb[0].mxu0
      %v2176 = vpop.f32.mrb[0].mxu0
      %v2177 = vadd.f32 %v2016, %v2176
      %v2178 = vpop.f32.mrb[0].mxu0
      %2179 = vmatprep.mubr.bf16.mxu0 %v1111
      %2180 = vmatmul.mubr.bf16.gmra.mrb[0].mxu0 %v1110
      %v2181 = vpop.f32.mrb[0].mxu0
      %v2182 = vadd.f32 %v2021, %v2181
      %v2183 = vpop.f32.mrb[0].mxu0
      %v2184 = vpop.f32.mrb[0].mxu0
      %v2185 = vadd.f32 %v2024, %v2184
      %v2186 = vpop.f32.mrb[0].mxu0
      %2187 = vmatprep.mubr.bf16.mxu0 %v1120
      %2188 = vmatmul.mubr.bf16.gmra.mrb[0].mxu0 %v1119
      %v2189 = vpop.f32.mrb[0].mxu0
      %v2190 = vadd.f32 %v2029, %v2189
      %v2191 = vpop.f32.mrb[0].mxu0
      %v2192 = vpop.f32.mrb[0].mxu0
      %v2193 = vadd.f32 %v2032, %v2192
      %v2194 = vpop.f32.mrb[0].mxu0
      %2195 = vmatprep.mubr.bf16.mxu0 %v1129
      %2196 = vmatmul.mubr.bf16.gmra.mrb[0].mxu0 %v1128
      %v2197 = vpop.f32.mrb[0].mxu0
      %v2198 = vadd.f32 %v2037, %v2197
      %v2199 = vpop.f32.mrb[0].mxu0
      %v2200 = vpop.f32.mrb[0].mxu0
      %v2201 = vadd.f32 %v2040, %v2200
      %v2202 = vpop.f32.mrb[0].mxu0
      %2203 = vmatprep.mubr.bf16.mxu0 %v1138
      %2204 = vmatmul.mubr.bf16.gmra.mrb[0].mxu0 %v1137
      %v2205 = vpop.f32.mrb[0].mxu0
      %v2206 = vadd.f32 %v2045, %v2205
      %v2207 = vpop.f32.mrb[0].mxu0
      %v2208 = vpop.f32.mrb[0].mxu0
      %v2209 = vadd.f32 %v2048, %v2208
      %v2210 = vpop.f32.mrb[0].mxu0
      %2211 = vmatprep.mubr.bf16.mxu0 %v1147
      %2212 = vmatmul.mubr.bf16.gmra.mrb[0].mxu0 %v1146
      %v2213 = vpop.f32.mrb[0].mxu0
      %v2214 = vadd.f32 %v2053, %v2213
      %v2215 = vpop.f32.mrb[0].mxu0
      %v2216 = vpop.f32.mrb[0].mxu0
      %v2217 = vadd.f32 %v2056, %v2216
      %v2218 = vpop.f32.mrb[0].mxu0
      %2219 = vmatprep.mubr.bf16.mxu0 %v1156
      %2220 = vmatmul.mubr.bf16.gmra.mrb[0].mxu0 %v1155
      %v2221 = vpop.f32.mrb[0].mxu0
      %v2222 = vadd.f32 %v2061, %v2221
      %v2223 = vpop.f32.mrb[0].mxu0
      %v2224 = vpop.f32.mrb[0].mxu0
      %v2225 = vadd.f32 %v2064, %v2224
      %v2226 = vpop.f32.mrb[0].mxu0
      %2227 = vmatprep.mubr.bf16.mxu0 %v1165
      %2228 = vmatmul.mubr.bf16.gmra.mrb[0].mxu0 %v1164
      %v2229 = vpop.f32.mrb[0].mxu0
      %v2230 = vadd.f32 %v2069, %v2229
      %v2231 = vpop.f32.mrb[0].mxu0
      %v2232 = vpop.f32.mrb[0].mxu0
      %v2233 = vadd.f32 %v2072, %v2232
      %v2234 = vpop.f32.mrb[0].mxu0
      %2235 = vmatprep.mubr.bf16.mxu0 %v1174
      %2236 = vmatmul.mubr.bf16.gmra.mrb[0].mxu0 %v1173
      %v2237 = vpop.f32.mrb[0].mxu0
      %v2238 = vadd.f32 %v2077, %v2237
      %v2239 = vpop.f32.mrb[0].mxu0
      %v2240 = vpop.f32.mrb[0].mxu0
      %v2241 = vadd.f32 %v2080, %v2240
      %v2242 = vpop.f32.mrb[0].mxu0
      %2243 = vmatprep.mubr.bf16.mxu0 %v1183
      %2244 = vmatmul.mubr.bf16.gmra.mrb[0].mxu0 %v1182
      %v2245 = vpop.f32.mrb[0].mxu0
      %v2246 = vadd.f32 %v2085, %v2245
      %v2247 = vpop.f32.mrb[0].mxu0
      %v2248 = vpop.f32.mrb[0].mxu0
      %v2249 = vadd.f32 %v2088, %v2248
      %v2250 = vpop.f32.mrb[0].mxu0
      %2251 = vmatprep.mubr.bf16.mxu0 %v1192
      %2252 = vmatmul.mubr.bf16.gmra.mrb[0].mxu0 %v1191
      %v2253 = vpop.f32.mrb[0].mxu0
      %v2254 = vadd.f32 %v2093, %v2253
      %v2255 = vpop.f32.mrb[0].mxu0
      %v2256 = vpop.f32.mrb[0].mxu0
      %v2257 = vadd.f32 %v2096, %v2256
      %v2258 = vpop.f32.mrb[0].mxu0
      %2259 = vmatprep.mubr.bf16.mxu0 %v1201
      %2260 = vmatmul.mubr.bf16.gmra.mrb[0].mxu0 %v1200
      %v2261 = vpop.f32.mrb[0].mxu0
      %v2262 = vadd.f32 %v2101, %v2261
      %v2263 = vpop.f32.mrb[0].mxu0
      %v2264 = vpop.f32.mrb[0].mxu0
      %v2265 = vadd.f32 %v2104, %v2264
      %v2266 = vpop.f32.mrb[0].mxu0
      %2267 = vmatprep.mubr.bf16.mxu0 %v1210
      %2268 = vmatmul.mubr.bf16.gmra.mrb[0].mxu0 %v1209
      %v2269 = vpop.f32.mrb[0].mxu0
      %v2270 = vadd.f32 %v2109, %v2269
      %v2271 = vpop.f32.mrb[0].mxu0
      %v2272 = vpop.f32.mrb[0].mxu0
      %v2273 = vadd.f32 %v2112, %v2272
      %v2274 = vpop.f32.mrb[0].mxu0
      %2275 = vmatprep.mubr.bf16.mxu0 %v1219
      %2276 = vmatmul.mubr.bf16.gmra.mrb[0].mxu0 %v1218
      %v2277 = vpop.f32.mrb[0].mxu0
      %v2278 = vadd.f32 %v2117, %v2277
      %v2279 = vpop.f32.mrb[0].mxu0
      %v2280 = vpop.f32.mrb[0].mxu0
      %v2281 = vadd.f32 %v2120, %v2280
      %v2282 = vpop.f32.mrb[0].mxu0
      %2283 = vmatprep.mubr.bf16.mxu0 %v1228
      %2284 = vmatmul.mubr.bf16.gmra.mrb[0].mxu0 %v1227
      %v2285 = vpop.f32.mrb[0].mxu0
      %v2286 = vadd.f32 %v2125, %v2285
      %v2287 = vpop.f32.mrb[0].mxu0
      %v2288 = vpop.f32.mrb[0].mxu0
      %v2289 = vadd.f32 %v2128, %v2288
      %v2290 = vpop.f32.mrb[0].mxu0
      %2291 = vmatprep.mubr.bf16.mxu0 %v1237
      %2292 = vmatmul.mubr.bf16.gmra.mrb[0].mxu0 %v1236
      %v2293 = vpop.f32.mrb[0].mxu0
      %v2294 = vadd.f32 %v2133, %v2293
      %v2295 = vpop.f32.mrb[0].mxu0
      %v2296 = vpop.f32.mrb[0].mxu0
      %v2297 = vadd.f32 %v2136, %v2296
      %v2298 = vpop.f32.mrb[0].mxu0
      %2299 = vdwg.mxu0
      %2300 = vmatprep.subr.bf16.mxu0 0
      %2301 = vmatpush1.bf16.msra.mxu0 %v1721
      %2302 = vmatprep.subr.bf16.mxu0 0
      %2303 = vmatpush1.bf16.msra.mxu0 %v1722
      %2304 = vmatprep.subr.bf16.mxu0 0
      %2305 = vmatpush1.bf16.msra.mxu0 %v1723
      %2306 = vmatprep.subr.bf16.mxu0 0
      %2307 = vmatpush1.bf16.msra.mxu0 %v1724
      %2308 = vmatprep.subr.bf16.mxu0 0
      %2309 = vmatpush1.bf16.msra.mxu0 %v1725
      %2310 = vmatprep.subr.bf16.mxu0 0
      %2311 = vmatpush1.bf16.msra.mxu0 %v1726
      %2312 = vmatprep.subr.bf16.mxu0 0
      %2313 = vmatpush1.bf16.msra.mxu0 %v1727
      %2314 = vmatprep.subr.bf16.mxu0 0
      %2315 = vmatpush1.bf16.msra.mxu0 %v1728
      %2316 = vmatprep.subr.bf16.mxu0 0
      %2317 = vmatpush1.bf16.msra.mxu0 %v1729
      %2318 = vmatprep.subr.bf16.mxu0 0
      %2319 = vmatpush1.bf16.msra.mxu0 %v1730
      %2320 = vmatprep.subr.bf16.mxu0 0
      %2321 = vmatpush1.bf16.msra.mxu0 %v1731
      %2322 = vmatprep.subr.bf16.mxu0 0
      %2323 = vmatpush1.bf16.msra.mxu0 %v1732
      %2324 = vmatprep.subr.bf16.mxu0 0
      %2325 = vmatpush1.bf16.msra.mxu0 %v1733
      %2326 = vmatprep.subr.bf16.mxu0 0
      %2327 = vmatpush1.bf16.msra.mxu0 %v1734
      %2328 = vmatprep.subr.bf16.mxu0 0
      %2329 = vmatpush1.bf16.msra.mxu0 %v1735
      %2330 = vmatprep.subr.bf16.mxu0 0
      %2331 = vmatpush1.bf16.msra.mxu0 %v1736
      %2332 = vmatprep.mubr.bf16.mxu0 %v1104
      %2333 = vmatmul.mubr.bf16.gmra.mrb[0].mxu0 %v1103
      %v2334 = vpop.f32.mrb[0].mxu0
      %v2335 = vadd.f32 %v2174, %v2334
      %v2336 = vpop.f32.mrb[0].mxu0
      %v2337 = vpop.f32.mrb[0].mxu0
      %v2338 = vadd.f32 %v2177, %v2337
      %v2339 = vpop.f32.mrb[0].mxu0
      %2340 = vmatprep.mubr.bf16.mxu0 %v1113
      %2341 = vmatmul.mubr.bf16.gmra.mrb[0].mxu0 %v1112
      %v2342 = vpop.f32.mrb[0].mxu0
      %v2343 = vadd.f32 %v2182, %v2342
      %v2344 = vpop.f32.mrb[0].mxu0
      %v2345 = vpop.f32.mrb[0].mxu0
      %v2346 = vadd.f32 %v2185, %v2345
      %v2347 = vpop.f32.mrb[0].mxu0
      %2348 = vmatprep.mubr.bf16.mxu0 %v1122
      %2349 = vmatmul.mubr.bf16.gmra.mrb[0].mxu0 %v1121
      %v2350 = vpop.f32.mrb[0].mxu0
      %v2351 = vadd.f32 %v2190, %v2350
      %v2352 = vpop.f32.mrb[0].mxu0
      %v2353 = vpop.f32.mrb[0].mxu0
      %v2354 = vadd.f32 %v2193, %v2353
      %v2355 = vpop.f32.mrb[0].mxu0
      %2356 = vmatprep.mubr.bf16.mxu0 %v1131
      %2357 = vmatmul.mubr.bf16.gmra.mrb[0].mxu0 %v1130
      %v2358 = vpop.f32.mrb[0].mxu0
      %v2359 = vadd.f32 %v2198, %v2358
      %v2360 = vpop.f32.mrb[0].mxu0
      %v2361 = vpop.f32.mrb[0].mxu0
      %v2362 = vadd.f32 %v2201, %v2361
      %v2363 = vpop.f32.mrb[0].mxu0
      %2364 = vmatprep.mubr.bf16.mxu0 %v1140
      %2365 = vmatmul.mubr.bf16.gmra.mrb[0].mxu0 %v1139
      %v2366 = vpop.f32.mrb[0].mxu0
      %v2367 = vadd.f32 %v2206, %v2366
      %v2368 = vpop.f32.mrb[0].mxu0
      %v2369 = vpop.f32.mrb[0].mxu0
      %v2370 = vadd.f32 %v2209, %v2369
      %v2371 = vpop.f32.mrb[0].mxu0
      %2372 = vmatprep.mubr.bf16.mxu0 %v1149
      %2373 = vmatmul.mubr.bf16.gmra.mrb[0].mxu0 %v1148
      %v2374 = vpop.f32.mrb[0].mxu0
      %v2375 = vadd.f32 %v2214, %v2374
      %v2376 = vpop.f32.mrb[0].mxu0
      %v2377 = vpop.f32.mrb[0].mxu0
      %v2378 = vadd.f32 %v2217, %v2377
      %v2379 = vpop.f32.mrb[0].mxu0
      %2380 = vmatprep.mubr.bf16.mxu0 %v1158
      %2381 = vmatmul.mubr.bf16.gmra.mrb[0].mxu0 %v1157
      %v2382 = vpop.f32.mrb[0].mxu0
      %v2383 = vadd.f32 %v2222, %v2382
      %v2384 = vpop.f32.mrb[0].mxu0
      %v2385 = vpop.f32.mrb[0].mxu0
      %v2386 = vadd.f32 %v2225, %v2385
      %v2387 = vpop.f32.mrb[0].mxu0
      %2388 = vmatprep.mubr.bf16.mxu0 %v1167
      %2389 = vmatmul.mubr.bf16.gmra.mrb[0].mxu0 %v1166
      %v2390 = vpop.f32.mrb[0].mxu0
      %v2391 = vadd.f32 %v2230, %v2390
      %v2392 = vpop.f32.mrb[0].mxu0
      %v2393 = vpop.f32.mrb[0].mxu0
      %v2394 = vadd.f32 %v2233, %v2393
      %v2395 = vpop.f32.mrb[0].mxu0
      %2396 = vmatprep.mubr.bf16.mxu0 %v1176
      %2397 = vmatmul.mubr.bf16.gmra.mrb[0].mxu0 %v1175
      %v2398 = vpop.f32.mrb[0].mxu0
      %v2399 = vadd.f32 %v2238, %v2398
      %v2400 = vpop.f32.mrb[0].mxu0
      %v2401 = vpop.f32.mrb[0].mxu0
      %v2402 = vadd.f32 %v2241, %v2401
      %v2403 = vpop.f32.mrb[0].mxu0
      %2404 = vmatprep.mubr.bf16.mxu0 %v1185
      %2405 = vmatmul.mubr.bf16.gmra.mrb[0].mxu0 %v1184
      %v2406 = vpop.f32.mrb[0].mxu0
      %v2407 = vadd.f32 %v2246, %v2406
      %v2408 = vpop.f32.mrb[0].mxu0
      %v2409 = vpop.f32.mrb[0].mxu0
      %v2410 = vadd.f32 %v2249, %v2409
      %v2411 = vpop.f32.mrb[0].mxu0
      %2412 = vmatprep.mubr.bf16.mxu0 %v1194
      %2413 = vmatmul.mubr.bf16.gmra.mrb[0].mxu0 %v1193
      %v2414 = vpop.f32.mrb[0].mxu0
      %v2415 = vadd.f32 %v2254, %v2414
      %v2416 = vpop.f32.mrb[0].mxu0
      %v2417 = vpop.f32.mrb[0].mxu0
      %v2418 = vadd.f32 %v2257, %v2417
      %v2419 = vpop.f32.mrb[0].mxu0
      %2420 = vmatprep.mubr.bf16.mxu0 %v1203
      %2421 = vmatmul.mubr.bf16.gmra.mrb[0].mxu0 %v1202
      %v2422 = vpop.f32.mrb[0].mxu0
      %v2423 = vadd.f32 %v2262, %v2422
      %v2424 = vpop.f32.mrb[0].mxu0
      %v2425 = vpop.f32.mrb[0].mxu0
      %v2426 = vadd.f32 %v2265, %v2425
      %v2427 = vpop.f32.mrb[0].mxu0
      %2428 = vmatprep.mubr.bf16.mxu0 %v1212
      %2429 = vmatmul.mubr.bf16.gmra.mrb[0].mxu0 %v1211
      %v2430 = vpop.f32.mrb[0].mxu0
      %v2431 = vadd.f32 %v2270, %v2430
      %v2432 = vpop.f32.mrb[0].mxu0
      %v2433 = vpop.f32.mrb[0].mxu0
      %v2434 = vadd.f32 %v2273, %v2433
      %v2435 = vpop.f32.mrb[0].mxu0
      %2436 = vmatprep.mubr.bf16.mxu0 %v1221
      %2437 = vmatmul.mubr.bf16.gmra.mrb[0].mxu0 %v1220
      %v2438 = vpop.f32.mrb[0].mxu0
      %v2439 = vadd.f32 %v2278, %v2438
      %v2440 = vpop.f32.mrb[0].mxu0
      %v2441 = vpop.f32.mrb[0].mxu0
      %v2442 = vadd.f32 %v2281, %v2441
      %v2443 = vpop.f32.mrb[0].mxu0
      %2444 = vmatprep.mubr.bf16.mxu0 %v1230
      %2445 = vmatmul.mubr.bf16.gmra.mrb[0].mxu0 %v1229
      %v2446 = vpop.f32.mrb[0].mxu0
      %v2447 = vadd.f32 %v2286, %v2446
      %v2448 = vpop.f32.mrb[0].mxu0
      %v2449 = vpop.f32.mrb[0].mxu0
      %v2450 = vadd.f32 %v2289, %v2449
      %v2451 = vpop.f32.mrb[0].mxu0
      %2452 = vmatprep.mubr.bf16.mxu0 %v1239
      %2453 = vmatmul.mubr.bf16.gmra.mrb[0].mxu0 %v1238
      %v2454 = vpop.f32.mrb[0].mxu0
      %v2455 = vadd.f32 %v2294, %v2454
      %v2456 = vpop.f32.mrb[0].mxu0
      %v2457 = vpop.f32.mrb[0].mxu0
      %v2458 = vadd.f32 %v2297, %v2457
      %v2459 = vpop.f32.mrb[0].mxu0
      %2460 = vdwg.mxu0
      %2461 = vmatprep.subr.bf16.mxu0 0
      %2462 = vmatpush1.bf16.msra.mxu0 %v1737
      %2463 = vmatprep.subr.bf16.mxu0 0
      %2464 = vmatpush1.bf16.msra.mxu0 %v1738
      %2465 = vmatprep.subr.bf16.mxu0 0
      %2466 = vmatpush1.bf16.msra.mxu0 %v1739
      %2467 = vmatprep.subr.bf16.mxu0 0
      %2468 = vmatpush1.bf16.msra.mxu0 %v1740
      %2469 = vmatprep.subr.bf16.mxu0 0
      %2470 = vmatpush1.bf16.msra.mxu0 %v1741
      %2471 = vmatprep.subr.bf16.mxu0 0
      %2472 = vmatpush1.bf16.msra.mxu0 %v1742
      %2473 = vmatprep.subr.bf16.mxu0 0
      %2474 = vmatpush1.bf16.msra.mxu0 %v1743
      %2475 = vmatprep.subr.bf16.mxu0 0
      %2476 = vmatpush1.bf16.msra.mxu0 %v1744
      %2477 = vmatprep.subr.bf16.mxu0 0
      %2478 = vmatpush1.bf16.msra.mxu0 0
      %2479 = vmatprep.subr.bf16.mxu0 0
      %2480 = vmatpush1.bf16.msra.mxu0 0
      %2481 = vmatprep.subr.bf16.mxu0 0
      %2482 = vmatpush1.bf16.msra.mxu0 0
      %2483 = vmatprep.subr.bf16.mxu0 0
      %2484 = vmatpush1.bf16.msra.mxu0 0
      %2485 = vmatprep.subr.bf16.mxu0 0
      %2486 = vmatpush1.bf16.msra.mxu0 0
      %2487 = vmatprep.subr.bf16.mxu0 0
      %2488 = vmatpush1.bf16.msra.mxu0 0
      %2489 = vmatprep.subr.bf16.mxu0 0
      %2490 = vmatpush1.bf16.msra.mxu0 0
      %2491 = vmatprep.subr.bf16.mxu0 0
      %2492 = vmatpush1.bf16.msra.mxu0 0
      %2493 = vmatprep.mubr.bf16.mxu0 0
      %2494 = vmatmul.mubr.bf16.gmra.mrb[0].mxu0 %v1105
      %v2495 = vpop.f32.mrb[0].mxu0
      %v2496 = vadd.f32 %v2335, %v2495
      %v2497 = vpop.f32.mrb[0].mxu0
      %v2498 = vpop.f32.mrb[0].mxu0
      %v2499 = vadd.f32 %v2338, %v2498
      %v2500 = vpop.f32.mrb[0].mxu0
      %2501 = vmatprep.mubr.bf16.mxu0 0
      %2502 = vmatmul.mubr.bf16.gmra.mrb[0].mxu0 %v1114
      %v2503 = vpop.f32.mrb[0].mxu0
      %v2504 = vadd.f32 %v2343, %v2503
      %v2505 = vpop.f32.mrb[0].mxu0
      %v2506 = vpop.f32.mrb[0].mxu0
      %v2507 = vadd.f32 %v2346, %v2506
      %v2508 = vpop.f32.mrb[0].mxu0
      %2509 = vmatprep.mubr.bf16.mxu0 0
      %2510 = vmatmul.mubr.bf16.gmra.mrb[0].mxu0 %v1123
      %v2511 = vpop.f32.mrb[0].mxu0
      %v2512 = vadd.f32 %v2351, %v2511
      %v2513 = vpop.f32.mrb[0].mxu0
      %v2514 = vpop.f32.mrb[0].mxu0
      %v2515 = vadd.f32 %v2354, %v2514
      %v2516 = vpop.f32.mrb[0].mxu0
      %2517 = vmatprep.mubr.bf16.mxu0 0
      %2518 = vmatmul.mubr.bf16.gmra.mrb[0].mxu0 %v1132
      %v2519 = vpop.f32.mrb[0].mxu0
      %v2520 = vadd.f32 %v2359, %v2519
      %v2521 = vpop.f32.mrb[0].mxu0
      %v2522 = vpop.f32.mrb[0].mxu0
      %v2523 = vadd.f32 %v2362, %v2522
      %v2524 = vpop.f32.mrb[0].mxu0
      %2525 = vmatprep.mubr.bf16.mxu0 0
      %2526 = vmatmul.mubr.bf16.gmra.mrb[0].mxu0 %v1141
      %v2527 = vpop.f32.mrb[0].mxu0
      %v2528 = vadd.f32 %v2367, %v2527
      %v2529 = vpop.f32.mrb[0].mxu0
      %v2530 = vpop.f32.mrb[0].mxu0
      %v2531 = vadd.f32 %v2370, %v2530
      %v2532 = vpop.f32.mrb[0].mxu0
      %2533 = vmatprep.mubr.bf16.mxu0 0
      %2534 = vmatmul.mubr.bf16.gmra.mrb[0].mxu0 %v1150
      %v2535 = vpop.f32.mrb[0].mxu0
      %v2536 = vadd.f32 %v2375, %v2535
      %v2537 = vpop.f32.mrb[0].mxu0
      %v2538 = vpop.f32.mrb[0].mxu0
      %v2539 = vadd.f32 %v2378, %v2538
      %v2540 = vpop.f32.mrb[0].mxu0
      %2541 = vmatprep.mubr.bf16.mxu0 0
      %2542 = vmatmul.mubr.bf16.gmra.mrb[0].mxu0 %v1159
      %v2543 = vpop.f32.mrb[0].mxu0
      %v2544 = vadd.f32 %v2383, %v2543
      %v2545 = vpop.f32.mrb[0].mxu0
      %v2546 = vpop.f32.mrb[0].mxu0
      %v2547 = vadd.f32 %v2386, %v2546
      %v2548 = vpop.f32.mrb[0].mxu0
      %2549 = vmatprep.mubr.bf16.mxu0 0
      %2550 = vmatmul.mubr.bf16.gmra.mrb[0].mxu0 %v1168
      %v2551 = vpop.f32.mrb[0].mxu0
      %v2552 = vadd.f32 %v2391, %v2551
      %v2553 = vpop.f32.mrb[0].mxu0
      %v2554 = vpop.f32.mrb[0].mxu0
      %v2555 = vadd.f32 %v2394, %v2554
      %v2556 = vpop.f32.mrb[0].mxu0
      %2557 = vmatprep.mubr.bf16.mxu0 0
      %2558 = vmatmul.mubr.bf16.gmra.mrb[0].mxu0 %v1177
      %v2559 = vpop.f32.mrb[0].mxu0
      %v2560 = vadd.f32 %v2399, %v2559
      %v2561 = vpop.f32.mrb[0].mxu0
      %v2562 = vpop.f32.mrb[0].mxu0
      %v2563 = vadd.f32 %v2402, %v2562
      %v2564 = vpop.f32.mrb[0].mxu0
      %2565 = vmatprep.mubr.bf16.mxu0 0
      %2566 = vmatmul.mubr.bf16.gmra.mrb[0].mxu0 %v1186
      %v2567 = vpop.f32.mrb[0].mxu0
      %v2568 = vadd.f32 %v2407, %v2567
      %v2569 = vpop.f32.mrb[0].mxu0
      %v2570 = vpop.f32.mrb[0].mxu0
      %v2571 = vadd.f32 %v2410, %v2570
      %v2572 = vpop.f32.mrb[0].mxu0
      %2573 = vmatprep.mubr.bf16.mxu0 0
      %2574 = vmatmul.mubr.bf16.gmra.mrb[0].mxu0 %v1195
      %v2575 = vpop.f32.mrb[0].mxu0
      %v2576 = vadd.f32 %v2415, %v2575
      %v2577 = vpop.f32.mrb[0].mxu0
      %v2578 = vpop.f32.mrb[0].mxu0
      %v2579 = vadd.f32 %v2418, %v2578
      %v2580 = vpop.f32.mrb[0].mxu0
      %2581 = vmatprep.mubr.bf16.mxu0 0
      %2582 = vmatmul.mubr.bf16.gmra.mrb[0].mxu0 %v1204
      %v2583 = vpop.f32.mrb[0].mxu0
      %v2584 = vadd.f32 %v2423, %v2583
      %v2585 = vpop.f32.mrb[0].mxu0
      %v2586 = vpop.f32.mrb[0].mxu0
      %v2587 = vadd.f32 %v2426, %v2586
      %v2588 = vpop.f32.mrb[0].mxu0
      %2589 = vmatprep.mubr.bf16.mxu0 0
      %2590 = vmatmul.mubr.bf16.gmra.mrb[0].mxu0 %v1213
      %v2591 = vpop.f32.mrb[0].mxu0
      %v2592 = vadd.f32 %v2431, %v2591
      %v2593 = vpop.f32.mrb[0].mxu0
      %v2594 = vpop.f32.mrb[0].mxu0
      %v2595 = vadd.f32 %v2434, %v2594
      %v2596 = vpop.f32.mrb[0].mxu0
      %2597 = vmatprep.mubr.bf16.mxu0 0
      %2598 = vmatmul.mubr.bf16.gmra.mrb[0].mxu0 %v1222
      %v2599 = vpop.f32.mrb[0].mxu0
      %v2600 = vadd.f32 %v2439, %v2599
      %v2601 = vpop.f32.mrb[0].mxu0
      %v2602 = vpop.f32.mrb[0].mxu0
      %v2603 = vadd.f32 %v2442, %v2602
      %v2604 = vpop.f32.mrb[0].mxu0
      %2605 = vmatprep.mubr.bf16.mxu0 0
      %2606 = vmatmul.mubr.bf16.gmra.mrb[0].mxu0 %v1231
      %v2607 = vpop.f32.mrb[0].mxu0
      %v2608 = vadd.f32 %v2447, %v2607
      %v2609 = vpop.f32.mrb[0].mxu0
      %v2610 = vpop.f32.mrb[0].mxu0
      %v2611 = vadd.f32 %v2450, %v2610
      %v2612 = vpop.f32.mrb[0].mxu0
      %2613 = vmatprep.mubr.bf16.mxu0 0
      %2614 = vmatmul.mubr.bf16.gmra.mrb[0].mxu0 %v1240
      %v2615 = vpop.f32.mrb[0].mxu0
      %v2616 = vadd.f32 %v2455, %v2615
      %v2617 = vpop.f32.mrb[0].mxu0
      %v2618 = vpop.f32.mrb[0].mxu0
      %v2619 = vadd.f32 %v2458, %v2618
      %v2620 = vpop.f32.mrb[0].mxu0
      %2621 = vdwg.mxu0
      %v2622 = vpack.c.bf16 %v2499, %v2496
      %v2623 = vpack.c.bf16 %v2507, %v2504
      %v2624 = vpack.c.bf16 %v2515, %v2512
      %v2625 = vpack.c.bf16 %v2523, %v2520
      %v2626 = vpack.c.bf16 %v2531, %v2528
      %v2627 = vpack.c.bf16 %v2539, %v2536
      %v2628 = vpack.c.bf16 %v2547, %v2544
      %v2629 = vpack.c.bf16 %v2555, %v2552
      %v2630 = vpack.c.bf16 %v2563, %v2560
      %v2631 = vpack.c.bf16 %v2571, %v2568
      %v2632 = vpack.c.bf16 %v2579, %v2576
      %v2633 = vpack.c.bf16 %v2587, %v2584
      %v2634 = vpack.c.bf16 %v2595, %v2592
      %v2635 = vpack.c.bf16 %v2603, %v2600
      %v2636 = vpack.c.bf16 %v2611, %v2608
      %v2637 = vpack.c.bf16 %v2619, %v2616
      %v2654 = vunpack.c.l.b16 %v2622
      %v2655 = vunpack.c.h.b16 %v2622
      %v2656 = vunpack.c.l.b16 %v2623
      %v2657 = vunpack.c.h.b16 %v2623
      %v2658 = vunpack.c.l.b16 %v2624
      %v2659 = vunpack.c.h.b16 %v2624
      %v2660 = vunpack.c.l.b16 %v2625
      %v2661 = vunpack.c.h.b16 %v2625
      %v2662 = vunpack.c.l.b16 %v2626
      %v2663 = vunpack.c.h.b16 %v2626
      %v2664 = vunpack.c.l.b16 %v2627
      %v2665 = vunpack.c.h.b16 %v2627
      %v2666 = vunpack.c.l.b16 %v2628
      %v2667 = vunpack.c.h.b16 %v2628
      %v2668 = vunpack.c.l.b16 %v2629
      %v2669 = vunpack.c.h.b16 %v2629
      %v2670 = vunpack.c.l.b16 %v2630
      %v2671 = vunpack.c.h.b16 %v2630
      %v2672 = vunpack.c.l.b16 %v2631
      %v2673 = vunpack.c.h.b16 %v2631
      %v2674 = vunpack.c.l.b16 %v2632
      %v2675 = vunpack.c.h.b16 %v2632
      %v2676 = vunpack.c.l.b16 %v2633
      %v2677 = vunpack.c.h.b16 %v2633
      %v2678 = vunpack.c.l.b16 %v2634
      %v2679 = vunpack.c.h.b16 %v2634
      %v2680 = vunpack.c.l.b16 %v2635
      %v2681 = vunpack.c.h.b16 %v2635
      %v2682 = vunpack.c.l.b16 %v2636
      %v2683 = vunpack.c.h.b16 %v2636
      %v2684 = vunpack.c.l.b16 %v2637
      %v2685 = vunpack.c.h.b16 %v2637
      %v2686 = vpack.c.b16 %v2654, %v2654
      %v2687 = vpack.c.b16 %v2655, %v2655
      %v2688 = vpack.c.b16 %v2656, %v2656
      %v2689 = vpack.c.b16 %v2657, %v2657
      %v2690 = vpack.c.b16 %v2658, %v2658
      %v2691 = vpack.c.b16 %v2659, %v2659
      %v2692 = vpack.c.b16 %v2660, %v2660
      %v2693 = vpack.c.b16 %v2661, %v2661
      %v2694 = vpack.c.b16 %v2662, %v2662
      %v2695 = vpack.c.b16 %v2663, %v2663
      %v2696 = vpack.c.b16 %v2664, %v2664
      %v2697 = vpack.c.b16 %v2665, %v2665
      %v2698 = vpack.c.b16 %v2666, %v2666
      %v2699 = vpack.c.b16 %v2667, %v2667
      %v2700 = vpack.c.b16 %v2668, %v2668
      %v2701 = vpack.c.b16 %v2669, %v2669
      %v2702 = vpack.c.b16 %v2670, %v2670
      %v2703 = vpack.c.b16 %v2671, %v2671
      %v2704 = vpack.c.b16 %v2672, %v2672
      %v2705 = vpack.c.b16 %v2673, %v2673
      %v2706 = vpack.c.b16 %v2674, %v2674
      %v2707 = vpack.c.b16 %v2675, %v2675
      %v2708 = vpack.c.b16 %v2676, %v2676
      %v2709 = vpack.c.b16 %v2677, %v2677
      %v2710 = vpack.c.b16 %v2678, %v2678
      %v2711 = vpack.c.b16 %v2679, %v2679
      %v2712 = vpack.c.b16 %v2680, %v2680
      %v2713 = vpack.c.b16 %v2681, %v2681
      %v2714 = vpack.c.b16 %v2682, %v2682
      %v2715 = vpack.c.b16 %v2683, %v2683
      %v2716 = vpack.c.b16 %v2684, %v2684
      %v2717 = vpack.c.b16 %v2685, %v2685
      %2750 = vst [vmem:[%s175] sm:$0xf] %v2686
      %2751 = vst [vmem:[%s175 + $0x4] sm:$0xf] %v2687
      %2752 = vst [vmem:[%s175 + $0x8] sm:$0xf] %v2688
      %2753 = vst [vmem:[%s175 + $0xc] sm:$0xf] %v2689
      %2754 = vst [vmem:[%s175 + $0x10] sm:$0xf] %v2690
      %2755 = vst [vmem:[%s175 + $0x14] sm:$0xf] %v2691
      %2756 = vst [vmem:[%s175 + $0x18] sm:$0xf] %v2692
      %2757 = vst [vmem:[%s175 + $0x1c] sm:$0xf] %v2693
      %2758 = vst [vmem:[%s175 + $0x20] sm:$0xf] %v2694
      %2759 = vst [vmem:[%s175 + $0x24] sm:$0xf] %v2695
      %2760 = vst [vmem:[%s175 + $0x28] sm:$0xf] %v2696
      %2761 = vst [vmem:[%s175 + $0x2c] sm:$0xf] %v2697
      %2762 = vst [vmem:[%s175 + $0x30] sm:$0xf] %v2698
      %2763 = vst [vmem:[%s175 + $0x34] sm:$0xf] %v2699
      %2764 = vst [vmem:[%s175 + $0x38] sm:$0xf] %v2700
      %2765 = vst [vmem:[%s175 + $0x3c] sm:$0xf] %v2701
      %2766 = vst [vmem:[%s175 + $0x40] sm:$0xf] %v2702
      %2767 = vst [vmem:[%s175 + $0x44] sm:$0xf] %v2703
      %2768 = vst [vmem:[%s175 + $0x48] sm:$0xf] %v2704
      %2769 = vst [vmem:[%s175 + $0x4c] sm:$0xf] %v2705
      %2770 = vst [vmem:[%s175 + $0x50] sm:$0xf] %v2706
      %2771 = vst [vmem:[%s175 + $0x54] sm:$0xf] %v2707
      %2772 = vst [vmem:[%s175 + $0x58] sm:$0xf] %v2708
      %2773 = vst [vmem:[%s175 + $0x5c] sm:$0xf] %v2709
      %2774 = vst [vmem:[%s175 + $0x60] sm:$0xf] %v2710
      %2775 = vst [vmem:[%s175 + $0x64] sm:$0xf] %v2711
      %2776 = vst [vmem:[%s175 + $0x68] sm:$0xf] %v2712
      %2777 = vst [vmem:[%s175 + $0x6c] sm:$0xf] %v2713
      %2778 = vst [vmem:[%s175 + $0x70] sm:$0xf] %v2714
      %2779 = vst [vmem:[%s175 + $0x74] sm:$0xf] %v2715
      %2780 = vst [vmem:[%s175 + $0x78] sm:$0xf] %v2716
      %2781 = vst [vmem:[%s175 + $0x7c] sm:$0xf] %v2717
      %s2782 = smul.u32 32, %s14
      %p2783 = scmp.lt.s32.totalorder %s2782, 63
      %s2784 = scalar_select %p2783, %s2782, 63
      %s2785 = smul.addr %s2784, 4
      %s2786 = scalar_lea.vmem %s3, %s2785
      // Predicated region
      $region33: #{discriminator32_forward.14} parent=31 // pred_check
        %p2787 = pneg %p100
      $region34: #{discriminator32_forward.14} parent=31 // pred_check_branch
        %2789 = sbr.rel (%p2787) target = $region36
      $region35: #{discriminator32_forward.14} parent=31 // pred_region
        %s2790 = smul.u32 32, %s14
      $region36: #{discriminator32_forward.14} parent=31 // pred_fallthru
        _
    $region32: #{discriminator32_forward.14} parent=5 // pred_fallthru
      _
    %p2791 = scmp.le.s32.totalorder 2, %s9
    // Predicated region
    $region37: #{discriminator32_forward.14} parent=5 // pred_check
      %p2792 = pneg %p2791
    $region38: #{discriminator32_forward.14} parent=5 // pred_check_branch
      %2794 = sbr.rel (%p2792) target = $region40
    $region39: #{discriminator32_forward.14} parent=5 // pred_region
      %s2795 = ssub.s32 %s9, 2
      // Predicated region
      $region41: #{discriminator32_forward.14} parent=39 // pred_check
        %p2796 = pneg %p106
      $region42: #{discriminator32_forward.14} parent=39 // pred_check_branch
        %2798 = sbr.rel (%p2796) target = $region44
      $region43: #{discriminator32_forward.14} parent=39 // pred_region
        %s2799 = smul.u32 32, %s15
        %p2800 = scmp.lt.s32.totalorder %s2799, 63
        %s2801 = scalar_select %p2800, %s2799, 63
        %s2802 = smul.addr %s2801, 4
        %s2803 = scalar_lea.vmem %s3, %s2802
      $region44: #{discriminator32_forward.14} parent=39 // pred_fallthru
        _
    $region40: #{discriminator32_forward.14} parent=5 // pred_fallthru
      _
  $region6: #{discriminator32_forward.14} parent=0 // loop_footer
    %s13 = sadd.s32 1, %s9
  $region7: #{discriminator32_forward.14} parent=0 // loop_footer_branch
    %8 = sbr.rel target = $region3
  $region8: #{discriminator32_forward.14} parent=0 // loop_exit
    _

// kernel: discriminator32_forward.16
$region0: #{discriminator32_forward.16}
  #allocation0 [shape = 'u32[]', space=smem, size = 0x4, offset = 0x4, fixed_abs, tag = 'smem constant byte address 0x4 - core index']
  #allocation1 [shape = 'u32[144,128]{1,0:T(1,128)}', space=vmem, size = 0x12000, scoped, tag = 'internal scratch']
  %s0 = inlined_call_operand.vmem [shape: bf16[128,128], index: 0, kind: input, shape index: {}]
  %s1 = inlined_call_operand.vmem [shape: bf16[128,128], index: 1, kind: input, shape index: {}]
  %s2 = inlined_call_operand.vmem [shape: f32[1,128], index: 2, kind: input, shape index: {}]
  %s3 = inlined_call_operand.vmem [shape: bf16[128,128], index: 3, kind: input, shape index: {}]
  %s4 = inlined_call_operand.vmem [shape: bf16[128,128], index: 4, kind: output, shape index: {}]
  %s5 = sld [smem:[#allocation0]]
  $region26: #{discriminator32_forward.16} parent=0
    _
  %s7 = ssub.s32 1, %s5
  %s8 = scalar_select 0, %s7, %s5
  // Predicated region
  $region2: #{discriminator32_forward.16} parent=0 // pred_check
    _
  $region3: #{discriminator32_forward.16} parent=0 // pred_check_branch
    %10 = sbr.rel (0) target = $region5
  $region4: #{discriminator32_forward.16} parent=0 // pred_region
    _
  $region5: #{discriminator32_forward.16} parent=0 // pred_fallthru
    _
  // Predicated region
  $region6: #{discriminator32_forward.16} parent=0 // pred_check
    _
  $region7: #{discriminator32_forward.16} parent=0 // pred_check_branch
    %12 = sbr.rel (0) target = $region9
  $region8: #{discriminator32_forward.16} parent=0 // pred_region
    _
  $region9: #{discriminator32_forward.16} parent=0 // pred_fallthru
    _
  // Predicated region
  $region10: #{discriminator32_forward.16} parent=0 // pred_check
    _
  $region11: #{discriminator32_forward.16} parent=0 // pred_check_branch
    %14 = sbr.rel (0) target = $region13
  $region12: #{discriminator32_forward.16} parent=0 // pred_region
    _
  $region13: #{discriminator32_forward.16} parent=0 // pred_fallthru
    _
  // Predicated region
  $region14: #{discriminator32_forward.16} parent=0 // pred_check
    _
  $region15: #{discriminator32_forward.16} parent=0 // pred_check_branch
    %16 = sbr.rel (0) target = $region17
  $region16: #{discriminator32_forward.16} parent=0 // pred_region
    _
  $region17: #{discriminator32_forward.16} parent=0 // pred_fallthru
    _
  %v18 = vld [vmem:[%s0] sm:$0xf]
  %v19 = vld [vmem:[%s0 + $0x4] sm:$0xf]
  %v20 = vld [vmem:[%s0 + $0x8] sm:$0xf]
  %v21 = vld [vmem:[%s0 + $0xc] sm:$0xf]
  %v22 = vld [vmem:[%s0 + $0x10] sm:$0xf]
  %v23 = vld [vmem:[%s0 + $0x14] sm:$0xf]
  %v24 = vld [vmem:[%s0 + $0x18] sm:$0xf]
  %v25 = vld [vmem:[%s0 + $0x1c] sm:$0xf]
  %v26 = vld [vmem:[%s0 + $0x20] sm:$0xf]
  %v27 = vld [vmem:[%s0 + $0x24] sm:$0xf]
  %v28 = vld [vmem:[%s0 + $0x28] sm:$0xf]
  %v29 = vld [vmem:[%s0 + $0x2c] sm:$0xf]
  %v30 = vld [vmem:[%s0 + $0x30] sm:$0xf]
  %v31 = vld [vmem:[%s0 + $0x34] sm:$0xf]
  %v32 = vld [vmem:[%s0 + $0x38] sm:$0xf]
  %v33 = vld [vmem:[%s0 + $0x3c] sm:$0xf]
  %v34 = vld [vmem:[%s1] sm:$0xf]
  %v35 = vld [vmem:[%s1 + $0x4] sm:$0xf]
  %v36 = vld [vmem:[%s1 + $0x8] sm:$0xf]
  %v37 = vld [vmem:[%s1 + $0xc] sm:$0xf]
  %v38 = vld [vmem:[%s1 + $0x10] sm:$0xf]
  %v39 = vld [vmem:[%s1 + $0x14] sm:$0xf]
  %v40 = vld [vmem:[%s1 + $0x18] sm:$0xf]
  %v41 = vld [vmem:[%s1 + $0x1c] sm:$0xf]
  %v42 = vld [vmem:[%s1 + $0x20] sm:$0xf]
  %v43 = vld [vmem:[%s1 + $0x24] sm:$0xf]
  %v44 = vld [vmem:[%s1 + $0x28] sm:$0xf]
  %v45 = vld [vmem:[%s1 + $0x2c] sm:$0xf]
  %v46 = vld [vmem:[%s1 + $0x30] sm:$0xf]
  %v47 = vld [vmem:[%s1 + $0x34] sm:$0xf]
  %v48 = vld [vmem:[%s1 + $0x38] sm:$0xf]
  %v49 = vld [vmem:[%s1 + $0x3c] sm:$0xf]
  %v50 = vld [vmem:[%s2] sm:$0x1]
  %v52 = vlaneseq
  %v53 = vshrl.u32 %v52, 7
  %v54 = vsub.s32 0, %v53
  %v55 = vrot.slane %v50, %v54
  %v73 = vunpack.c.l.b16 %v18
  %v74 = vunpack.c.l.b16 %v19
  %v75 = vunpack.c.l.b16 %v20
  %v76 = vunpack.c.l.b16 %v21
  %v77 = vunpack.c.l.b16 %v22
  %v78 = vunpack.c.l.b16 %v23
  %v79 = vunpack.c.l.b16 %v24
  %v80 = vunpack.c.l.b16 %v25
  %v81 = vunpack.c.l.b16 %v26
  %v82 = vunpack.c.l.b16 %v27
  %v83 = vunpack.c.l.b16 %v28
  %v84 = vunpack.c.l.b16 %v29
  %v85 = vunpack.c.l.b16 %v30
  %v86 = vunpack.c.l.b16 %v31
  %v87 = vunpack.c.l.b16 %v32
  %v88 = vunpack.c.l.b16 %v33
  %v89 = vpack.c.b16 %v74, %v73
  %v90 = vpack.c.b16 %v76, %v75
  %v91 = vpack.c.b16 %v78, %v77
  %v92 = vpack.c.b16 %v80, %v79
  %v93 = vpack.c.b16 %v82, %v81
  %v94 = vpack.c.b16 %v84, %v83
  %v95 = vpack.c.b16 %v86, %v85
  %v96 = vpack.c.b16 %v88, %v87
  %v121 = vunpack.c.l.b16 %v34
  %v122 = vunpack.c.l.b16 %v35
  %v123 = vunpack.c.l.b16 %v36
  %v124 = vunpack.c.l.b16 %v37
  %v125 = vunpack.c.l.b16 %v38
  %v126 = vunpack.c.l.b16 %v39
  %v127 = vunpack.c.l.b16 %v40
  %v128 = vunpack.c.l.b16 %v41
  %v129 = vunpack.c.l.b16 %v42
  %v130 = vunpack.c.l.b16 %v43
  %v131 = vunpack.c.l.b16 %v44
  %v132 = vunpack.c.l.b16 %v45
  %v133 = vunpack.c.l.b16 %v46
  %v134 = vunpack.c.l.b16 %v47
  %v135 = vunpack.c.l.b16 %v48
  %v136 = vunpack.c.l.b16 %v49
  %v137 = vpack.c.b16 %v122, %v121
  %v138 = vpack.c.b16 %v124, %v123
  %v139 = vpack.c.b16 %v126, %v125
  %v140 = vpack.c.b16 %v128, %v127
  %v141 = vpack.c.b16 %v130, %v129
  %v142 = vpack.c.b16 %v132, %v131
  %v143 = vpack.c.b16 %v134, %v133
  %v144 = vpack.c.b16 %v136, %v135
  %153 = vmatprep.subr.bf16.mxu0 0
  %154 = vmatpush1.bf16.msra.mxu0 %v137
  %155 = vmatprep.subr.bf16.mxu0 0
  %156 = vmatpush1.bf16.msra.mxu0 %v138
  %157 = vmatprep.subr.bf16.mxu0 0
  %158 = vmatpush1.bf16.msra.mxu0 %v139
  %159 = vmatprep.subr.bf16.mxu0 0
  %160 = vmatpush1.bf16.msra.mxu0 %v140
  %161 = vmatprep.subr.bf16.mxu0 0
  %162 = vmatpush1.bf16.msra.mxu0 %v141
  %163 = vmatprep.subr.bf16.mxu0 0
  %164 = vmatpush1.bf16.msra.mxu0 %v142
  %165 = vmatprep.subr.bf16.mxu0 0
  %166 = vmatpush1.bf16.msra.mxu0 %v143
  %167 = vmatprep.subr.bf16.mxu0 0
  %168 = vmatpush1.bf16.msra.mxu0 %v144
  %169 = vmatprep.subr.bf16.mxu0 0
  %170 = vmatpush1.bf16.msra.mxu0 0
  %171 = vmatprep.subr.bf16.mxu0 0
  %172 = vmatpush1.bf16.msra.mxu0 0
  %173 = vmatprep.subr.bf16.mxu0 0
  %174 = vmatpush1.bf16.msra.mxu0 0
  %175 = vmatprep.subr.bf16.mxu0 0
  %176 = vmatpush1.bf16.msra.mxu0 0
  %177 = vmatprep.subr.bf16.mxu0 0
  %178 = vmatpush1.bf16.msra.mxu0 0
  %179 = vmatprep.subr.bf16.mxu0 0
  %180 = vmatpush1.bf16.msra.mxu0 0
  %181 = vmatprep.subr.bf16.mxu0 0
  %182 = vmatpush1.bf16.msra.mxu0 0
  %183 = vmatprep.subr.bf16.mxu0 0
  %184 = vmatpush1.bf16.msra.mxu0 0
  %185 = vmatprep.mubr.bf16.mxu0 0
  %186 = vmatmul.mubr.bf16.gmra.mrb[0].mxu0 %v89
  %v187 = vpop.f32.mrb[0].mxu0
  %v188 = vadd.f32 %v55, %v187
  %v189 = vpop.f32.mrb[0].mxu0
  %v190 = vpop.f32.mrb[0].mxu0
  %v191 = vadd.f32 %v55, %v190
  %v192 = vpop.f32.mrb[0].mxu0
  %193 = vmatprep.mubr.bf16.mxu0 0
  %194 = vmatmul.mubr.bf16.gmra.mrb[0].mxu0 %v90
  %v195 = vpop.f32.mrb[0].mxu0
  %v196 = vadd.f32 %v55, %v195
  %v197 = vpop.f32.mrb[0].mxu0
  %v198 = vpop.f32.mrb[0].mxu0
  %v199 = vadd.f32 %v55, %v198
  %v200 = vpop.f32.mrb[0].mxu0
  %201 = vmatprep.mubr.bf16.mxu0 0
  %202 = vmatmul.mubr.bf16.gmra.mrb[0].mxu0 %v91
  %v203 = vpop.f32.mrb[0].mxu0
  %v204 = vadd.f32 %v55, %v203
  %v205 = vpop.f32.mrb[0].mxu0
  %v206 = vpop.f32.mrb[0].mxu0
  %v207 = vadd.f32 %v55, %v206
  %v208 = vpop.f32.mrb[0].mxu0
  %209 = vmatprep.mubr.bf16.mxu0 0
  %210 = vmatmul.mubr.bf16.gmra.mrb[0].mxu0 %v92
  %v211 = vpop.f32.mrb[0].mxu0
  %v212 = vadd.f32 %v55, %v211
  %v213 = vpop.f32.mrb[0].mxu0
  %v214 = vpop.f32.mrb[0].mxu0
  %v215 = vadd.f32 %v55, %v214
  %v216 = vpop.f32.mrb[0].mxu0
  %217 = vmatprep.mubr.bf16.mxu0 0
  %218 = vmatmul.mubr.bf16.gmra.mrb[0].mxu0 %v93
  %v219 = vpop.f32.mrb[0].mxu0
  %v220 = vadd.f32 %v55, %v219
  %v221 = vpop.f32.mrb[0].mxu0
  %v222 = vpop.f32.mrb[0].mxu0
  %v223 = vadd.f32 %v55, %v222
  %v224 = vpop.f32.mrb[0].mxu0
  %225 = vmatprep.mubr.bf16.mxu0 0
  %226 = vmatmul.mubr.bf16.gmra.mrb[0].mxu0 %v94
  %v227 = vpop.f32.mrb[0].mxu0
  %v228 = vadd.f32 %v55, %v227
  %v229 = vpop.f32.mrb[0].mxu0
  %v230 = vpop.f32.mrb[0].mxu0
  %v231 = vadd.f32 %v55, %v230
  %v232 = vpop.f32.mrb[0].mxu0
  %233 = vmatprep.mubr.bf16.mxu0 0
  %234 = vmatmul.mubr.bf16.gmra.mrb[0].mxu0 %v95
  %v235 = vpop.f32.mrb[0].mxu0
  %v236 = vadd.f32 %v55, %v235
  %v237 = vpop.f32.mrb[0].mxu0
  %v238 = vpop.f32.mrb[0].mxu0
  %v239 = vadd.f32 %v55, %v238
  %v240 = vpop.f32.mrb[0].mxu0
  %241 = vmatprep.mubr.bf16.mxu0 0
  %242 = vmatmul.mubr.bf16.gmra.mrb[0].mxu0 %v96
  %v243 = vpop.f32.mrb[0].mxu0
  %v244 = vadd.f32 %v55, %v243
  %v245 = vpop.f32.mrb[0].mxu0
  %v246 = vpop.f32.mrb[0].mxu0
  %v247 = vadd.f32 %v55, %v246
  %v248 = vpop.f32.mrb[0].mxu0
  %249 = vdwg.mxu0
  %v250 = vld [vmem:[%s3] sm:$0xf]
  %v251 = vld [vmem:[%s3 + $0x4] sm:$0xf]
  %v252 = vld [vmem:[%s3 + $0x8] sm:$0xf]
  %v253 = vld [vmem:[%s3 + $0xc] sm:$0xf]
  %v254 = vld [vmem:[%s3 + $0x10] sm:$0xf]
  %v255 = vld [vmem:[%s3 + $0x14] sm:$0xf]
  %v256 = vld [vmem:[%s3 + $0x18] sm:$0xf]
  %v257 = vld [vmem:[%s3 + $0x1c] sm:$0xf]
  %v258 = vld [vmem:[%s3 + $0x20] sm:$0xf]
  %v259 = vld [vmem:[%s3 + $0x24] sm:$0xf]
  %v260 = vld [vmem:[%s3 + $0x28] sm:$0xf]
  %v261 = vld [vmem:[%s3 + $0x2c] sm:$0xf]
  %v262 = vld [vmem:[%s3 + $0x30] sm:$0xf]
  %v263 = vld [vmem:[%s3 + $0x34] sm:$0xf]
  %v264 = vld [vmem:[%s3 + $0x38] sm:$0xf]
  %v265 = vld [vmem:[%s3 + $0x3c] sm:$0xf]
  %v266 = vunpack.c.l.bf16 %v250
  %v267 = vunpack.c.l.bf16 %v251
  %v268 = vunpack.c.l.bf16 %v252
  %v269 = vunpack.c.l.bf16 %v253
  %v270 = vunpack.c.l.bf16 %v254
  %v271 = vunpack.c.l.bf16 %v255
  %v272 = vunpack.c.l.bf16 %v256
  %v273 = vunpack.c.l.bf16 %v257
  %v274 = vunpack.c.l.bf16 %v258
  %v275 = vunpack.c.l.bf16 %v259
  %v276 = vunpack.c.l.bf16 %v260
  %v277 = vunpack.c.l.bf16 %v261
  %v278 = vunpack.c.l.bf16 %v262
  %v279 = vunpack.c.l.bf16 %v263
  %v280 = vunpack.c.l.bf16 %v264
  %v281 = vunpack.c.l.bf16 %v265
  %v282 = vadd.f32 %v188, %v266
  %v283 = vadd.f32 %v191, %v267
  %v284 = vadd.f32 %v196, %v268
  %v285 = vadd.f32 %v199, %v269
  %v286 = vadd.f32 %v204, %v270
  %v287 = vadd.f32 %v207, %v271
  %v288 = vadd.f32 %v212, %v272
  %v289 = vadd.f32 %v215, %v273
  %v290 = vadd.f32 %v220, %v274
  %v291 = vadd.f32 %v223, %v275
  %v292 = vadd.f32 %v228, %v276
  %v293 = vadd.f32 %v231, %v277
  %v294 = vadd.f32 %v236, %v278
  %v295 = vadd.f32 %v239, %v279
  %v296 = vadd.f32 %v244, %v280
  %v297 = vadd.f32 %v247, %v281
  %v298 = vpack.c.bf16 %v283, %v282
  %v299 = vpack.c.bf16 %v285, %v284
  %v300 = vpack.c.bf16 %v287, %v286
  %v301 = vpack.c.bf16 %v289, %v288
  %v302 = vpack.c.bf16 %v291, %v290
  %v303 = vpack.c.bf16 %v293, %v292
  %v304 = vpack.c.bf16 %v295, %v294
  %v305 = vpack.c.bf16 %v297, %v296
  %v314 = vunpack.c.l.b16 %v298
  %v315 = vunpack.c.h.b16 %v298
  %v316 = vunpack.c.l.b16 %v299
  %v317 = vunpack.c.h.b16 %v299
  %v318 = vunpack.c.l.b16 %v300
  %v319 = vunpack.c.h.b16 %v300
  %v320 = vunpack.c.l.b16 %v301
  %v321 = vunpack.c.h.b16 %v301
  %v322 = vunpack.c.l.b16 %v302
  %v323 = vunpack.c.h.b16 %v302
  %v324 = vunpack.c.l.b16 %v303
  %v325 = vunpack.c.h.b16 %v303
  %v326 = vunpack.c.l.b16 %v304
  %v327 = vunpack.c.h.b16 %v304
  %v328 = vunpack.c.l.b16 %v305
  %v329 = vunpack.c.h.b16 %v305
  %v330 = vpack.c.b16 %v314, %v314
  %v331 = vpack.c.b16 %v315, %v315
  %v332 = vpack.c.b16 %v316, %v316
  %v333 = vpack.c.b16 %v317, %v317
  %v334 = vpack.c.b16 %v318, %v318
  %v335 = vpack.c.b16 %v319, %v319
  %v336 = vpack.c.b16 %v320, %v320
  %v337 = vpack.c.b16 %v321, %v321
  %v338 = vpack.c.b16 %v322, %v322
  %v339 = vpack.c.b16 %v323, %v323
  %v340 = vpack.c.b16 %v324, %v324
  %v341 = vpack.c.b16 %v325, %v325
  %v342 = vpack.c.b16 %v326, %v326
  %v343 = vpack.c.b16 %v327, %v327
  %v344 = vpack.c.b16 %v328, %v328
  %v345 = vpack.c.b16 %v329, %v329
  %362 = vst [vmem:[%s4] sm:$0xf] %v330
  %363 = vst [vmem:[%s4 + $0x4] sm:$0xf] %v331
  %364 = vst [vmem:[%s4 + $0x8] sm:$0xf] %v332
  %365 = vst [vmem:[%s4 + $0xc] sm:$0xf] %v333
  %366 = vst [vmem:[%s4 + $0x10] sm:$0xf] %v334
  %367 = vst [vmem:[%s4 + $0x14] sm:$0xf] %v335
  %368 = vst [vmem:[%s4 + $0x18] sm:$0xf] %v336
  %369 = vst [vmem:[%s4 + $0x1c] sm:$0xf] %v337
  %370 = vst [vmem:[%s4 + $0x20] sm:$0xf] %v338
  %371 = vst [vmem:[%s4 + $0x24] sm:$0xf] %v339
  %372 = vst [vmem:[%s4 + $0x28] sm:$0xf] %v340
  %373 = vst [vmem:[%s4 + $0x2c] sm:$0xf] %v341
  %374 = vst [vmem:[%s4 + $0x30] sm:$0xf] %v342
  %375 = vst [vmem:[%s4 + $0x34] sm:$0xf] %v343
  %376 = vst [vmem:[%s4 + $0x38] sm:$0xf] %v344
  %377 = vst [vmem:[%s4 + $0x3c] sm:$0xf] %v345
  // Predicated region
  $region18: #{discriminator32_forward.16} parent=0 // pred_check
    _
  $region19: #{discriminator32_forward.16} parent=0 // pred_check_branch
    %379 = sbr.rel (0) target = $region21
  $region20: #{discriminator32_forward.16} parent=0 // pred_region
    _
  $region21: #{discriminator32_forward.16} parent=0 // pred_fallthru
    _
  // Predicated region
  $region22: #{discriminator32_forward.16} parent=0 // pred_check
    _
  $region23: #{discriminator32_forward.16} parent=0 // pred_check_branch
    %381 = sbr.rel (0) target = $region25
  $region24: #{discriminator32_forward.16} parent=0 // pred_region
    _
  $region25: #{discriminator32_forward.16} parent=0 // pred_fallthru
    _

// kernel: discriminator32_forward.17
$region0: #{discriminator32_forward.17}
  #allocation0 [shape = 'u32[]', space=smem, size = 0x4, offset = 0x4, fixed_abs, tag = 'smem constant byte address 0x4 - core index']
  #allocation1 [shape = 'u32[144,128]{1,0:T(1,128)}', space=vmem, size = 0x12000, scoped, tag = 'internal scratch']
  %s0 = inlined_call_operand.vmem [shape: bf16[128,1152], index: 0, kind: input, shape index: {}]
  %s1 = inlined_call_operand.vmem [shape: bf16[1152,128], index: 1, kind: input, shape index: {}]
  %s2 = inlined_call_operand.vmem [shape: f32[1,128], index: 2, kind: input, shape index: {}]
  %s3 = inlined_call_operand.vmem [shape: bf16[128,128], index: 3, kind: output, shape index: {}]
  %s4 = sld [smem:[#allocation0]]
  $region22: #{discriminator32_forward.17} parent=0
    _
  %s6 = ssub.s32 1, %s4
  %s7 = scalar_select 0, %s6, %s4
  // Predicated region
  $region2: #{discriminator32_forward.17} parent=0 // pred_check
    _
  $region3: #{discriminator32_forward.17} parent=0 // pred_check_branch
    %9 = sbr.rel (0) target = $region5
  $region4: #{discriminator32_forward.17} parent=0 // pred_region
    _
  $region5: #{discriminator32_forward.17} parent=0 // pred_fallthru
    _
  // Predicated region
  $region6: #{discriminator32_forward.17} parent=0 // pred_check
    _
  $region7: #{discriminator32_forward.17} parent=0 // pred_check_branch
    %11 = sbr.rel (0) target = $region9
  $region8: #{discriminator32_forward.17} parent=0 // pred_region
    _
  $region9: #{discriminator32_forward.17} parent=0 // pred_fallthru
    _
  // Predicated region
  $region10: #{discriminator32_forward.17} parent=0 // pred_check
    _
  $region11: #{discriminator32_forward.17} parent=0 // pred_check_branch
    %13 = sbr.rel (0) target = $region13
  $region12: #{discriminator32_forward.17} parent=0 // pred_region
    _
  $region13: #{discriminator32_forward.17} parent=0 // pred_fallthru
    _
  %v15 = vld [vmem:[%s0] sm:$0xff]
  %v16 = vld [vmem:[%s0 + $0x8] sm:$0xff]
  %v17 = vld [vmem:[%s0 + $0x10] sm:$0xff]
  %v18 = vld [vmem:[%s0 + $0x18] sm:$0xff]
  %v19 = vld [vmem:[%s0 + $0x20] sm:$0xf]
  %v20 = vld [vmem:[%s0 + $0x24] sm:$0xff]
  %v21 = vld [vmem:[%s0 + $0x2c] sm:$0xff]
  %v22 = vld [vmem:[%s0 + $0x34] sm:$0xff]
  %v23 = vld [vmem:[%s0 + $0x3c] sm:$0xff]
  %v24 = vld [vmem:[%s0 + $0x44] sm:$0xf]
  %v25 = vld [vmem:[%s0 + $0x48] sm:$0xff]
  %v26 = vld [vmem:[%s0 + $0x50] sm:$0xff]
  %v27 = vld [vmem:[%s0 + $0x58] sm:$0xff]
  %v28 = vld [vmem:[%s0 + $0x60] sm:$0xff]
  %v29 = vld [vmem:[%s0 + $0x68] sm:$0xf]
  %v30 = vld [vmem:[%s0 + $0x6c] sm:$0xff]
  %v31 = vld [vmem:[%s0 + $0x74] sm:$0xff]
  %v32 = vld [vmem:[%s0 + $0x7c] sm:$0xff]
  %v33 = vld [vmem:[%s0 + $0x84] sm:$0xff]
  %v34 = vld [vmem:[%s0 + $0x8c] sm:$0xf]
  %v35 = vld [vmem:[%s0 + $0x90] sm:$0xff]
  %v36 = vld [vmem:[%s0 + $0x98] sm:$0xff]
  %v37 = vld [vmem:[%s0 + $0xa0] sm:$0xff]
  %v38 = vld [vmem:[%s0 + $0xa8] sm:$0xff]
  %v39 = vld [vmem:[%s0 + $0xb0] sm:$0xf]
  %v40 = vld [vmem:[%s0 + $0xb4] sm:$0xff]
  %v41 = vld [vmem:[%s0 + $0xbc] sm:$0xff]
  %v42 = vld [vmem:[%s0 + $0xc4] sm:$0xff]
  %v43 = vld [vmem:[%s0 + $0xcc] sm:$0xff]
  %v44 = vld [vmem:[%s0 + $0xd4] sm:$0xf]
  %v45 = vld [vmem:[%s0 + $0xd8] sm:$0xff]
  %v46 = vld [vmem:[%s0 + $0xe0] sm:$0xff]
  %v47 = vld [vmem:[%s0 + $0xe8] sm:$0xff]
  %v48 = vld [vmem:[%s0 + $0xf0] sm:$0xff]
  %v49 = vld [vmem:[%s0 + $0xf8] sm:$0xf]
  %v50 = vld [vmem:[%s0 + $0xfc] sm:$0xff]
  %v51 = vld [vmem:[%s0 + $0x104] sm:$0xff]
  %v52 = vld [vmem:[%s0 + $0x10c] sm:$0xff]
  %v53 = vld [vmem:[%s0 + $0x114] sm:$0xff]
  %v54 = vld [vmem:[%s0 + $0x11c] sm:$0xf]
  %v55 = vld [vmem:[%s0 + $0x120] sm:$0xff]
  %v56 = vld [vmem:[%s0 + $0x128] sm:$0xff]
  %v57 = vld [vmem:[%s0 + $0x130] sm:$0xff]
  %v58 = vld [vmem:[%s0 + $0x138] sm:$0xff]
  %v59 = vld [vmem:[%s0 + $0x140] sm:$0xf]
  %v60 = vld [vmem:[%s0 + $0x144] sm:$0xff]
  %v61 = vld [vmem:[%s0 + $0x14c] sm:$0xff]
  %v62 = vld [vmem:[%s0 + $0x154] sm:$0xff]
  %v63 = vld [vmem:[%s0 + $0x15c] sm:$0xff]
  %v64 = vld [vmem:[%s0 + $0x164] sm:$0xf]
  %v65 = vld [vmem:[%s0 + $0x168] sm:$0xff]
  %v66 = vld [vmem:[%s0 + $0x170] sm:$0xff]
  %v67 = vld [vmem:[%s0 + $0x178] sm:$0xff]
  %v68 = vld [vmem:[%s0 + $0x180] sm:$0xff]
  %v69 = vld [vmem:[%s0 + $0x188] sm:$0xf]
  %v70 = vld [vmem:[%s0 + $0x18c] sm:$0xff]
  %v71 = vld [vmem:[%s0 + $0x194] sm:$0xff]
  %v72 = vld [vmem:[%s0 + $0x19c] sm:$0xff]
  %v73 = vld [vmem:[%s0 + $0x1a4] sm:$0xff]
  %v74 = vld [vmem:[%s0 + $0x1ac] sm:$0xf]
  %v75 = vld [vmem:[%s0 + $0x1b0] sm:$0xff]
  %v76 = vld [vmem:[%s0 + $0x1b8] sm:$0xff]
  %v77 = vld [vmem:[%s0 + $0x1c0] sm:$0xff]
  %v78 = vld [vmem:[%s0 + $0x1c8] sm:$0xff]
  %v79 = vld [vmem:[%s0 + $0x1d0] sm:$0xf]
  %v80 = vld [vmem:[%s0 + $0x1d4] sm:$0xff]
  %v81 = vld [vmem:[%s0 + $0x1dc] sm:$0xff]
  %v82 = vld [vmem:[%s0 + $0x1e4] sm:$0xff]
  %v83 = vld [vmem:[%s0 + $0x1ec] sm:$0xff]
  %v84 = vld [vmem:[%s0 + $0x1f4] sm:$0xf]
  %v85 = vld [vmem:[%s0 + $0x1f8] sm:$0xff]
  %v86 = vld [vmem:[%s0 + $0x200] sm:$0xff]
  %v87 = vld [vmem:[%s0 + $0x208] sm:$0xff]
  %v88 = vld [vmem:[%s0 + $0x210] sm:$0xff]
  %v89 = vld [vmem:[%s0 + $0x218] sm:$0xf]
  %v90 = vld [vmem:[%s0 + $0x21c] sm:$0xff]
  %v91 = vld [vmem:[%s0 + $0x224] sm:$0xff]
  %v92 = vld [vmem:[%s0 + $0x22c] sm:$0xff]
  %v93 = vld [vmem:[%s0 + $0x234] sm:$0xff]
  %v94 = vld [vmem:[%s0 + $0x23c] sm:$0xf]
  %v95 = vmax.bf16 %v15, 0
  %v96 = vmax.bf16 %v16, 0
  %v97 = vmax.bf16 %v17, 0
  %v98 = vmax.bf16 %v18, 0
  %v99 = vmax.bf16 %v19, 0
  %v100 = vmax.bf16 %v20, 0
  %v101 = vmax.bf16 %v21, 0
  %v102 = vmax.bf16 %v22, 0
  %v103 = vmax.bf16 %v23, 0
  %v104 = vmax.bf16 %v24, 0
  %v105 = vmax.bf16 %v25, 0
  %v106 = vmax.bf16 %v26, 0
  %v107 = vmax.bf16 %v27, 0
  %v108 = vmax.bf16 %v28, 0
  %v109 = vmax.bf16 %v29, 0
  %v110 = vmax.bf16 %v30, 0
  %v111 = vmax.bf16 %v31, 0
  %v112 = vmax.bf16 %v32, 0
  %v113 = vmax.bf16 %v33, 0
  %v114 = vmax.bf16 %v34, 0
  %v115 = vmax.bf16 %v35, 0
  %v116 = vmax.bf16 %v36, 0
  %v117 = vmax.bf16 %v37, 0
  %v118 = vmax.bf16 %v38, 0
  %v119 = vmax.bf16 %v39, 0
  %v120 = vmax.bf16 %v40, 0
  %v121 = vmax.bf16 %v41, 0
  %v122 = vmax.bf16 %v42, 0
  %v123 = vmax.bf16 %v43, 0
  %v124 = vmax.bf16 %v44, 0
  %v125 = vmax.bf16 %v45, 0
  %v126 = vmax.bf16 %v46, 0
  %v127 = vmax.bf16 %v47, 0
  %v128 = vmax.bf16 %v48, 0
  %v129 = vmax.bf16 %v49, 0
  %v130 = vmax.bf16 %v50, 0
  %v131 = vmax.bf16 %v51, 0
  %v132 = vmax.bf16 %v52, 0
  %v133 = vmax.bf16 %v53, 0
  %v134 = vmax.bf16 %v54, 0
  %v135 = vmax.bf16 %v55, 0
  %v136 = vmax.bf16 %v56, 0
  %v137 = vmax.bf16 %v57, 0
  %v138 = vmax.bf16 %v58, 0
  %v139 = vmax.bf16 %v59, 0
  %v140 = vmax.bf16 %v60, 0
  %v141 = vmax.bf16 %v61, 0
  %v142 = vmax.bf16 %v62, 0
  %v143 = vmax.bf16 %v63, 0
  %v144 = vmax.bf16 %v64, 0
  %v145 = vmax.bf16 %v65, 0
  %v146 = vmax.bf16 %v66, 0
  %v147 = vmax.bf16 %v67, 0
  %v148 = vmax.bf16 %v68, 0
  %v149 = vmax.bf16 %v69, 0
  %v150 = vmax.bf16 %v70, 0
  %v151 = vmax.bf16 %v71, 0
  %v152 = vmax.bf16 %v72, 0
  %v153 = vmax.bf16 %v73, 0
  %v154 = vmax.bf16 %v74, 0
  %v155 = vmax.bf16 %v75, 0
  %v156 = vmax.bf16 %v76, 0
  %v157 = vmax.bf16 %v77, 0
  %v158 = vmax.bf16 %v78, 0
  %v159 = vmax.bf16 %v79, 0
  %v160 = vmax.bf16 %v80, 0
  %v161 = vmax.bf16 %v81, 0
  %v162 = vmax.bf16 %v82, 0
  %v163 = vmax.bf16 %v83, 0
  %v164 = vmax.bf16 %v84, 0
  %v165 = vmax.bf16 %v85, 0
  %v166 = vmax.bf16 %v86, 0
  %v167 = vmax.bf16 %v87, 0
  %v168 = vmax.bf16 %v88, 0
  %v169 = vmax.bf16 %v89, 0
  %v170 = vmax.bf16 %v90, 0
  %v171 = vmax.bf16 %v91, 0
  %v172 = vmax.bf16 %v92, 0
  %v173 = vmax.bf16 %v93, 0
  %v174 = vmax.bf16 %v94, 0
  %v175 = vld [vmem:[%s1] sm:$0xf]
  %v176 = vld [vmem:[%s1 + $0x4] sm:$0xf]
  %v177 = vld [vmem:[%s1 + $0x8] sm:$0xf]
  %v178 = vld [vmem:[%s1 + $0xc] sm:$0xf]
  %v179 = vld [vmem:[%s1 + $0x10] sm:$0xf]
  %v180 = vld [vmem:[%s1 + $0x14] sm:$0xf]
  %v181 = vld [vmem:[%s1 + $0x18] sm:$0xf]
  %v182 = vld [vmem:[%s1 + $0x1c] sm:$0xf]
  %v183 = vld [vmem:[%s1 + $0x20] sm:$0xf]
  %v184 = vld [vmem:[%s1 + $0x24] sm:$0xf]
  %v185 = vld [vmem:[%s1 + $0x28] sm:$0xf]
  %v186 = vld [vmem:[%s1 + $0x2c] sm:$0xf]
  %v187 = vld [vmem:[%s1 + $0x30] sm:$0xf]
  %v188 = vld [vmem:[%s1 + $0x34] sm:$0xf]
  %v189 = vld [vmem:[%s1 + $0x38] sm:$0xf]
  %v190 = vld [vmem:[%s1 + $0x3c] sm:$0xf]
  %v191 = vld [vmem:[%s1 + $0x40] sm:$0xf]
  %v192 = vld [vmem:[%s1 + $0x44] sm:$0xf]
  %v193 = vld [vmem:[%s1 + $0x48] sm:$0xf]
  %v194 = vld [vmem:[%s1 + $0x4c] sm:$0xf]
  %v195 = vld [vmem:[%s1 + $0x50] sm:$0xf]
  %v196 = vld [vmem:[%s1 + $0x54] sm:$0xf]
  %v197 = vld [vmem:[%s1 + $0x58] sm:$0xf]
  %v198 = vld [vmem:[%s1 + $0x5c] sm:$0xf]
  %v199 = vld [vmem:[%s1 + $0x60] sm:$0xf]
  %v200 = vld [vmem:[%s1 + $0x64] sm:$0xf]
  %v201 = vld [vmem:[%s1 + $0x68] sm:$0xf]
  %v202 = vld [vmem:[%s1 + $0x6c] sm:$0xf]
  %v203 = vld [vmem:[%s1 + $0x70] sm:$0xf]
  %v204 = vld [vmem:[%s1 + $0x74] sm:$0xf]
  %v205 = vld [vmem:[%s1 + $0x78] sm:$0xf]
  %v206 = vld [vmem:[%s1 + $0x7c] sm:$0xf]
  %v207 = vld [vmem:[%s1 + $0x80] sm:$0xf]
  %v208 = vld [vmem:[%s1 + $0x84] sm:$0xf]
  %v209 = vld [vmem:[%s1 + $0x88] sm:$0xf]
  %v210 = vld [vmem:[%s1 + $0x8c] sm:$0xf]
  %v211 = vld [vmem:[%s1 + $0x90] sm:$0xf]
  %v212 = vld [vmem:[%s1 + $0x94] sm:$0xf]
  %v213 = vld [vmem:[%s1 + $0x98] sm:$0xf]
  %v214 = vld [vmem:[%s1 + $0x9c] sm:$0xf]
  %v215 = vld [vmem:[%s1 + $0xa0] sm:$0xf]
  %v216 = vld [vmem:[%s1 + $0xa4] sm:$0xf]
  %v217 = vld [vmem:[%s1 + $0xa8] sm:$0xf]
  %v218 = vld [vmem:[%s1 + $0xac] sm:$0xf]
  %v219 = vld [vmem:[%s1 + $0xb0] sm:$0xf]
  %v220 = vld [vmem:[%s1 + $0xb4] sm:$0xf]
  %v221 = vld [vmem:[%s1 + $0xb8] sm:$0xf]
  %v222 = vld [vmem:[%s1 + $0xbc] sm:$0xf]
  %v223 = vld [vmem:[%s1 + $0xc0] sm:$0xf]
  %v224 = vld [vmem:[%s1 + $0xc4] sm:$0xf]
  %v225 = vld [vmem:[%s1 + $0xc8] sm:$0xf]
  %v226 = vld [vmem:[%s1 + $0xcc] sm:$0xf]
  %v227 = vld [vmem:[%s1 + $0xd0] sm:$0xf]
  %v228 = vld [vmem:[%s1 + $0xd4] sm:$0xf]
  %v229 = vld [vmem:[%s1 + $0xd8] sm:$0xf]
  %v230 = vld [vmem:[%s1 + $0xdc] sm:$0xf]
  %v231 = vld [vmem:[%s1 + $0xe0] sm:$0xf]
  %v232 = vld [vmem:[%s1 + $0xe4] sm:$0xf]
  %v233 = vld [vmem:[%s1 + $0xe8] sm:$0xf]
  %v234 = vld [vmem:[%s1 + $0xec] sm:$0xf]
  %v235 = vld [vmem:[%s1 + $0xf0] sm:$0xf]
  %v236 = vld [vmem:[%s1 + $0xf4] sm:$0xf]
  %v237 = vld [vmem:[%s1 + $0xf8] sm:$0xf]
  %v238 = vld [vmem:[%s1 + $0xfc] sm:$0xf]
  %v239 = vld [vmem:[%s1 + $0x100] sm:$0xf]
  %v240 = vld [vmem:[%s1 + $0x104] sm:$0xf]
  %v241 = vld [vmem:[%s1 + $0x108] sm:$0xf]
  %v242 = vld [vmem:[%s1 + $0x10c] sm:$0xf]
  %v243 = vld [vmem:[%s1 + $0x110] sm:$0xf]
  %v244 = vld [vmem:[%s1 + $0x114] sm:$0xf]
  %v245 = vld [vmem:[%s1 + $0x118] sm:$0xf]
  %v246 = vld [vmem:[%s1 + $0x11c] sm:$0xf]
  %v247 = vld [vmem:[%s1 + $0x120] sm:$0xf]
  %v248 = vld [vmem:[%s1 + $0x124] sm:$0xf]
  %v249 = vld [vmem:[%s1 + $0x128] sm:$0xf]
  %v250 = vld [vmem:[%s1 + $0x12c] sm:$0xf]
  %v251 = vld [vmem:[%s1 + $0x130] sm:$0xf]
  %v252 = vld [vmem:[%s1 + $0x134] sm:$0xf]
  %v253 = vld [vmem:[%s1 + $0x138] sm:$0xf]
  %v254 = vld [vmem:[%s1 + $0x13c] sm:$0xf]
  %v255 = vld [vmem:[%s1 + $0x140] sm:$0xf]
  %v256 = vld [vmem:[%s1 + $0x144] sm:$0xf]
  %v257 = vld [vmem:[%s1 + $0x148] sm:$0xf]
  %v258 = vld [vmem:[%s1 + $0x14c] sm:$0xf]
  %v259 = vld [vmem:[%s1 + $0x150] sm:$0xf]
  %v260 = vld [vmem:[%s1 + $0x154] sm:$0xf]
  %v261 = vld [vmem:[%s1 + $0x158] sm:$0xf]
  %v262 = vld [vmem:[%s1 + $0x15c] sm:$0xf]
  %v263 = vld [vmem:[%s1 + $0x160] sm:$0xf]
  %v264 = vld [vmem:[%s1 + $0x164] sm:$0xf]
  %v265 = vld [vmem:[%s1 + $0x168] sm:$0xf]
  %v266 = vld [vmem:[%s1 + $0x16c] sm:$0xf]
  %v267 = vld [vmem:[%s1 + $0x170] sm:$0xf]
  %v268 = vld [vmem:[%s1 + $0x174] sm:$0xf]
  %v269 = vld [vmem:[%s1 + $0x178] sm:$0xf]
  %v270 = vld [vmem:[%s1 + $0x17c] sm:$0xf]
  %v271 = vld [vmem:[%s1 + $0x180] sm:$0xf]
  %v272 = vld [vmem:[%s1 + $0x184] sm:$0xf]
  %v273 = vld [vmem:[%s1 + $0x188] sm:$0xf]
  %v274 = vld [vmem:[%s1 + $0x18c] sm:$0xf]
  %v275 = vld [vmem:[%s1 + $0x190] sm:$0xf]
  %v276 = vld [vmem:[%s1 + $0x194] sm:$0xf]
  %v277 = vld [vmem:[%s1 + $0x198] sm:$0xf]
  %v278 = vld [vmem:[%s1 + $0x19c] sm:$0xf]
  %v279 = vld [vmem:[%s1 + $0x1a0] sm:$0xf]
  %v280 = vld [vmem:[%s1 + $0x1a4] sm:$0xf]
  %v281 = vld [vmem:[%s1 + $0x1a8] sm:$0xf]
  %v282 = vld [vmem:[%s1 + $0x1ac] sm:$0xf]
  %v283 = vld [vmem:[%s1 + $0x1b0] sm:$0xf]
  %v284 = vld [vmem:[%s1 + $0x1b4] sm:$0xf]
  %v285 = vld [vmem:[%s1 + $0x1b8] sm:$0xf]
  %v286 = vld [vmem:[%s1 + $0x1bc] sm:$0xf]
  %v287 = vld [vmem:[%s1 + $0x1c0] sm:$0xf]
  %v288 = vld [vmem:[%s1 + $0x1c4] sm:$0xf]
  %v289 = vld [vmem:[%s1 + $0x1c8] sm:$0xf]
  %v290 = vld [vmem:[%s1 + $0x1cc] sm:$0xf]
  %v291 = vld [vmem:[%s1 + $0x1d0] sm:$0xf]
  %v292 = vld [vmem:[%s1 + $0x1d4] sm:$0xf]
  %v293 = vld [vmem:[%s1 + $0x1d8] sm:$0xf]
  %v294 = vld [vmem:[%s1 + $0x1dc] sm:$0xf]
  %v295 = vld [vmem:[%s1 + $0x1e0] sm:$0xf]
  %v296 = vld [vmem:[%s1 + $0x1e4] sm:$0xf]
  %v297 = vld [vmem:[%s1 + $0x1e8] sm:$0xf]
  %v298 = vld [vmem:[%s1 + $0x1ec] sm:$0xf]
  %v299 = vld [vmem:[%s1 + $0x1f0] sm:$0xf]
  %v300 = vld [vmem:[%s1 + $0x1f4] sm:$0xf]
  %v301 = vld [vmem:[%s1 + $0x1f8] sm:$0xf]
  %v302 = vld [vmem:[%s1 + $0x1fc] sm:$0xf]
  %v303 = vld [vmem:[%s1 + $0x200] sm:$0xf]
  %v304 = vld [vmem:[%s1 + $0x204] sm:$0xf]
  %v305 = vld [vmem:[%s1 + $0x208] sm:$0xf]
  %v306 = vld [vmem:[%s1 + $0x20c] sm:$0xf]
  %v307 = vld [vmem:[%s1 + $0x210] sm:$0xf]
  %v308 = vld [vmem:[%s1 + $0x214] sm:$0xf]
  %v309 = vld [vmem:[%s1 + $0x218] sm:$0xf]
  %v310 = vld [vmem:[%s1 + $0x21c] sm:$0xf]
  %v311 = vld [vmem:[%s1 + $0x220] sm:$0xf]
  %v312 = vld [vmem:[%s1 + $0x224] sm:$0xf]
  %v313 = vld [vmem:[%s1 + $0x228] sm:$0xf]
  %v314 = vld [vmem:[%s1 + $0x22c] sm:$0xf]
  %v315 = vld [vmem:[%s1 + $0x230] sm:$0xf]
  %v316 = vld [vmem:[%s1 + $0x234] sm:$0xf]
  %v317 = vld [vmem:[%s1 + $0x238] sm:$0xf]
  %v318 = vld [vmem:[%s1 + $0x23c] sm:$0xf]
  %v319 = vld [vmem:[%s2] sm:$0x1]
  %v321 = vlaneseq
  %v322 = vshrl.u32 %v321, 7
  %v323 = vsub.s32 0, %v322
  %v324 = vrot.slane %v319, %v323
  %v406 = vunpack.c.l.b16 %v95
  %v407 = vunpack.c.h.b16 %v95
  %v408 = vunpack.c.l.b16 %v96
  %v409 = vunpack.c.h.b16 %v96
  %v410 = vunpack.c.l.b16 %v97
  %v411 = vunpack.c.h.b16 %v97
  %v412 = vunpack.c.l.b16 %v98
  %v413 = vunpack.c.h.b16 %v98
  %v414 = vunpack.c.l.b16 %v99
  %v415 = vunpack.c.l.b16 %v100
  %v416 = vunpack.c.h.b16 %v100
  %v417 = vunpack.c.l.b16 %v101
  %v418 = vunpack.c.h.b16 %v101
  %v419 = vunpack.c.l.b16 %v102
  %v420 = vunpack.c.h.b16 %v102
  %v421 = vunpack.c.l.b16 %v103
  %v422 = vunpack.c.h.b16 %v103
  %v423 = vunpack.c.l.b16 %v104
  %v424 = vunpack.c.l.b16 %v105
  %v425 = vunpack.c.h.b16 %v105
  %v426 = vunpack.c.l.b16 %v106
  %v427 = vunpack.c.h.b16 %v106
  %v428 = vunpack.c.l.b16 %v107
  %v429 = vunpack.c.h.b16 %v107
  %v430 = vunpack.c.l.b16 %v108
  %v431 = vunpack.c.h.b16 %v108
  %v432 = vunpack.c.l.b16 %v109
  %v433 = vunpack.c.l.b16 %v110
  %v434 = vunpack.c.h.b16 %v110
  %v435 = vunpack.c.l.b16 %v111
  %v436 = vunpack.c.h.b16 %v111
  %v437 = vunpack.c.l.b16 %v112
  %v438 = vunpack.c.h.b16 %v112
  %v439 = vunpack.c.l.b16 %v113
  %v440 = vunpack.c.h.b16 %v113
  %v441 = vunpack.c.l.b16 %v114
  %v442 = vunpack.c.l.b16 %v115
  %v443 = vunpack.c.h.b16 %v115
  %v444 = vunpack.c.l.b16 %v116
  %v445 = vunpack.c.h.b16 %v116
  %v446 = vunpack.c.l.b16 %v117
  %v447 = vunpack.c.h.b16 %v117
  %v448 = vunpack.c.l.b16 %v118
  %v449 = vunpack.c.h.b16 %v118
  %v450 = vunpack.c.l.b16 %v119
  %v451 = vunpack.c.l.b16 %v120
  %v452 = vunpack.c.h.b16 %v120
  %v453 = vunpack.c.l.b16 %v121
  %v454 = vunpack.c.h.b16 %v121
  %v455 = vunpack.c.l.b16 %v122
  %v456 = vunpack.c.h.b16 %v122
  %v457 = vunpack.c.l.b16 %v123
  %v458 = vunpack.c.h.b16 %v123
  %v459 = vunpack.c.l.b16 %v124
  %v460 = vunpack.c.l.b16 %v125
  %v461 = vunpack.c.h.b16 %v125
  %v462 = vunpack.c.l.b16 %v126
  %v463 = vunpack.c.h.b16 %v126
  %v464 = vunpack.c.l.b16 %v127
  %v465 = vunpack.c.h.b16 %v127
  %v466 = vunpack.c.l.b16 %v128
  %v467 = vunpack.c.h.b16 %v128
  %v468 = vunpack.c.l.b16 %v129
  %v469 = vunpack.c.l.b16 %v130
  %v470 = vunpack.c.h.b16 %v130
  %v471 = vunpack.c.l.b16 %v131
  %v472 = vunpack.c.h.b16 %v131
  %v473 = vunpack.c.l.b16 %v132
  %v474 = vunpack.c.h.b16 %v132
  %v475 = vunpack.c.l.b16 %v133
  %v476 = vunpack.c.h.b16 %v133
  %v477 = vunpack.c.l.b16 %v134
  %v478 = vunpack.c.l.b16 %v135
  %v479 = vunpack.c.h.b16 %v135
  %v480 = vunpack.c.l.b16 %v136
  %v481 = vunpack.c.h.b16 %v136
  %v482 = vunpack.c.l.b16 %v137
  %v483 = vunpack.c.h.b16 %v137
  %v484 = vunpack.c.l.b16 %v138
  %v485 = vunpack.c.h.b16 %v138
  %v486 = vunpack.c.l.b16 %v139
  %v487 = vunpack.c.l.b16 %v140
  %v488 = vunpack.c.h.b16 %v140
  %v489 = vunpack.c.l.b16 %v141
  %v490 = vunpack.c.h.b16 %v141
  %v491 = vunpack.c.l.b16 %v142
  %v492 = vunpack.c.h.b16 %v142
  %v493 = vunpack.c.l.b16 %v143
  %v494 = vunpack.c.h.b16 %v143
  %v495 = vunpack.c.l.b16 %v144
  %v496 = vunpack.c.l.b16 %v145
  %v497 = vunpack.c.h.b16 %v145
  %v498 = vunpack.c.l.b16 %v146
  %v499 = vunpack.c.h.b16 %v146
  %v500 = vunpack.c.l.b16 %v147
  %v501 = vunpack.c.h.b16 %v147
  %v502 = vunpack.c.l.b16 %v148
  %v503 = vunpack.c.h.b16 %v148
  %v504 = vunpack.c.l.b16 %v149
  %v505 = vunpack.c.l.b16 %v150
  %v506 = vunpack.c.h.b16 %v150
  %v507 = vunpack.c.l.b16 %v151
  %v508 = vunpack.c.h.b16 %v151
  %v509 = vunpack.c.l.b16 %v152
  %v510 = vunpack.c.h.b16 %v152
  %v511 = vunpack.c.l.b16 %v153
  %v512 = vunpack.c.h.b16 %v153
  %v513 = vunpack.c.l.b16 %v154
  %v514 = vunpack.c.l.b16 %v155
  %v515 = vunpack.c.h.b16 %v155
  %v516 = vunpack.c.l.b16 %v156
  %v517 = vunpack.c.h.b16 %v156
  %v518 = vunpack.c.l.b16 %v157
  %v519 = vunpack.c.h.b16 %v157
  %v520 = vunpack.c.l.b16 %v158
  %v521 = vunpack.c.h.b16 %v158
  %v522 = vunpack.c.l.b16 %v159
  %v523 = vunpack.c.l.b16 %v160
  %v524 = vunpack.c.h.b16 %v160
  %v525 = vunpack.c.l.b16 %v161
  %v526 = vunpack.c.h.b16 %v161
  %v527 = vunpack.c.l.b16 %v162
  %v528 = vunpack.c.h.b16 %v162
  %v529 = vunpack.c.l.b16 %v163
  %v530 = vunpack.c.h.b16 %v163
  %v531 = vunpack.c.l.b16 %v164
  %v532 = vunpack.c.l.b16 %v165
  %v533 = vunpack.c.h.b16 %v165
  %v534 = vunpack.c.l.b16 %v166
  %v535 = vunpack.c.h.b16 %v166
  %v536 = vunpack.c.l.b16 %v167
  %v537 = vunpack.c.h.b16 %v167
  %v538 = vunpack.c.l.b16 %v168
  %v539 = vunpack.c.h.b16 %v168
  %v540 = vunpack.c.l.b16 %v169
  %v541 = vunpack.c.l.b16 %v170
  %v542 = vunpack.c.h.b16 %v170
  %v543 = vunpack.c.l.b16 %v171
  %v544 = vunpack.c.h.b16 %v171
  %v545 = vunpack.c.l.b16 %v172
  %v546 = vunpack.c.h.b16 %v172
  %v547 = vunpack.c.l.b16 %v173
  %v548 = vunpack.c.h.b16 %v173
  %v549 = vunpack.c.l.b16 %v174
  %v550 = vpack.c.b16 %v415, %v406
  %v551 = vpack.c.b16 %v416, %v407
  %v552 = vpack.c.b16 %v417, %v408
  %v553 = vpack.c.b16 %v418, %v409
  %v554 = vpack.c.b16 %v419, %v410
  %v555 = vpack.c.b16 %v420, %v411
  %v556 = vpack.c.b16 %v421, %v412
  %v557 = vpack.c.b16 %v422, %v413
  %v558 = vpack.c.b16 %v423, %v414
  %v559 = vpack.c.b16 %v433, %v424
  %v560 = vpack.c.b16 %v434, %v425
  %v561 = vpack.c.b16 %v435, %v426
  %v562 = vpack.c.b16 %v436, %v427
  %v563 = vpack.c.b16 %v437, %v428
  %v564 = vpack.c.b16 %v438, %v429
  %v565 = vpack.c.b16 %v439, %v430
  %v566 = vpack.c.b16 %v440, %v431
  %v567 = vpack.c.b16 %v441, %v432
  %v568 = vpack.c.b16 %v451, %v442
  %v569 = vpack.c.b16 %v452, %v443
  %v570 = vpack.c.b16 %v453, %v444
  %v571 = vpack.c.b16 %v454, %v445
  %v572 = vpack.c.b16 %v455, %v446
  %v573 = vpack.c.b16 %v456, %v447
  %v574 = vpack.c.b16 %v457, %v448
  %v575 = vpack.c.b16 %v458, %v449
  %v576 = vpack.c.b16 %v459, %v450
  %v577 = vpack.c.b16 %v469, %v460
  %v578 = vpack.c.b16 %v470, %v461
  %v579 = vpack.c.b16 %v471, %v462
  %v580 = vpack.c.b16 %v472, %v463
  %v581 = vpack.c.b16 %v473, %v464
  %v582 = vpack.c.b16 %v474, %v465
  %v583 = vpack.c.b16 %v475, %v466
  %v584 = vpack.c.b16 %v476, %v467
  %v585 = vpack.c.b16 %v477, %v468
  %v586 = vpack.c.b16 %v487, %v478
  %v587 = vpack.c.b16 %v488, %v479
  %v588 = vpack.c.b16 %v489, %v480
  %v589 = vpack.c.b16 %v490, %v481
  %v590 = vpack.c.b16 %v491, %v482
  %v591 = vpack.c.b16 %v492, %v483
  %v592 = vpack.c.b16 %v493, %v484
  %v593 = vpack.c.b16 %v494, %v485
  %v594 = vpack.c.b16 %v495, %v486
  %v595 = vpack.c.b16 %v505, %v496
  %v596 = vpack.c.b16 %v506, %v497
  %v597 = vpack.c.b16 %v507, %v498
  %v598 = vpack.c.b16 %v508, %v499
  %v599 = vpack.c.b16 %v509, %v500
  %v600 = vpack.c.b16 %v510, %v501
  %v601 = vpack.c.b16 %v511, %v502
  %v602 = vpack.c.b16 %v512, %v503
  %v603 = vpack.c.b16 %v513, %v504
  %v604 = vpack.c.b16 %v523, %v514
  %v605 = vpack.c.b16 %v524, %v515
  %v606 = vpack.c.b16 %v525, %v516
  %v607 = vpack.c.b16 %v526, %v517
  %v608 = vpack.c.b16 %v527, %v518
  %v609 = vpack.c.b16 %v528, %v519
  %v610 = vpack.c.b16 %v529, %v520
  %v611 = vpack.c.b16 %v530, %v521
  %v612 = vpack.c.b16 %v531, %v522
  %v613 = vpack.c.b16 %v541, %v532
  %v614 = vpack.c.b16 %v542, %v533
  %v615 = vpack.c.b16 %v543, %v534
  %v616 = vpack.c.b16 %v544, %v535
  %v617 = vpack.c.b16 %v545, %v536
  %v618 = vpack.c.b16 %v546, %v537
  %v619 = vpack.c.b16 %v547, %v538
  %v620 = vpack.c.b16 %v548, %v539
  %v621 = vpack.c.b16 %v549, %v540
  %v838 = vunpack.c.l.b16 %v175
  %v839 = vunpack.c.l.b16 %v176
  %v840 = vunpack.c.l.b16 %v177
  %v841 = vunpack.c.l.b16 %v178
  %v842 = vunpack.c.l.b16 %v179
  %v843 = vunpack.c.l.b16 %v180
  %v844 = vunpack.c.l.b16 %v181
  %v845 = vunpack.c.l.b16 %v182
  %v846 = vunpack.c.l.b16 %v183
  %v847 = vunpack.c.l.b16 %v184
  %v848 = vunpack.c.l.b16 %v185
  %v849 = vunpack.c.l.b16 %v186
  %v850 = vunpack.c.l.b16 %v187
  %v851 = vunpack.c.l.b16 %v188
  %v852 = vunpack.c.l.b16 %v189
  %v853 = vunpack.c.l.b16 %v190
  %v854 = vunpack.c.l.b16 %v191
  %v855 = vunpack.c.l.b16 %v192
  %v856 = vunpack.c.l.b16 %v193
  %v857 = vunpack.c.l.b16 %v194
  %v858 = vunpack.c.l.b16 %v195
  %v859 = vunpack.c.l.b16 %v196
  %v860 = vunpack.c.l.b16 %v197
  %v861 = vunpack.c.l.b16 %v198
  %v862 = vunpack.c.l.b16 %v199
  %v863 = vunpack.c.l.b16 %v200
  %v864 = vunpack.c.l.b16 %v201
  %v865 = vunpack.c.l.b16 %v202
  %v866 = vunpack.c.l.b16 %v203
  %v867 = vunpack.c.l.b16 %v204
  %v868 = vunpack.c.l.b16 %v205
  %v869 = vunpack.c.l.b16 %v206
  %v870 = vunpack.c.l.b16 %v207
  %v871 = vunpack.c.l.b16 %v208
  %v872 = vunpack.c.l.b16 %v209
  %v873 = vunpack.c.l.b16 %v210
  %v874 = vunpack.c.l.b16 %v211
  %v875 = vunpack.c.l.b16 %v212
  %v876 = vunpack.c.l.b16 %v213
  %v877 = vunpack.c.l.b16 %v214
  %v878 = vunpack.c.l.b16 %v215
  %v879 = vunpack.c.l.b16 %v216
  %v880 = vunpack.c.l.b16 %v217
  %v881 = vunpack.c.l.b16 %v218
  %v882 = vunpack.c.l.b16 %v219
  %v883 = vunpack.c.l.b16 %v220
  %v884 = vunpack.c.l.b16 %v221
  %v885 = vunpack.c.l.b16 %v222
  %v886 = vunpack.c.l.b16 %v223
  %v887 = vunpack.c.l.b16 %v224
  %v888 = vunpack.c.l.b16 %v225
  %v889 = vunpack.c.l.b16 %v226
  %v890 = vunpack.c.l.b16 %v227
  %v891 = vunpack.c.l.b16 %v228
  %v892 = vunpack.c.l.b16 %v229
  %v893 = vunpack.c.l.b16 %v230
  %v894 = vunpack.c.l.b16 %v231
  %v895 = vunpack.c.l.b16 %v232
  %v896 = vunpack.c.l.b16 %v233
  %v897 = vunpack.c.l.b16 %v234
  %v898 = vunpack.c.l.b16 %v235
  %v899 = vunpack.c.l.b16 %v236
  %v900 = vunpack.c.l.b16 %v237
  %v901 = vunpack.c.l.b16 %v238
  %v902 = vunpack.c.l.b16 %v239
  %v903 = vunpack.c.l.b16 %v240
  %v904 = vunpack.c.l.b16 %v241
  %v905 = vunpack.c.l.b16 %v242
  %v906 = vunpack.c.l.b16 %v243
  %v907 = vunpack.c.l.b16 %v244
  %v908 = vunpack.c.l.b16 %v245
  %v909 = vunpack.c.l.b16 %v246
  %v910 = vunpack.c.l.b16 %v247
  %v911 = vunpack.c.l.b16 %v248
  %v912 = vunpack.c.l.b16 %v249
  %v913 = vunpack.c.l.b16 %v250
  %v914 = vunpack.c.l.b16 %v251
  %v915 = vunpack.c.l.b16 %v252
  %v916 = vunpack.c.l.b16 %v253
  %v917 = vunpack.c.l.b16 %v254
  %v918 = vunpack.c.l.b16 %v255
  %v919 = vunpack.c.l.b16 %v256
  %v920 = vunpack.c.l.b16 %v257
  %v921 = vunpack.c.l.b16 %v258
  %v922 = vunpack.c.l.b16 %v259
  %v923 = vunpack.c.l.b16 %v260
  %v924 = vunpack.c.l.b16 %v261
  %v925 = vunpack.c.l.b16 %v262
  %v926 = vunpack.c.l.b16 %v263
  %v927 = vunpack.c.l.b16 %v264
  %v928 = vunpack.c.l.b16 %v265
  %v929 = vunpack.c.l.b16 %v266
  %v930 = vunpack.c.l.b16 %v267
  %v931 = vunpack.c.l.b16 %v268
  %v932 = vunpack.c.l.b16 %v269
  %v933 = vunpack.c.l.b16 %v270
  %v934 = vunpack.c.l.b16 %v271
  %v935 = vunpack.c.l.b16 %v272
  %v936 = vunpack.c.l.b16 %v273
  %v937 = vunpack.c.l.b16 %v274
  %v938 = vunpack.c.l.b16 %v275
  %v939 = vunpack.c.l.b16 %v276
  %v940 = vunpack.c.l.b16 %v277
  %v941 = vunpack.c.l.b16 %v278
  %v942 = vunpack.c.l.b16 %v279
  %v943 = vunpack.c.l.b16 %v280
  %v944 = vunpack.c.l.b16 %v281
  %v945 = vunpack.c.l.b16 %v282
  %v946 = vunpack.c.l.b16 %v283
  %v947 = vunpack.c.l.b16 %v284
  %v948 = vunpack.c.l.b16 %v285
  %v949 = vunpack.c.l.b16 %v286
  %v950 = vunpack.c.l.b16 %v287
  %v951 = vunpack.c.l.b16 %v288
  %v952 = vunpack.c.l.b16 %v289
  %v953 = vunpack.c.l.b16 %v290
  %v954 = vunpack.c.l.b16 %v291
  %v955 = vunpack.c.l.b16 %v292
  %v956 = vunpack.c.l.b16 %v293
  %v957 = vunpack.c.l.b16 %v294
  %v958 = vunpack.c.l.b16 %v295
  %v959 = vunpack.c.l.b16 %v296
  %v960 = vunpack.c.l.b16 %v297
  %v961 = vunpack.c.l.b16 %v298
  %v962 = vunpack.c.l.b16 %v299
  %v963 = vunpack.c.l.b16 %v300
  %v964 = vunpack.c.l.b16 %v301
  %v965 = vunpack.c.l.b16 %v302
  %v966 = vunpack.c.l.b16 %v303
  %v967 = vunpack.c.l.b16 %v304
  %v968 = vunpack.c.l.b16 %v305
  %v969 = vunpack.c.l.b16 %v306
  %v970 = vunpack.c.l.b16 %v307
  %v971 = vunpack.c.l.b16 %v308
  %v972 = vunpack.c.l.b16 %v309
  %v973 = vunpack.c.l.b16 %v310
  %v974 = vunpack.c.l.b16 %v311
  %v975 = vunpack.c.l.b16 %v312
  %v976 = vunpack.c.l.b16 %v313
  %v977 = vunpack.c.l.b16 %v314
  %v978 = vunpack.c.l.b16 %v315
  %v979 = vunpack.c.l.b16 %v316
  %v980 = vunpack.c.l.b16 %v317
  %v981 = vunpack.c.l.b16 %v318
  %v982 = vpack.c.b16 %v839, %v838
  %v983 = vpack.c.b16 %v841, %v840
  %v984 = vpack.c.b16 %v843, %v842
  %v985 = vpack.c.b16 %v845, %v844
  %v986 = vpack.c.b16 %v847, %v846
  %v987 = vpack.c.b16 %v849, %v848
  %v988 = vpack.c.b16 %v851, %v850
  %v989 = vpack.c.b16 %v853, %v852
  %v990 = vpack.c.b16 %v855, %v854
  %v991 = vpack.c.b16 %v857, %v856
  %v992 = vpack.c.b16 %v859, %v858
  %v993 = vpack.c.b16 %v861, %v860
  %v994 = vpack.c.b16 %v863, %v862
  %v995 = vpack.c.b16 %v865, %v864
  %v996 = vpack.c.b16 %v867, %v866
  %v997 = vpack.c.b16 %v869, %v868
  %v998 = vpack.c.b16 %v871, %v870
  %v999 = vpack.c.b16 %v873, %v872
  %v1000 = vpack.c.b16 %v875, %v874
  %v1001 = vpack.c.b16 %v877, %v876
  %v1002 = vpack.c.b16 %v879, %v878
  %v1003 = vpack.c.b16 %v881, %v880
  %v1004 = vpack.c.b16 %v883, %v882
  %v1005 = vpack.c.b16 %v885, %v884
  %v1006 = vpack.c.b16 %v887, %v886
  %v1007 = vpack.c.b16 %v889, %v888
  %v1008 = vpack.c.b16 %v891, %v890
  %v1009 = vpack.c.b16 %v893, %v892
  %v1010 = vpack.c.b16 %v895, %v894
  %v1011 = vpack.c.b16 %v897, %v896
  %v1012 = vpack.c.b16 %v899, %v898
  %v1013 = vpack.c.b16 %v901, %v900
  %v1014 = vpack.c.b16 %v903, %v902
  %v1015 = vpack.c.b16 %v905, %v904
  %v1016 = vpack.c.b16 %v907, %v906
  %v1017 = vpack.c.b16 %v909, %v908
  %v1018 = vpack.c.b16 %v911, %v910
  %v1019 = vpack.c.b16 %v913, %v912
  %v1020 = vpack.c.b16 %v915, %v914
  %v1021 = vpack.c.b16 %v917, %v916
  %v1022 = vpack.c.b16 %v919, %v918
  %v1023 = vpack.c.b16 %v921, %v920
  %v1024 = vpack.c.b16 %v923, %v922
  %v1025 = vpack.c.b16 %v925, %v924
  %v1026 = vpack.c.b16 %v927, %v926
  %v1027 = vpack.c.b16 %v929, %v928
  %v1028 = vpack.c.b16 %v931, %v930
  %v1029 = vpack.c.b16 %v933, %v932
  %v1030 = vpack.c.b16 %v935, %v934
  %v1031 = vpack.c.b16 %v937, %v936
  %v1032 = vpack.c.b16 %v939, %v938
  %v1033 = vpack.c.b16 %v941, %v940
  %v1034 = vpack.c.b16 %v943, %v942
  %v1035 = vpack.c.b16 %v945, %v944
  %v1036 = vpack.c.b16 %v947, %v946
  %v1037 = vpack.c.b16 %v949, %v948
  %v1038 = vpack.c.b16 %v951, %v950
  %v1039 = vpack.c.b16 %v953, %v952
  %v1040 = vpack.c.b16 %v955, %v954
  %v1041 = vpack.c.b16 %v957, %v956
  %v1042 = vpack.c.b16 %v959, %v958
  %v1043 = vpack.c.b16 %v961, %v960
  %v1044 = vpack.c.b16 %v963, %v962
  %v1045 = vpack.c.b16 %v965, %v964
  %v1046 = vpack.c.b16 %v967, %v966
  %v1047 = vpack.c.b16 %v969, %v968
  %v1048 = vpack.c.b16 %v971, %v970
  %v1049 = vpack.c.b16 %v973, %v972
  %v1050 = vpack.c.b16 %v975, %v974
  %v1051 = vpack.c.b16 %v977, %v976
  %v1052 = vpack.c.b16 %v979, %v978
  %v1053 = vpack.c.b16 %v981, %v980
  %1126 = vmatprep.subr.bf16.mxu0 0
  %1127 = vmatpush1.bf16.msra.mxu0 %v982
  %1128 = vmatprep.subr.bf16.mxu0 0
  %1129 = vmatpush1.bf16.msra.mxu0 %v983
  %1130 = vmatprep.subr.bf16.mxu0 0
  %1131 = vmatpush1.bf16.msra.mxu0 %v984
  %1132 = vmatprep.subr.bf16.mxu0 0
  %1133 = vmatpush1.bf16.msra.mxu0 %v985
  %1134 = vmatprep.subr.bf16.mxu0 0
  %1135 = vmatpush1.bf16.msra.mxu0 %v986
  %1136 = vmatprep.subr.bf16.mxu0 0
  %1137 = vmatpush1.bf16.msra.mxu0 %v987
  %1138 = vmatprep.subr.bf16.mxu0 0
  %1139 = vmatpush1.bf16.msra.mxu0 %v988
  %1140 = vmatprep.subr.bf16.mxu0 0
  %1141 = vmatpush1.bf16.msra.mxu0 %v989
  %1142 = vmatprep.subr.bf16.mxu0 0
  %1143 = vmatpush1.bf16.msra.mxu0 %v990
  %1144 = vmatprep.subr.bf16.mxu0 0
  %1145 = vmatpush1.bf16.msra.mxu0 %v991
  %1146 = vmatprep.subr.bf16.mxu0 0
  %1147 = vmatpush1.bf16.msra.mxu0 %v992
  %1148 = vmatprep.subr.bf16.mxu0 0
  %1149 = vmatpush1.bf16.msra.mxu0 %v993
  %1150 = vmatprep.subr.bf16.mxu0 0
  %1151 = vmatpush1.bf16.msra.mxu0 %v994
  %1152 = vmatprep.subr.bf16.mxu0 0
  %1153 = vmatpush1.bf16.msra.mxu0 %v995
  %1154 = vmatprep.subr.bf16.mxu0 0
  %1155 = vmatpush1.bf16.msra.mxu0 %v996
  %1156 = vmatprep.subr.bf16.mxu0 0
  %1157 = vmatpush1.bf16.msra.mxu0 %v997
  %1158 = vmatprep.mubr.bf16.mxu0 %v551
  %1159 = vmatmul.mubr.bf16.gmra.mrb[0].mxu0 %v550
  %v1160 = vpop.f32.mrb[0].mxu0
  %v1161 = vadd.f32 %v324, %v1160
  %v1162 = vpop.f32.mrb[0].mxu0
  %v1163 = vpop.f32.mrb[0].mxu0
  %v1164 = vadd.f32 %v324, %v1163
  %v1165 = vpop.f32.mrb[0].mxu0
  %1166 = vmatprep.mubr.bf16.mxu0 %v560
  %1167 = vmatmul.mubr.bf16.gmra.mrb[0].mxu0 %v559
  %v1168 = vpop.f32.mrb[0].mxu0
  %v1169 = vadd.f32 %v324, %v1168
  %v1170 = vpop.f32.mrb[0].mxu0
  %v1171 = vpop.f32.mrb[0].mxu0
  %v1172 = vadd.f32 %v324, %v1171
  %v1173 = vpop.f32.mrb[0].mxu0
  %1174 = vmatprep.mubr.bf16.mxu0 %v569
  %1175 = vmatmul.mubr.bf16.gmra.mrb[0].mxu0 %v568
  %v1176 = vpop.f32.mrb[0].mxu0
  %v1177 = vadd.f32 %v324, %v1176
  %v1178 = vpop.f32.mrb[0].mxu0
  %v1179 = vpop.f32.mrb[0].mxu0
  %v1180 = vadd.f32 %v324, %v1179
  %v1181 = vpop.f32.mrb[0].mxu0
  %1182 = vmatprep.mubr.bf16.mxu0 %v578
  %1183 = vmatmul.mubr.bf16.gmra.mrb[0].mxu0 %v577
  %v1184 = vpop.f32.mrb[0].mxu0
  %v1185 = vadd.f32 %v324, %v1184
  %v1186 = vpop.f32.mrb[0].mxu0
  %v1187 = vpop.f32.mrb[0].mxu0
  %v1188 = vadd.f32 %v324, %v1187
  %v1189 = vpop.f32.mrb[0].mxu0
  %1190 = vmatprep.mubr.bf16.mxu0 %v587
  %1191 = vmatmul.mubr.bf16.gmra.mrb[0].mxu0 %v586
  %v1192 = vpop.f32.mrb[0].mxu0
  %v1193 = vadd.f32 %v324, %v1192
  %v1194 = vpop.f32.mrb[0].mxu0
  %v1195 = vpop.f32.mrb[0].mxu0
  %v1196 = vadd.f32 %v324, %v1195
  %v1197 = vpop.f32.mrb[0].mxu0
  %1198 = vmatprep.mubr.bf16.mxu0 %v596
  %1199 = vmatmul.mubr.bf16.gmra.mrb[0].mxu0 %v595
  %v1200 = vpop.f32.mrb[0].mxu0
  %v1201 = vadd.f32 %v324, %v1200
  %v1202 = vpop.f32.mrb[0].mxu0
  %v1203 = vpop.f32.mrb[0].mxu0
  %v1204 = vadd.f32 %v324, %v1203
  %v1205 = vpop.f32.mrb[0].mxu0
  %1206 = vmatprep.mubr.bf16.mxu0 %v605
  %1207 = vmatmul.mubr.bf16.gmra.mrb[0].mxu0 %v604
  %v1208 = vpop.f32.mrb[0].mxu0
  %v1209 = vadd.f32 %v324, %v1208
  %v1210 = vpop.f32.mrb[0].mxu0
  %v1211 = vpop.f32.mrb[0].mxu0
  %v1212 = vadd.f32 %v324, %v1211
  %v1213 = vpop.f32.mrb[0].mxu0
  %1214 = vmatprep.mubr.bf16.mxu0 %v614
  %1215 = vmatmul.mubr.bf16.gmra.mrb[0].mxu0 %v613
  %v1216 = vpop.f32.mrb[0].mxu0
  %v1217 = vadd.f32 %v324, %v1216
  %v1218 = vpop.f32.mrb[0].mxu0
  %v1219 = vpop.f32.mrb[0].mxu0
  %v1220 = vadd.f32 %v324, %v1219
  %v1221 = vpop.f32.mrb[0].mxu0
  %1222 = vdwg.mxu0
  %1223 = vmatprep.subr.bf16.mxu0 0
  %1224 = vmatpush1.bf16.msra.mxu0 %v998
  %1225 = vmatprep.subr.bf16.mxu0 0
  %1226 = vmatpush1.bf16.msra.mxu0 %v999
  %1227 = vmatprep.subr.bf16.mxu0 0
  %1228 = vmatpush1.bf16.msra.mxu0 %v1000
  %1229 = vmatprep.subr.bf16.mxu0 0
  %1230 = vmatpush1.bf16.msra.mxu0 %v1001
  %1231 = vmatprep.subr.bf16.mxu0 0
  %1232 = vmatpush1.bf16.msra.mxu0 %v1002
  %1233 = vmatprep.subr.bf16.mxu0 0
  %1234 = vmatpush1.bf16.msra.mxu0 %v1003
  %1235 = vmatprep.subr.bf16.mxu0 0
  %1236 = vmatpush1.bf16.msra.mxu0 %v1004
  %1237 = vmatprep.subr.bf16.mxu0 0
  %1238 = vmatpush1.bf16.msra.mxu0 %v1005
  %1239 = vmatprep.subr.bf16.mxu0 0
  %1240 = vmatpush1.bf16.msra.mxu0 %v1006
  %1241 = vmatprep.subr.bf16.mxu0 0
  %1242 = vmatpush1.bf16.msra.mxu0 %v1007
  %1243 = vmatprep.subr.bf16.mxu0 0
  %1244 = vmatpush1.bf16.msra.mxu0 %v1008
  %1245 = vmatprep.subr.bf16.mxu0 0
  %1246 = vmatpush1.bf16.msra.mxu0 %v1009
  %1247 = vmatprep.subr.bf16.mxu0 0
  %1248 = vmatpush1.bf16.msra.mxu0 %v1010
  %1249 = vmatprep.subr.bf16.mxu0 0
  %1250 = vmatpush1.bf16.msra.mxu0 %v1011
  %1251 = vmatprep.subr.bf16.mxu0 0
  %1252 = vmatpush1.bf16.msra.mxu0 %v1012
  %1253 = vmatprep.subr.bf16.mxu0 0
  %1254 = vmatpush1.bf16.msra.mxu0 %v1013
  %1255 = vmatprep.mubr.bf16.mxu0 %v553
  %1256 = vmatmul.mubr.bf16.gmra.mrb[0].mxu0 %v552
  %v1257 = vpop.f32.mrb[0].mxu0
  %v1258 = vadd.f32 %v1161, %v1257
  %v1259 = vpop.f32.mrb[0].mxu0
  %v1260 = vpop.f32.mrb[0].mxu0
  %v1261 = vadd.f32 %v1164, %v1260
  %v1262 = vpop.f32.mrb[0].mxu0
  %1263 = vmatprep.mubr.bf16.mxu0 %v562
  %1264 = vmatmul.mubr.bf16.gmra.mrb[0].mxu0 %v561
  %v1265 = vpop.f32.mrb[0].mxu0
  %v1266 = vadd.f32 %v1169, %v1265
  %v1267 = vpop.f32.mrb[0].mxu0
  %v1268 = vpop.f32.mrb[0].mxu0
  %v1269 = vadd.f32 %v1172, %v1268
  %v1270 = vpop.f32.mrb[0].mxu0
  %1271 = vmatprep.mubr.bf16.mxu0 %v571
  %1272 = vmatmul.mubr.bf16.gmra.mrb[0].mxu0 %v570
  %v1273 = vpop.f32.mrb[0].mxu0
  %v1274 = vadd.f32 %v1177, %v1273
  %v1275 = vpop.f32.mrb[0].mxu0
  %v1276 = vpop.f32.mrb[0].mxu0
  %v1277 = vadd.f32 %v1180, %v1276
  %v1278 = vpop.f32.mrb[0].mxu0
  %1279 = vmatprep.mubr.bf16.mxu0 %v580
  %1280 = vmatmul.mubr.bf16.gmra.mrb[0].mxu0 %v579
  %v1281 = vpop.f32.mrb[0].mxu0
  %v1282 = vadd.f32 %v1185, %v1281
  %v1283 = vpop.f32.mrb[0].mxu0
  %v1284 = vpop.f32.mrb[0].mxu0
  %v1285 = vadd.f32 %v1188, %v1284
  %v1286 = vpop.f32.mrb[0].mxu0
  %1287 = vmatprep.mubr.bf16.mxu0 %v589
  %1288 = vmatmul.mubr.bf16.gmra.mrb[0].mxu0 %v588
  %v1289 = vpop.f32.mrb[0].mxu0
  %v1290 = vadd.f32 %v1193, %v1289
  %v1291 = vpop.f32.mrb[0].mxu0
  %v1292 = vpop.f32.mrb[0].mxu0
  %v1293 = vadd.f32 %v1196, %v1292
  %v1294 = vpop.f32.mrb[0].mxu0
  %1295 = vmatprep.mubr.bf16.mxu0 %v598
  %1296 = vmatmul.mubr.bf16.gmra.mrb[0].mxu0 %v597
  %v1297 = vpop.f32.mrb[0].mxu0
  %v1298 = vadd.f32 %v1201, %v1297
  %v1299 = vpop.f32.mrb[0].mxu0
  %v1300 = vpop.f32.mrb[0].mxu0
  %v1301 = vadd.f32 %v1204, %v1300
  %v1302 = vpop.f32.mrb[0].mxu0
  %1303 = vmatprep.mubr.bf16.mxu0 %v607
  %1304 = vmatmul.mubr.bf16.gmra.mrb[0].mxu0 %v606
  %v1305 = vpop.f32.mrb[0].mxu0
  %v1306 = vadd.f32 %v1209, %v1305
  %v1307 = vpop.f32.mrb[0].mxu0
  %v1308 = vpop.f32.mrb[0].mxu0
  %v1309 = vadd.f32 %v1212, %v1308
  %v1310 = vpop.f32.mrb[0].mxu0
  %1311 = vmatprep.mubr.bf16.mxu0 %v616
  %1312 = vmatmul.mubr.bf16.gmra.mrb[0].mxu0 %v615
  %v1313 = vpop.f32.mrb[0].mxu0
  %v1314 = vadd.f32 %v1217, %v1313
  %v1315 = vpop.f32.mrb[0].mxu0
  %v1316 = vpop.f32.mrb[0].mxu0
  %v1317 = vadd.f32 %v1220, %v1316
  %v1318 = vpop.f32.mrb[0].mxu0
  %1319 = vdwg.mxu0
  %1320 = vmatprep.subr.bf16.mxu0 0
  %1321 = vmatpush1.bf16.msra.mxu0 %v1014
  %1322 = vmatprep.subr.bf16.mxu0 0
  %1323 = vmatpush1.bf16.msra.mxu0 %v1015
  %1324 = vmatprep.subr.bf16.mxu0 0
  %1325 = vmatpush1.bf16.msra.mxu0 %v1016
  %1326 = vmatprep.subr.bf16.mxu0 0
  %1327 = vmatpush1.bf16.msra.mxu0 %v1017
  %1328 = vmatprep.subr.bf16.mxu0 0
  %1329 = vmatpush1.bf16.msra.mxu0 %v1018
  %1330 = vmatprep.subr.bf16.mxu0 0
  %1331 = vmatpush1.bf16.msra.mxu0 %v1019
  %1332 = vmatprep.subr.bf16.mxu0 0
  %1333 = vmatpush1.bf16.msra.mxu0 %v1020
  %1334 = vmatprep.subr.bf16.mxu0 0
  %1335 = vmatpush1.bf16.msra.mxu0 %v1021
  %1336 = vmatprep.subr.bf16.mxu0 0
  %1337 = vmatpush1.bf16.msra.mxu0 %v1022
  %1338 = vmatprep.subr.bf16.mxu0 0
  %1339 = vmatpush1.bf16.msra.mxu0 %v1023
  %1340 = vmatprep.subr.bf16.mxu0 0
  %1341 = vmatpush1.bf16.msra.mxu0 %v1024
  %1342 = vmatprep.subr.bf16.mxu0 0
  %1343 = vmatpush1.bf16.msra.mxu0 %v1025
  %1344 = vmatprep.subr.bf16.mxu0 0
  %1345 = vmatpush1.bf16.msra.mxu0 %v1026
  %1346 = vmatprep.subr.bf16.mxu0 0
  %1347 = vmatpush1.bf16.msra.mxu0 %v1027
  %1348 = vmatprep.subr.bf16.mxu0 0
  %1349 = vmatpush1.bf16.msra.mxu0 %v1028
  %1350 = vmatprep.subr.bf16.mxu0 0
  %1351 = vmatpush1.bf16.msra.mxu0 %v1029
  %1352 = vmatprep.mubr.bf16.mxu0 %v555
  %1353 = vmatmul.mubr.bf16.gmra.mrb[0].mxu0 %v554
  %v1354 = vpop.f32.mrb[0].mxu0
  %v1355 = vadd.f32 %v1258, %v1354
  %v1356 = vpop.f32.mrb[0].mxu0
  %v1357 = vpop.f32.mrb[0].mxu0
  %v1358 = vadd.f32 %v1261, %v1357
  %v1359 = vpop.f32.mrb[0].mxu0
  %1360 = vmatprep.mubr.bf16.mxu0 %v564
  %1361 = vmatmul.mubr.bf16.gmra.mrb[0].mxu0 %v563
  %v1362 = vpop.f32.mrb[0].mxu0
  %v1363 = vadd.f32 %v1266, %v1362
  %v1364 = vpop.f32.mrb[0].mxu0
  %v1365 = vpop.f32.mrb[0].mxu0
  %v1366 = vadd.f32 %v1269, %v1365
  %v1367 = vpop.f32.mrb[0].mxu0
  %1368 = vmatprep.mubr.bf16.mxu0 %v573
  %1369 = vmatmul.mubr.bf16.gmra.mrb[0].mxu0 %v572
  %v1370 = vpop.f32.mrb[0].mxu0
  %v1371 = vadd.f32 %v1274, %v1370
  %v1372 = vpop.f32.mrb[0].mxu0
  %v1373 = vpop.f32.mrb[0].mxu0
  %v1374 = vadd.f32 %v1277, %v1373
  %v1375 = vpop.f32.mrb[0].mxu0
  %1376 = vmatprep.mubr.bf16.mxu0 %v582
  %1377 = vmatmul.mubr.bf16.gmra.mrb[0].mxu0 %v581
  %v1378 = vpop.f32.mrb[0].mxu0
  %v1379 = vadd.f32 %v1282, %v1378
  %v1380 = vpop.f32.mrb[0].mxu0
  %v1381 = vpop.f32.mrb[0].mxu0
  %v1382 = vadd.f32 %v1285, %v1381
  %v1383 = vpop.f32.mrb[0].mxu0
  %1384 = vmatprep.mubr.bf16.mxu0 %v591
  %1385 = vmatmul.mubr.bf16.gmra.mrb[0].mxu0 %v590
  %v1386 = vpop.f32.mrb[0].mxu0
  %v1387 = vadd.f32 %v1290, %v1386
  %v1388 = vpop.f32.mrb[0].mxu0
  %v1389 = vpop.f32.mrb[0].mxu0
  %v1390 = vadd.f32 %v1293, %v1389
  %v1391 = vpop.f32.mrb[0].mxu0
  %1392 = vmatprep.mubr.bf16.mxu0 %v600
  %1393 = vmatmul.mubr.bf16.gmra.mrb[0].mxu0 %v599
  %v1394 = vpop.f32.mrb[0].mxu0
  %v1395 = vadd.f32 %v1298, %v1394
  %v1396 = vpop.f32.mrb[0].mxu0
  %v1397 = vpop.f32.mrb[0].mxu0
  %v1398 = vadd.f32 %v1301, %v1397
  %v1399 = vpop.f32.mrb[0].mxu0
  %1400 = vmatprep.mubr.bf16.mxu0 %v609
  %1401 = vmatmul.mubr.bf16.gmra.mrb[0].mxu0 %v608
  %v1402 = vpop.f32.mrb[0].mxu0
  %v1403 = vadd.f32 %v1306, %v1402
  %v1404 = vpop.f32.mrb[0].mxu0
  %v1405 = vpop.f32.mrb[0].mxu0
  %v1406 = vadd.f32 %v1309, %v1405
  %v1407 = vpop.f32.mrb[0].mxu0
  %1408 = vmatprep.mubr.bf16.mxu0 %v618
  %1409 = vmatmul.mubr.bf16.gmra.mrb[0].mxu0 %v617
  %v1410 = vpop.f32.mrb[0].mxu0
  %v1411 = vadd.f32 %v1314, %v1410
  %v1412 = vpop.f32.mrb[0].mxu0
  %v1413 = vpop.f32.mrb[0].mxu0
  %v1414 = vadd.f32 %v1317, %v1413
  %v1415 = vpop.f32.mrb[0].mxu0
  %1416 = vdwg.mxu0
  %1417 = vmatprep.subr.bf16.mxu0 0
  %1418 = vmatpush1.bf16.msra.mxu0 %v1030
  %1419 = vmatprep.subr.bf16.mxu0 0
  %1420 = vmatpush1.bf16.msra.mxu0 %v1031
  %1421 = vmatprep.subr.bf16.mxu0 0
  %1422 = vmatpush1.bf16.msra.mxu0 %v1032
  %1423 = vmatprep.subr.bf16.mxu0 0
  %1424 = vmatpush1.bf16.msra.mxu0 %v1033
  %1425 = vmatprep.subr.bf16.mxu0 0
  %1426 = vmatpush1.bf16.msra.mxu0 %v1034
  %1427 = vmatprep.subr.bf16.mxu0 0
  %1428 = vmatpush1.bf16.msra.mxu0 %v1035
  %1429 = vmatprep.subr.bf16.mxu0 0
  %1430 = vmatpush1.bf16.msra.mxu0 %v1036
  %1431 = vmatprep.subr.bf16.mxu0 0
  %1432 = vmatpush1.bf16.msra.mxu0 %v1037
  %1433 = vmatprep.subr.bf16.mxu0 0
  %1434 = vmatpush1.bf16.msra.mxu0 %v1038
  %1435 = vmatprep.subr.bf16.mxu0 0
  %1436 = vmatpush1.bf16.msra.mxu0 %v1039
  %1437 = vmatprep.subr.bf16.mxu0 0
  %1438 = vmatpush1.bf16.msra.mxu0 %v1040
  %1439 = vmatprep.subr.bf16.mxu0 0
  %1440 = vmatpush1.bf16.msra.mxu0 %v1041
  %1441 = vmatprep.subr.bf16.mxu0 0
  %1442 = vmatpush1.bf16.msra.mxu0 %v1042
  %1443 = vmatprep.subr.bf16.mxu0 0
  %1444 = vmatpush1.bf16.msra.mxu0 %v1043
  %1445 = vmatprep.subr.bf16.mxu0 0
  %1446 = vmatpush1.bf16.msra.mxu0 %v1044
  %1447 = vmatprep.subr.bf16.mxu0 0
  %1448 = vmatpush1.bf16.msra.mxu0 %v1045
  %1449 = vmatprep.mubr.bf16.mxu0 %v557
  %1450 = vmatmul.mubr.bf16.gmra.mrb[0].mxu0 %v556
  %v1451 = vpop.f32.mrb[0].mxu0
  %v1452 = vadd.f32 %v1355, %v1451
  %v1453 = vpop.f32.mrb[0].mxu0
  %v1454 = vpop.f32.mrb[0].mxu0
  %v1455 = vadd.f32 %v1358, %v1454
  %v1456 = vpop.f32.mrb[0].mxu0
  %1457 = vmatprep.mubr.bf16.mxu0 %v566
  %1458 = vmatmul.mubr.bf16.gmra.mrb[0].mxu0 %v565
  %v1459 = vpop.f32.mrb[0].mxu0
  %v1460 = vadd.f32 %v1363, %v1459
  %v1461 = vpop.f32.mrb[0].mxu0
  %v1462 = vpop.f32.mrb[0].mxu0
  %v1463 = vadd.f32 %v1366, %v1462
  %v1464 = vpop.f32.mrb[0].mxu0
  %1465 = vmatprep.mubr.bf16.mxu0 %v575
  %1466 = vmatmul.mubr.bf16.gmra.mrb[0].mxu0 %v574
  %v1467 = vpop.f32.mrb[0].mxu0
  %v1468 = vadd.f32 %v1371, %v1467
  %v1469 = vpop.f32.mrb[0].mxu0
  %v1470 = vpop.f32.mrb[0].mxu0
  %v1471 = vadd.f32 %v1374, %v1470
  %v1472 = vpop.f32.mrb[0].mxu0
  %1473 = vmatprep.mubr.bf16.mxu0 %v584
  %1474 = vmatmul.mubr.bf16.gmra.mrb[0].mxu0 %v583
  %v1475 = vpop.f32.mrb[0].mxu0
  %v1476 = vadd.f32 %v1379, %v1475
  %v1477 = vpop.f32.mrb[0].mxu0
  %v1478 = vpop.f32.mrb[0].mxu0
  %v1479 = vadd.f32 %v1382, %v1478
  %v1480 = vpop.f32.mrb[0].mxu0
  %1481 = vmatprep.mubr.bf16.mxu0 %v593
  %1482 = vmatmul.mubr.bf16.gmra.mrb[0].mxu0 %v592
  %v1483 = vpop.f32.mrb[0].mxu0
  %v1484 = vadd.f32 %v1387, %v1483
  %v1485 = vpop.f32.mrb[0].mxu0
  %v1486 = vpop.f32.mrb[0].mxu0
  %v1487 = vadd.f32 %v1390, %v1486
  %v1488 = vpop.f32.mrb[0].mxu0
  %1489 = vmatprep.mubr.bf16.mxu0 %v602
  %1490 = vmatmul.mubr.bf16.gmra.mrb[0].mxu0 %v601
  %v1491 = vpop.f32.mrb[0].mxu0
  %v1492 = vadd.f32 %v1395, %v1491
  %v1493 = vpop.f32.mrb[0].mxu0
  %v1494 = vpop.f32.mrb[0].mxu0
  %v1495 = vadd.f32 %v1398, %v1494
  %v1496 = vpop.f32.mrb[0].mxu0
  %1497 = vmatprep.mubr.bf16.mxu0 %v611
  %1498 = vmatmul.mubr.bf16.gmra.mrb[0].mxu0 %v610
  %v1499 = vpop.f32.mrb[0].mxu0
  %v1500 = vadd.f32 %v1403, %v1499
  %v1501 = vpop.f32.mrb[0].mxu0
  %v1502 = vpop.f32.mrb[0].mxu0
  %v1503 = vadd.f32 %v1406, %v1502
  %v1504 = vpop.f32.mrb[0].mxu0
  %1505 = vmatprep.mubr.bf16.mxu0 %v620
  %1506 = vmatmul.mubr.bf16.gmra.mrb[0].mxu0 %v619
  %v1507 = vpop.f32.mrb[0].mxu0
  %v1508 = vadd.f32 %v1411, %v1507
  %v1509 = vpop.f32.mrb[0].mxu0
  %v1510 = vpop.f32.mrb[0].mxu0
  %v1511 = vadd.f32 %v1414, %v1510
  %v1512 = vpop.f32.mrb[0].mxu0
  %1513 = vdwg.mxu0
  %1514 = vmatprep.subr.bf16.mxu0 0
  %1515 = vmatpush1.bf16.msra.mxu0 %v1046
  %1516 = vmatprep.subr.bf16.mxu0 0
  %1517 = vmatpush1.bf16.msra.mxu0 %v1047
  %1518 = vmatprep.subr.bf16.mxu0 0
  %1519 = vmatpush1.bf16.msra.mxu0 %v1048
  %1520 = vmatprep.subr.bf16.mxu0 0
  %1521 = vmatpush1.bf16.msra.mxu0 %v1049
  %1522 = vmatprep.subr.bf16.mxu0 0
  %1523 = vmatpush1.bf16.msra.mxu0 %v1050
  %1524 = vmatprep.subr.bf16.mxu0 0
  %1525 = vmatpush1.bf16.msra.mxu0 %v1051
  %1526 = vmatprep.subr.bf16.mxu0 0
  %1527 = vmatpush1.bf16.msra.mxu0 %v1052
  %1528 = vmatprep.subr.bf16.mxu0 0
  %1529 = vmatpush1.bf16.msra.mxu0 %v1053
  %1530 = vmatprep.subr.bf16.mxu0 0
  %1531 = vmatpush1.bf16.msra.mxu0 0
  %1532 = vmatprep.subr.bf16.mxu0 0
  %1533 = vmatpush1.bf16.msra.mxu0 0
  %1534 = vmatprep.subr.bf16.mxu0 0
  %1535 = vmatpush1.bf16.msra.mxu0 0
  %1536 = vmatprep.subr.bf16.mxu0 0
  %1537 = vmatpush1.bf16.msra.mxu0 0
  %1538 = vmatprep.subr.bf16.mxu0 0
  %1539 = vmatpush1.bf16.msra.mxu0 0
  %1540 = vmatprep.subr.bf16.mxu0 0
  %1541 = vmatpush1.bf16.msra.mxu0 0
  %1542 = vmatprep.subr.bf16.mxu0 0
  %1543 = vmatpush1.bf16.msra.mxu0 0
  %1544 = vmatprep.subr.bf16.mxu0 0
  %1545 = vmatpush1.bf16.msra.mxu0 0
  %1546 = vmatprep.mubr.bf16.mxu0 0
  %1547 = vmatmul.mubr.bf16.gmra.mrb[0].mxu0 %v558
  %v1548 = vpop.f32.mrb[0].mxu0
  %v1549 = vadd.f32 %v1452, %v1548
  %v1550 = vpop.f32.mrb[0].mxu0
  %v1551 = vpop.f32.mrb[0].mxu0
  %v1552 = vadd.f32 %v1455, %v1551
  %v1553 = vpop.f32.mrb[0].mxu0
  %1554 = vmatprep.mubr.bf16.mxu0 0
  %1555 = vmatmul.mubr.bf16.gmra.mrb[0].mxu0 %v567
  %v1556 = vpop.f32.mrb[0].mxu0
  %v1557 = vadd.f32 %v1460, %v1556
  %v1558 = vpop.f32.mrb[0].mxu0
  %v1559 = vpop.f32.mrb[0].mxu0
  %v1560 = vadd.f32 %v1463, %v1559
  %v1561 = vpop.f32.mrb[0].mxu0
  %1562 = vmatprep.mubr.bf16.mxu0 0
  %1563 = vmatmul.mubr.bf16.gmra.mrb[0].mxu0 %v576
  %v1564 = vpop.f32.mrb[0].mxu0
  %v1565 = vadd.f32 %v1468, %v1564
  %v1566 = vpop.f32.mrb[0].mxu0
  %v1567 = vpop.f32.mrb[0].mxu0
  %v1568 = vadd.f32 %v1471, %v1567
  %v1569 = vpop.f32.mrb[0].mxu0
  %1570 = vmatprep.mubr.bf16.mxu0 0
  %1571 = vmatmul.mubr.bf16.gmra.mrb[0].mxu0 %v585
  %v1572 = vpop.f32.mrb[0].mxu0
  %v1573 = vadd.f32 %v1476, %v1572
  %v1574 = vpop.f32.mrb[0].mxu0
  %v1575 = vpop.f32.mrb[0].mxu0
  %v1576 = vadd.f32 %v1479, %v1575
  %v1577 = vpop.f32.mrb[0].mxu0
  %1578 = vmatprep.mubr.bf16.mxu0 0
  %1579 = vmatmul.mubr.bf16.gmra.mrb[0].mxu0 %v594
  %v1580 = vpop.f32.mrb[0].mxu0
  %v1581 = vadd.f32 %v1484, %v1580
  %v1582 = vpop.f32.mrb[0].mxu0
  %v1583 = vpop.f32.mrb[0].mxu0
  %v1584 = vadd.f32 %v1487, %v1583
  %v1585 = vpop.f32.mrb[0].mxu0
  %1586 = vmatprep.mubr.bf16.mxu0 0
  %1587 = vmatmul.mubr.bf16.gmra.mrb[0].mxu0 %v603
  %v1588 = vpop.f32.mrb[0].mxu0
  %v1589 = vadd.f32 %v1492, %v1588
  %v1590 = vpop.f32.mrb[0].mxu0
  %v1591 = vpop.f32.mrb[0].mxu0
  %v1592 = vadd.f32 %v1495, %v1591
  %v1593 = vpop.f32.mrb[0].mxu0
  %1594 = vmatprep.mubr.bf16.mxu0 0
  %1595 = vmatmul.mubr.bf16.gmra.mrb[0].mxu0 %v612
  %v1596 = vpop.f32.mrb[0].mxu0
  %v1597 = vadd.f32 %v1500, %v1596
  %v1598 = vpop.f32.mrb[0].mxu0
  %v1599 = vpop.f32.mrb[0].mxu0
  %v1600 = vadd.f32 %v1503, %v1599
  %v1601 = vpop.f32.mrb[0].mxu0
  %1602 = vmatprep.mubr.bf16.mxu0 0
  %1603 = vmatmul.mubr.bf16.gmra.mrb[0].mxu0 %v621
  %v1604 = vpop.f32.mrb[0].mxu0
  %v1605 = vadd.f32 %v1508, %v1604
  %v1606 = vpop.f32.mrb[0].mxu0
  %v1607 = vpop.f32.mrb[0].mxu0
  %v1608 = vadd.f32 %v1511, %v1607
  %v1609 = vpop.f32.mrb[0].mxu0
  %1610 = vdwg.mxu0
  %v1611 = vpack.c.bf16 %v1552, %v1549
  %v1612 = vpack.c.bf16 %v1560, %v1557
  %v1613 = vpack.c.bf16 %v1568, %v1565
  %v1614 = vpack.c.bf16 %v1576, %v1573
  %v1615 = vpack.c.bf16 %v1584, %v1581
  %v1616 = vpack.c.bf16 %v1592, %v1589
  %v1617 = vpack.c.bf16 %v1600, %v1597
  %v1618 = vpack.c.bf16 %v1608, %v1605
  %v1627 = vunpack.c.l.b16 %v1611
  %v1628 = vunpack.c.h.b16 %v1611
  %v1629 = vunpack.c.l.b16 %v1612
  %v1630 = vunpack.c.h.b16 %v1612
  %v1631 = vunpack.c.l.b16 %v1613
  %v1632 = vunpack.c.h.b16 %v1613
  %v1633 = vunpack.c.l.b16 %v1614
  %v1634 = vunpack.c.h.b16 %v1614
  %v1635 = vunpack.c.l.b16 %v1615
  %v1636 = vunpack.c.h.b16 %v1615
  %v1637 = vunpack.c.l.b16 %v1616
  %v1638 = vunpack.c.h.b16 %v1616
  %v1639 = vunpack.c.l.b16 %v1617
  %v1640 = vunpack.c.h.b16 %v1617
  %v1641 = vunpack.c.l.b16 %v1618
  %v1642 = vunpack.c.h.b16 %v1618
  %v1643 = vpack.c.b16 %v1627, %v1627
  %v1644 = vpack.c.b16 %v1628, %v1628
  %v1645 = vpack.c.b16 %v1629, %v1629
  %v1646 = vpack.c.b16 %v1630, %v1630
  %v1647 = vpack.c.b16 %v1631, %v1631
  %v1648 = vpack.c.b16 %v1632, %v1632
  %v1649 = vpack.c.b16 %v1633, %v1633
  %v1650 = vpack.c.b16 %v1634, %v1634
  %v1651 = vpack.c.b16 %v1635, %v1635
  %v1652 = vpack.c.b16 %v1636, %v1636
  %v1653 = vpack.c.b16 %v1637, %v1637
  %v1654 = vpack.c.b16 %v1638, %v1638
  %v1655 = vpack.c.b16 %v1639, %v1639
  %v1656 = vpack.c.b16 %v1640, %v1640
  %v1657 = vpack.c.b16 %v1641, %v1641
  %v1658 = vpack.c.b16 %v1642, %v1642
  %1675 = vst [vmem:[%s3] sm:$0xf] %v1643
  %1676 = vst [vmem:[%s3 + $0x4] sm:$0xf] %v1644
  %1677 = vst [vmem:[%s3 + $0x8] sm:$0xf] %v1645
  %1678 = vst [vmem:[%s3 + $0xc] sm:$0xf] %v1646
  %1679 = vst [vmem:[%s3 + $0x10] sm:$0xf] %v1647
  %1680 = vst [vmem:[%s3 + $0x14] sm:$0xf] %v1648
  %1681 = vst [vmem:[%s3 + $0x18] sm:$0xf] %v1649
  %1682 = vst [vmem:[%s3 + $0x1c] sm:$0xf] %v1650
  %1683 = vst [vmem:[%s3 + $0x20] sm:$0xf] %v1651
  %1684 = vst [vmem:[%s3 + $0x24] sm:$0xf] %v1652
  %1685 = vst [vmem:[%s3 + $0x28] sm:$0xf] %v1653
  %1686 = vst [vmem:[%s3 + $0x2c] sm:$0xf] %v1654
  %1687 = vst [vmem:[%s3 + $0x30] sm:$0xf] %v1655
  %1688 = vst [vmem:[%s3 + $0x34] sm:$0xf] %v1656
  %1689 = vst [vmem:[%s3 + $0x38] sm:$0xf] %v1657
  %1690 = vst [vmem:[%s3 + $0x3c] sm:$0xf] %v1658
  // Predicated region
  $region14: #{discriminator32_forward.17} parent=0 // pred_check
    _
  $region15: #{discriminator32_forward.17} parent=0 // pred_check_branch
    %1692 = sbr.rel (0) target = $region17
  $region16: #{discriminator32_forward.17} parent=0 // pred_region
    _
  $region17: #{discriminator32_forward.17} parent=0 // pred_fallthru
    _
  // Predicated region
  $region18: #{discriminator32_forward.17} parent=0 // pred_check
    _
  $region19: #{discriminator32_forward.17} parent=0 // pred_check_branch
    %1694 = sbr.rel (0) target = $region21
  $region20: #{discriminator32_forward.17} parent=0 // pred_region
    _
  $region21: #{discriminator32_forward.17} parent=0 // pred_fallthru
    _

// kernel: discriminator32_forward.18
$region0: #{discriminator32_forward.18}
  #allocation0 [shape = 'u32[]', space=smem, size = 0x4, offset = 0x4, fixed_abs, tag = 'smem constant byte address 0x4 - core index']
  #allocation1 [shape = 'u32[144,128]{1,0:T(1,128)}', space=vmem, size = 0x12000, scoped, tag = 'internal scratch']
  %s0 = inlined_call_operand.vmem [shape: bf16[128,1152], index: 0, kind: input, shape index: {}]
  %s1 = inlined_call_operand.vmem [shape: bf16[1152,128], index: 1, kind: input, shape index: {}]
  %s2 = inlined_call_operand.vmem [shape: f32[1,128], index: 2, kind: input, shape index: {}]
  %s3 = inlined_call_operand.vmem [shape: bf16[128,128], index: 3, kind: input, shape index: {}]
  %s4 = inlined_call_operand.vmem [shape: bf16[128,128], index: 4, kind: output, shape index: {}]
  %s5 = sld [smem:[#allocation0]]
  $region26: #{discriminator32_forward.18} parent=0
    _
  %s7 = ssub.s32 1, %s5
  %s8 = scalar_select 0, %s7, %s5
  // Predicated region
  $region2: #{discriminator32_forward.18} parent=0 // pred_check
    _
  $region3: #{discriminator32_forward.18} parent=0 // pred_check_branch
    %10 = sbr.rel (0) target = $region5
  $region4: #{discriminator32_forward.18} parent=0 // pred_region
    _
  $region5: #{discriminator32_forward.18} parent=0 // pred_fallthru
    _
  // Predicated region
  $region6: #{discriminator32_forward.18} parent=0 // pred_check
    _
  $region7: #{discriminator32_forward.18} parent=0 // pred_check_branch
    %12 = sbr.rel (0) target = $region9
  $region8: #{discriminator32_forward.18} parent=0 // pred_region
    _
  $region9: #{discriminator32_forward.18} parent=0 // pred_fallthru
    _
  // Predicated region
  $region10: #{discriminator32_forward.18} parent=0 // pred_check
    _
  $region11: #{discriminator32_forward.18} parent=0 // pred_check_branch
    %14 = sbr.rel (0) target = $region13
  $region12: #{discriminator32_forward.18} parent=0 // pred_region
    _
  $region13: #{discriminator32_forward.18} parent=0 // pred_fallthru
    _
  // Predicated region
  $region14: #{discriminator32_forward.18} parent=0 // pred_check
    _
  $region15: #{discriminator32_forward.18} parent=0 // pred_check_branch
    %16 = sbr.rel (0) target = $region17
  $region16: #{discriminator32_forward.18} parent=0 // pred_region
    _
  $region17: #{discriminator32_forward.18} parent=0 // pred_fallthru
    _
  %v18 = vld [vmem:[%s0] sm:$0xff]
  %v19 = vld [vmem:[%s0 + $0x8] sm:$0xff]
  %v20 = vld [vmem:[%s0 + $0x10] sm:$0xff]
  %v21 = vld [vmem:[%s0 + $0x18] sm:$0xff]
  %v22 = vld [vmem:[%s0 + $0x20] sm:$0xf]
  %v23 = vld [vmem:[%s0 + $0x24] sm:$0xff]
  %v24 = vld [vmem:[%s0 + $0x2c] sm:$0xff]
  %v25 = vld [vmem:[%s0 + $0x34] sm:$0xff]
  %v26 = vld [vmem:[%s0 + $0x3c] sm:$0xff]
  %v27 = vld [vmem:[%s0 + $0x44] sm:$0xf]
  %v28 = vld [vmem:[%s0 + $0x48] sm:$0xff]
  %v29 = vld [vmem:[%s0 + $0x50] sm:$0xff]
  %v30 = vld [vmem:[%s0 + $0x58] sm:$0xff]
  %v31 = vld [vmem:[%s0 + $0x60] sm:$0xff]
  %v32 = vld [vmem:[%s0 + $0x68] sm:$0xf]
  %v33 = vld [vmem:[%s0 + $0x6c] sm:$0xff]
  %v34 = vld [vmem:[%s0 + $0x74] sm:$0xff]
  %v35 = vld [vmem:[%s0 + $0x7c] sm:$0xff]
  %v36 = vld [vmem:[%s0 + $0x84] sm:$0xff]
  %v37 = vld [vmem:[%s0 + $0x8c] sm:$0xf]
  %v38 = vld [vmem:[%s0 + $0x90] sm:$0xff]
  %v39 = vld [vmem:[%s0 + $0x98] sm:$0xff]
  %v40 = vld [vmem:[%s0 + $0xa0] sm:$0xff]
  %v41 = vld [vmem:[%s0 + $0xa8] sm:$0xff]
  %v42 = vld [vmem:[%s0 + $0xb0] sm:$0xf]
  %v43 = vld [vmem:[%s0 + $0xb4] sm:$0xff]
  %v44 = vld [vmem:[%s0 + $0xbc] sm:$0xff]
  %v45 = vld [vmem:[%s0 + $0xc4] sm:$0xff]
  %v46 = vld [vmem:[%s0 + $0xcc] sm:$0xff]
  %v47 = vld [vmem:[%s0 + $0xd4] sm:$0xf]
  %v48 = vld [vmem:[%s0 + $0xd8] sm:$0xff]
  %v49 = vld [vmem:[%s0 + $0xe0] sm:$0xff]
  %v50 = vld [vmem:[%s0 + $0xe8] sm:$0xff]
  %v51 = vld [vmem:[%s0 + $0xf0] sm:$0xff]
  %v52 = vld [vmem:[%s0 + $0xf8] sm:$0xf]
  %v53 = vld [vmem:[%s0 + $0xfc] sm:$0xff]
  %v54 = vld [vmem:[%s0 + $0x104] sm:$0xff]
  %v55 = vld [vmem:[%s0 + $0x10c] sm:$0xff]
  %v56 = vld [vmem:[%s0 + $0x114] sm:$0xff]
  %v57 = vld [vmem:[%s0 + $0x11c] sm:$0xf]
  %v58 = vld [vmem:[%s0 + $0x120] sm:$0xff]
  %v59 = vld [vmem:[%s0 + $0x128] sm:$0xff]
  %v60 = vld [vmem:[%s0 + $0x130] sm:$0xff]
  %v61 = vld [vmem:[%s0 + $0x138] sm:$0xff]
  %v62 = vld [vmem:[%s0 + $0x140] sm:$0xf]
  %v63 = vld [vmem:[%s0 + $0x144] sm:$0xff]
  %v64 = vld [vmem:[%s0 + $0x14c] sm:$0xff]
  %v65 = vld [vmem:[%s0 + $0x154] sm:$0xff]
  %v66 = vld [vmem:[%s0 + $0x15c] sm:$0xff]
  %v67 = vld [vmem:[%s0 + $0x164] sm:$0xf]
  %v68 = vld [vmem:[%s0 + $0x168] sm:$0xff]
  %v69 = vld [vmem:[%s0 + $0x170] sm:$0xff]
  %v70 = vld [vmem:[%s0 + $0x178] sm:$0xff]
  %v71 = vld [vmem:[%s0 + $0x180] sm:$0xff]
  %v72 = vld [vmem:[%s0 + $0x188] sm:$0xf]
  %v73 = vld [vmem:[%s0 + $0x18c] sm:$0xff]
  %v74 = vld [vmem:[%s0 + $0x194] sm:$0xff]
  %v75 = vld [vmem:[%s0 + $0x19c] sm:$0xff]
  %v76 = vld [vmem:[%s0 + $0x1a4] sm:$0xff]
  %v77 = vld [vmem:[%s0 + $0x1ac] sm:$0xf]
  %v78 = vld [vmem:[%s0 + $0x1b0] sm:$0xff]
  %v79 = vld [vmem:[%s0 + $0x1b8] sm:$0xff]
  %v80 = vld [vmem:[%s0 + $0x1c0] sm:$0xff]
  %v81 = vld [vmem:[%s0 + $0x1c8] sm:$0xff]
  %v82 = vld [vmem:[%s0 + $0x1d0] sm:$0xf]
  %v83 = vld [vmem:[%s0 + $0x1d4] sm:$0xff]
  %v84 = vld [vmem:[%s0 + $0x1dc] sm:$0xff]
  %v85 = vld [vmem:[%s0 + $0x1e4] sm:$0xff]
  %v86 = vld [vmem:[%s0 + $0x1ec] sm:$0xff]
  %v87 = vld [vmem:[%s0 + $0x1f4] sm:$0xf]
  %v88 = vld [vmem:[%s0 + $0x1f8] sm:$0xff]
  %v89 = vld [vmem:[%s0 + $0x200] sm:$0xff]
  %v90 = vld [vmem:[%s0 + $0x208] sm:$0xff]
  %v91 = vld [vmem:[%s0 + $0x210] sm:$0xff]
  %v92 = vld [vmem:[%s0 + $0x218] sm:$0xf]
  %v93 = vld [vmem:[%s0 + $0x21c] sm:$0xff]
  %v94 = vld [vmem:[%s0 + $0x224] sm:$0xff]
  %v95 = vld [vmem:[%s0 + $0x22c] sm:$0xff]
  %v96 = vld [vmem:[%s0 + $0x234] sm:$0xff]
  %v97 = vld [vmem:[%s0 + $0x23c] sm:$0xf]
  %v98 = vmax.bf16 %v18, 0
  %v99 = vmax.bf16 %v19, 0
  %v100 = vmax.bf16 %v20, 0
  %v101 = vmax.bf16 %v21, 0
  %v102 = vmax.bf16 %v22, 0
  %v103 = vmax.bf16 %v23, 0
  %v104 = vmax.bf16 %v24, 0
  %v105 = vmax.bf16 %v25, 0
  %v106 = vmax.bf16 %v26, 0
  %v107 = vmax.bf16 %v27, 0
  %v108 = vmax.bf16 %v28, 0
  %v109 = vmax.bf16 %v29, 0
  %v110 = vmax.bf16 %v30, 0
  %v111 = vmax.bf16 %v31, 0
  %v112 = vmax.bf16 %v32, 0
  %v113 = vmax.bf16 %v33, 0
  %v114 = vmax.bf16 %v34, 0
  %v115 = vmax.bf16 %v35, 0
  %v116 = vmax.bf16 %v36, 0
  %v117 = vmax.bf16 %v37, 0
  %v118 = vmax.bf16 %v38, 0
  %v119 = vmax.bf16 %v39, 0
  %v120 = vmax.bf16 %v40, 0
  %v121 = vmax.bf16 %v41, 0
  %v122 = vmax.bf16 %v42, 0
  %v123 = vmax.bf16 %v43, 0
  %v124 = vmax.bf16 %v44, 0
  %v125 = vmax.bf16 %v45, 0
  %v126 = vmax.bf16 %v46, 0
  %v127 = vmax.bf16 %v47, 0
  %v128 = vmax.bf16 %v48, 0
  %v129 = vmax.bf16 %v49, 0
  %v130 = vmax.bf16 %v50, 0
  %v131 = vmax.bf16 %v51, 0
  %v132 = vmax.bf16 %v52, 0
  %v133 = vmax.bf16 %v53, 0
  %v134 = vmax.bf16 %v54, 0
  %v135 = vmax.bf16 %v55, 0
  %v136 = vmax.bf16 %v56, 0
  %v137 = vmax.bf16 %v57, 0
  %v138 = vmax.bf16 %v58, 0
  %v139 = vmax.bf16 %v59, 0
  %v140 = vmax.bf16 %v60, 0
  %v141 = vmax.bf16 %v61, 0
  %v142 = vmax.bf16 %v62, 0
  %v143 = vmax.bf16 %v63, 0
  %v144 = vmax.bf16 %v64, 0
  %v145 = vmax.bf16 %v65, 0
  %v146 = vmax.bf16 %v66, 0
  %v147 = vmax.bf16 %v67, 0
  %v148 = vmax.bf16 %v68, 0
  %v149 = vmax.bf16 %v69, 0
  %v150 = vmax.bf16 %v70, 0
  %v151 = vmax.bf16 %v71, 0
  %v152 = vmax.bf16 %v72, 0
  %v153 = vmax.bf16 %v73, 0
  %v154 = vmax.bf16 %v74, 0
  %v155 = vmax.bf16 %v75, 0
  %v156 = vmax.bf16 %v76, 0
  %v157 = vmax.bf16 %v77, 0
  %v158 = vmax.bf16 %v78, 0
  %v159 = vmax.bf16 %v79, 0
  %v160 = vmax.bf16 %v80, 0
  %v161 = vmax.bf16 %v81, 0
  %v162 = vmax.bf16 %v82, 0
  %v163 = vmax.bf16 %v83, 0
  %v164 = vmax.bf16 %v84, 0
  %v165 = vmax.bf16 %v85, 0
  %v166 = vmax.bf16 %v86, 0
  %v167 = vmax.bf16 %v87, 0
  %v168 = vmax.bf16 %v88, 0
  %v169 = vmax.bf16 %v89, 0
  %v170 = vmax.bf16 %v90, 0
  %v171 = vmax.bf16 %v91, 0
  %v172 = vmax.bf16 %v92, 0
  %v173 = vmax.bf16 %v93, 0
  %v174 = vmax.bf16 %v94, 0
  %v175 = vmax.bf16 %v95, 0
  %v176 = vmax.bf16 %v96, 0
  %v177 = vmax.bf16 %v97, 0
  %v178 = vld [vmem:[%s1] sm:$0xf]
  %v179 = vld [vmem:[%s1 + $0x4] sm:$0xf]
  %v180 = vld [vmem:[%s1 + $0x8] sm:$0xf]
  %v181 = vld [vmem:[%s1 + $0xc] sm:$0xf]
  %v182 = vld [vmem:[%s1 + $0x10] sm:$0xf]
  %v183 = vld [vmem:[%s1 + $0x14] sm:$0xf]
  %v184 = vld [vmem:[%s1 + $0x18] sm:$0xf]
  %v185 = vld [vmem:[%s1 + $0x1c] sm:$0xf]
  %v186 = vld [vmem:[%s1 + $0x20] sm:$0xf]
  %v187 = vld [vmem:[%s1 + $0x24] sm:$0xf]
  %v188 = vld [vmem:[%s1 + $0x28] sm:$0xf]
  %v189 = vld [vmem:[%s1 + $0x2c] sm:$0xf]
  %v190 = vld [vmem:[%s1 + $0x30] sm:$0xf]
  %v191 = vld [vmem:[%s1 + $0x34] sm:$0xf]
  %v192 = vld [vmem:[%s1 + $0x38] sm:$0xf]
  %v193 = vld [vmem:[%s1 + $0x3c] sm:$0xf]
  %v194 = vld [vmem:[%s1 + $0x40] sm:$0xf]
  %v195 = vld [vmem:[%s1 + $0x44] sm:$0xf]
  %v196 = vld [vmem:[%s1 + $0x48] sm:$0xf]
  %v197 = vld [vmem:[%s1 + $0x4c] sm:$0xf]
  %v198 = vld [vmem:[%s1 + $0x50] sm:$0xf]
  %v199 = vld [vmem:[%s1 + $0x54] sm:$0xf]
  %v200 = vld [vmem:[%s1 + $0x58] sm:$0xf]
  %v201 = vld [vmem:[%s1 + $0x5c] sm:$0xf]
  %v202 = vld [vmem:[%s1 + $0x60] sm:$0xf]
  %v203 = vld [vmem:[%s1 + $0x64] sm:$0xf]
  %v204 = vld [vmem:[%s1 + $0x68] sm:$0xf]
  %v205 = vld [vmem:[%s1 + $0x6c] sm:$0xf]
  %v206 = vld [vmem:[%s1 + $0x70] sm:$0xf]
  %v207 = vld [vmem:[%s1 + $0x74] sm:$0xf]
  %v208 = vld [vmem:[%s1 + $0x78] sm:$0xf]
  %v209 = vld [vmem:[%s1 + $0x7c] sm:$0xf]
  %v210 = vld [vmem:[%s1 + $0x80] sm:$0xf]
  %v211 = vld [vmem:[%s1 + $0x84] sm:$0xf]
  %v212 = vld [vmem:[%s1 + $0x88] sm:$0xf]
  %v213 = vld [vmem:[%s1 + $0x8c] sm:$0xf]
  %v214 = vld [vmem:[%s1 + $0x90] sm:$0xf]
  %v215 = vld [vmem:[%s1 + $0x94] sm:$0xf]
  %v216 = vld [vmem:[%s1 + $0x98] sm:$0xf]
  %v217 = vld [vmem:[%s1 + $0x9c] sm:$0xf]
  %v218 = vld [vmem:[%s1 + $0xa0] sm:$0xf]
  %v219 = vld [vmem:[%s1 + $0xa4] sm:$0xf]
  %v220 = vld [vmem:[%s1 + $0xa8] sm:$0xf]
  %v221 = vld [vmem:[%s1 + $0xac] sm:$0xf]
  %v222 = vld [vmem:[%s1 + $0xb0] sm:$0xf]
  %v223 = vld [vmem:[%s1 + $0xb4] sm:$0xf]
  %v224 = vld [vmem:[%s1 + $0xb8] sm:$0xf]
  %v225 = vld [vmem:[%s1 + $0xbc] sm:$0xf]
  %v226 = vld [vmem:[%s1 + $0xc0] sm:$0xf]
  %v227 = vld [vmem:[%s1 + $0xc4] sm:$0xf]
  %v228 = vld [vmem:[%s1 + $0xc8] sm:$0xf]
  %v229 = vld [vmem:[%s1 + $0xcc] sm:$0xf]
  %v230 = vld [vmem:[%s1 + $0xd0] sm:$0xf]
  %v231 = vld [vmem:[%s1 + $0xd4] sm:$0xf]
  %v232 = vld [vmem:[%s1 + $0xd8] sm:$0xf]
  %v233 = vld [vmem:[%s1 + $0xdc] sm:$0xf]
  %v234 = vld [vmem:[%s1 + $0xe0] sm:$0xf]
  %v235 = vld [vmem:[%s1 + $0xe4] sm:$0xf]
  %v236 = vld [vmem:[%s1 + $0xe8] sm:$0xf]
  %v237 = vld [vmem:[%s1 + $0xec] sm:$0xf]
  %v238 = vld [vmem:[%s1 + $0xf0] sm:$0xf]
  %v239 = vld [vmem:[%s1 + $0xf4] sm:$0xf]
  %v240 = vld [vmem:[%s1 + $0xf8] sm:$0xf]
  %v241 = vld [vmem:[%s1 + $0xfc] sm:$0xf]
  %v242 = vld [vmem:[%s1 + $0x100] sm:$0xf]
  %v243 = vld [vmem:[%s1 + $0x104] sm:$0xf]
  %v244 = vld [vmem:[%s1 + $0x108] sm:$0xf]
  %v245 = vld [vmem:[%s1 + $0x10c] sm:$0xf]
  %v246 = vld [vmem:[%s1 + $0x110] sm:$0xf]
  %v247 = vld [vmem:[%s1 + $0x114] sm:$0xf]
  %v248 = vld [vmem:[%s1 + $0x118] sm:$0xf]
  %v249 = vld [vmem:[%s1 + $0x11c] sm:$0xf]
  %v250 = vld [vmem:[%s1 + $0x120] sm:$0xf]
  %v251 = vld [vmem:[%s1 + $0x124] sm:$0xf]
  %v252 = vld [vmem:[%s1 + $0x128] sm:$0xf]
  %v253 = vld [vmem:[%s1 + $0x12c] sm:$0xf]
  %v254 = vld [vmem:[%s1 + $0x130] sm:$0xf]
  %v255 = vld [vmem:[%s1 + $0x134] sm:$0xf]
  %v256 = vld [vmem:[%s1 + $0x138] sm:$0xf]
  %v257 = vld [vmem:[%s1 + $0x13c] sm:$0xf]
  %v258 = vld [vmem:[%s1 + $0x140] sm:$0xf]
  %v259 = vld [vmem:[%s1 + $0x144] sm:$0xf]
  %v260 = vld [vmem:[%s1 + $0x148] sm:$0xf]
  %v261 = vld [vmem:[%s1 + $0x14c] sm:$0xf]
  %v262 = vld [vmem:[%s1 + $0x150] sm:$0xf]
  %v263 = vld [vmem:[%s1 + $0x154] sm:$0xf]
  %v264 = vld [vmem:[%s1 + $0x158] sm:$0xf]
  %v265 = vld [vmem:[%s1 + $0x15c] sm:$0xf]
  %v266 = vld [vmem:[%s1 + $0x160] sm:$0xf]
  %v267 = vld [vmem:[%s1 + $0x164] sm:$0xf]
  %v268 = vld [vmem:[%s1 + $0x168] sm:$0xf]
  %v269 = vld [vmem:[%s1 + $0x16c] sm:$0xf]
  %v270 = vld [vmem:[%s1 + $0x170] sm:$0xf]
  %v271 = vld [vmem:[%s1 + $0x174] sm:$0xf]
  %v272 = vld [vmem:[%s1 + $0x178] sm:$0xf]
  %v273 = vld [vmem:[%s1 + $0x17c] sm:$0xf]
  %v274 = vld [vmem:[%s1 + $0x180] sm:$0xf]
  %v275 = vld [vmem:[%s1 + $0x184] sm:$0xf]
  %v276 = vld [vmem:[%s1 + $0x188] sm:$0xf]
  %v277 = vld [vmem:[%s1 + $0x18c] sm:$0xf]
  %v278 = vld [vmem:[%s1 + $0x190] sm:$0xf]
  %v279 = vld [vmem:[%s1 + $0x194] sm:$0xf]
  %v280 = vld [vmem:[%s1 + $0x198] sm:$0xf]
  %v281 = vld [vmem:[%s1 + $0x19c] sm:$0xf]
  %v282 = vld [vmem:[%s1 + $0x1a0] sm:$0xf]
  %v283 = vld [vmem:[%s1 + $0x1a4] sm:$0xf]
  %v284 = vld [vmem:[%s1 + $0x1a8] sm:$0xf]
  %v285 = vld [vmem:[%s1 + $0x1ac] sm:$0xf]
  %v286 = vld [vmem:[%s1 + $0x1b0] sm:$0xf]
  %v287 = vld [vmem:[%s1 + $0x1b4] sm:$0xf]
  %v288 = vld [vmem:[%s1 + $0x1b8] sm:$0xf]
  %v289 = vld [vmem:[%s1 + $0x1bc] sm:$0xf]
  %v290 = vld [vmem:[%s1 + $0x1c0] sm:$0xf]
  %v291 = vld [vmem:[%s1 + $0x1c4] sm:$0xf]
  %v292 = vld [vmem:[%s1 + $0x1c8] sm:$0xf]
  %v293 = vld [vmem:[%s1 + $0x1cc] sm:$0xf]
  %v294 = vld [vmem:[%s1 + $0x1d0] sm:$0xf]
  %v295 = vld [vmem:[%s1 + $0x1d4] sm:$0xf]
  %v296 = vld [vmem:[%s1 + $0x1d8] sm:$0xf]
  %v297 = vld [vmem:[%s1 + $0x1dc] sm:$0xf]
  %v298 = vld [vmem:[%s1 + $0x1e0] sm:$0xf]
  %v299 = vld [vmem:[%s1 + $0x1e4] sm:$0xf]
  %v300 = vld [vmem:[%s1 + $0x1e8] sm:$0xf]
  %v301 = vld [vmem:[%s1 + $0x1ec] sm:$0xf]
  %v302 = vld [vmem:[%s1 + $0x1f0] sm:$0xf]
  %v303 = vld [vmem:[%s1 + $0x1f4] sm:$0xf]
  %v304 = vld [vmem:[%s1 + $0x1f8] sm:$0xf]
  %v305 = vld [vmem:[%s1 + $0x1fc] sm:$0xf]
  %v306 = vld [vmem:[%s1 + $0x200] sm:$0xf]
  %v307 = vld [vmem:[%s1 + $0x204] sm:$0xf]
  %v308 = vld [vmem:[%s1 + $0x208] sm:$0xf]
  %v309 = vld [vmem:[%s1 + $0x20c] sm:$0xf]
  %v310 = vld [vmem:[%s1 + $0x210] sm:$0xf]
  %v311 = vld [vmem:[%s1 + $0x214] sm:$0xf]
  %v312 = vld [vmem:[%s1 + $0x218] sm:$0xf]
  %v313 = vld [vmem:[%s1 + $0x21c] sm:$0xf]
  %v314 = vld [vmem:[%s1 + $0x220] sm:$0xf]
  %v315 = vld [vmem:[%s1 + $0x224] sm:$0xf]
  %v316 = vld [vmem:[%s1 + $0x228] sm:$0xf]
  %v317 = vld [vmem:[%s1 + $0x22c] sm:$0xf]
  %v318 = vld [vmem:[%s1 + $0x230] sm:$0xf]
  %v319 = vld [vmem:[%s1 + $0x234] sm:$0xf]
  %v320 = vld [vmem:[%s1 + $0x238] sm:$0xf]
  %v321 = vld [vmem:[%s1 + $0x23c] sm:$0xf]
  %v322 = vld [vmem:[%s2] sm:$0x1]
  %v324 = vlaneseq
  %v325 = vshrl.u32 %v324, 7
  %v326 = vsub.s32 0, %v325
  %v327 = vrot.slane %v322, %v326
  %v409 = vunpack.c.l.b16 %v98
  %v410 = vunpack.c.h.b16 %v98
  %v411 = vunpack.c.l.b16 %v99
  %v412 = vunpack.c.h.b16 %v99
  %v413 = vunpack.c.l.b16 %v100
  %v414 = vunpack.c.h.b16 %v100
  %v415 = vunpack.c.l.b16 %v101
  %v416 = vunpack.c.h.b16 %v101
  %v417 = vunpack.c.l.b16 %v102
  %v418 = vunpack.c.l.b16 %v103
  %v419 = vunpack.c.h.b16 %v103
  %v420 = vunpack.c.l.b16 %v104
  %v421 = vunpack.c.h.b16 %v104
  %v422 = vunpack.c.l.b16 %v105
  %v423 = vunpack.c.h.b16 %v105
  %v424 = vunpack.c.l.b16 %v106
  %v425 = vunpack.c.h.b16 %v106
  %v426 = vunpack.c.l.b16 %v107
  %v427 = vunpack.c.l.b16 %v108
  %v428 = vunpack.c.h.b16 %v108
  %v429 = vunpack.c.l.b16 %v109
  %v430 = vunpack.c.h.b16 %v109
  %v431 = vunpack.c.l.b16 %v110
  %v432 = vunpack.c.h.b16 %v110
  %v433 = vunpack.c.l.b16 %v111
  %v434 = vunpack.c.h.b16 %v111
  %v435 = vunpack.c.l.b16 %v112
  %v436 = vunpack.c.l.b16 %v113
  %v437 = vunpack.c.h.b16 %v113
  %v438 = vunpack.c.l.b16 %v114
  %v439 = vunpack.c.h.b16 %v114
  %v440 = vunpack.c.l.b16 %v115
  %v441 = vunpack.c.h.b16 %v115
  %v442 = vunpack.c.l.b16 %v116
  %v443 = vunpack.c.h.b16 %v116
  %v444 = vunpack.c.l.b16 %v117
  %v445 = vunpack.c.l.b16 %v118
  %v446 = vunpack.c.h.b16 %v118
  %v447 = vunpack.c.l.b16 %v119
  %v448 = vunpack.c.h.b16 %v119
  %v449 = vunpack.c.l.b16 %v120
  %v450 = vunpack.c.h.b16 %v120
  %v451 = vunpack.c.l.b16 %v121
  %v452 = vunpack.c.h.b16 %v121
  %v453 = vunpack.c.l.b16 %v122
  %v454 = vunpack.c.l.b16 %v123
  %v455 = vunpack.c.h.b16 %v123
  %v456 = vunpack.c.l.b16 %v124
  %v457 = vunpack.c.h.b16 %v124
  %v458 = vunpack.c.l.b16 %v125
  %v459 = vunpack.c.h.b16 %v125
  %v460 = vunpack.c.l.b16 %v126
  %v461 = vunpack.c.h.b16 %v126
  %v462 = vunpack.c.l.b16 %v127
  %v463 = vunpack.c.l.b16 %v128
  %v464 = vunpack.c.h.b16 %v128
  %v465 = vunpack.c.l.b16 %v129
  %v466 = vunpack.c.h.b16 %v129
  %v467 = vunpack.c.l.b16 %v130
  %v468 = vunpack.c.h.b16 %v130
  %v469 = vunpack.c.l.b16 %v131
  %v470 = vunpack.c.h.b16 %v131
  %v471 = vunpack.c.l.b16 %v132
  %v472 = vunpack.c.l.b16 %v133
  %v473 = vunpack.c.h.b16 %v133
  %v474 = vunpack.c.l.b16 %v134
  %v475 = vunpack.c.h.b16 %v134
  %v476 = vunpack.c.l.b16 %v135
  %v477 = vunpack.c.h.b16 %v135
  %v478 = vunpack.c.l.b16 %v136
  %v479 = vunpack.c.h.b16 %v136
  %v480 = vunpack.c.l.b16 %v137
  %v481 = vunpack.c.l.b16 %v138
  %v482 = vunpack.c.h.b16 %v138
  %v483 = vunpack.c.l.b16 %v139
  %v484 = vunpack.c.h.b16 %v139
  %v485 = vunpack.c.l.b16 %v140
  %v486 = vunpack.c.h.b16 %v140
  %v487 = vunpack.c.l.b16 %v141
  %v488 = vunpack.c.h.b16 %v141
  %v489 = vunpack.c.l.b16 %v142
  %v490 = vunpack.c.l.b16 %v143
  %v491 = vunpack.c.h.b16 %v143
  %v492 = vunpack.c.l.b16 %v144
  %v493 = vunpack.c.h.b16 %v144
  %v494 = vunpack.c.l.b16 %v145
  %v495 = vunpack.c.h.b16 %v145
  %v496 = vunpack.c.l.b16 %v146
  %v497 = vunpack.c.h.b16 %v146
  %v498 = vunpack.c.l.b16 %v147
  %v499 = vunpack.c.l.b16 %v148
  %v500 = vunpack.c.h.b16 %v148
  %v501 = vunpack.c.l.b16 %v149
  %v502 = vunpack.c.h.b16 %v149
  %v503 = vunpack.c.l.b16 %v150
  %v504 = vunpack.c.h.b16 %v150
  %v505 = vunpack.c.l.b16 %v151
  %v506 = vunpack.c.h.b16 %v151
  %v507 = vunpack.c.l.b16 %v152
  %v508 = vunpack.c.l.b16 %v153
  %v509 = vunpack.c.h.b16 %v153
  %v510 = vunpack.c.l.b16 %v154
  %v511 = vunpack.c.h.b16 %v154
  %v512 = vunpack.c.l.b16 %v155
  %v513 = vunpack.c.h.b16 %v155
  %v514 = vunpack.c.l.b16 %v156
  %v515 = vunpack.c.h.b16 %v156
  %v516 = vunpack.c.l.b16 %v157
  %v517 = vunpack.c.l.b16 %v158
  %v518 = vunpack.c.h.b16 %v158
  %v519 = vunpack.c.l.b16 %v159
  %v520 = vunpack.c.h.b16 %v159
  %v521 = vunpack.c.l.b16 %v160
  %v522 = vunpack.c.h.b16 %v160
  %v523 = vunpack.c.l.b16 %v161
  %v524 = vunpack.c.h.b16 %v161
  %v525 = vunpack.c.l.b16 %v162
  %v526 = vunpack.c.l.b16 %v163
  %v527 = vunpack.c.h.b16 %v163
  %v528 = vunpack.c.l.b16 %v164
  %v529 = vunpack.c.h.b16 %v164
  %v530 = vunpack.c.l.b16 %v165
  %v531 = vunpack.c.h.b16 %v165
  %v532 = vunpack.c.l.b16 %v166
  %v533 = vunpack.c.h.b16 %v166
  %v534 = vunpack.c.l.b16 %v167
  %v535 = vunpack.c.l.b16 %v168
  %v536 = vunpack.c.h.b16 %v168
  %v537 = vunpack.c.l.b16 %v169
  %v538 = vunpack.c.h.b16 %v169
  %v539 = vunpack.c.l.b16 %v170
  %v540 = vunpack.c.h.b16 %v170
  %v541 = vunpack.c.l.b16 %v171
  %v542 = vunpack.c.h.b16 %v171
  %v543 = vunpack.c.l.b16 %v172
  %v544 = vunpack.c.l.b16 %v173
  %v545 = vunpack.c.h.b16 %v173
  %v546 = vunpack.c.l.b16 %v174
  %v547 = vunpack.c.h.b16 %v174
  %v548 = vunpack.c.l.b16 %v175
  %v549 = vunpack.c.h.b16 %v175
  %v550 = vunpack.c.l.b16 %v176
  %v551 = vunpack.c.h.b16 %v176
  %v552 = vunpack.c.l.b16 %v177
  %v553 = vpack.c.b16 %v418, %v409
  %v554 = vpack.c.b16 %v419, %v410
  %v555 = vpack.c.b16 %v420, %v411
  %v556 = vpack.c.b16 %v421, %v412
  %v557 = vpack.c.b16 %v422, %v413
  %v558 = vpack.c.b16 %v423, %v414
  %v559 = vpack.c.b16 %v424, %v415
  %v560 = vpack.c.b16 %v425, %v416
  %v561 = vpack.c.b16 %v426, %v417
  %v562 = vpack.c.b16 %v436, %v427
  %v563 = vpack.c.b16 %v437, %v428
  %v564 = vpack.c.b16 %v438, %v429
  %v565 = vpack.c.b16 %v439, %v430
  %v566 = vpack.c.b16 %v440, %v431
  %v567 = vpack.c.b16 %v441, %v432
  %v568 = vpack.c.b16 %v442, %v433
  %v569 = vpack.c.b16 %v443, %v434
  %v570 = vpack.c.b16 %v444, %v435
  %v571 = vpack.c.b16 %v454, %v445
  %v572 = vpack.c.b16 %v455, %v446
  %v573 = vpack.c.b16 %v456, %v447
  %v574 = vpack.c.b16 %v457, %v448
  %v575 = vpack.c.b16 %v458, %v449
  %v576 = vpack.c.b16 %v459, %v450
  %v577 = vpack.c.b16 %v460, %v451
  %v578 = vpack.c.b16 %v461, %v452
  %v579 = vpack.c.b16 %v462, %v453
  %v580 = vpack.c.b16 %v472, %v463
  %v581 = vpack.c.b16 %v473, %v464
  %v582 = vpack.c.b16 %v474, %v465
  %v583 = vpack.c.b16 %v475, %v466
  %v584 = vpack.c.b16 %v476, %v467
  %v585 = vpack.c.b16 %v477, %v468
  %v586 = vpack.c.b16 %v478, %v469
  %v587 = vpack.c.b16 %v479, %v470
  %v588 = vpack.c.b16 %v480, %v471
  %v589 = vpack.c.b16 %v490, %v481
  %v590 = vpack.c.b16 %v491, %v482
  %v591 = vpack.c.b16 %v492, %v483
  %v592 = vpack.c.b16 %v493, %v484
  %v593 = vpack.c.b16 %v494, %v485
  %v594 = vpack.c.b16 %v495, %v486
  %v595 = vpack.c.b16 %v496, %v487
  %v596 = vpack.c.b16 %v497, %v488
  %v597 = vpack.c.b16 %v498, %v489
  %v598 = vpack.c.b16 %v508, %v499
  %v599 = vpack.c.b16 %v509, %v500
  %v600 = vpack.c.b16 %v510, %v501
  %v601 = vpack.c.b16 %v511, %v502
  %v602 = vpack.c.b16 %v512, %v503
  %v603 = vpack.c.b16 %v513, %v504
  %v604 = vpack.c.b16 %v514, %v505
  %v605 = vpack.c.b16 %v515, %v506
  %v606 = vpack.c.b16 %v516, %v507
  %v607 = vpack.c.b16 %v526, %v517
  %v608 = vpack.c.b16 %v527, %v518
  %v609 = vpack.c.b16 %v528, %v519
  %v610 = vpack.c.b16 %v529, %v520
  %v611 = vpack.c.b16 %v530, %v521
  %v612 = vpack.c.b16 %v531, %v522
  %v613 = vpack.c.b16 %v532, %v523
  %v614 = vpack.c.b16 %v533, %v524
  %v615 = vpack.c.b16 %v534, %v525
  %v616 = vpack.c.b16 %v544, %v535
  %v617 = vpack.c.b16 %v545, %v536
  %v618 = vpack.c.b16 %v546, %v537
  %v619 = vpack.c.b16 %v547, %v538
  %v620 = vpack.c.b16 %v548, %v539
  %v621 = vpack.c.b16 %v549, %v540
  %v622 = vpack.c.b16 %v550, %v541
  %v623 = vpack.c.b16 %v551, %v542
  %v624 = vpack.c.b16 %v552, %v543
  %v841 = vunpack.c.l.b16 %v178
  %v842 = vunpack.c.l.b16 %v179
  %v843 = vunpack.c.l.b16 %v180
  %v844 = vunpack.c.l.b16 %v181
  %v845 = vunpack.c.l.b16 %v182
  %v846 = vunpack.c.l.b16 %v183
  %v847 = vunpack.c.l.b16 %v184
  %v848 = vunpack.c.l.b16 %v185
  %v849 = vunpack.c.l.b16 %v186
  %v850 = vunpack.c.l.b16 %v187
  %v851 = vunpack.c.l.b16 %v188
  %v852 = vunpack.c.l.b16 %v189
  %v853 = vunpack.c.l.b16 %v190
  %v854 = vunpack.c.l.b16 %v191
  %v855 = vunpack.c.l.b16 %v192
  %v856 = vunpack.c.l.b16 %v193
  %v857 = vunpack.c.l.b16 %v194
  %v858 = vunpack.c.l.b16 %v195
  %v859 = vunpack.c.l.b16 %v196
  %v860 = vunpack.c.l.b16 %v197
  %v861 = vunpack.c.l.b16 %v198
  %v862 = vunpack.c.l.b16 %v199
  %v863 = vunpack.c.l.b16 %v200
  %v864 = vunpack.c.l.b16 %v201
  %v865 = vunpack.c.l.b16 %v202
  %v866 = vunpack.c.l.b16 %v203
  %v867 = vunpack.c.l.b16 %v204
  %v868 = vunpack.c.l.b16 %v205
  %v869 = vunpack.c.l.b16 %v206
  %v870 = vunpack.c.l.b16 %v207
  %v871 = vunpack.c.l.b16 %v208
  %v872 = vunpack.c.l.b16 %v209
  %v873 = vunpack.c.l.b16 %v210
  %v874 = vunpack.c.l.b16 %v211
  %v875 = vunpack.c.l.b16 %v212
  %v876 = vunpack.c.l.b16 %v213
  %v877 = vunpack.c.l.b16 %v214
  %v878 = vunpack.c.l.b16 %v215
  %v879 = vunpack.c.l.b16 %v216
  %v880 = vunpack.c.l.b16 %v217
  %v881 = vunpack.c.l.b16 %v218
  %v882 = vunpack.c.l.b16 %v219
  %v883 = vunpack.c.l.b16 %v220
  %v884 = vunpack.c.l.b16 %v221
  %v885 = vunpack.c.l.b16 %v222
  %v886 = vunpack.c.l.b16 %v223
  %v887 = vunpack.c.l.b16 %v224
  %v888 = vunpack.c.l.b16 %v225
  %v889 = vunpack.c.l.b16 %v226
  %v890 = vunpack.c.l.b16 %v227
  %v891 = vunpack.c.l.b16 %v228
  %v892 = vunpack.c.l.b16 %v229
  %v893 = vunpack.c.l.b16 %v230
  %v894 = vunpack.c.l.b16 %v231
  %v895 = vunpack.c.l.b16 %v232
  %v896 = vunpack.c.l.b16 %v233
  %v897 = vunpack.c.l.b16 %v234
  %v898 = vunpack.c.l.b16 %v235
  %v899 = vunpack.c.l.b16 %v236
  %v900 = vunpack.c.l.b16 %v237
  %v901 = vunpack.c.l.b16 %v238
  %v902 = vunpack.c.l.b16 %v239
  %v903 = vunpack.c.l.b16 %v240
  %v904 = vunpack.c.l.b16 %v241
  %v905 = vunpack.c.l.b16 %v242
  %v906 = vunpack.c.l.b16 %v243
  %v907 = vunpack.c.l.b16 %v244
  %v908 = vunpack.c.l.b16 %v245
  %v909 = vunpack.c.l.b16 %v246
  %v910 = vunpack.c.l.b16 %v247
  %v911 = vunpack.c.l.b16 %v248
  %v912 = vunpack.c.l.b16 %v249
  %v913 = vunpack.c.l.b16 %v250
  %v914 = vunpack.c.l.b16 %v251
  %v915 = vunpack.c.l.b16 %v252
  %v916 = vunpack.c.l.b16 %v253
  %v917 = vunpack.c.l.b16 %v254
  %v918 = vunpack.c.l.b16 %v255
  %v919 = vunpack.c.l.b16 %v256
  %v920 = vunpack.c.l.b16 %v257
  %v921 = vunpack.c.l.b16 %v258
  %v922 = vunpack.c.l.b16 %v259
  %v923 = vunpack.c.l.b16 %v260
  %v924 = vunpack.c.l.b16 %v261
  %v925 = vunpack.c.l.b16 %v262
  %v926 = vunpack.c.l.b16 %v263
  %v927 = vunpack.c.l.b16 %v264
  %v928 = vunpack.c.l.b16 %v265
  %v929 = vunpack.c.l.b16 %v266
  %v930 = vunpack.c.l.b16 %v267
  %v931 = vunpack.c.l.b16 %v268
  %v932 = vunpack.c.l.b16 %v269
  %v933 = vunpack.c.l.b16 %v270
  %v934 = vunpack.c.l.b16 %v271
  %v935 = vunpack.c.l.b16 %v272
  %v936 = vunpack.c.l.b16 %v273
  %v937 = vunpack.c.l.b16 %v274
  %v938 = vunpack.c.l.b16 %v275
  %v939 = vunpack.c.l.b16 %v276
  %v940 = vunpack.c.l.b16 %v277
  %v941 = vunpack.c.l.b16 %v278
  %v942 = vunpack.c.l.b16 %v279
  %v943 = vunpack.c.l.b16 %v280
  %v944 = vunpack.c.l.b16 %v281
  %v945 = vunpack.c.l.b16 %v282
  %v946 = vunpack.c.l.b16 %v283
  %v947 = vunpack.c.l.b16 %v284
  %v948 = vunpack.c.l.b16 %v285
  %v949 = vunpack.c.l.b16 %v286
  %v950 = vunpack.c.l.b16 %v287
  %v951 = vunpack.c.l.b16 %v288
  %v952 = vunpack.c.l.b16 %v289
  %v953 = vunpack.c.l.b16 %v290
  %v954 = vunpack.c.l.b16 %v291
  %v955 = vunpack.c.l.b16 %v292
  %v956 = vunpack.c.l.b16 %v293
  %v957 = vunpack.c.l.b16 %v294
  %v958 = vunpack.c.l.b16 %v295
  %v959 = vunpack.c.l.b16 %v296
  %v960 = vunpack.c.l.b16 %v297
  %v961 = vunpack.c.l.b16 %v298
  %v962 = vunpack.c.l.b16 %v299
  %v963 = vunpack.c.l.b16 %v300
  %v964 = vunpack.c.l.b16 %v301
  %v965 = vunpack.c.l.b16 %v302
  %v966 = vunpack.c.l.b16 %v303
  %v967 = vunpack.c.l.b16 %v304
  %v968 = vunpack.c.l.b16 %v305
  %v969 = vunpack.c.l.b16 %v306
  %v970 = vunpack.c.l.b16 %v307
  %v971 = vunpack.c.l.b16 %v308
  %v972 = vunpack.c.l.b16 %v309
  %v973 = vunpack.c.l.b16 %v310
  %v974 = vunpack.c.l.b16 %v311
  %v975 = vunpack.c.l.b16 %v312
  %v976 = vunpack.c.l.b16 %v313
  %v977 = vunpack.c.l.b16 %v314
  %v978 = vunpack.c.l.b16 %v315
  %v979 = vunpack.c.l.b16 %v316
  %v980 = vunpack.c.l.b16 %v317
  %v981 = vunpack.c.l.b16 %v318
  %v982 = vunpack.c.l.b16 %v319
  %v983 = vunpack.c.l.b16 %v320
  %v984 = vunpack.c.l.b16 %v321
  %v985 = vpack.c.b16 %v842, %v841
  %v986 = vpack.c.b16 %v844, %v843
  %v987 = vpack.c.b16 %v846, %v845
  %v988 = vpack.c.b16 %v848, %v847
  %v989 = vpack.c.b16 %v850, %v849
  %v990 = vpack.c.b16 %v852, %v851
  %v991 = vpack.c.b16 %v854, %v853
  %v992 = vpack.c.b16 %v856, %v855
  %v993 = vpack.c.b16 %v858, %v857
  %v994 = vpack.c.b16 %v860, %v859
  %v995 = vpack.c.b16 %v862, %v861
  %v996 = vpack.c.b16 %v864, %v863
  %v997 = vpack.c.b16 %v866, %v865
  %v998 = vpack.c.b16 %v868, %v867
  %v999 = vpack.c.b16 %v870, %v869
  %v1000 = vpack.c.b16 %v872, %v871
  %v1001 = vpack.c.b16 %v874, %v873
  %v1002 = vpack.c.b16 %v876, %v875
  %v1003 = vpack.c.b16 %v878, %v877
  %v1004 = vpack.c.b16 %v880, %v879
  %v1005 = vpack.c.b16 %v882, %v881
  %v1006 = vpack.c.b16 %v884, %v883
  %v1007 = vpack.c.b16 %v886, %v885
  %v1008 = vpack.c.b16 %v888, %v887
  %v1009 = vpack.c.b16 %v890, %v889
  %v1010 = vpack.c.b16 %v892, %v891
  %v1011 = vpack.c.b16 %v894, %v893
  %v1012 = vpack.c.b16 %v896, %v895
  %v1013 = vpack.c.b16 %v898, %v897
  %v1014 = vpack.c.b16 %v900, %v899
  %v1015 = vpack.c.b16 %v902, %v901
  %v1016 = vpack.c.b16 %v904, %v903
  %v1017 = vpack.c.b16 %v906, %v905
  %v1018 = vpack.c.b16 %v908, %v907
  %v1019 = vpack.c.b16 %v910, %v909
  %v1020 = vpack.c.b16 %v912, %v911
  %v1021 = vpack.c.b16 %v914, %v913
  %v1022 = vpack.c.b16 %v916, %v915
  %v1023 = vpack.c.b16 %v918, %v917
  %v1024 = vpack.c.b16 %v920, %v919
  %v1025 = vpack.c.b16 %v922, %v921
  %v1026 = vpack.c.b16 %v924, %v923
  %v1027 = vpack.c.b16 %v926, %v925
  %v1028 = vpack.c.b16 %v928, %v927
  %v1029 = vpack.c.b16 %v930, %v929
  %v1030 = vpack.c.b16 %v932, %v931
  %v1031 = vpack.c.b16 %v934, %v933
  %v1032 = vpack.c.b16 %v936, %v935
  %v1033 = vpack.c.b16 %v938, %v937
  %v1034 = vpack.c.b16 %v940, %v939
  %v1035 = vpack.c.b16 %v942, %v941
  %v1036 = vpack.c.b16 %v944, %v943
  %v1037 = vpack.c.b16 %v946, %v945
  %v1038 = vpack.c.b16 %v948, %v947
  %v1039 = vpack.c.b16 %v950, %v949
  %v1040 = vpack.c.b16 %v952, %v951
  %v1041 = vpack.c.b16 %v954, %v953
  %v1042 = vpack.c.b16 %v956, %v955
  %v1043 = vpack.c.b16 %v958, %v957
  %v1044 = vpack.c.b16 %v960, %v959
  %v1045 = vpack.c.b16 %v962, %v961
  %v1046 = vpack.c.b16 %v964, %v963
  %v1047 = vpack.c.b16 %v966, %v965
  %v1048 = vpack.c.b16 %v968, %v967
  %v1049 = vpack.c.b16 %v970, %v969
  %v1050 = vpack.c.b16 %v972, %v971
  %v1051 = vpack.c.b16 %v974, %v973
  %v1052 = vpack.c.b16 %v976, %v975
  %v1053 = vpack.c.b16 %v978, %v977
  %v1054 = vpack.c.b16 %v980, %v979
  %v1055 = vpack.c.b16 %v982, %v981
  %v1056 = vpack.c.b16 %v984, %v983
  %1129 = vmatprep.subr.bf16.mxu0 0
  %1130 = vmatpush1.bf16.msra.mxu0 %v985
  %1131 = vmatprep.subr.bf16.mxu0 0
  %1132 = vmatpush1.bf16.msra.mxu0 %v986
  %1133 = vmatprep.subr.bf16.mxu0 0
  %1134 = vmatpush1.bf16.msra.mxu0 %v987
  %1135 = vmatprep.subr.bf16.mxu0 0
  %1136 = vmatpush1.bf16.msra.mxu0 %v988
  %1137 = vmatprep.subr.bf16.mxu0 0
  %1138 = vmatpush1.bf16.msra.mxu0 %v989
  %1139 = vmatprep.subr.bf16.mxu0 0
  %1140 = vmatpush1.bf16.msra.mxu0 %v990
  %1141 = vmatprep.subr.bf16.mxu0 0
  %1142 = vmatpush1.bf16.msra.mxu0 %v991
  %1143 = vmatprep.subr.bf16.mxu0 0
  %1144 = vmatpush1.bf16.msra.mxu0 %v992
  %1145 = vmatprep.subr.bf16.mxu0 0
  %1146 = vmatpush1.bf16.msra.mxu0 %v993
  %1147 = vmatprep.subr.bf16.mxu0 0
  %1148 = vmatpush1.bf16.msra.mxu0 %v994
  %1149 = vmatprep.subr.bf16.mxu0 0
  %1150 = vmatpush1.bf16.msra.mxu0 %v995
  %1151 = vmatprep.subr.bf16.mxu0 0
  %1152 = vmatpush1.bf16.msra.mxu0 %v996
  %1153 = vmatprep.subr.bf16.mxu0 0
  %1154 = vmatpush1.bf16.msra.mxu0 %v997
  %1155 = vmatprep.subr.bf16.mxu0 0
  %1156 = vmatpush1.bf16.msra.mxu0 %v998
  %1157 = vmatprep.subr.bf16.mxu0 0
  %1158 = vmatpush1.bf16.msra.mxu0 %v999
  %1159 = vmatprep.subr.bf16.mxu0 0
  %1160 = vmatpush1.bf16.msra.mxu0 %v1000
  %1161 = vmatprep.mubr.bf16.mxu0 %v554
  %1162 = vmatmul.mubr.bf16.gmra.mrb[0].mxu0 %v553
  %v1163 = vpop.f32.mrb[0].mxu0
  %v1164 = vadd.f32 %v327, %v1163
  %v1165 = vpop.f32.mrb[0].mxu0
  %v1166 = vpop.f32.mrb[0].mxu0
  %v1167 = vadd.f32 %v327, %v1166
  %v1168 = vpop.f32.mrb[0].mxu0
  %1169 = vmatprep.mubr.bf16.mxu0 %v563
  %1170 = vmatmul.mubr.bf16.gmra.mrb[0].mxu0 %v562
  %v1171 = vpop.f32.mrb[0].mxu0
  %v1172 = vadd.f32 %v327, %v1171
  %v1173 = vpop.f32.mrb[0].mxu0
  %v1174 = vpop.f32.mrb[0].mxu0
  %v1175 = vadd.f32 %v327, %v1174
  %v1176 = vpop.f32.mrb[0].mxu0
  %1177 = vmatprep.mubr.bf16.mxu0 %v572
  %1178 = vmatmul.mubr.bf16.gmra.mrb[0].mxu0 %v571
  %v1179 = vpop.f32.mrb[0].mxu0
  %v1180 = vadd.f32 %v327, %v1179
  %v1181 = vpop.f32.mrb[0].mxu0
  %v1182 = vpop.f32.mrb[0].mxu0
  %v1183 = vadd.f32 %v327, %v1182
  %v1184 = vpop.f32.mrb[0].mxu0
  %1185 = vmatprep.mubr.bf16.mxu0 %v581
  %1186 = vmatmul.mubr.bf16.gmra.mrb[0].mxu0 %v580
  %v1187 = vpop.f32.mrb[0].mxu0
  %v1188 = vadd.f32 %v327, %v1187
  %v1189 = vpop.f32.mrb[0].mxu0
  %v1190 = vpop.f32.mrb[0].mxu0
  %v1191 = vadd.f32 %v327, %v1190
  %v1192 = vpop.f32.mrb[0].mxu0
  %1193 = vmatprep.mubr.bf16.mxu0 %v590
  %1194 = vmatmul.mubr.bf16.gmra.mrb[0].mxu0 %v589
  %v1195 = vpop.f32.mrb[0].mxu0
  %v1196 = vadd.f32 %v327, %v1195
  %v1197 = vpop.f32.mrb[0].mxu0
  %v1198 = vpop.f32.mrb[0].mxu0
  %v1199 = vadd.f32 %v327, %v1198
  %v1200 = vpop.f32.mrb[0].mxu0
  %1201 = vmatprep.mubr.bf16.mxu0 %v599
  %1202 = vmatmul.mubr.bf16.gmra.mrb[0].mxu0 %v598
  %v1203 = vpop.f32.mrb[0].mxu0
  %v1204 = vadd.f32 %v327, %v1203
  %v1205 = vpop.f32.mrb[0].mxu0
  %v1206 = vpop.f32.mrb[0].mxu0
  %v1207 = vadd.f32 %v327, %v1206
  %v1208 = vpop.f32.mrb[0].mxu0
  %1209 = vmatprep.mubr.bf16.mxu0 %v608
  %1210 = vmatmul.mubr.bf16.gmra.mrb[0].mxu0 %v607
  %v1211 = vpop.f32.mrb[0].mxu0
  %v1212 = vadd.f32 %v327, %v1211
  %v1213 = vpop.f32.mrb[0].mxu0
  %v1214 = vpop.f32.mrb[0].mxu0
  %v1215 = vadd.f32 %v327, %v1214
  %v1216 = vpop.f32.mrb[0].mxu0
  %1217 = vmatprep.mubr.bf16.mxu0 %v617
  %1218 = vmatmul.mubr.bf16.gmra.mrb[0].mxu0 %v616
  %v1219 = vpop.f32.mrb[0].mxu0
  %v1220 = vadd.f32 %v327, %v1219
  %v1221 = vpop.f32.mrb[0].mxu0
  %v1222 = vpop.f32.mrb[0].mxu0
  %v1223 = vadd.f32 %v327, %v1222
  %v1224 = vpop.f32.mrb[0].mxu0
  %1225 = vdwg.mxu0
  %1226 = vmatprep.subr.bf16.mxu0 0
  %1227 = vmatpush1.bf16.msra.mxu0 %v1001
  %1228 = vmatprep.subr.bf16.mxu0 0
  %1229 = vmatpush1.bf16.msra.mxu0 %v1002
  %1230 = vmatprep.subr.bf16.mxu0 0
  %1231 = vmatpush1.bf16.msra.mxu0 %v1003
  %1232 = vmatprep.subr.bf16.mxu0 0
  %1233 = vmatpush1.bf16.msra.mxu0 %v1004
  %1234 = vmatprep.subr.bf16.mxu0 0
  %1235 = vmatpush1.bf16.msra.mxu0 %v1005
  %1236 = vmatprep.subr.bf16.mxu0 0
  %1237 = vmatpush1.bf16.msra.mxu0 %v1006
  %1238 = vmatprep.subr.bf16.mxu0 0
  %1239 = vmatpush1.bf16.msra.mxu0 %v1007
  %1240 = vmatprep.subr.bf16.mxu0 0
  %1241 = vmatpush1.bf16.msra.mxu0 %v1008
  %1242 = vmatprep.subr.bf16.mxu0 0
  %1243 = vmatpush1.bf16.msra.mxu0 %v1009
  %1244 = vmatprep.subr.bf16.mxu0 0
  %1245 = vmatpush1.bf16.msra.mxu0 %v1010
  %1246 = vmatprep.subr.bf16.mxu0 0
  %1247 = vmatpush1.bf16.msra.mxu0 %v1011
  %1248 = vmatprep.subr.bf16.mxu0 0
  %1249 = vmatpush1.bf16.msra.mxu0 %v1012
  %1250 = vmatprep.subr.bf16.mxu0 0
  %1251 = vmatpush1.bf16.msra.mxu0 %v1013
  %1252 = vmatprep.subr.bf16.mxu0 0
  %1253 = vmatpush1.bf16.msra.mxu0 %v1014
  %1254 = vmatprep.subr.bf16.mxu0 0
  %1255 = vmatpush1.bf16.msra.mxu0 %v1015
  %1256 = vmatprep.subr.bf16.mxu0 0
  %1257 = vmatpush1.bf16.msra.mxu0 %v1016
  %1258 = vmatprep.mubr.bf16.mxu0 %v556
  %1259 = vmatmul.mubr.bf16.gmra.mrb[0].mxu0 %v555
  %v1260 = vpop.f32.mrb[0].mxu0
  %v1261 = vadd.f32 %v1164, %v1260
  %v1262 = vpop.f32.mrb[0].mxu0
  %v1263 = vpop.f32.mrb[0].mxu0
  %v1264 = vadd.f32 %v1167, %v1263
  %v1265 = vpop.f32.mrb[0].mxu0
  %1266 = vmatprep.mubr.bf16.mxu0 %v565
  %1267 = vmatmul.mubr.bf16.gmra.mrb[0].mxu0 %v564
  %v1268 = vpop.f32.mrb[0].mxu0
  %v1269 = vadd.f32 %v1172, %v1268
  %v1270 = vpop.f32.mrb[0].mxu0
  %v1271 = vpop.f32.mrb[0].mxu0
  %v1272 = vadd.f32 %v1175, %v1271
  %v1273 = vpop.f32.mrb[0].mxu0
  %1274 = vmatprep.mubr.bf16.mxu0 %v574
  %1275 = vmatmul.mubr.bf16.gmra.mrb[0].mxu0 %v573
  %v1276 = vpop.f32.mrb[0].mxu0
  %v1277 = vadd.f32 %v1180, %v1276
  %v1278 = vpop.f32.mrb[0].mxu0
  %v1279 = vpop.f32.mrb[0].mxu0
  %v1280 = vadd.f32 %v1183, %v1279
  %v1281 = vpop.f32.mrb[0].mxu0
  %1282 = vmatprep.mubr.bf16.mxu0 %v583
  %1283 = vmatmul.mubr.bf16.gmra.mrb[0].mxu0 %v582
  %v1284 = vpop.f32.mrb[0].mxu0
  %v1285 = vadd.f32 %v1188, %v1284
  %v1286 = vpop.f32.mrb[0].mxu0
  %v1287 = vpop.f32.mrb[0].mxu0
  %v1288 = vadd.f32 %v1191, %v1287
  %v1289 = vpop.f32.mrb[0].mxu0
  %1290 = vmatprep.mubr.bf16.mxu0 %v592
  %1291 = vmatmul.mubr.bf16.gmra.mrb[0].mxu0 %v591
  %v1292 = vpop.f32.mrb[0].mxu0
  %v1293 = vadd.f32 %v1196, %v1292
  %v1294 = vpop.f32.mrb[0].mxu0
  %v1295 = vpop.f32.mrb[0].mxu0
  %v1296 = vadd.f32 %v1199, %v1295
  %v1297 = vpop.f32.mrb[0].mxu0
  %1298 = vmatprep.mubr.bf16.mxu0 %v601
  %1299 = vmatmul.mubr.bf16.gmra.mrb[0].mxu0 %v600
  %v1300 = vpop.f32.mrb[0].mxu0
  %v1301 = vadd.f32 %v1204, %v1300
  %v1302 = vpop.f32.mrb[0].mxu0
  %v1303 = vpop.f32.mrb[0].mxu0
  %v1304 = vadd.f32 %v1207, %v1303
  %v1305 = vpop.f32.mrb[0].mxu0
  %1306 = vmatprep.mubr.bf16.mxu0 %v610
  %1307 = vmatmul.mubr.bf16.gmra.mrb[0].mxu0 %v609
  %v1308 = vpop.f32.mrb[0].mxu0
  %v1309 = vadd.f32 %v1212, %v1308
  %v1310 = vpop.f32.mrb[0].mxu0
  %v1311 = vpop.f32.mrb[0].mxu0
  %v1312 = vadd.f32 %v1215, %v1311
  %v1313 = vpop.f32.mrb[0].mxu0
  %1314 = vmatprep.mubr.bf16.mxu0 %v619
  %1315 = vmatmul.mubr.bf16.gmra.mrb[0].mxu0 %v618
  %v1316 = vpop.f32.mrb[0].mxu0
  %v1317 = vadd.f32 %v1220, %v1316
  %v1318 = vpop.f32.mrb[0].mxu0
  %v1319 = vpop.f32.mrb[0].mxu0
  %v1320 = vadd.f32 %v1223, %v1319
  %v1321 = vpop.f32.mrb[0].mxu0
  %1322 = vdwg.mxu0
  %1323 = vmatprep.subr.bf16.mxu0 0
  %1324 = vmatpush1.bf16.msra.mxu0 %v1017
  %1325 = vmatprep.subr.bf16.mxu0 0
  %1326 = vmatpush1.bf16.msra.mxu0 %v1018
  %1327 = vmatprep.subr.bf16.mxu0 0
  %1328 = vmatpush1.bf16.msra.mxu0 %v1019
  %1329 = vmatprep.subr.bf16.mxu0 0
  %1330 = vmatpush1.bf16.msra.mxu0 %v1020
  %1331 = vmatprep.subr.bf16.mxu0 0
  %1332 = vmatpush1.bf16.msra.mxu0 %v1021
  %1333 = vmatprep.subr.bf16.mxu0 0
  %1334 = vmatpush1.bf16.msra.mxu0 %v1022
  %1335 = vmatprep.subr.bf16.mxu0 0
  %1336 = vmatpush1.bf16.msra.mxu0 %v1023
  %1337 = vmatprep.subr.bf16.mxu0 0
  %1338 = vmatpush1.bf16.msra.mxu0 %v1024
  %1339 = vmatprep.subr.bf16.mxu0 0
  %1340 = vmatpush1.bf16.msra.mxu0 %v1025
  %1341 = vmatprep.subr.bf16.mxu0 0
  %1342 = vmatpush1.bf16.msra.mxu0 %v1026
  %1343 = vmatprep.subr.bf16.mxu0 0
  %1344 = vmatpush1.bf16.msra.mxu0 %v1027
  %1345 = vmatprep.subr.bf16.mxu0 0
  %1346 = vmatpush1.bf16.msra.mxu0 %v1028
  %1347 = vmatprep.subr.bf16.mxu0 0
  %1348 = vmatpush1.bf16.msra.mxu0 %v1029
  %1349 = vmatprep.subr.bf16.mxu0 0
  %1350 = vmatpush1.bf16.msra.mxu0 %v1030
  %1351 = vmatprep.subr.bf16.mxu0 0
  %1352 = vmatpush1.bf16.msra.mxu0 %v1031
  %1353 = vmatprep.subr.bf16.mxu0 0
  %1354 = vmatpush1.bf16.msra.mxu0 %v1032
  %1355 = vmatprep.mubr.bf16.mxu0 %v558
  %1356 = vmatmul.mubr.bf16.gmra.mrb[0].mxu0 %v557
  %v1357 = vpop.f32.mrb[0].mxu0
  %v1358 = vadd.f32 %v1261, %v1357
  %v1359 = vpop.f32.mrb[0].mxu0
  %v1360 = vpop.f32.mrb[0].mxu0
  %v1361 = vadd.f32 %v1264, %v1360
  %v1362 = vpop.f32.mrb[0].mxu0
  %1363 = vmatprep.mubr.bf16.mxu0 %v567
  %1364 = vmatmul.mubr.bf16.gmra.mrb[0].mxu0 %v566
  %v1365 = vpop.f32.mrb[0].mxu0
  %v1366 = vadd.f32 %v1269, %v1365
  %v1367 = vpop.f32.mrb[0].mxu0
  %v1368 = vpop.f32.mrb[0].mxu0
  %v1369 = vadd.f32 %v1272, %v1368
  %v1370 = vpop.f32.mrb[0].mxu0
  %1371 = vmatprep.mubr.bf16.mxu0 %v576
  %1372 = vmatmul.mubr.bf16.gmra.mrb[0].mxu0 %v575
  %v1373 = vpop.f32.mrb[0].mxu0
  %v1374 = vadd.f32 %v1277, %v1373
  %v1375 = vpop.f32.mrb[0].mxu0
  %v1376 = vpop.f32.mrb[0].mxu0
  %v1377 = vadd.f32 %v1280, %v1376
  %v1378 = vpop.f32.mrb[0].mxu0
  %1379 = vmatprep.mubr.bf16.mxu0 %v585
  %1380 = vmatmul.mubr.bf16.gmra.mrb[0].mxu0 %v584
  %v1381 = vpop.f32.mrb[0].mxu0
  %v1382 = vadd.f32 %v1285, %v1381
  %v1383 = vpop.f32.mrb[0].mxu0
  %v1384 = vpop.f32.mrb[0].mxu0
  %v1385 = vadd.f32 %v1288, %v1384
  %v1386 = vpop.f32.mrb[0].mxu0
  %1387 = vmatprep.mubr.bf16.mxu0 %v594
  %1388 = vmatmul.mubr.bf16.gmra.mrb[0].mxu0 %v593
  %v1389 = vpop.f32.mrb[0].mxu0
  %v1390 = vadd.f32 %v1293, %v1389
  %v1391 = vpop.f32.mrb[0].mxu0
  %v1392 = vpop.f32.mrb[0].mxu0
  %v1393 = vadd.f32 %v1296, %v1392
  %v1394 = vpop.f32.mrb[0].mxu0
  %1395 = vmatprep.mubr.bf16.mxu0 %v603
  %1396 = vmatmul.mubr.bf16.gmra.mrb[0].mxu0 %v602
  %v1397 = vpop.f32.mrb[0].mxu0
  %v1398 = vadd.f32 %v1301, %v1397
  %v1399 = vpop.f32.mrb[0].mxu0
  %v1400 = vpop.f32.mrb[0].mxu0
  %v1401 = vadd.f32 %v1304, %v1400
  %v1402 = vpop.f32.mrb[0].mxu0
  %1403 = vmatprep.mubr.bf16.mxu0 %v612
  %1404 = vmatmul.mubr.bf16.gmra.mrb[0].mxu0 %v611
  %v1405 = vpop.f32.mrb[0].mxu0
  %v1406 = vadd.f32 %v1309, %v1405
  %v1407 = vpop.f32.mrb[0].mxu0
  %v1408 = vpop.f32.mrb[0].mxu0
  %v1409 = vadd.f32 %v1312, %v1408
  %v1410 = vpop.f32.mrb[0].mxu0
  %1411 = vmatprep.mubr.bf16.mxu0 %v621
  %1412 = vmatmul.mubr.bf16.gmra.mrb[0].mxu0 %v620
  %v1413 = vpop.f32.mrb[0].mxu0
  %v1414 = vadd.f32 %v1317, %v1413
  %v1415 = vpop.f32.mrb[0].mxu0
  %v1416 = vpop.f32.mrb[0].mxu0
  %v1417 = vadd.f32 %v1320, %v1416
  %v1418 = vpop.f32.mrb[0].mxu0
  %1419 = vdwg.mxu0
  %1420 = vmatprep.subr.bf16.mxu0 0
  %1421 = vmatpush1.bf16.msra.mxu0 %v1033
  %1422 = vmatprep.subr.bf16.mxu0 0
  %1423 = vmatpush1.bf16.msra.mxu0 %v1034
  %1424 = vmatprep.subr.bf16.mxu0 0
  %1425 = vmatpush1.bf16.msra.mxu0 %v1035
  %1426 = vmatprep.subr.bf16.mxu0 0
  %1427 = vmatpush1.bf16.msra.mxu0 %v1036
  %1428 = vmatprep.subr.bf16.mxu0 0
  %1429 = vmatpush1.bf16.msra.mxu0 %v1037
  %1430 = vmatprep.subr.bf16.mxu0 0
  %1431 = vmatpush1.bf16.msra.mxu0 %v1038
  %1432 = vmatprep.subr.bf16.mxu0 0
  %1433 = vmatpush1.bf16.msra.mxu0 %v1039
  %1434 = vmatprep.subr.bf16.mxu0 0
  %1435 = vmatpush1.bf16.msra.mxu0 %v1040
  %1436 = vmatprep.subr.bf16.mxu0 0
  %1437 = vmatpush1.bf16.msra.mxu0 %v1041
  %1438 = vmatprep.subr.bf16.mxu0 0
  %1439 = vmatpush1.bf16.msra.mxu0 %v1042
  %1440 = vmatprep.subr.bf16.mxu0 0
  %1441 = vmatpush1.bf16.msra.mxu0 %v1043
  %1442 = vmatprep.subr.bf16.mxu0 0
  %1443 = vmatpush1.bf16.msra.mxu0 %v1044
  %1444 = vmatprep.subr.bf16.mxu0 0
  %1445 = vmatpush1.bf16.msra.mxu0 %v1045
  %1446 = vmatprep.subr.bf16.mxu0 0
  %1447 = vmatpush1.bf16.msra.mxu0 %v1046
  %1448 = vmatprep.subr.bf16.mxu0 0
  %1449 = vmatpush1.bf16.msra.mxu0 %v1047
  %1450 = vmatprep.subr.bf16.mxu0 0
  %1451 = vmatpush1.bf16.msra.mxu0 %v1048
  %1452 = vmatprep.mubr.bf16.mxu0 %v560
  %1453 = vmatmul.mubr.bf16.gmra.mrb[0].mxu0 %v559
  %v1454 = vpop.f32.mrb[0].mxu0
  %v1455 = vadd.f32 %v1358, %v1454
  %v1456 = vpop.f32.mrb[0].mxu0
  %v1457 = vpop.f32.mrb[0].mxu0
  %v1458 = vadd.f32 %v1361, %v1457
  %v1459 = vpop.f32.mrb[0].mxu0
  %1460 = vmatprep.mubr.bf16.mxu0 %v569
  %1461 = vmatmul.mubr.bf16.gmra.mrb[0].mxu0 %v568
  %v1462 = vpop.f32.mrb[0].mxu0
  %v1463 = vadd.f32 %v1366, %v1462
  %v1464 = vpop.f32.mrb[0].mxu0
  %v1465 = vpop.f32.mrb[0].mxu0
  %v1466 = vadd.f32 %v1369, %v1465
  %v1467 = vpop.f32.mrb[0].mxu0
  %1468 = vmatprep.mubr.bf16.mxu0 %v578
  %1469 = vmatmul.mubr.bf16.gmra.mrb[0].mxu0 %v577
  %v1470 = vpop.f32.mrb[0].mxu0
  %v1471 = vadd.f32 %v1374, %v1470
  %v1472 = vpop.f32.mrb[0].mxu0
  %v1473 = vpop.f32.mrb[0].mxu0
  %v1474 = vadd.f32 %v1377, %v1473
  %v1475 = vpop.f32.mrb[0].mxu0
  %1476 = vmatprep.mubr.bf16.mxu0 %v587
  %1477 = vmatmul.mubr.bf16.gmra.mrb[0].mxu0 %v586
  %v1478 = vpop.f32.mrb[0].mxu0
  %v1479 = vadd.f32 %v1382, %v1478
  %v1480 = vpop.f32.mrb[0].mxu0
  %v1481 = vpop.f32.mrb[0].mxu0
  %v1482 = vadd.f32 %v1385, %v1481
  %v1483 = vpop.f32.mrb[0].mxu0
  %1484 = vmatprep.mubr.bf16.mxu0 %v596
  %1485 = vmatmul.mubr.bf16.gmra.mrb[0].mxu0 %v595
  %v1486 = vpop.f32.mrb[0].mxu0
  %v1487 = vadd.f32 %v1390, %v1486
  %v1488 = vpop.f32.mrb[0].mxu0
  %v1489 = vpop.f32.mrb[0].mxu0
  %v1490 = vadd.f32 %v1393, %v1489
  %v1491 = vpop.f32.mrb[0].mxu0
  %1492 = vmatprep.mubr.bf16.mxu0 %v605
  %1493 = vmatmul.mubr.bf16.gmra.mrb[0].mxu0 %v604
  %v1494 = vpop.f32.mrb[0].mxu0
  %v1495 = vadd.f32 %v1398, %v1494
  %v1496 = vpop.f32.mrb[0].mxu0
  %v1497 = vpop.f32.mrb[0].mxu0
  %v1498 = vadd.f32 %v1401, %v1497
  %v1499 = vpop.f32.mrb[0].mxu0
  %1500 = vmatprep.mubr.bf16.mxu0 %v614
  %1501 = vmatmul.mubr.bf16.gmra.mrb[0].mxu0 %v613
  %v1502 = vpop.f32.mrb[0].mxu0
  %v1503 = vadd.f32 %v1406, %v1502
  %v1504 = vpop.f32.mrb[0].mxu0
  %v1505 = vpop.f32.mrb[0].mxu0
  %v1506 = vadd.f32 %v1409, %v1505
  %v1507 = vpop.f32.mrb[0].mxu0
  %1508 = vmatprep.mubr.bf16.mxu0 %v623
  %1509 = vmatmul.mubr.bf16.gmra.mrb[0].mxu0 %v622
  %v1510 = vpop.f32.mrb[0].mxu0
  %v1511 = vadd.f32 %v1414, %v1510
  %v1512 = vpop.f32.mrb[0].mxu0
  %v1513 = vpop.f32.mrb[0].mxu0
  %v1514 = vadd.f32 %v1417, %v1513
  %v1515 = vpop.f32.mrb[0].mxu0
  %1516 = vdwg.mxu0
  %1517 = vmatprep.subr.bf16.mxu0 0
  %1518 = vmatpush1.bf16.msra.mxu0 %v1049
  %1519 = vmatprep.subr.bf16.mxu0 0
  %1520 = vmatpush1.bf16.msra.mxu0 %v1050
  %1521 = vmatprep.subr.bf16.mxu0 0
  %1522 = vmatpush1.bf16.msra.mxu0 %v1051
  %1523 = vmatprep.subr.bf16.mxu0 0
  %1524 = vmatpush1.bf16.msra.mxu0 %v1052
  %1525 = vmatprep.subr.bf16.mxu0 0
  %1526 = vmatpush1.bf16.msra.mxu0 %v1053
  %1527 = vmatprep.subr.bf16.mxu0 0
  %1528 = vmatpush1.bf16.msra.mxu0 %v1054
  %1529 = vmatprep.subr.bf16.mxu0 0
  %1530 = vmatpush1.bf16.msra.mxu0 %v1055
  %1531 = vmatprep.subr.bf16.mxu0 0
  %1532 = vmatpush1.bf16.msra.mxu0 %v1056
  %1533 = vmatprep.subr.bf16.mxu0 0
  %1534 = vmatpush1.bf16.msra.mxu0 0
  %1535 = vmatprep.subr.bf16.mxu0 0
  %1536 = vmatpush1.bf16.msra.mxu0 0
  %1537 = vmatprep.subr.bf16.mxu0 0
  %1538 = vmatpush1.bf16.msra.mxu0 0
  %1539 = vmatprep.subr.bf16.mxu0 0
  %1540 = vmatpush1.bf16.msra.mxu0 0
  %1541 = vmatprep.subr.bf16.mxu0 0
  %1542 = vmatpush1.bf16.msra.mxu0 0
  %1543 = vmatprep.subr.bf16.mxu0 0
  %1544 = vmatpush1.bf16.msra.mxu0 0
  %1545 = vmatprep.subr.bf16.mxu0 0
  %1546 = vmatpush1.bf16.msra.mxu0 0
  %1547 = vmatprep.subr.bf16.mxu0 0
  %1548 = vmatpush1.bf16.msra.mxu0 0
  %1549 = vmatprep.mubr.bf16.mxu0 0
  %1550 = vmatmul.mubr.bf16.gmra.mrb[0].mxu0 %v561
  %v1551 = vpop.f32.mrb[0].mxu0
  %v1552 = vadd.f32 %v1455, %v1551
  %v1553 = vpop.f32.mrb[0].mxu0
  %v1554 = vpop.f32.mrb[0].mxu0
  %v1555 = vadd.f32 %v1458, %v1554
  %v1556 = vpop.f32.mrb[0].mxu0
  %1557 = vmatprep.mubr.bf16.mxu0 0
  %1558 = vmatmul.mubr.bf16.gmra.mrb[0].mxu0 %v570
  %v1559 = vpop.f32.mrb[0].mxu0
  %v1560 = vadd.f32 %v1463, %v1559
  %v1561 = vpop.f32.mrb[0].mxu0
  %v1562 = vpop.f32.mrb[0].mxu0
  %v1563 = vadd.f32 %v1466, %v1562
  %v1564 = vpop.f32.mrb[0].mxu0
  %1565 = vmatprep.mubr.bf16.mxu0 0
  %1566 = vmatmul.mubr.bf16.gmra.mrb[0].mxu0 %v579
  %v1567 = vpop.f32.mrb[0].mxu0
  %v1568 = vadd.f32 %v1471, %v1567
  %v1569 = vpop.f32.mrb[0].mxu0
  %v1570 = vpop.f32.mrb[0].mxu0
  %v1571 = vadd.f32 %v1474, %v1570
  %v1572 = vpop.f32.mrb[0].mxu0
  %1573 = vmatprep.mubr.bf16.mxu0 0
  %1574 = vmatmul.mubr.bf16.gmra.mrb[0].mxu0 %v588
  %v1575 = vpop.f32.mrb[0].mxu0
  %v1576 = vadd.f32 %v1479, %v1575
  %v1577 = vpop.f32.mrb[0].mxu0
  %v1578 = vpop.f32.mrb[0].mxu0
  %v1579 = vadd.f32 %v1482, %v1578
  %v1580 = vpop.f32.mrb[0].mxu0
  %1581 = vmatprep.mubr.bf16.mxu0 0
  %1582 = vmatmul.mubr.bf16.gmra.mrb[0].mxu0 %v597
  %v1583 = vpop.f32.mrb[0].mxu0
  %v1584 = vadd.f32 %v1487, %v1583
  %v1585 = vpop.f32.mrb[0].mxu0
  %v1586 = vpop.f32.mrb[0].mxu0
  %v1587 = vadd.f32 %v1490, %v1586
  %v1588 = vpop.f32.mrb[0].mxu0
  %1589 = vmatprep.mubr.bf16.mxu0 0
  %1590 = vmatmul.mubr.bf16.gmra.mrb[0].mxu0 %v606
  %v1591 = vpop.f32.mrb[0].mxu0
  %v1592 = vadd.f32 %v1495, %v1591
  %v1593 = vpop.f32.mrb[0].mxu0
  %v1594 = vpop.f32.mrb[0].mxu0
  %v1595 = vadd.f32 %v1498, %v1594
  %v1596 = vpop.f32.mrb[0].mxu0
  %1597 = vmatprep.mubr.bf16.mxu0 0
  %1598 = vmatmul.mubr.bf16.gmra.mrb[0].mxu0 %v615
  %v1599 = vpop.f32.mrb[0].mxu0
  %v1600 = vadd.f32 %v1503, %v1599
  %v1601 = vpop.f32.mrb[0].mxu0
  %v1602 = vpop.f32.mrb[0].mxu0
  %v1603 = vadd.f32 %v1506, %v1602
  %v1604 = vpop.f32.mrb[0].mxu0
  %1605 = vmatprep.mubr.bf16.mxu0 0
  %1606 = vmatmul.mubr.bf16.gmra.mrb[0].mxu0 %v624
  %v1607 = vpop.f32.mrb[0].mxu0
  %v1608 = vadd.f32 %v1511, %v1607
  %v1609 = vpop.f32.mrb[0].mxu0
  %v1610 = vpop.f32.mrb[0].mxu0
  %v1611 = vadd.f32 %v1514, %v1610
  %v1612 = vpop.f32.mrb[0].mxu0
  %1613 = vdwg.mxu0
  %v1614 = vld [vmem:[%s3] sm:$0xf]
  %v1615 = vld [vmem:[%s3 + $0x4] sm:$0xf]
  %v1616 = vld [vmem:[%s3 + $0x8] sm:$0xf]
  %v1617 = vld [vmem:[%s3 + $0xc] sm:$0xf]
  %v1618 = vld [vmem:[%s3 + $0x10] sm:$0xf]
  %v1619 = vld [vmem:[%s3 + $0x14] sm:$0xf]
  %v1620 = vld [vmem:[%s3 + $0x18] sm:$0xf]
  %v1621 = vld [vmem:[%s3 + $0x1c] sm:$0xf]
  %v1622 = vld [vmem:[%s3 + $0x20] sm:$0xf]
  %v1623 = vld [vmem:[%s3 + $0x24] sm:$0xf]
  %v1624 = vld [vmem:[%s3 + $0x28] sm:$0xf]
  %v1625 = vld [vmem:[%s3 + $0x2c] sm:$0xf]
  %v1626 = vld [vmem:[%s3 + $0x30] sm:$0xf]
  %v1627 = vld [vmem:[%s3 + $0x34] sm:$0xf]
  %v1628 = vld [vmem:[%s3 + $0x38] sm:$0xf]
  %v1629 = vld [vmem:[%s3 + $0x3c] sm:$0xf]
  %v1630 = vunpack.c.l.bf16 %v1614
  %v1631 = vunpack.c.l.bf16 %v1615
  %v1632 = vunpack.c.l.bf16 %v1616
  %v1633 = vunpack.c.l.bf16 %v1617
  %v1634 = vunpack.c.l.bf16 %v1618
  %v1635 = vunpack.c.l.bf16 %v1619
  %v1636 = vunpack.c.l.bf16 %v1620
  %v1637 = vunpack.c.l.bf16 %v1621
  %v1638 = vunpack.c.l.bf16 %v1622
  %v1639 = vunpack.c.l.bf16 %v1623
  %v1640 = vunpack.c.l.bf16 %v1624
  %v1641 = vunpack.c.l.bf16 %v1625
  %v1642 = vunpack.c.l.bf16 %v1626
  %v1643 = vunpack.c.l.bf16 %v1627
  %v1644 = vunpack.c.l.bf16 %v1628
  %v1645 = vunpack.c.l.bf16 %v1629
  %v1646 = vadd.f32 %v1552, %v1630
  %v1647 = vadd.f32 %v1555, %v1631
  %v1648 = vadd.f32 %v1560, %v1632
  %v1649 = vadd.f32 %v1563, %v1633
  %v1650 = vadd.f32 %v1568, %v1634
  %v1651 = vadd.f32 %v1571, %v1635
  %v1652 = vadd.f32 %v1576, %v1636
  %v1653 = vadd.f32 %v1579, %v1637
  %v1654 = vadd.f32 %v1584, %v1638
  %v1655 = vadd.f32 %v1587, %v1639
  %v1656 = vadd.f32 %v1592, %v1640
  %v1657 = vadd.f32 %v1595, %v1641
  %v1658 = vadd.f32 %v1600, %v1642
  %v1659 = vadd.f32 %v1603, %v1643
  %v1660 = vadd.f32 %v1608, %v1644
  %v1661 = vadd.f32 %v1611, %v1645
  %v1662 = vpack.c.bf16 %v1647, %v1646
  %v1663 = vpack.c.bf16 %v1649, %v1648
  %v1664 = vpack.c.bf16 %v1651, %v1650
  %v1665 = vpack.c.bf16 %v1653, %v1652
  %v1666 = vpack.c.bf16 %v1655, %v1654
  %v1667 = vpack.c.bf16 %v1657, %v1656
  %v1668 = vpack.c.bf16 %v1659, %v1658
  %v1669 = vpack.c.bf16 %v1661, %v1660
  %v1678 = vunpack.c.l.b16 %v1662
  %v1679 = vunpack.c.h.b16 %v1662
  %v1680 = vunpack.c.l.b16 %v1663
  %v1681 = vunpack.c.h.b16 %v1663
  %v1682 = vunpack.c.l.b16 %v1664
  %v1683 = vunpack.c.h.b16 %v1664
  %v1684 = vunpack.c.l.b16 %v1665
  %v1685 = vunpack.c.h.b16 %v1665
  %v1686 = vunpack.c.l.b16 %v1666
  %v1687 = vunpack.c.h.b16 %v1666
  %v1688 = vunpack.c.l.b16 %v1667
  %v1689 = vunpack.c.h.b16 %v1667
  %v1690 = vunpack.c.l.b16 %v1668
  %v1691 = vunpack.c.h.b16 %v1668
  %v1692 = vunpack.c.l.b16 %v1669
  %v1693 = vunpack.c.h.b16 %v1669
  %v1694 = vpack.c.b16 %v1678, %v1678
  %v1695 = vpack.c.b16 %v1679, %v1679
  %v1696 = vpack.c.b16 %v1680, %v1680
  %v1697 = vpack.c.b16 %v1681, %v1681
  %v1698 = vpack.c.b16 %v1682, %v1682
  %v1699 = vpack.c.b16 %v1683, %v1683
  %v1700 = vpack.c.b16 %v1684, %v1684
  %v1701 = vpack.c.b16 %v1685, %v1685
  %v1702 = vpack.c.b16 %v1686, %v1686
  %v1703 = vpack.c.b16 %v1687, %v1687
  %v1704 = vpack.c.b16 %v1688, %v1688
  %v1705 = vpack.c.b16 %v1689, %v1689
  %v1706 = vpack.c.b16 %v1690, %v1690
  %v1707 = vpack.c.b16 %v1691, %v1691
  %v1708 = vpack.c.b16 %v1692, %v1692
  %v1709 = vpack.c.b16 %v1693, %v1693
  %1726 = vst [vmem:[%s4] sm:$0xf] %v1694
  %1727 = vst [vmem:[%s4 + $0x4] sm:$0xf] %v1695
  %1728 = vst [vmem:[%s4 + $0x8] sm:$0xf] %v1696
  %1729 = vst [vmem:[%s4 + $0xc] sm:$0xf] %v1697
  %1730 = vst [vmem:[%s4 + $0x10] sm:$0xf] %v1698
  %1731 = vst [vmem:[%s4 + $0x14] sm:$0xf] %v1699
  %1732 = vst [vmem:[%s4 + $0x18] sm:$0xf] %v1700
  %1733 = vst [vmem:[%s4 + $0x1c] sm:$0xf] %v1701
  %1734 = vst [vmem:[%s4 + $0x20] sm:$0xf] %v1702
  %1735 = vst [vmem:[%s4 + $0x24] sm:$0xf] %v1703
  %1736 = vst [vmem:[%s4 + $0x28] sm:$0xf] %v1704
  %1737 = vst [vmem:[%s4 + $0x2c] sm:$0xf] %v1705
  %1738 = vst [vmem:[%s4 + $0x30] sm:$0xf] %v1706
  %1739 = vst [vmem:[%s4 + $0x34] sm:$0xf] %v1707
  %1740 = vst [vmem:[%s4 + $0x38] sm:$0xf] %v1708
  %1741 = vst [vmem:[%s4 + $0x3c] sm:$0xf] %v1709
  // Predicated region
  $region18: #{discriminator32_forward.18} parent=0 // pred_check
    _
  $region19: #{discriminator32_forward.18} parent=0 // pred_check_branch
    %1743 = sbr.rel (0) target = $region21
  $region20: #{discriminator32_forward.18} parent=0 // pred_region
    _
  $region21: #{discriminator32_forward.18} parent=0 // pred_fallthru
    _
  // Predicated region
  $region22: #{discriminator32_forward.18} parent=0 // pred_check
    _
  $region23: #{discriminator32_forward.18} parent=0 // pred_check_branch
    %1745 = sbr.rel (0) target = $region25
  $region24: #{discriminator32_forward.18} parent=0 // pred_region
    _
  $region25: #{discriminator32_forward.18} parent=0 // pred_fallthru
    _

// kernel: discriminator32_forward.21
$region0: #{discriminator32_forward.21}
  #allocation0 [shape = 'u32[]', space=smem, size = 0x4, offset = 0x4, fixed_abs, tag = 'smem constant byte address 0x4 - core index']
  #allocation1 [shape = 'u32[144,128]{1,0:T(1,128)}', space=vmem, size = 0x12000, scoped, tag = 'internal scratch']
  %s0 = inlined_call_operand.vmem [shape: bf16[8,128], index: 0, kind: input, shape index: {}]
  %s1 = inlined_call_operand.vmem [shape: bf16[128,128], index: 1, kind: input, shape index: {}]
  %s2 = inlined_call_operand.vmem [shape: f32[1,128], index: 2, kind: input, shape index: {}]
  %s3 = inlined_call_operand.vmem [shape: f32[8,128], index: 3, kind: output, shape index: {}]
  %s4 = sld [smem:[#allocation0]]
  $region22: #{discriminator32_forward.21} parent=0
    _
  %s6 = ssub.s32 1, %s4
  %s7 = scalar_select 0, %s6, %s4
  // Predicated region
  $region2: #{discriminator32_forward.21} parent=0 // pred_check
    _
  $region3: #{discriminator32_forward.21} parent=0 // pred_check_branch
    %9 = sbr.rel (0) target = $region5
  $region4: #{discriminator32_forward.21} parent=0 // pred_region
    _
  $region5: #{discriminator32_forward.21} parent=0 // pred_fallthru
    _
  // Predicated region
  $region6: #{discriminator32_forward.21} parent=0 // pred_check
    _
  $region7: #{discriminator32_forward.21} parent=0 // pred_check_branch
    %11 = sbr.rel (0) target = $region9
  $region8: #{discriminator32_forward.21} parent=0 // pred_region
    _
  $region9: #{discriminator32_forward.21} parent=0 // pred_fallthru
    _
  // Predicated region
  $region10: #{discriminator32_forward.21} parent=0 // pred_check
    _
  $region11: #{discriminator32_forward.21} parent=0 // pred_check_branch
    %13 = sbr.rel (0) target = $region13
  $region12: #{discriminator32_forward.21} parent=0 // pred_region
    _
  $region13: #{discriminator32_forward.21} parent=0 // pred_fallthru
    _
  %v15 = vld [vmem:[%s0] sm:$0xf]
  %v16 = vld [vmem:[%s1] sm:$0xf]
  %v17 = vld [vmem:[%s1 + $0x4] sm:$0xf]
  %v18 = vld [vmem:[%s1 + $0x8] sm:$0xf]
  %v19 = vld [vmem:[%s1 + $0xc] sm:$0xf]
  %v20 = vld [vmem:[%s1 + $0x10] sm:$0xf]
  %v21 = vld [vmem:[%s1 + $0x14] sm:$0xf]
  %v22 = vld [vmem:[%s1 + $0x18] sm:$0xf]
  %v23 = vld [vmem:[%s1 + $0x1c] sm:$0xf]
  %v24 = vld [vmem:[%s1 + $0x20] sm:$0xf]
  %v25 = vld [vmem:[%s1 + $0x24] sm:$0xf]
  %v26 = vld [vmem:[%s1 + $0x28] sm:$0xf]
  %v27 = vld [vmem:[%s1 + $0x2c] sm:$0xf]
  %v28 = vld [vmem:[%s1 + $0x30] sm:$0xf]
  %v29 = vld [vmem:[%s1 + $0x34] sm:$0xf]
  %v30 = vld [vmem:[%s1 + $0x38] sm:$0xf]
  %v31 = vld [vmem:[%s1 + $0x3c] sm:$0xf]
  %v32 = vld [vmem:[%s2] sm:$0x1]
  %v34 = vlaneseq
  %v35 = vshrl.u32 %v34, 7
  %v36 = vsub.s32 0, %v35
  %v37 = vrot.slane %v32, %v36
  %v55 = vunpack.c.l.b16 %v16
  %v56 = vunpack.c.l.b16 %v17
  %v57 = vunpack.c.l.b16 %v18
  %v58 = vunpack.c.l.b16 %v19
  %v59 = vunpack.c.l.b16 %v20
  %v60 = vunpack.c.l.b16 %v21
  %v61 = vunpack.c.l.b16 %v22
  %v62 = vunpack.c.l.b16 %v23
  %v63 = vunpack.c.l.b16 %v24
  %v64 = vunpack.c.l.b16 %v25
  %v65 = vunpack.c.l.b16 %v26
  %v66 = vunpack.c.l.b16 %v27
  %v67 = vunpack.c.l.b16 %v28
  %v68 = vunpack.c.l.b16 %v29
  %v69 = vunpack.c.l.b16 %v30
  %v70 = vunpack.c.l.b16 %v31
  %v71 = vpack.c.b16 %v56, %v55
  %v72 = vpack.c.b16 %v58, %v57
  %v73 = vpack.c.b16 %v60, %v59
  %v74 = vpack.c.b16 %v62, %v61
  %v75 = vpack.c.b16 %v64, %v63
  %v76 = vpack.c.b16 %v66, %v65
  %v77 = vpack.c.b16 %v68, %v67
  %v78 = vpack.c.b16 %v70, %v69
  %87 = vmatprep.subr.bf16.mxu0 0
  %88 = vmatpush1.bf16.msra.mxu0 %v71
  %89 = vmatprep.subr.bf16.mxu0 0
  %90 = vmatpush1.bf16.msra.mxu0 %v72
  %91 = vmatprep.subr.bf16.mxu0 0
  %92 = vmatpush1.bf16.msra.mxu0 %v73
  %93 = vmatprep.subr.bf16.mxu0 0
  %94 = vmatpush1.bf16.msra.mxu0 %v74
  %95 = vmatprep.subr.bf16.mxu0 0
  %96 = vmatpush1.bf16.msra.mxu0 %v75
  %97 = vmatprep.subr.bf16.mxu0 0
  %98 = vmatpush1.bf16.msra.mxu0 %v76
  %99 = vmatprep.subr.bf16.mxu0 0
  %100 = vmatpush1.bf16.msra.mxu0 %v77
  %101 = vmatprep.subr.bf16.mxu0 0
  %102 = vmatpush1.bf16.msra.mxu0 %v78
  %103 = vmatprep.subr.bf16.mxu0 0
  %104 = vmatpush1.bf16.msra.mxu0 0
  %105 = vmatprep.subr.bf16.mxu0 0
  %106 = vmatpush1.bf16.msra.mxu0 0
  %107 = vmatprep.subr.bf16.mxu0 0
  %108 = vmatpush1.bf16.msra.mxu0 0
  %109 = vmatprep.subr.bf16.mxu0 0
  %110 = vmatpush1.bf16.msra.mxu0 0
  %111 = vmatprep.subr.bf16.mxu0 0
  %112 = vmatpush1.bf16.msra.mxu0 0
  %113 = vmatprep.subr.bf16.mxu0 0
  %114 = vmatpush1.bf16.msra.mxu0 0
  %115 = vmatprep.subr.bf16.mxu0 0
  %116 = vmatpush1.bf16.msra.mxu0 0
  %117 = vmatprep.subr.bf16.mxu0 0
  %118 = vmatpush1.bf16.msra.mxu0 0
  %119 = vmatprep.mubr.bf16.mxu0 0
  %120 = vmatmul.mubr.bf16.gmra.mrb[0].mxu0 %v15
  %v121 = vpop.f32.mrb[0].mxu0
  %v122 = vadd.f32 %v37, %v121
  %v123 = vpop.f32.mrb[0].mxu0
  %v124 = vpop.f32.mrb[0].mxu0
  %v125 = vpop.f32.mrb[0].mxu0
  %126 = vdwg.mxu0
  %127 = vst [vmem:[%s3] sm:$0xff] %v122
  // Predicated region
  $region14: #{discriminator32_forward.21} parent=0 // pred_check
    _
  $region15: #{discriminator32_forward.21} parent=0 // pred_check_branch
    %129 = sbr.rel (0) target = $region17
  $region16: #{discriminator32_forward.21} parent=0 // pred_region
    _
  $region17: #{discriminator32_forward.21} parent=0 // pred_fallthru
    _
  // Predicated region
  $region18: #{discriminator32_forward.21} parent=0 // pred_check
    _
  $region19: #{discriminator32_forward.21} parent=0 // pred_check_branch
    %131 = sbr.rel (0) target = $region21
  $region20: #{discriminator32_forward.21} parent=0 // pred_region
    _
  $region21: #{discriminator32_forward.21} parent=0 // pred_fallthru
    _

</llo_original>
